<compile_context>
chip_gen: v6e
topology: v6e:2x2x1
jax: 0.10.0
libtpu: 0.0.40
codegen_flags: <defaults>
</compile_context>

<pallas_src>
import jax
import jax.numpy as jnp
from jax import lax
from jax.experimental import pallas as pl
from jax.experimental.pallas import tpu as pltpu

HIDDEN_SIZE = 128
INPUT_SIZE = 40
NEG_SLOPE = 0.01          # F.leaky_relu default
LOGIT_DIM = 2
LOGIT_PAD = 128           # lane-dense padded fc3 width (inside the hoisted MLP kernel)
ROW_TILE = 128            # row tile for the parallel (non-recurrent) kernels
MAX_T_CHUNK = 16          # timesteps processed per grid step of the recurrence


def _leaky_relu(x):
    return jnp.where(x > 0, x, NEG_SLOPE * x)


def _pick_chunk(T, max_chunk=MAX_T_CHUNK):
    """Largest chunk <= max_chunk that divides T (keeps the grid exact)."""
    for c in range(min(max_chunk, T), 0, -1):
        if T % c == 0:
            return c
    return 1


def _pad_rows(a, tile):
    rows = a.shape[0]
    pad = (-rows) % tile
    if pad:
        a = jnp.pad(a, ((0, pad), (0, 0)))
    return a, rows


# ----------------------------- kernels ---------------------------------------

def _proj_kernel(x_ref, w_ih_ref, b_i_ref, gi_ref):
    """Row-parallel input projection: (ROW_TILE,40)@(40,3H) + bias -> bf16."""
    acc = jnp.dot(x_ref[...].astype(jnp.bfloat16), w_ih_ref[...],
                  preferred_element_type=jnp.float32)
    gi_ref[...] = (acc + b_i_ref[...]).astype(jnp.bfloat16)


def _gru_kernel(gi_ref, h0_ref, w_hh_ref, b_hn_ref, h_all_ref, h_fin_ref):
    """T_CHUNK GRU steps per grid iteration. Weights VMEM-resident (constant index
    maps); hidden state carried across grid steps in the resident output block."""
    H = HIDDEN_SIZE

    @pl.when(pl.program_id(0) == 0)
    def _():
        h_fin_ref[...] = h0_ref[...]

    def step(i, h):
        gi = gi_ref[i].astype(jnp.float32)                      # (B, 3H)
        gh = jnp.dot(h.astype(jnp.bfloat16), w_hh_ref[...],
                     preferred_element_type=jnp.float32)        # (B, 3H)
        # PyTorch GRU gate order: r, z, n (r/z biases pre-folded into gi).
        r = jax.nn.sigmoid(gi[:, 0:H] + gh[:, 0:H])
        z = jax.nn.sigmoid(gi[:, H:2 * H] + gh[:, H:2 * H])
        n = jnp.tanh(gi[:, 2 * H:] + r * (gh[:, 2 * H:] + b_hn_ref[...]))
        h_new = (1.0 - z) * n + z * h
        h_all_ref[i] = h_new.astype(jnp.bfloat16)
        return h_new

    h_last = lax.fori_loop(0, h_all_ref.shape[0], step, h_fin_ref[...],
                           unroll=True)
    h_fin_ref[...] = h_last


def _mlp_kernel(h_ref, w1_ref, b1_ref, w2_ref, b2_ref, w3_ref, b3_ref, o_ref):
    """Row-parallel MLP head: 128 -> 64 -> 32 -> 2 (fc3 lane-padded to 128)."""
    a1 = _leaky_relu(jnp.dot(h_ref[...], w1_ref[...],
                             preferred_element_type=jnp.float32) + b1_ref[...])
    a2 = _leaky_relu(jnp.dot(a1.astype(jnp.bfloat16), w2_ref[...],
                             preferred_element_type=jnp.float32) + b2_ref[...])
    o_ref[...] = jnp.dot(a2.astype(jnp.bfloat16), w3_ref[...],
                         preferred_element_type=jnp.float32) + b3_ref[...]


# ----------------------------- pallas_call wrappers ---------------------------

def _input_projection(x_flat, w_ih, b_i):
    H = HIDDEN_SIZE
    x_p, rows = _pad_rows(x_flat, ROW_TILE)
    rows_p = x_p.shape[0]
    gi = pl.pallas_call(
        _proj_kernel,
        out_shape=jax.ShapeDtypeStruct((rows_p, 3 * H), jnp.bfloat16),
        grid_spec=pltpu.PrefetchScalarGridSpec(
            num_scalar_prefetch=0,
            grid=(rows_p // ROW_TILE,),
            in_specs=[
                pl.BlockSpec((ROW_TILE, INPUT_SIZE), lambda i: (i, 0)),
                pl.BlockSpec((INPUT_SIZE, 3 * H), lambda i: (0, 0)),
                pl.BlockSpec((1, 3 * H), lambda i: (0, 0)),
            ],
            out_specs=pl.BlockSpec((ROW_TILE, 3 * H), lambda i: (i, 0)),
        ),
        compiler_params=pltpu.CompilerParams(
            dimension_semantics=("parallel",)),
    )(x_p, w_ih, b_i)
    return gi[:rows]


def _gru_recurrence(gi, h0, w_hh, b_hn):
    T, B, _ = gi.shape
    H = HIDDEN_SIZE
    t_chunk = _pick_chunk(T)
    cost = pl.CostEstimate(
        flops=2 * T * B * H * 3 * H,
        transcendentals=3 * T * B * H,
        bytes_accessed=int(T * B * 3 * H * 2 + T * B * H * 2
                           + H * 3 * H * 2 + 2 * B * H * 4),
    )
    h_all, h_final = pl.pallas_call(
        _gru_kernel,
        out_shape=(jax.ShapeDtypeStruct((T, B, H), jnp.bfloat16),
                   jax.ShapeDtypeStruct((B, H), jnp.float32)),
        grid_spec=pltpu.PrefetchScalarGridSpec(
            num_scalar_prefetch=0,
            grid=(T // t_chunk,),
            in_specs=[
                pl.BlockSpec((t_chunk, B, 3 * H), lambda c: (c, 0, 0)),  # gi chunk
                pl.BlockSpec((B, H), lambda c: (0, 0)),                  # h0
                pl.BlockSpec((H, 3 * H), lambda c: (0, 0)),              # w_hh
                pl.BlockSpec((1, H), lambda c: (0, 0)),                  # b_hn
            ],
            out_specs=(
                pl.BlockSpec((t_chunk, B, H), lambda c: (c, 0, 0)),      # h per step
                pl.BlockSpec((B, H), lambda c: (0, 0)),                  # resident carry
            ),
        ),
        compiler_params=pltpu.CompilerParams(
            dimension_semantics=("arbitrary",)),   # sequential recurrence over T
        cost_estimate=cost,
    )(gi, h0, w_hh, b_hn)
    return h_all, h_final


def _mlp_head(h_flat, kp):
    H = HIDDEN_SIZE
    h_p, rows = _pad_rows(h_flat, ROW_TILE)
    rows_p = h_p.shape[0]
    logits_pad = pl.pallas_call(
        _mlp_kernel,
        out_shape=jax.ShapeDtypeStruct((rows_p, LOGIT_PAD), jnp.float32),
        grid_spec=pltpu.PrefetchScalarGridSpec(
            num_scalar_prefetch=0,
            grid=(rows_p // ROW_TILE,),
            in_specs=[
                pl.BlockSpec((ROW_TILE, H), lambda i: (i, 0)),
                pl.BlockSpec((H, H // 2), lambda i: (0, 0)),
                pl.BlockSpec((1, H // 2), lambda i: (0, 0)),
                pl.BlockSpec((H // 2, H // 4), lambda i: (0, 0)),
                pl.BlockSpec((1, H // 4), lambda i: (0, 0)),
                pl.BlockSpec((H // 4, LOGIT_PAD), lambda i: (0, 0)),
                pl.BlockSpec((1, LOGIT_PAD), lambda i: (0, 0)),
            ],
            out_specs=pl.BlockSpec((ROW_TILE, LOGIT_PAD), lambda i: (i, 0)),
        ),
        compiler_params=pltpu.CompilerParams(
            dimension_semantics=("parallel",)),
    )(h_p, kp["w1"], kp["b1"], kp["w2"], kp["b2"], kp["w3"], kp["b3"])
    return logits_pad[:rows, :LOGIT_DIM]


# ----------------------------- parameter handling -----------------------------

def prepare_params(p):
    """f32 params (stored (in,out)) -> kernel layout: bf16 weights, r/z biases folded,
    fc3 lane-padded to 128."""
    H = HIDDEN_SIZE
    b_i = jnp.concatenate(
        [p["b_ih"][:, :2 * H] + p["b_hh"][:, :2 * H],   # combined bias for r, z gates
         p["b_ih"][:, 2 * H:]], axis=1)                 # input-side bias for n gate
    w3_pad = jnp.zeros((H // 4, LOGIT_PAD), jnp.float32).at[:, :LOGIT_DIM].set(p["w3"])
    b3_pad = jnp.zeros((1, LOGIT_PAD), jnp.float32).at[:, :LOGIT_DIM].set(p["b3"])
    return {
        "w_ih": p["w_ih"].astype(jnp.bfloat16),
        "b_i": b_i,
        "w_hh": p["w_hh"].astype(jnp.bfloat16),
        "b_hn": p["b_hh"][:, 2 * H:],
        "w1": p["w1"].astype(jnp.bfloat16), "b1": p["b1"],
        "w2": p["w2"].astype(jnp.bfloat16), "b2": p["b2"],
        "w3": w3_pad.astype(jnp.bfloat16), "b3": b3_pad,
    }


def init_params(key):
    """PyTorch-style uniform(-1/sqrt(fan_in), 1/sqrt(fan_in)); weights stored (in, out)."""
    H = HIDDEN_SIZE
    ks = jax.random.split(key, 10)

    def uni(k, shape, fan_in):
        bound = 1.0 / jnp.sqrt(fan_in)
        return jax.random.uniform(k, shape, jnp.float32, -bound, bound)

    return {
        "w_ih": uni(ks[0], (INPUT_SIZE, 3 * H), H),
        "w_hh": uni(ks[1], (H, 3 * H), H),
        "b_ih": uni(ks[2], (1, 3 * H), H),
        "b_hh": uni(ks[3], (1, 3 * H), H),
        "w1": uni(ks[4], (H, H // 2), H),
        "b1": uni(ks[5], (1, H // 2), H),
        "w2": uni(ks[6], (H // 2, H // 4), H // 2),
        "b2": uni(ks[7], (1, H // 4), H // 2),
        "w3": uni(ks[8], (H // 4, LOGIT_DIM), H // 4),
        "b3": uni(ks[9], (1, LOGIT_DIM), H // 4),
    }


# ----------------------------- forward passes ---------------------------------

def net_forward_seq(x_seq, h0, params):
    """x_seq: (T, B, 40) f32, h0: (B, 128) f32 or None.
    Returns (logits (T, B, 2) f32, h_final (B, 128) f32)."""
    T, B, _ = x_seq.shape
    H = HIDDEN_SIZE
    if h0 is None:
        h0 = jnp.zeros((B, H), jnp.float32)
    kp = prepare_params(params)

    gi = _input_projection(x_seq.reshape(T * B, INPUT_SIZE),
                           kp["w_ih"], kp["b_i"]).reshape(T, B, 3 * H)
    h_all, h_final = _gru_recurrence(gi, h0, kp["w_hh"], kp["b_hn"])
    logits = _mlp_head(h_all.reshape(T * B, H), kp).reshape(T, B, LOGIT_DIM)
    return logits, h_final


def net_forward(x, h, params):
    """Single-step forward matching the PyTorch module: x (B,40), h (B,128) or None."""
    logits, h_new = net_forward_seq(x[None], h, params)
    return logits[0], h_new


def reference_forward_seq(x_seq, h0, params):
    """Pure-JAX reference with the same bf16 weights / f32 math as the kernels."""
    kp = prepare_params(params)
    H = HIDDEN_SIZE
    T, B, _ = x_seq.shape
    bf = jnp.bfloat16

    gi_all = (jnp.dot(x_seq.reshape(T * B, INPUT_SIZE).astype(bf), kp["w_ih"],
                      preferred_element_type=jnp.float32)
              + kp["b_i"]).astype(bf).reshape(T, B, 3 * H)

    def step(h, gi_b16):
        gi = gi_b16.astype(jnp.float32)
        gh = jnp.dot(h.astype(bf), kp["w_hh"], preferred_element_type=jnp.float32)
        r = jax.nn.sigmoid(gi[:, :H] + gh[:, :H])
        z = jax.nn.sigmoid(gi[:, H:2 * H] + gh[:, H:2 * H])
        n = jnp.tanh(gi[:, 2 * H:] + r * (gh[:, 2 * H:] + kp["b_hn"]))
        h_new = (1.0 - z) * n + z * h
        return h_new, h_new.astype(bf)

    h_final, h_seq = lax.scan(step, h0, gi_all)
    hf = h_seq.reshape(T * B, H)
    a1 = _leaky_relu(jnp.dot(hf, kp["w1"], preferred_element_type=jnp.float32) + kp["b1"])
    a2 = _leaky_relu(jnp.dot(a1.astype(bf), kp["w2"],
                             preferred_element_type=jnp.float32) + kp["b2"])
    logits = jnp.dot(a2.astype(bf), kp["w3"],
                     preferred_element_type=jnp.float32) + kp["b3"]
    return logits[:, :LOGIT_DIM].reshape(T, B, LOGIT_DIM), h_final


if __name__ == "__main__":
    key = jax.random.PRNGKey(0)
    kx, kparam = jax.random.split(key)

    B, T = 8, 32
    x_seq = jax.random.normal(kx, (T, B, INPUT_SIZE), jnp.float32)
    h0 = jnp.zeros((B, HIDDEN_SIZE), jnp.float32)   # PyTorch: h=None -> zeros
    params = init_params(kparam)

    # Amortized sequence call (chunked recurrence + hoisted projection/MLP head).
    fwd_seq = jax.jit(lambda xs, h: net_forward_seq(xs, h, params))
    logits_seq, h_final = fwd_seq(x_seq, h0)
    jax.block_until_ready((logits_seq, h_final))

    # Single-step call matching the PyTorch module's forward signature.
    fwd_step = jax.jit(lambda x, h: net_forward(x, h, params))
    logits1, h1 = fwd_step(x_seq[0], h0)
    jax.block_until_ready((logits1, h1))

    # Correctness vs a pure-JAX reference using the same bf16 weights / f32 math.
    ref_logits, ref_h = reference_forward_seq(x_seq, h0, params)
    ref_logits1, ref_h1 = reference_forward_seq(x_seq[:1], h0, params)

    assert logits_seq.shape == (T, B, LOGIT_DIM) and h_final.shape == (B, HIDDEN_SIZE)
    assert logits1.shape == (B, LOGIT_DIM) and h1.shape == (B, HIDDEN_SIZE)
    assert jnp.allclose(logits_seq, ref_logits, atol=2e-2, rtol=2e-2)
    assert jnp.allclose(h_final, ref_h, atol=2e-2, rtol=2e-2)
    assert jnp.allclose(logits1, ref_logits1[0], atol=2e-2, rtol=2e-2)
    assert jnp.allclose(h1, ref_h1, atol=2e-2, rtol=2e-2)

    print("KERNEL_OK")
</pallas_src>

<mosaic_0001>
module attributes {stable_mosaic.version = 11 : i64} {
  func.func @_proj_kernel(%arg0: i32, %arg1: memref<128x40xf32, #tpu.memory_space<vmem>>, %arg2: memref<40x384xbf16, #tpu.memory_space<vmem>>, %arg3: memref<1x384xf32, #tpu.memory_space<vmem>>, %arg4: memref<128x384xbf16, #tpu.memory_space<vmem>>) attributes {dimension_semantics = [#tpu.dimension_semantics<parallel>], iteration_bounds = array<i64: 2>, scalar_prefetch = 0 : i64, scratch_operands = 0 : i64, tpu.core_type = #tpu.core_type<tc>, window_params = [{transform_indices = @transform_0, window_bounds = array<i64: 128, 40>}, {pipeline_mode = #tpu.pipeline_mode<synchronous>, transform_indices = @transform_1, window_bounds = array<i64: 40, 384>}, {pipeline_mode = #tpu.pipeline_mode<synchronous>, transform_indices = @transform_2, window_bounds = array<i64: 1, 384>}, {transform_indices = @transform_3, window_bounds = array<i64: 128, 384>}]} {
    %c0 = arith.constant 0 : index
    %c0_0 = arith.constant 0 : index
    %0 = vector.load %arg1[%c0, %c0_0] : memref<128x40xf32, #tpu.memory_space<vmem>>, vector<128x40xf32>
    %1 = arith.truncf %0 : vector<128x40xf32> to vector<128x40xbf16>
    %c0_1 = arith.constant 0 : index
    %c0_2 = arith.constant 0 : index
    %2 = vector.load %arg2[%c0_1, %c0_2] : memref<40x384xbf16, #tpu.memory_space<vmem>>, vector<40x384xbf16>
    %cst = arith.constant dense<0.000000e+00> : vector<128x384xf32>
    %3 = tpu.matmul %1, %2, %cst {dimension_numbers = #tpu.dot_dimension_numbers<[1], [0], [0], [1], [0, 0, 1, 1], [], []>} : vector<128x40xbf16>, vector<40x384xbf16>, vector<128x384xf32> -> vector<128x384xf32>
    %c0_3 = arith.constant 0 : index
    %c0_4 = arith.constant 0 : index
    %4 = vector.load %arg3[%c0_3, %c0_4] : memref<1x384xf32, #tpu.memory_space<vmem>>, vector<1x384xf32>
    %5 = vector.broadcast %4 : vector<1x384xf32> to vector<128x384xf32>
    %6 = arith.addf %3, %5 : vector<128x384xf32>
    %7 = arith.truncf %6 : vector<128x384xf32> to vector<128x384xbf16>
    %c0_5 = arith.constant 0 : index
    %c0_6 = arith.constant 0 : index
    %8 = vector.load %arg4[%c0_5, %c0_6] : memref<128x384xbf16, #tpu.memory_space<vmem>>, vector<128x384xbf16>
    tpu.vector_store %arg4[%c0_5, %c0_6], %7 {strides = array<i32>} : memref<128x384xbf16, #tpu.memory_space<vmem>>, vector<128x384xbf16>,
    return
  }
  func.func @transform_0(%arg0: i32) -> (i32, i32) {
    %c0_i32 = arith.constant 0 : i32
    %c0_i32_0 = arith.constant 0 : i32
    return %arg0, %c0_i32 : i32, i32
  }
  func.func @transform_1(%arg0: i32) -> (i32, i32) {
    %c0_i32 = arith.constant 0 : i32
    %c0_i32_0 = arith.constant 0 : i32
    %c0_i32_1 = arith.constant 0 : i32
    return %c0_i32, %c0_i32_0 : i32, i32
  }
  func.func @transform_2(%arg0: i32) -> (i32, i32) {
    %c0_i32 = arith.constant 0 : i32
    %c0_i32_0 = arith.constant 0 : i32
    %c0_i32_1 = arith.constant 0 : i32
    return %c0_i32, %c0_i32_0 : i32, i32
  }
  func.func @transform_3(%arg0: i32) -> (i32, i32) {
    %c0_i32 = arith.constant 0 : i32
    %c0_i32_0 = arith.constant 0 : i32
    return %arg0, %c0_i32 : i32, i32
  }
}

module attributes {stable_mosaic.version = 11 : i64} {
  func.func @_gru_kernel(%arg0: i32, %arg1: memref<16x8x384xbf16, #tpu.memory_space<vmem>>, %arg2: memref<8x128xf32, #tpu.memory_space<vmem>>, %arg3: memref<128x384xbf16, #tpu.memory_space<vmem>>, %arg4: memref<1x128xf32, #tpu.memory_space<vmem>>, %arg5: memref<16x8x128xbf16, #tpu.memory_space<vmem>>, %arg6: memref<8x128xf32, #tpu.memory_space<vmem>>) attributes {dimension_semantics = [#tpu.dimension_semantics<arbitrary>], iteration_bounds = array<i64: 2>, scalar_prefetch = 0 : i64, scratch_operands = 0 : i64, tpu.core_type = #tpu.core_type<tc>, window_params = [{transform_indices = @transform_0, window_bounds = array<i64: 16, 8, 384>}, {pipeline_mode = #tpu.pipeline_mode<synchronous>, transform_indices = @transform_1, window_bounds = array<i64: 8, 128>}, {pipeline_mode = #tpu.pipeline_mode<synchronous>, transform_indices = @transform_2, window_bounds = array<i64: 128, 384>}, {pipeline_mode = #tpu.pipeline_mode<synchronous>, transform_indices = @transform_3, window_bounds = array<i64: 1, 128>}, {transform_indices = @transform_4, window_bounds = array<i64: 16, 8, 128>}, {pipeline_mode = #tpu.pipeline_mode<synchronous>, transform_indices = @transform_5, window_bounds = array<i64: 8, 128>}]} {
    %c0_i32 = arith.constant 0 : i32
    %0 = arith.cmpi eq, %arg0, %c0_i32 : i32
    %1 = arith.extui %0 : i1 to i32
    %c0_i32_0 = arith.constant 0 : i32
    %2 = arith.cmpi ne, %1, %c0_i32_0 : i32
    scf.if %2 {
      %c0_196 = arith.constant 0 : index
      %c0_197 = arith.constant 0 : index
      %661 = vector.load %arg2[%c0_196, %c0_197] : memref<8x128xf32, #tpu.memory_space<vmem>>, vector<8x128xf32>
      %c0_198 = arith.constant 0 : index
      %c0_199 = arith.constant 0 : index
      %662 = vector.load %arg6[%c0_198, %c0_199] : memref<8x128xf32, #tpu.memory_space<vmem>>, vector<8x128xf32>
      tpu.vector_store %arg6[%c0_198, %c0_199], %661 {strides = array<i32>} : memref<8x128xf32, #tpu.memory_space<vmem>>, vector<8x128xf32>,
    } else {
    }
    %c0 = arith.constant 0 : index
    %c0_1 = arith.constant 0 : index
    %3 = vector.load %arg6[%c0, %c0_1] : memref<8x128xf32, #tpu.memory_space<vmem>>, vector<8x128xf32>
    %c0_i32_2 = arith.constant 0 : i32
    %4 = arith.index_cast %c0_i32_2 : i32 to index
    %c0_3 = arith.constant 0 : index
    %c0_4 = arith.constant 0 : index
    %5 = vector.load %arg1[%4, %c0_3, %c0_4] : memref<16x8x384xbf16, #tpu.memory_space<vmem>>, vector<1x8x384xbf16>
    %6 = vector.shape_cast %5 : vector<1x8x384xbf16> to vector<8x384xbf16>
    %7 = arith.extf %6 : vector<8x384xbf16> to vector<8x384xf32>
    %8 = arith.truncf %3 : vector<8x128xf32> to vector<8x128xbf16>
    %c0_5 = arith.constant 0 : index
    %c0_6 = arith.constant 0 : index
    %9 = vector.load %arg3[%c0_5, %c0_6] : memref<128x384xbf16, #tpu.memory_space<vmem>>, vector<128x384xbf16>
    %cst = arith.constant dense<0.000000e+00> : vector<8x384xf32>
    %10 = tpu.matmul %8, %9, %cst {dimension_numbers = #tpu.dot_dimension_numbers<[1], [0], [0], [1], [0, 0, 1, 1], [], []>} : vector<8x128xbf16>, vector<128x384xbf16>, vector<8x384xf32> -> vector<8x384xf32>
    %11 = vector.extract_strided_slice %7 {offsets = [0, 0], sizes = [8, 128], strides = [1, 1]} : vector<8x384xf32> to vector<8x128xf32>
    %12 = vector.extract_strided_slice %10 {offsets = [0, 0], sizes = [8, 128], strides = [1, 1]} : vector<8x384xf32> to vector<8x128xf32>
    %13 = arith.addf %11, %12 : vector<8x128xf32>
    %14 = arith.negf %13 : vector<8x128xf32>
    %15 = math.exp %14 : vector<8x128xf32>
    %cst_7 = arith.constant 1.000000e+00 : f32
    %16 = vector.broadcast %cst_7 : f32 to vector<8x128xf32>
    %17 = arith.addf %16, %15 : vector<8x128xf32>
    %18 = arith.divf %16, %17 : vector<8x128xf32>
    %19 = vector.extract_strided_slice %7 {offsets = [0, 128], sizes = [8, 128], strides = [1, 1]} : vector<8x384xf32> to vector<8x128xf32>
    %20 = vector.extract_strided_slice %10 {offsets = [0, 128], sizes = [8, 128], strides = [1, 1]} : vector<8x384xf32> to vector<8x128xf32>
    %21 = arith.addf %19, %20 : vector<8x128xf32>
    %22 = arith.negf %21 : vector<8x128xf32>
    %23 = math.exp %22 : vector<8x128xf32>
    %cst_8 = arith.constant 1.000000e+00 : f32
    %24 = vector.broadcast %cst_8 : f32 to vector<8x128xf32>
    %25 = arith.addf %24, %23 : vector<8x128xf32>
    %26 = arith.divf %24, %25 : vector<8x128xf32>
    %27 = vector.extract_strided_slice %7 {offsets = [0, 256], sizes = [8, 128], strides = [1, 1]} : vector<8x384xf32> to vector<8x128xf32>
    %28 = vector.extract_strided_slice %10 {offsets = [0, 256], sizes = [8, 128], strides = [1, 1]} : vector<8x384xf32> to vector<8x128xf32>
    %c0_9 = arith.constant 0 : index
    %c0_10 = arith.constant 0 : index
    %29 = vector.load %arg4[%c0_9, %c0_10] : memref<1x128xf32, #tpu.memory_space<vmem>>, vector<1x128xf32>
    %30 = vector.broadcast %29 : vector<1x128xf32> to vector<8x128xf32>
    %31 = arith.addf %28, %30 : vector<8x128xf32>
    %32 = arith.mulf %18, %31 : vector<8x128xf32>
    %33 = arith.addf %27, %32 : vector<8x128xf32>
    %34 = math.tanh %33 : vector<8x128xf32>
    %cst_11 = arith.constant 1.000000e+00 : f32
    %35 = vector.broadcast %cst_11 : f32 to vector<8x128xf32>
    %36 = arith.subf %35, %26 : vector<8x128xf32>
    %37 = arith.mulf %36, %34 : vector<8x128xf32>
    %38 = arith.mulf %26, %3 : vector<8x128xf32>
    %39 = arith.addf %37, %38 : vector<8x128xf32>
    %40 = arith.truncf %39 : vector<8x128xf32> to vector<8x128xbf16>
    %41 = arith.index_cast %c0_i32_2 : i32 to index
    %c0_12 = arith.constant 0 : index
    %c0_13 = arith.constant 0 : index
    %42 = vector.load %arg5[%41, %c0_12, %c0_13] : memref<16x8x128xbf16, #tpu.memory_space<vmem>>, vector<1x8x128xbf16>
    %43 = vector.shape_cast %42 : vector<1x8x128xbf16> to vector<8x128xbf16>
    %44 = vector.shape_cast %40 : vector<8x128xbf16> to vector<1x8x128xbf16>
    tpu.vector_store %arg5[%41, %c0_12, %c0_13], %44 {strides = array<i32>} : memref<16x8x128xbf16, #tpu.memory_space<vmem>>, vector<1x8x128xbf16>,
    %c1_i32 = arith.constant 1 : i32
    %45 = arith.index_cast %c1_i32 : i32 to index
    %c0_14 = arith.constant 0 : index
    %c0_15 = arith.constant 0 : index
    %46 = vector.load %arg1[%45, %c0_14, %c0_15] : memref<16x8x384xbf16, #tpu.memory_space<vmem>>, vector<1x8x384xbf16>
    %47 = vector.shape_cast %46 : vector<1x8x384xbf16> to vector<8x384xbf16>
    %48 = arith.extf %47 : vector<8x384xbf16> to vector<8x384xf32>
    %49 = arith.truncf %39 : vector<8x128xf32> to vector<8x128xbf16>
    %c0_16 = arith.constant 0 : index
    %c0_17 = arith.constant 0 : index
    %50 = vector.load %arg3[%c0_16, %c0_17] : memref<128x384xbf16, #tpu.memory_space<vmem>>, vector<128x384xbf16>
    %cst_18 = arith.constant dense<0.000000e+00> : vector<8x384xf32>
    %51 = tpu.matmul %49, %50, %cst_18 {dimension_numbers = #tpu.dot_dimension_numbers<[1], [0], [0], [1], [0, 0, 1, 1], [], []>} : vector<8x128xbf16>, vector<128x384xbf16>, vector<8x384xf32> -> vector<8x384xf32>
    %52 = vector.extract_strided_slice %48 {offsets = [0, 0], sizes = [8, 128], strides = [1, 1]} : vector<8x384xf32> to vector<8x128xf32>
    %53 = vector.extract_strided_slice %51 {offsets = [0, 0], sizes = [8, 128], strides = [1, 1]} : vector<8x384xf32> to vector<8x128xf32>
    %54 = arith.addf %52, %53 : vector<8x128xf32>
    %55 = arith.negf %54 : vector<8x128xf32>
    %56 = math.exp %55 : vector<8x128xf32>
    %cst_19 = arith.constant 1.000000e+00 : f32
    %57 = vector.broadcast %cst_19 : f32 to vector<8x128xf32>
    %58 = arith.addf %57, %56 : vector<8x128xf32>
    %59 = arith.divf %57, %58 : vector<8x128xf32>
    %60 = vector.extract_strided_slice %48 {offsets = [0, 128], sizes = [8, 128], strides = [1, 1]} : vector<8x384xf32> to vector<8x128xf32>
    %61 = vector.extract_strided_slice %51 {offsets = [0, 128], sizes = [8, 128], strides = [1, 1]} : vector<8x384xf32> to vector<8x128xf32>
    %62 = arith.addf %60, %61 : vector<8x128xf32>
    %63 = arith.negf %62 : vector<8x128xf32>
    %64 = math.exp %63 : vector<8x128xf32>
    %cst_20 = arith.constant 1.000000e+00 : f32
    %65 = vector.broadcast %cst_20 : f32 to vector<8x128xf32>
    %66 = arith.addf %65, %64 : vector<8x128xf32>
    %67 = arith.divf %65, %66 : vector<8x128xf32>
    %68 = vector.extract_strided_slice %48 {offsets = [0, 256], sizes = [8, 128], strides = [1, 1]} : vector<8x384xf32> to vector<8x128xf32>
    %69 = vector.extract_strided_slice %51 {offsets = [0, 256], sizes = [8, 128], strides = [1, 1]} : vector<8x384xf32> to vector<8x128xf32>
    %c0_21 = arith.constant 0 : index
    %c0_22 = arith.constant 0 : index
    %70 = vector.load %arg4[%c0_21, %c0_22] : memref<1x128xf32, #tpu.memory_space<vmem>>, vector<1x128xf32>
    %71 = vector.broadcast %70 : vector<1x128xf32> to vector<8x128xf32>
    %72 = arith.addf %69, %71 : vector<8x128xf32>
    %73 = arith.mulf %59, %72 : vector<8x128xf32>
    %74 = arith.addf %68, %73 : vector<8x128xf32>
    %75 = math.tanh %74 : vector<8x128xf32>
    %cst_23 = arith.constant 1.000000e+00 : f32
    %76 = vector.broadcast %cst_23 : f32 to vector<8x128xf32>
    %77 = arith.subf %76, %67 : vector<8x128xf32>
    %78 = arith.mulf %77, %75 : vector<8x128xf32>
    %79 = arith.mulf %67, %39 : vector<8x128xf32>
    %80 = arith.addf %78, %79 : vector<8x128xf32>
    %81 = arith.truncf %80 : vector<8x128xf32> to vector<8x128xbf16>
    %82 = arith.index_cast %c1_i32 : i32 to index
    %c0_24 = arith.constant 0 : index
    %c0_25 = arith.constant 0 : index
    %83 = vector.load %arg5[%82, %c0_24, %c0_25] : memref<16x8x128xbf16, #tpu.memory_space<vmem>>, vector<1x8x128xbf16>
    %84 = vector.shape_cast %83 : vector<1x8x128xbf16> to vector<8x128xbf16>
    %85 = vector.shape_cast %81 : vector<8x128xbf16> to vector<1x8x128xbf16>
    tpu.vector_store %arg5[%82, %c0_24, %c0_25], %85 {strides = array<i32>} : memref<16x8x128xbf16, #tpu.memory_space<vmem>>, vector<1x8x128xbf16>,
    %c2_i32 = arith.constant 2 : i32
    %86 = arith.index_cast %c2_i32 : i32 to index
    %c0_26 = arith.constant 0 : index
    %c0_27 = arith.constant 0 : index
    %87 = vector.load %arg1[%86, %c0_26, %c0_27] : memref<16x8x384xbf16, #tpu.memory_space<vmem>>, vector<1x8x384xbf16>
    %88 = vector.shape_cast %87 : vector<1x8x384xbf16> to vector<8x384xbf16>
    %89 = arith.extf %88 : vector<8x384xbf16> to vector<8x384xf32>
    %90 = arith.truncf %80 : vector<8x128xf32> to vector<8x128xbf16>
    %c0_28 = arith.constant 0 : index
    %c0_29 = arith.constant 0 : index
    %91 = vector.load %arg3[%c0_28, %c0_29] : memref<128x384xbf16, #tpu.memory_space<vmem>>, vector<128x384xbf16>
    %cst_30 = arith.constant dense<0.000000e+00> : vector<8x384xf32>
    %92 = tpu.matmul %90, %91, %cst_30 {dimension_numbers = #tpu.dot_dimension_numbers<[1], [0], [0], [1], [0, 0, 1, 1], [], []>} : vector<8x128xbf16>, vector<128x384xbf16>, vector<8x384xf32> -> vector<8x384xf32>
    %93 = vector.extract_strided_slice %89 {offsets = [0, 0], sizes = [8, 128], strides = [1, 1]} : vector<8x384xf32> to vector<8x128xf32>
    %94 = vector.extract_strided_slice %92 {offsets = [0, 0], sizes = [8, 128], strides = [1, 1]} : vector<8x384xf32> to vector<8x128xf32>
    %95 = arith.addf %93, %94 : vector<8x128xf32>
    %96 = arith.negf %95 : vector<8x128xf32>
    %97 = math.exp %96 : vector<8x128xf32>
    %cst_31 = arith.constant 1.000000e+00 : f32
    %98 = vector.broadcast %cst_31 : f32 to vector<8x128xf32>
    %99 = arith.addf %98, %97 : vector<8x128xf32>
    %100 = arith.divf %98, %99 : vector<8x128xf32>
    %101 = vector.extract_strided_slice %89 {offsets = [0, 128], sizes = [8, 128], strides = [1, 1]} : vector<8x384xf32> to vector<8x128xf32>
    %102 = vector.extract_strided_slice %92 {offsets = [0, 128], sizes = [8, 128], strides = [1, 1]} : vector<8x384xf32> to vector<8x128xf32>
    %103 = arith.addf %101, %102 : vector<8x128xf32>
    %104 = arith.negf %103 : vector<8x128xf32>
    %105 = math.exp %104 : vector<8x128xf32>
    %cst_32 = arith.constant 1.000000e+00 : f32
    %106 = vector.broadcast %cst_32 : f32 to vector<8x128xf32>
    %107 = arith.addf %106, %105 : vector<8x128xf32>
    %108 = arith.divf %106, %107 : vector<8x128xf32>
    %109 = vector.extract_strided_slice %89 {offsets = [0, 256], sizes = [8, 128], strides = [1, 1]} : vector<8x384xf32> to vector<8x128xf32>
    %110 = vector.extract_strided_slice %92 {offsets = [0, 256], sizes = [8, 128], strides = [1, 1]} : vector<8x384xf32> to vector<8x128xf32>
    %c0_33 = arith.constant 0 : index
    %c0_34 = arith.constant 0 : index
    %111 = vector.load %arg4[%c0_33, %c0_34] : memref<1x128xf32, #tpu.memory_space<vmem>>, vector<1x128xf32>
    %112 = vector.broadcast %111 : vector<1x128xf32> to vector<8x128xf32>
    %113 = arith.addf %110, %112 : vector<8x128xf32>
    %114 = arith.mulf %100, %113 : vector<8x128xf32>
    %115 = arith.addf %109, %114 : vector<8x128xf32>
    %116 = math.tanh %115 : vector<8x128xf32>
    %cst_35 = arith.constant 1.000000e+00 : f32
    %117 = vector.broadcast %cst_35 : f32 to vector<8x128xf32>
    %118 = arith.subf %117, %108 : vector<8x128xf32>
    %119 = arith.mulf %118, %116 : vector<8x128xf32>
    %120 = arith.mulf %108, %80 : vector<8x128xf32>
    %121 = arith.addf %119, %120 : vector<8x128xf32>
    %122 = arith.truncf %121 : vector<8x128xf32> to vector<8x128xbf16>
    %123 = arith.index_cast %c2_i32 : i32 to index
    %c0_36 = arith.constant 0 : index
    %c0_37 = arith.constant 0 : index
    %124 = vector.load %arg5[%123, %c0_36, %c0_37] : memref<16x8x128xbf16, #tpu.memory_space<vmem>>, vector<1x8x128xbf16>
    %125 = vector.shape_cast %124 : vector<1x8x128xbf16> to vector<8x128xbf16>
    %126 = vector.shape_cast %122 : vector<8x128xbf16> to vector<1x8x128xbf16>
    tpu.vector_store %arg5[%123, %c0_36, %c0_37], %126 {strides = array<i32>} : memref<16x8x128xbf16, #tpu.memory_space<vmem>>, vector<1x8x128xbf16>,
    %c3_i32 = arith.constant 3 : i32
    %127 = arith.index_cast %c3_i32 : i32 to index
    %c0_38 = arith.constant 0 : index
    %c0_39 = arith.constant 0 : index
    %128 = vector.load %arg1[%127, %c0_38, %c0_39] : memref<16x8x384xbf16, #tpu.memory_space<vmem>>, vector<1x8x384xbf16>
    %129 = vector.shape_cast %128 : vector<1x8x384xbf16> to vector<8x384xbf16>
    %130 = arith.extf %129 : vector<8x384xbf16> to vector<8x384xf32>
    %131 = arith.truncf %121 : vector<8x128xf32> to vector<8x128xbf16>
    %c0_40 = arith.constant 0 : index
    %c0_41 = arith.constant 0 : index
    %132 = vector.load %arg3[%c0_40, %c0_41] : memref<128x384xbf16, #tpu.memory_space<vmem>>, vector<128x384xbf16>
    %cst_42 = arith.constant dense<0.000000e+00> : vector<8x384xf32>
    %133 = tpu.matmul %131, %132, %cst_42 {dimension_numbers = #tpu.dot_dimension_numbers<[1], [0], [0], [1], [0, 0, 1, 1], [], []>} : vector<8x128xbf16>, vector<128x384xbf16>, vector<8x384xf32> -> vector<8x384xf32>
    %134 = vector.extract_strided_slice %130 {offsets = [0, 0], sizes = [8, 128], strides = [1, 1]} : vector<8x384xf32> to vector<8x128xf32>
    %135 = vector.extract_strided_slice %133 {offsets = [0, 0], sizes = [8, 128], strides = [1, 1]} : vector<8x384xf32> to vector<8x128xf32>
    %136 = arith.addf %134, %135 : vector<8x128xf32>
    %137 = arith.negf %136 : vector<8x128xf32>
    %138 = math.exp %137 : vector<8x128xf32>
    %cst_43 = arith.constant 1.000000e+00 : f32
    %139 = vector.broadcast %cst_43 : f32 to vector<8x128xf32>
    %140 = arith.addf %139, %138 : vector<8x128xf32>
    %141 = arith.divf %139, %140 : vector<8x128xf32>
    %142 = vector.extract_strided_slice %130 {offsets = [0, 128], sizes = [8, 128], strides = [1, 1]} : vector<8x384xf32> to vector<8x128xf32>
    %143 = vector.extract_strided_slice %133 {offsets = [0, 128], sizes = [8, 128], strides = [1, 1]} : vector<8x384xf32> to vector<8x128xf32>
    %144 = arith.addf %142, %143 : vector<8x128xf32>
    %145 = arith.negf %144 : vector<8x128xf32>
    %146 = math.exp %145 : vector<8x128xf32>
    %cst_44 = arith.constant 1.000000e+00 : f32
    %147 = vector.broadcast %cst_44 : f32 to vector<8x128xf32>
    %148 = arith.addf %147, %146 : vector<8x128xf32>
    %149 = arith.divf %147, %148 : vector<8x128xf32>
    %150 = vector.extract_strided_slice %130 {offsets = [0, 256], sizes = [8, 128], strides = [1, 1]} : vector<8x384xf32> to vector<8x128xf32>
    %151 = vector.extract_strided_slice %133 {offsets = [0, 256], sizes = [8, 128], strides = [1, 1]} : vector<8x384xf32> to vector<8x128xf32>
    %c0_45 = arith.constant 0 : index
    %c0_46 = arith.constant 0 : index
    %152 = vector.load %arg4[%c0_45, %c0_46] : memref<1x128xf32, #tpu.memory_space<vmem>>, vector<1x128xf32>
    %153 = vector.broadcast %152 : vector<1x128xf32> to vector<8x128xf32>
    %154 = arith.addf %151, %153 : vector<8x128xf32>
    %155 = arith.mulf %141, %154 : vector<8x128xf32>
    %156 = arith.addf %150, %155 : vector<8x128xf32>
    %157 = math.tanh %156 : vector<8x128xf32>
    %cst_47 = arith.constant 1.000000e+00 : f32
    %158 = vector.broadcast %cst_47 : f32 to vector<8x128xf32>
    %159 = arith.subf %158, %149 : vector<8x128xf32>
    %160 = arith.mulf %159, %157 : vector<8x128xf32>
    %161 = arith.mulf %149, %121 : vector<8x128xf32>
    %162 = arith.addf %160, %161 : vector<8x128xf32>
    %163 = arith.truncf %162 : vector<8x128xf32> to vector<8x128xbf16>
    %164 = arith.index_cast %c3_i32 : i32 to index
    %c0_48 = arith.constant 0 : index
    %c0_49 = arith.constant 0 : index
    %165 = vector.load %arg5[%164, %c0_48, %c0_49] : memref<16x8x128xbf16, #tpu.memory_space<vmem>>, vector<1x8x128xbf16>
    %166 = vector.shape_cast %165 : vector<1x8x128xbf16> to vector<8x128xbf16>
    %167 = vector.shape_cast %163 : vector<8x128xbf16> to vector<1x8x128xbf16>
    tpu.vector_store %arg5[%164, %c0_48, %c0_49], %167 {strides = array<i32>} : memref<16x8x128xbf16, #tpu.memory_space<vmem>>, vector<1x8x128xbf16>,
    %c4_i32 = arith.constant 4 : i32
    %168 = arith.index_cast %c4_i32 : i32 to index
    %c0_50 = arith.constant 0 : index
    %c0_51 = arith.constant 0 : index
    %169 = vector.load %arg1[%168, %c0_50, %c0_51] : memref<16x8x384xbf16, #tpu.memory_space<vmem>>, vector<1x8x384xbf16>
    %170 = vector.shape_cast %169 : vector<1x8x384xbf16> to vector<8x384xbf16>
    %171 = arith.extf %170 : vector<8x384xbf16> to vector<8x384xf32>
    %172 = arith.truncf %162 : vector<8x128xf32> to vector<8x128xbf16>
    %c0_52 = arith.constant 0 : index
    %c0_53 = arith.constant 0 : index
    %173 = vector.load %arg3[%c0_52, %c0_53] : memref<128x384xbf16, #tpu.memory_space<vmem>>, vector<128x384xbf16>
    %cst_54 = arith.constant dense<0.000000e+00> : vector<8x384xf32>
    %174 = tpu.matmul %172, %173, %cst_54 {dimension_numbers = #tpu.dot_dimension_numbers<[1], [0], [0], [1], [0, 0, 1, 1], [], []>} : vector<8x128xbf16>, vector<128x384xbf16>, vector<8x384xf32> -> vector<8x384xf32>
    %175 = vector.extract_strided_slice %171 {offsets = [0, 0], sizes = [8, 128], strides = [1, 1]} : vector<8x384xf32> to vector<8x128xf32>
    %176 = vector.extract_strided_slice %174 {offsets = [0, 0], sizes = [8, 128], strides = [1, 1]} : vector<8x384xf32> to vector<8x128xf32>
    %177 = arith.addf %175, %176 : vector<8x128xf32>
    %178 = arith.negf %177 : vector<8x128xf32>
    %179 = math.exp %178 : vector<8x128xf32>
    %cst_55 = arith.constant 1.000000e+00 : f32
    %180 = vector.broadcast %cst_55 : f32 to vector<8x128xf32>
    %181 = arith.addf %180, %179 : vector<8x128xf32>
    %182 = arith.divf %180, %181 : vector<8x128xf32>
    %183 = vector.extract_strided_slice %171 {offsets = [0, 128], sizes = [8, 128], strides = [1, 1]} : vector<8x384xf32> to vector<8x128xf32>
    %184 = vector.extract_strided_slice %174 {offsets = [0, 128], sizes = [8, 128], strides = [1, 1]} : vector<8x384xf32> to vector<8x128xf32>
    %185 = arith.addf %183, %184 : vector<8x128xf32>
    %186 = arith.negf %185 : vector<8x128xf32>
    %187 = math.exp %186 : vector<8x128xf32>
    %cst_56 = arith.constant 1.000000e+00 : f32
    %188 = vector.broadcast %cst_56 : f32 to vector<8x128xf32>
    %189 = arith.addf %188, %187 : vector<8x128xf32>
    %190 = arith.divf %188, %189 : vector<8x128xf32>
    %191 = vector.extract_strided_slice %171 {offsets = [0, 256], sizes = [8, 128], strides = [1, 1]} : vector<8x384xf32> to vector<8x128xf32>
    %192 = vector.extract_strided_slice %174 {offsets = [0, 256], sizes = [8, 128], strides = [1, 1]} : vector<8x384xf32> to vector<8x128xf32>
    %c0_57 = arith.constant 0 : index
    %c0_58 = arith.constant 0 : index
    %193 = vector.load %arg4[%c0_57, %c0_58] : memref<1x128xf32, #tpu.memory_space<vmem>>, vector<1x128xf32>
    %194 = vector.broadcast %193 : vector<1x128xf32> to vector<8x128xf32>
    %195 = arith.addf %192, %194 : vector<8x128xf32>
    %196 = arith.mulf %182, %195 : vector<8x128xf32>
    %197 = arith.addf %191, %196 : vector<8x128xf32>
    %198 = math.tanh %197 : vector<8x128xf32>
    %cst_59 = arith.constant 1.000000e+00 : f32
    %199 = vector.broadcast %cst_59 : f32 to vector<8x128xf32>
    %200 = arith.subf %199, %190 : vector<8x128xf32>
    %201 = arith.mulf %200, %198 : vector<8x128xf32>
    %202 = arith.mulf %190, %162 : vector<8x128xf32>
    %203 = arith.addf %201, %202 : vector<8x128xf32>
    %204 = arith.truncf %203 : vector<8x128xf32> to vector<8x128xbf16>
    %205 = arith.index_cast %c4_i32 : i32 to index
    %c0_60 = arith.constant 0 : index
    %c0_61 = arith.constant 0 : index
    %206 = vector.load %arg5[%205, %c0_60, %c0_61] : memref<16x8x128xbf16, #tpu.memory_space<vmem>>, vector<1x8x128xbf16>
    %207 = vector.shape_cast %206 : vector<1x8x128xbf16> to vector<8x128xbf16>
    %208 = vector.shape_cast %204 : vector<8x128xbf16> to vector<1x8x128xbf16>
    tpu.vector_store %arg5[%205, %c0_60, %c0_61], %208 {strides = array<i32>} : memref<16x8x128xbf16, #tpu.memory_space<vmem>>, vector<1x8x128xbf16>,
    %c5_i32 = arith.constant 5 : i32
    %209 = arith.index_cast %c5_i32 : i32 to index
    %c0_62 = arith.constant 0 : index
    %c0_63 = arith.constant 0 : index
    %210 = vector.load %arg1[%209, %c0_62, %c0_63] : memref<16x8x384xbf16, #tpu.memory_space<vmem>>, vector<1x8x384xbf16>
    %211 = vector.shape_cast %210 : vector<1x8x384xbf16> to vector<8x384xbf16>
    %212 = arith.extf %211 : vector<8x384xbf16> to vector<8x384xf32>
    %213 = arith.truncf %203 : vector<8x128xf32> to vector<8x128xbf16>
    %c0_64 = arith.constant 0 : index
    %c0_65 = arith.constant 0 : index
    %214 = vector.load %arg3[%c0_64, %c0_65] : memref<128x384xbf16, #tpu.memory_space<vmem>>, vector<128x384xbf16>
    %cst_66 = arith.constant dense<0.000000e+00> : vector<8x384xf32>
    %215 = tpu.matmul %213, %214, %cst_66 {dimension_numbers = #tpu.dot_dimension_numbers<[1], [0], [0], [1], [0, 0, 1, 1], [], []>} : vector<8x128xbf16>, vector<128x384xbf16>, vector<8x384xf32> -> vector<8x384xf32>
    %216 = vector.extract_strided_slice %212 {offsets = [0, 0], sizes = [8, 128], strides = [1, 1]} : vector<8x384xf32> to vector<8x128xf32>
    %217 = vector.extract_strided_slice %215 {offsets = [0, 0], sizes = [8, 128], strides = [1, 1]} : vector<8x384xf32> to vector<8x128xf32>
    %218 = arith.addf %216, %217 : vector<8x128xf32>
    %219 = arith.negf %218 : vector<8x128xf32>
    %220 = math.exp %219 : vector<8x128xf32>
    %cst_67 = arith.constant 1.000000e+00 : f32
    %221 = vector.broadcast %cst_67 : f32 to vector<8x128xf32>
    %222 = arith.addf %221, %220 : vector<8x128xf32>
    %223 = arith.divf %221, %222 : vector<8x128xf32>
    %224 = vector.extract_strided_slice %212 {offsets = [0, 128], sizes = [8, 128], strides = [1, 1]} : vector<8x384xf32> to vector<8x128xf32>
    %225 = vector.extract_strided_slice %215 {offsets = [0, 128], sizes = [8, 128], strides = [1, 1]} : vector<8x384xf32> to vector<8x128xf32>
    %226 = arith.addf %224, %225 : vector<8x128xf32>
    %227 = arith.negf %226 : vector<8x128xf32>
    %228 = math.exp %227 : vector<8x128xf32>
    %cst_68 = arith.constant 1.000000e+00 : f32
    %229 = vector.broadcast %cst_68 : f32 to vector<8x128xf32>
    %230 = arith.addf %229, %228 : vector<8x128xf32>
    %231 = arith.divf %229, %230 : vector<8x128xf32>
    %232 = vector.extract_strided_slice %212 {offsets = [0, 256], sizes = [8, 128], strides = [1, 1]} : vector<8x384xf32> to vector<8x128xf32>
    %233 = vector.extract_strided_slice %215 {offsets = [0, 256], sizes = [8, 128], strides = [1, 1]} : vector<8x384xf32> to vector<8x128xf32>
    %c0_69 = arith.constant 0 : index
    %c0_70 = arith.constant 0 : index
    %234 = vector.load %arg4[%c0_69, %c0_70] : memref<1x128xf32, #tpu.memory_space<vmem>>, vector<1x128xf32>
    %235 = vector.broadcast %234 : vector<1x128xf32> to vector<8x128xf32>
    %236 = arith.addf %233, %235 : vector<8x128xf32>
    %237 = arith.mulf %223, %236 : vector<8x128xf32>
    %238 = arith.addf %232, %237 : vector<8x128xf32>
    %239 = math.tanh %238 : vector<8x128xf32>
    %cst_71 = arith.constant 1.000000e+00 : f32
    %240 = vector.broadcast %cst_71 : f32 to vector<8x128xf32>
    %241 = arith.subf %240, %231 : vector<8x128xf32>
    %242 = arith.mulf %241, %239 : vector<8x128xf32>
    %243 = arith.mulf %231, %203 : vector<8x128xf32>
    %244 = arith.addf %242, %243 : vector<8x128xf32>
    %245 = arith.truncf %244 : vector<8x128xf32> to vector<8x128xbf16>
    %246 = arith.index_cast %c5_i32 : i32 to index
    %c0_72 = arith.constant 0 : index
    %c0_73 = arith.constant 0 : index
    %247 = vector.load %arg5[%246, %c0_72, %c0_73] : memref<16x8x128xbf16, #tpu.memory_space<vmem>>, vector<1x8x128xbf16>
    %248 = vector.shape_cast %247 : vector<1x8x128xbf16> to vector<8x128xbf16>
    %249 = vector.shape_cast %245 : vector<8x128xbf16> to vector<1x8x128xbf16>
    tpu.vector_store %arg5[%246, %c0_72, %c0_73], %249 {strides = array<i32>} : memref<16x8x128xbf16, #tpu.memory_space<vmem>>, vector<1x8x128xbf16>,
    %c6_i32 = arith.constant 6 : i32
    %250 = arith.index_cast %c6_i32 : i32 to index
    %c0_74 = arith.constant 0 : index
    %c0_75 = arith.constant 0 : index
    %251 = vector.load %arg1[%250, %c0_74, %c0_75] : memref<16x8x384xbf16, #tpu.memory_space<vmem>>, vector<1x8x384xbf16>
    %252 = vector.shape_cast %251 : vector<1x8x384xbf16> to vector<8x384xbf16>
    %253 = arith.extf %252 : vector<8x384xbf16> to vector<8x384xf32>
    %254 = arith.truncf %244 : vector<8x128xf32> to vector<8x128xbf16>
    %c0_76 = arith.constant 0 : index
    %c0_77 = arith.constant 0 : index
    %255 = vector.load %arg3[%c0_76, %c0_77] : memref<128x384xbf16, #tpu.memory_space<vmem>>, vector<128x384xbf16>
    %cst_78 = arith.constant dense<0.000000e+00> : vector<8x384xf32>
    %256 = tpu.matmul %254, %255, %cst_78 {dimension_numbers = #tpu.dot_dimension_numbers<[1], [0], [0], [1], [0, 0, 1, 1], [], []>} : vector<8x128xbf16>, vector<128x384xbf16>, vector<8x384xf32> -> vector<8x384xf32>
    %257 = vector.extract_strided_slice %253 {offsets = [0, 0], sizes = [8, 128], strides = [1, 1]} : vector<8x384xf32> to vector<8x128xf32>
    %258 = vector.extract_strided_slice %256 {offsets = [0, 0], sizes = [8, 128], strides = [1, 1]} : vector<8x384xf32> to vector<8x128xf32>
    %259 = arith.addf %257, %258 : vector<8x128xf32>
    %260 = arith.negf %259 : vector<8x128xf32>
    %261 = math.exp %260 : vector<8x128xf32>
    %cst_79 = arith.constant 1.000000e+00 : f32
    %262 = vector.broadcast %cst_79 : f32 to vector<8x128xf32>
    %263 = arith.addf %262, %261 : vector<8x128xf32>
    %264 = arith.divf %262, %263 : vector<8x128xf32>
    %265 = vector.extract_strided_slice %253 {offsets = [0, 128], sizes = [8, 128], strides = [1, 1]} : vector<8x384xf32> to vector<8x128xf32>
    %266 = vector.extract_strided_slice %256 {offsets = [0, 128], sizes = [8, 128], strides = [1, 1]} : vector<8x384xf32> to vector<8x128xf32>
    %267 = arith.addf %265, %266 : vector<8x128xf32>
    %268 = arith.negf %267 : vector<8x128xf32>
    %269 = math.exp %268 : vector<8x128xf32>
    %cst_80 = arith.constant 1.000000e+00 : f32
    %270 = vector.broadcast %cst_80 : f32 to vector<8x128xf32>
    %271 = arith.addf %270, %269 : vector<8x128xf32>
    %272 = arith.divf %270, %271 : vector<8x128xf32>
    %273 = vector.extract_strided_slice %253 {offsets = [0, 256], sizes = [8, 128], strides = [1, 1]} : vector<8x384xf32> to vector<8x128xf32>
    %274 = vector.extract_strided_slice %256 {offsets = [0, 256], sizes = [8, 128], strides = [1, 1]} : vector<8x384xf32> to vector<8x128xf32>
    %c0_81 = arith.constant 0 : index
    %c0_82 = arith.constant 0 : index
    %275 = vector.load %arg4[%c0_81, %c0_82] : memref<1x128xf32, #tpu.memory_space<vmem>>, vector<1x128xf32>
    %276 = vector.broadcast %275 : vector<1x128xf32> to vector<8x128xf32>
    %277 = arith.addf %274, %276 : vector<8x128xf32>
    %278 = arith.mulf %264, %277 : vector<8x128xf32>
    %279 = arith.addf %273, %278 : vector<8x128xf32>
    %280 = math.tanh %279 : vector<8x128xf32>
    %cst_83 = arith.constant 1.000000e+00 : f32
    %281 = vector.broadcast %cst_83 : f32 to vector<8x128xf32>
    %282 = arith.subf %281, %272 : vector<8x128xf32>
    %283 = arith.mulf %282, %280 : vector<8x128xf32>
    %284 = arith.mulf %272, %244 : vector<8x128xf32>
    %285 = arith.addf %283, %284 : vector<8x128xf32>
    %286 = arith.truncf %285 : vector<8x128xf32> to vector<8x128xbf16>
    %287 = arith.index_cast %c6_i32 : i32 to index
    %c0_84 = arith.constant 0 : index
    %c0_85 = arith.constant 0 : index
    %288 = vector.load %arg5[%287, %c0_84, %c0_85] : memref<16x8x128xbf16, #tpu.memory_space<vmem>>, vector<1x8x128xbf16>
    %289 = vector.shape_cast %288 : vector<1x8x128xbf16> to vector<8x128xbf16>
    %290 = vector.shape_cast %286 : vector<8x128xbf16> to vector<1x8x128xbf16>
    tpu.vector_store %arg5[%287, %c0_84, %c0_85], %290 {strides = array<i32>} : memref<16x8x128xbf16, #tpu.memory_space<vmem>>, vector<1x8x128xbf16>,
    %c7_i32 = arith.constant 7 : i32
    %291 = arith.index_cast %c7_i32 : i32 to index
    %c0_86 = arith.constant 0 : index
    %c0_87 = arith.constant 0 : index
    %292 = vector.load %arg1[%291, %c0_86, %c0_87] : memref<16x8x384xbf16, #tpu.memory_space<vmem>>, vector<1x8x384xbf16>
    %293 = vector.shape_cast %292 : vector<1x8x384xbf16> to vector<8x384xbf16>
    %294 = arith.extf %293 : vector<8x384xbf16> to vector<8x384xf32>
    %295 = arith.truncf %285 : vector<8x128xf32> to vector<8x128xbf16>
    %c0_88 = arith.constant 0 : index
    %c0_89 = arith.constant 0 : index
    %296 = vector.load %arg3[%c0_88, %c0_89] : memref<128x384xbf16, #tpu.memory_space<vmem>>, vector<128x384xbf16>
    %cst_90 = arith.constant dense<0.000000e+00> : vector<8x384xf32>
    %297 = tpu.matmul %295, %296, %cst_90 {dimension_numbers = #tpu.dot_dimension_numbers<[1], [0], [0], [1], [0, 0, 1, 1], [], []>} : vector<8x128xbf16>, vector<128x384xbf16>, vector<8x384xf32> -> vector<8x384xf32>
    %298 = vector.extract_strided_slice %294 {offsets = [0, 0], sizes = [8, 128], strides = [1, 1]} : vector<8x384xf32> to vector<8x128xf32>
    %299 = vector.extract_strided_slice %297 {offsets = [0, 0], sizes = [8, 128], strides = [1, 1]} : vector<8x384xf32> to vector<8x128xf32>
    %300 = arith.addf %298, %299 : vector<8x128xf32>
    %301 = arith.negf %300 : vector<8x128xf32>
    %302 = math.exp %301 : vector<8x128xf32>
    %cst_91 = arith.constant 1.000000e+00 : f32
    %303 = vector.broadcast %cst_91 : f32 to vector<8x128xf32>
    %304 = arith.addf %303, %302 : vector<8x128xf32>
    %305 = arith.divf %303, %304 : vector<8x128xf32>
    %306 = vector.extract_strided_slice %294 {offsets = [0, 128], sizes = [8, 128], strides = [1, 1]} : vector<8x384xf32> to vector<8x128xf32>
    %307 = vector.extract_strided_slice %297 {offsets = [0, 128], sizes = [8, 128], strides = [1, 1]} : vector<8x384xf32> to vector<8x128xf32>
    %308 = arith.addf %306, %307 : vector<8x128xf32>
    %309 = arith.negf %308 : vector<8x128xf32>
    %310 = math.exp %309 : vector<8x128xf32>
    %cst_92 = arith.constant 1.000000e+00 : f32
    %311 = vector.broadcast %cst_92 : f32 to vector<8x128xf32>
    %312 = arith.addf %311, %310 : vector<8x128xf32>
    %313 = arith.divf %311, %312 : vector<8x128xf32>
    %314 = vector.extract_strided_slice %294 {offsets = [0, 256], sizes = [8, 128], strides = [1, 1]} : vector<8x384xf32> to vector<8x128xf32>
    %315 = vector.extract_strided_slice %297 {offsets = [0, 256], sizes = [8, 128], strides = [1, 1]} : vector<8x384xf32> to vector<8x128xf32>
    %c0_93 = arith.constant 0 : index
    %c0_94 = arith.constant 0 : index
    %316 = vector.load %arg4[%c0_93, %c0_94] : memref<1x128xf32, #tpu.memory_space<vmem>>, vector<1x128xf32>
    %317 = vector.broadcast %316 : vector<1x128xf32> to vector<8x128xf32>
    %318 = arith.addf %315, %317 : vector<8x128xf32>
    %319 = arith.mulf %305, %318 : vector<8x128xf32>
    %320 = arith.addf %314, %319 : vector<8x128xf32>
    %321 = math.tanh %320 : vector<8x128xf32>
    %cst_95 = arith.constant 1.000000e+00 : f32
    %322 = vector.broadcast %cst_95 : f32 to vector<8x128xf32>
    %323 = arith.subf %322, %313 : vector<8x128xf32>
    %324 = arith.mulf %323, %321 : vector<8x128xf32>
    %325 = arith.mulf %313, %285 : vector<8x128xf32>
    %326 = arith.addf %324, %325 : vector<8x128xf32>
    %327 = arith.truncf %326 : vector<8x128xf32> to vector<8x128xbf16>
    %328 = arith.index_cast %c7_i32 : i32 to index
    %c0_96 = arith.constant 0 : index
    %c0_97 = arith.constant 0 : index
    %329 = vector.load %arg5[%328, %c0_96, %c0_97] : memref<16x8x128xbf16, #tpu.memory_space<vmem>>, vector<1x8x128xbf16>
    %330 = vector.shape_cast %329 : vector<1x8x128xbf16> to vector<8x128xbf16>
    %331 = vector.shape_cast %327 : vector<8x128xbf16> to vector<1x8x128xbf16>
    tpu.vector_store %arg5[%328, %c0_96, %c0_97], %331 {strides = array<i32>} : memref<16x8x128xbf16, #tpu.memory_space<vmem>>, vector<1x8x128xbf16>,
    %c8_i32 = arith.constant 8 : i32
    %332 = arith.index_cast %c8_i32 : i32 to index
    %c0_98 = arith.constant 0 : index
    %c0_99 = arith.constant 0 : index
    %333 = vector.load %arg1[%332, %c0_98, %c0_99] : memref<16x8x384xbf16, #tpu.memory_space<vmem>>, vector<1x8x384xbf16>
    %334 = vector.shape_cast %333 : vector<1x8x384xbf16> to vector<8x384xbf16>
    %335 = arith.extf %334 : vector<8x384xbf16> to vector<8x384xf32>
    %336 = arith.truncf %326 : vector<8x128xf32> to vector<8x128xbf16>
    %c0_100 = arith.constant 0 : index
    %c0_101 = arith.constant 0 : index
    %337 = vector.load %arg3[%c0_100, %c0_101] : memref<128x384xbf16, #tpu.memory_space<vmem>>, vector<128x384xbf16>
    %cst_102 = arith.constant dense<0.000000e+00> : vector<8x384xf32>
    %338 = tpu.matmul %336, %337, %cst_102 {dimension_numbers = #tpu.dot_dimension_numbers<[1], [0], [0], [1], [0, 0, 1, 1], [], []>} : vector<8x128xbf16>, vector<128x384xbf16>, vector<8x384xf32> -> vector<8x384xf32>
    %339 = vector.extract_strided_slice %335 {offsets = [0, 0], sizes = [8, 128], strides = [1, 1]} : vector<8x384xf32> to vector<8x128xf32>
    %340 = vector.extract_strided_slice %338 {offsets = [0, 0], sizes = [8, 128], strides = [1, 1]} : vector<8x384xf32> to vector<8x128xf32>
    %341 = arith.addf %339, %340 : vector<8x128xf32>
    %342 = arith.negf %341 : vector<8x128xf32>
    %343 = math.exp %342 : vector<8x128xf32>
    %cst_103 = arith.constant 1.000000e+00 : f32
    %344 = vector.broadcast %cst_103 : f32 to vector<8x128xf32>
    %345 = arith.addf %344, %343 : vector<8x128xf32>
    %346 = arith.divf %344, %345 : vector<8x128xf32>
    %347 = vector.extract_strided_slice %335 {offsets = [0, 128], sizes = [8, 128], strides = [1, 1]} : vector<8x384xf32> to vector<8x128xf32>
    %348 = vector.extract_strided_slice %338 {offsets = [0, 128], sizes = [8, 128], strides = [1, 1]} : vector<8x384xf32> to vector<8x128xf32>
    %349 = arith.addf %347, %348 : vector<8x128xf32>
    %350 = arith.negf %349 : vector<8x128xf32>
    %351 = math.exp %350 : vector<8x128xf32>
    %cst_104 = arith.constant 1.000000e+00 : f32
    %352 = vector.broadcast %cst_104 : f32 to vector<8x128xf32>
    %353 = arith.addf %352, %351 : vector<8x128xf32>
    %354 = arith.divf %352, %353 : vector<8x128xf32>
    %355 = vector.extract_strided_slice %335 {offsets = [0, 256], sizes = [8, 128], strides = [1, 1]} : vector<8x384xf32> to vector<8x128xf32>
    %356 = vector.extract_strided_slice %338 {offsets = [0, 256], sizes = [8, 128], strides = [1, 1]} : vector<8x384xf32> to vector<8x128xf32>
    %c0_105 = arith.constant 0 : index
    %c0_106 = arith.constant 0 : index
    %357 = vector.load %arg4[%c0_105, %c0_106] : memref<1x128xf32, #tpu.memory_space<vmem>>, vector<1x128xf32>
    %358 = vector.broadcast %357 : vector<1x128xf32> to vector<8x128xf32>
    %359 = arith.addf %356, %358 : vector<8x128xf32>
    %360 = arith.mulf %346, %359 : vector<8x128xf32>
    %361 = arith.addf %355, %360 : vector<8x128xf32>
    %362 = math.tanh %361 : vector<8x128xf32>
    %cst_107 = arith.constant 1.000000e+00 : f32
    %363 = vector.broadcast %cst_107 : f32 to vector<8x128xf32>
    %364 = arith.subf %363, %354 : vector<8x128xf32>
    %365 = arith.mulf %364, %362 : vector<8x128xf32>
    %366 = arith.mulf %354, %326 : vector<8x128xf32>
    %367 = arith.addf %365, %366 : vector<8x128xf32>
    %368 = arith.truncf %367 : vector<8x128xf32> to vector<8x128xbf16>
    %369 = arith.index_cast %c8_i32 : i32 to index
    %c0_108 = arith.constant 0 : index
    %c0_109 = arith.constant 0 : index
    %370 = vector.load %arg5[%369, %c0_108, %c0_109] : memref<16x8x128xbf16, #tpu.memory_space<vmem>>, vector<1x8x128xbf16>
    %371 = vector.shape_cast %370 : vector<1x8x128xbf16> to vector<8x128xbf16>
    %372 = vector.shape_cast %368 : vector<8x128xbf16> to vector<1x8x128xbf16>
    tpu.vector_store %arg5[%369, %c0_108, %c0_109], %372 {strides = array<i32>} : memref<16x8x128xbf16, #tpu.memory_space<vmem>>, vector<1x8x128xbf16>,
    %c9_i32 = arith.constant 9 : i32
    %373 = arith.index_cast %c9_i32 : i32 to index
    %c0_110 = arith.constant 0 : index
    %c0_111 = arith.constant 0 : index
    %374 = vector.load %arg1[%373, %c0_110, %c0_111] : memref<16x8x384xbf16, #tpu.memory_space<vmem>>, vector<1x8x384xbf16>
    %375 = vector.shape_cast %374 : vector<1x8x384xbf16> to vector<8x384xbf16>
    %376 = arith.extf %375 : vector<8x384xbf16> to vector<8x384xf32>
    %377 = arith.truncf %367 : vector<8x128xf32> to vector<8x128xbf16>
    %c0_112 = arith.constant 0 : index
    %c0_113 = arith.constant 0 : index
    %378 = vector.load %arg3[%c0_112, %c0_113] : memref<128x384xbf16, #tpu.memory_space<vmem>>, vector<128x384xbf16>
    %cst_114 = arith.constant dense<0.000000e+00> : vector<8x384xf32>
    %379 = tpu.matmul %377, %378, %cst_114 {dimension_numbers = #tpu.dot_dimension_numbers<[1], [0], [0], [1], [0, 0, 1, 1], [], []>} : vector<8x128xbf16>, vector<128x384xbf16>, vector<8x384xf32> -> vector<8x384xf32>
    %380 = vector.extract_strided_slice %376 {offsets = [0, 0], sizes = [8, 128], strides = [1, 1]} : vector<8x384xf32> to vector<8x128xf32>
    %381 = vector.extract_strided_slice %379 {offsets = [0, 0], sizes = [8, 128], strides = [1, 1]} : vector<8x384xf32> to vector<8x128xf32>
    %382 = arith.addf %380, %381 : vector<8x128xf32>
    %383 = arith.negf %382 : vector<8x128xf32>
    %384 = math.exp %383 : vector<8x128xf32>
    %cst_115 = arith.constant 1.000000e+00 : f32
    %385 = vector.broadcast %cst_115 : f32 to vector<8x128xf32>
    %386 = arith.addf %385, %384 : vector<8x128xf32>
    %387 = arith.divf %385, %386 : vector<8x128xf32>
    %388 = vector.extract_strided_slice %376 {offsets = [0, 128], sizes = [8, 128], strides = [1, 1]} : vector<8x384xf32> to vector<8x128xf32>
    %389 = vector.extract_strided_slice %379 {offsets = [0, 128], sizes = [8, 128], strides = [1, 1]} : vector<8x384xf32> to vector<8x128xf32>
    %390 = arith.addf %388, %389 : vector<8x128xf32>
    %391 = arith.negf %390 : vector<8x128xf32>
    %392 = math.exp %391 : vector<8x128xf32>
    %cst_116 = arith.constant 1.000000e+00 : f32
    %393 = vector.broadcast %cst_116 : f32 to vector<8x128xf32>
    %394 = arith.addf %393, %392 : vector<8x128xf32>
    %395 = arith.divf %393, %394 : vector<8x128xf32>
    %396 = vector.extract_strided_slice %376 {offsets = [0, 256], sizes = [8, 128], strides = [1, 1]} : vector<8x384xf32> to vector<8x128xf32>
    %397 = vector.extract_strided_slice %379 {offsets = [0, 256], sizes = [8, 128], strides = [1, 1]} : vector<8x384xf32> to vector<8x128xf32>
    %c0_117 = arith.constant 0 : index
    %c0_118 = arith.constant 0 : index
    %398 = vector.load %arg4[%c0_117, %c0_118] : memref<1x128xf32, #tpu.memory_space<vmem>>, vector<1x128xf32>
    %399 = vector.broadcast %398 : vector<1x128xf32> to vector<8x128xf32>
    %400 = arith.addf %397, %399 : vector<8x128xf32>
    %401 = arith.mulf %387, %400 : vector<8x128xf32>
    %402 = arith.addf %396, %401 : vector<8x128xf32>
    %403 = math.tanh %402 : vector<8x128xf32>
    %cst_119 = arith.constant 1.000000e+00 : f32
    %404 = vector.broadcast %cst_119 : f32 to vector<8x128xf32>
    %405 = arith.subf %404, %395 : vector<8x128xf32>
    %406 = arith.mulf %405, %403 : vector<8x128xf32>
    %407 = arith.mulf %395, %367 : vector<8x128xf32>
    %408 = arith.addf %406, %407 : vector<8x128xf32>
    %409 = arith.truncf %408 : vector<8x128xf32> to vector<8x128xbf16>
    %410 = arith.index_cast %c9_i32 : i32 to index
    %c0_120 = arith.constant 0 : index
    %c0_121 = arith.constant 0 : index
    %411 = vector.load %arg5[%410, %c0_120, %c0_121] : memref<16x8x128xbf16, #tpu.memory_space<vmem>>, vector<1x8x128xbf16>
    %412 = vector.shape_cast %411 : vector<1x8x128xbf16> to vector<8x128xbf16>
    %413 = vector.shape_cast %409 : vector<8x128xbf16> to vector<1x8x128xbf16>
    tpu.vector_store %arg5[%410, %c0_120, %c0_121], %413 {strides = array<i32>} : memref<16x8x128xbf16, #tpu.memory_space<vmem>>, vector<1x8x128xbf16>,
    %c10_i32 = arith.constant 10 : i32
    %414 = arith.index_cast %c10_i32 : i32 to index
    %c0_122 = arith.constant 0 : index
    %c0_123 = arith.constant 0 : index
    %415 = vector.load %arg1[%414, %c0_122, %c0_123] : memref<16x8x384xbf16, #tpu.memory_space<vmem>>, vector<1x8x384xbf16>
    %416 = vector.shape_cast %415 : vector<1x8x384xbf16> to vector<8x384xbf16>
    %417 = arith.extf %416 : vector<8x384xbf16> to vector<8x384xf32>
    %418 = arith.truncf %408 : vector<8x128xf32> to vector<8x128xbf16>
    %c0_124 = arith.constant 0 : index
    %c0_125 = arith.constant 0 : index
    %419 = vector.load %arg3[%c0_124, %c0_125] : memref<128x384xbf16, #tpu.memory_space<vmem>>, vector<128x384xbf16>
    %cst_126 = arith.constant dense<0.000000e+00> : vector<8x384xf32>
    %420 = tpu.matmul %418, %419, %cst_126 {dimension_numbers = #tpu.dot_dimension_numbers<[1], [0], [0], [1], [0, 0, 1, 1], [], []>} : vector<8x128xbf16>, vector<128x384xbf16>, vector<8x384xf32> -> vector<8x384xf32>
    %421 = vector.extract_strided_slice %417 {offsets = [0, 0], sizes = [8, 128], strides = [1, 1]} : vector<8x384xf32> to vector<8x128xf32>
    %422 = vector.extract_strided_slice %420 {offsets = [0, 0], sizes = [8, 128], strides = [1, 1]} : vector<8x384xf32> to vector<8x128xf32>
    %423 = arith.addf %421, %422 : vector<8x128xf32>
    %424 = arith.negf %423 : vector<8x128xf32>
    %425 = math.exp %424 : vector<8x128xf32>
    %cst_127 = arith.constant 1.000000e+00 : f32
    %426 = vector.broadcast %cst_127 : f32 to vector<8x128xf32>
    %427 = arith.addf %426, %425 : vector<8x128xf32>
    %428 = arith.divf %426, %427 : vector<8x128xf32>
    %429 = vector.extract_strided_slice %417 {offsets = [0, 128], sizes = [8, 128], strides = [1, 1]} : vector<8x384xf32> to vector<8x128xf32>
    %430 = vector.extract_strided_slice %420 {offsets = [0, 128], sizes = [8, 128], strides = [1, 1]} : vector<8x384xf32> to vector<8x128xf32>
    %431 = arith.addf %429, %430 : vector<8x128xf32>
    %432 = arith.negf %431 : vector<8x128xf32>
    %433 = math.exp %432 : vector<8x128xf32>
    %cst_128 = arith.constant 1.000000e+00 : f32
    %434 = vector.broadcast %cst_128 : f32 to vector<8x128xf32>
    %435 = arith.addf %434, %433 : vector<8x128xf32>
    %436 = arith.divf %434, %435 : vector<8x128xf32>
    %437 = vector.extract_strided_slice %417 {offsets = [0, 256], sizes = [8, 128], strides = [1, 1]} : vector<8x384xf32> to vector<8x128xf32>
    %438 = vector.extract_strided_slice %420 {offsets = [0, 256], sizes = [8, 128], strides = [1, 1]} : vector<8x384xf32> to vector<8x128xf32>
    %c0_129 = arith.constant 0 : index
    %c0_130 = arith.constant 0 : index
    %439 = vector.load %arg4[%c0_129, %c0_130] : memref<1x128xf32, #tpu.memory_space<vmem>>, vector<1x128xf32>
    %440 = vector.broadcast %439 : vector<1x128xf32> to vector<8x128xf32>
    %441 = arith.addf %438, %440 : vector<8x128xf32>
    %442 = arith.mulf %428, %441 : vector<8x128xf32>
    %443 = arith.addf %437, %442 : vector<8x128xf32>
    %444 = math.tanh %443 : vector<8x128xf32>
    %cst_131 = arith.constant 1.000000e+00 : f32
    %445 = vector.broadcast %cst_131 : f32 to vector<8x128xf32>
    %446 = arith.subf %445, %436 : vector<8x128xf32>
    %447 = arith.mulf %446, %444 : vector<8x128xf32>
    %448 = arith.mulf %436, %408 : vector<8x128xf32>
    %449 = arith.addf %447, %448 : vector<8x128xf32>
    %450 = arith.truncf %449 : vector<8x128xf32> to vector<8x128xbf16>
    %451 = arith.index_cast %c10_i32 : i32 to index
    %c0_132 = arith.constant 0 : index
    %c0_133 = arith.constant 0 : index
    %452 = vector.load %arg5[%451, %c0_132, %c0_133] : memref<16x8x128xbf16, #tpu.memory_space<vmem>>, vector<1x8x128xbf16>
    %453 = vector.shape_cast %452 : vector<1x8x128xbf16> to vector<8x128xbf16>
    %454 = vector.shape_cast %450 : vector<8x128xbf16> to vector<1x8x128xbf16>
    tpu.vector_store %arg5[%451, %c0_132, %c0_133], %454 {strides = array<i32>} : memref<16x8x128xbf16, #tpu.memory_space<vmem>>, vector<1x8x128xbf16>,
    %c11_i32 = arith.constant 11 : i32
    %455 = arith.index_cast %c11_i32 : i32 to index
    %c0_134 = arith.constant 0 : index
    %c0_135 = arith.constant 0 : index
    %456 = vector.load %arg1[%455, %c0_134, %c0_135] : memref<16x8x384xbf16, #tpu.memory_space<vmem>>, vector<1x8x384xbf16>
    %457 = vector.shape_cast %456 : vector<1x8x384xbf16> to vector<8x384xbf16>
    %458 = arith.extf %457 : vector<8x384xbf16> to vector<8x384xf32>
    %459 = arith.truncf %449 : vector<8x128xf32> to vector<8x128xbf16>
    %c0_136 = arith.constant 0 : index
    %c0_137 = arith.constant 0 : index
    %460 = vector.load %arg3[%c0_136, %c0_137] : memref<128x384xbf16, #tpu.memory_space<vmem>>, vector<128x384xbf16>
    %cst_138 = arith.constant dense<0.000000e+00> : vector<8x384xf32>
    %461 = tpu.matmul %459, %460, %cst_138 {dimension_numbers = #tpu.dot_dimension_numbers<[1], [0], [0], [1], [0, 0, 1, 1], [], []>} : vector<8x128xbf16>, vector<128x384xbf16>, vector<8x384xf32> -> vector<8x384xf32>
    %462 = vector.extract_strided_slice %458 {offsets = [0, 0], sizes = [8, 128], strides = [1, 1]} : vector<8x384xf32> to vector<8x128xf32>
    %463 = vector.extract_strided_slice %461 {offsets = [0, 0], sizes = [8, 128], strides = [1, 1]} : vector<8x384xf32> to vector<8x128xf32>
    %464 = arith.addf %462, %463 : vector<8x128xf32>
    %465 = arith.negf %464 : vector<8x128xf32>
    %466 = math.exp %465 : vector<8x128xf32>
    %cst_139 = arith.constant 1.000000e+00 : f32
    %467 = vector.broadcast %cst_139 : f32 to vector<8x128xf32>
    %468 = arith.addf %467, %466 : vector<8x128xf32>
    %469 = arith.divf %467, %468 : vector<8x128xf32>
    %470 = vector.extract_strided_slice %458 {offsets = [0, 128], sizes = [8, 128], strides = [1, 1]} : vector<8x384xf32> to vector<8x128xf32>
    %471 = vector.extract_strided_slice %461 {offsets = [0, 128], sizes = [8, 128], strides = [1, 1]} : vector<8x384xf32> to vector<8x128xf32>
    %472 = arith.addf %470, %471 : vector<8x128xf32>
    %473 = arith.negf %472 : vector<8x128xf32>
    %474 = math.exp %473 : vector<8x128xf32>
    %cst_140 = arith.constant 1.000000e+00 : f32
    %475 = vector.broadcast %cst_140 : f32 to vector<8x128xf32>
    %476 = arith.addf %475, %474 : vector<8x128xf32>
    %477 = arith.divf %475, %476 : vector<8x128xf32>
    %478 = vector.extract_strided_slice %458 {offsets = [0, 256], sizes = [8, 128], strides = [1, 1]} : vector<8x384xf32> to vector<8x128xf32>
    %479 = vector.extract_strided_slice %461 {offsets = [0, 256], sizes = [8, 128], strides = [1, 1]} : vector<8x384xf32> to vector<8x128xf32>
    %c0_141 = arith.constant 0 : index
    %c0_142 = arith.constant 0 : index
    %480 = vector.load %arg4[%c0_141, %c0_142] : memref<1x128xf32, #tpu.memory_space<vmem>>, vector<1x128xf32>
    %481 = vector.broadcast %480 : vector<1x128xf32> to vector<8x128xf32>
    %482 = arith.addf %479, %481 : vector<8x128xf32>
    %483 = arith.mulf %469, %482 : vector<8x128xf32>
    %484 = arith.addf %478, %483 : vector<8x128xf32>
    %485 = math.tanh %484 : vector<8x128xf32>
    %cst_143 = arith.constant 1.000000e+00 : f32
    %486 = vector.broadcast %cst_143 : f32 to vector<8x128xf32>
    %487 = arith.subf %486, %477 : vector<8x128xf32>
    %488 = arith.mulf %487, %485 : vector<8x128xf32>
    %489 = arith.mulf %477, %449 : vector<8x128xf32>
    %490 = arith.addf %488, %489 : vector<8x128xf32>
    %491 = arith.truncf %490 : vector<8x128xf32> to vector<8x128xbf16>
    %492 = arith.index_cast %c11_i32 : i32 to index
    %c0_144 = arith.constant 0 : index
    %c0_145 = arith.constant 0 : index
    %493 = vector.load %arg5[%492, %c0_144, %c0_145] : memref<16x8x128xbf16, #tpu.memory_space<vmem>>, vector<1x8x128xbf16>
    %494 = vector.shape_cast %493 : vector<1x8x128xbf16> to vector<8x128xbf16>
    %495 = vector.shape_cast %491 : vector<8x128xbf16> to vector<1x8x128xbf16>
    tpu.vector_store %arg5[%492, %c0_144, %c0_145], %495 {strides = array<i32>} : memref<16x8x128xbf16, #tpu.memory_space<vmem>>, vector<1x8x128xbf16>,
    %c12_i32 = arith.constant 12 : i32
    %496 = arith.index_cast %c12_i32 : i32 to index
    %c0_146 = arith.constant 0 : index
    %c0_147 = arith.constant 0 : index
    %497 = vector.load %arg1[%496, %c0_146, %c0_147] : memref<16x8x384xbf16, #tpu.memory_space<vmem>>, vector<1x8x384xbf16>
    %498 = vector.shape_cast %497 : vector<1x8x384xbf16> to vector<8x384xbf16>
    %499 = arith.extf %498 : vector<8x384xbf16> to vector<8x384xf32>
    %500 = arith.truncf %490 : vector<8x128xf32> to vector<8x128xbf16>
    %c0_148 = arith.constant 0 : index
    %c0_149 = arith.constant 0 : index
    %501 = vector.load %arg3[%c0_148, %c0_149] : memref<128x384xbf16, #tpu.memory_space<vmem>>, vector<128x384xbf16>
    %cst_150 = arith.constant dense<0.000000e+00> : vector<8x384xf32>
    %502 = tpu.matmul %500, %501, %cst_150 {dimension_numbers = #tpu.dot_dimension_numbers<[1], [0], [0], [1], [0, 0, 1, 1], [], []>} : vector<8x128xbf16>, vector<128x384xbf16>, vector<8x384xf32> -> vector<8x384xf32>
    %503 = vector.extract_strided_slice %499 {offsets = [0, 0], sizes = [8, 128], strides = [1, 1]} : vector<8x384xf32> to vector<8x128xf32>
    %504 = vector.extract_strided_slice %502 {offsets = [0, 0], sizes = [8, 128], strides = [1, 1]} : vector<8x384xf32> to vector<8x128xf32>
    %505 = arith.addf %503, %504 : vector<8x128xf32>
    %506 = arith.negf %505 : vector<8x128xf32>
    %507 = math.exp %506 : vector<8x128xf32>
    %cst_151 = arith.constant 1.000000e+00 : f32
    %508 = vector.broadcast %cst_151 : f32 to vector<8x128xf32>
    %509 = arith.addf %508, %507 : vector<8x128xf32>
    %510 = arith.divf %508, %509 : vector<8x128xf32>
    %511 = vector.extract_strided_slice %499 {offsets = [0, 128], sizes = [8, 128], strides = [1, 1]} : vector<8x384xf32> to vector<8x128xf32>
    %512 = vector.extract_strided_slice %502 {offsets = [0, 128], sizes = [8, 128], strides = [1, 1]} : vector<8x384xf32> to vector<8x128xf32>
    %513 = arith.addf %511, %512 : vector<8x128xf32>
    %514 = arith.negf %513 : vector<8x128xf32>
    %515 = math.exp %514 : vector<8x128xf32>
    %cst_152 = arith.constant 1.000000e+00 : f32
    %516 = vector.broadcast %cst_152 : f32 to vector<8x128xf32>
    %517 = arith.addf %516, %515 : vector<8x128xf32>
    %518 = arith.divf %516, %517 : vector<8x128xf32>
    %519 = vector.extract_strided_slice %499 {offsets = [0, 256], sizes = [8, 128], strides = [1, 1]} : vector<8x384xf32> to vector<8x128xf32>
    %520 = vector.extract_strided_slice %502 {offsets = [0, 256], sizes = [8, 128], strides = [1, 1]} : vector<8x384xf32> to vector<8x128xf32>
    %c0_153 = arith.constant 0 : index
    %c0_154 = arith.constant 0 : index
    %521 = vector.load %arg4[%c0_153, %c0_154] : memref<1x128xf32, #tpu.memory_space<vmem>>, vector<1x128xf32>
    %522 = vector.broadcast %521 : vector<1x128xf32> to vector<8x128xf32>
    %523 = arith.addf %520, %522 : vector<8x128xf32>
    %524 = arith.mulf %510, %523 : vector<8x128xf32>
    %525 = arith.addf %519, %524 : vector<8x128xf32>
    %526 = math.tanh %525 : vector<8x128xf32>
    %cst_155 = arith.constant 1.000000e+00 : f32
    %527 = vector.broadcast %cst_155 : f32 to vector<8x128xf32>
    %528 = arith.subf %527, %518 : vector<8x128xf32>
    %529 = arith.mulf %528, %526 : vector<8x128xf32>
    %530 = arith.mulf %518, %490 : vector<8x128xf32>
    %531 = arith.addf %529, %530 : vector<8x128xf32>
    %532 = arith.truncf %531 : vector<8x128xf32> to vector<8x128xbf16>
    %533 = arith.index_cast %c12_i32 : i32 to index
    %c0_156 = arith.constant 0 : index
    %c0_157 = arith.constant 0 : index
    %534 = vector.load %arg5[%533, %c0_156, %c0_157] : memref<16x8x128xbf16, #tpu.memory_space<vmem>>, vector<1x8x128xbf16>
    %535 = vector.shape_cast %534 : vector<1x8x128xbf16> to vector<8x128xbf16>
    %536 = vector.shape_cast %532 : vector<8x128xbf16> to vector<1x8x128xbf16>
    tpu.vector_store %arg5[%533, %c0_156, %c0_157], %536 {strides = array<i32>} : memref<16x8x128xbf16, #tpu.memory_space<vmem>>, vector<1x8x128xbf16>,
    %c13_i32 = arith.constant 13 : i32
    %537 = arith.index_cast %c13_i32 : i32 to index
    %c0_158 = arith.constant 0 : index
    %c0_159 = arith.constant 0 : index
    %538 = vector.load %arg1[%537, %c0_158, %c0_159] : memref<16x8x384xbf16, #tpu.memory_space<vmem>>, vector<1x8x384xbf16>
    %539 = vector.shape_cast %538 : vector<1x8x384xbf16> to vector<8x384xbf16>
    %540 = arith.extf %539 : vector<8x384xbf16> to vector<8x384xf32>
    %541 = arith.truncf %531 : vector<8x128xf32> to vector<8x128xbf16>
    %c0_160 = arith.constant 0 : index
    %c0_161 = arith.constant 0 : index
    %542 = vector.load %arg3[%c0_160, %c0_161] : memref<128x384xbf16, #tpu.memory_space<vmem>>, vector<128x384xbf16>
    %cst_162 = arith.constant dense<0.000000e+00> : vector<8x384xf32>
    %543 = tpu.matmul %541, %542, %cst_162 {dimension_numbers = #tpu.dot_dimension_numbers<[1], [0], [0], [1], [0, 0, 1, 1], [], []>} : vector<8x128xbf16>, vector<128x384xbf16>, vector<8x384xf32> -> vector<8x384xf32>
    %544 = vector.extract_strided_slice %540 {offsets = [0, 0], sizes = [8, 128], strides = [1, 1]} : vector<8x384xf32> to vector<8x128xf32>
    %545 = vector.extract_strided_slice %543 {offsets = [0, 0], sizes = [8, 128], strides = [1, 1]} : vector<8x384xf32> to vector<8x128xf32>
    %546 = arith.addf %544, %545 : vector<8x128xf32>
    %547 = arith.negf %546 : vector<8x128xf32>
    %548 = math.exp %547 : vector<8x128xf32>
    %cst_163 = arith.constant 1.000000e+00 : f32
    %549 = vector.broadcast %cst_163 : f32 to vector<8x128xf32>
    %550 = arith.addf %549, %548 : vector<8x128xf32>
    %551 = arith.divf %549, %550 : vector<8x128xf32>
    %552 = vector.extract_strided_slice %540 {offsets = [0, 128], sizes = [8, 128], strides = [1, 1]} : vector<8x384xf32> to vector<8x128xf32>
    %553 = vector.extract_strided_slice %543 {offsets = [0, 128], sizes = [8, 128], strides = [1, 1]} : vector<8x384xf32> to vector<8x128xf32>
    %554 = arith.addf %552, %553 : vector<8x128xf32>
    %555 = arith.negf %554 : vector<8x128xf32>
    %556 = math.exp %555 : vector<8x128xf32>
    %cst_164 = arith.constant 1.000000e+00 : f32
    %557 = vector.broadcast %cst_164 : f32 to vector<8x128xf32>
    %558 = arith.addf %557, %556 : vector<8x128xf32>
    %559 = arith.divf %557, %558 : vector<8x128xf32>
    %560 = vector.extract_strided_slice %540 {offsets = [0, 256], sizes = [8, 128], strides = [1, 1]} : vector<8x384xf32> to vector<8x128xf32>
    %561 = vector.extract_strided_slice %543 {offsets = [0, 256], sizes = [8, 128], strides = [1, 1]} : vector<8x384xf32> to vector<8x128xf32>
    %c0_165 = arith.constant 0 : index
    %c0_166 = arith.constant 0 : index
    %562 = vector.load %arg4[%c0_165, %c0_166] : memref<1x128xf32, #tpu.memory_space<vmem>>, vector<1x128xf32>
    %563 = vector.broadcast %562 : vector<1x128xf32> to vector<8x128xf32>
    %564 = arith.addf %561, %563 : vector<8x128xf32>
    %565 = arith.mulf %551, %564 : vector<8x128xf32>
    %566 = arith.addf %560, %565 : vector<8x128xf32>
    %567 = math.tanh %566 : vector<8x128xf32>
    %cst_167 = arith.constant 1.000000e+00 : f32
    %568 = vector.broadcast %cst_167 : f32 to vector<8x128xf32>
    %569 = arith.subf %568, %559 : vector<8x128xf32>
    %570 = arith.mulf %569, %567 : vector<8x128xf32>
    %571 = arith.mulf %559, %531 : vector<8x128xf32>
    %572 = arith.addf %570, %571 : vector<8x128xf32>
    %573 = arith.truncf %572 : vector<8x128xf32> to vector<8x128xbf16>
    %574 = arith.index_cast %c13_i32 : i32 to index
    %c0_168 = arith.constant 0 : index
    %c0_169 = arith.constant 0 : index
    %575 = vector.load %arg5[%574, %c0_168, %c0_169] : memref<16x8x128xbf16, #tpu.memory_space<vmem>>, vector<1x8x128xbf16>
    %576 = vector.shape_cast %575 : vector<1x8x128xbf16> to vector<8x128xbf16>
    %577 = vector.shape_cast %573 : vector<8x128xbf16> to vector<1x8x128xbf16>
    tpu.vector_store %arg5[%574, %c0_168, %c0_169], %577 {strides = array<i32>} : memref<16x8x128xbf16, #tpu.memory_space<vmem>>, vector<1x8x128xbf16>,
    %c14_i32 = arith.constant 14 : i32
    %578 = arith.index_cast %c14_i32 : i32 to index
    %c0_170 = arith.constant 0 : index
    %c0_171 = arith.constant 0 : index
    %579 = vector.load %arg1[%578, %c0_170, %c0_171] : memref<16x8x384xbf16, #tpu.memory_space<vmem>>, vector<1x8x384xbf16>
    %580 = vector.shape_cast %579 : vector<1x8x384xbf16> to vector<8x384xbf16>
    %581 = arith.extf %580 : vector<8x384xbf16> to vector<8x384xf32>
    %582 = arith.truncf %572 : vector<8x128xf32> to vector<8x128xbf16>
    %c0_172 = arith.constant 0 : index
    %c0_173 = arith.constant 0 : index
    %583 = vector.load %arg3[%c0_172, %c0_173] : memref<128x384xbf16, #tpu.memory_space<vmem>>, vector<128x384xbf16>
    %cst_174 = arith.constant dense<0.000000e+00> : vector<8x384xf32>
    %584 = tpu.matmul %582, %583, %cst_174 {dimension_numbers = #tpu.dot_dimension_numbers<[1], [0], [0], [1], [0, 0, 1, 1], [], []>} : vector<8x128xbf16>, vector<128x384xbf16>, vector<8x384xf32> -> vector<8x384xf32>
    %585 = vector.extract_strided_slice %581 {offsets = [0, 0], sizes = [8, 128], strides = [1, 1]} : vector<8x384xf32> to vector<8x128xf32>
    %586 = vector.extract_strided_slice %584 {offsets = [0, 0], sizes = [8, 128], strides = [1, 1]} : vector<8x384xf32> to vector<8x128xf32>
    %587 = arith.addf %585, %586 : vector<8x128xf32>
    %588 = arith.negf %587 : vector<8x128xf32>
    %589 = math.exp %588 : vector<8x128xf32>
    %cst_175 = arith.constant 1.000000e+00 : f32
    %590 = vector.broadcast %cst_175 : f32 to vector<8x128xf32>
    %591 = arith.addf %590, %589 : vector<8x128xf32>
    %592 = arith.divf %590, %591 : vector<8x128xf32>
    %593 = vector.extract_strided_slice %581 {offsets = [0, 128], sizes = [8, 128], strides = [1, 1]} : vector<8x384xf32> to vector<8x128xf32>
    %594 = vector.extract_strided_slice %584 {offsets = [0, 128], sizes = [8, 128], strides = [1, 1]} : vector<8x384xf32> to vector<8x128xf32>
    %595 = arith.addf %593, %594 : vector<8x128xf32>
    %596 = arith.negf %595 : vector<8x128xf32>
    %597 = math.exp %596 : vector<8x128xf32>
    %cst_176 = arith.constant 1.000000e+00 : f32
    %598 = vector.broadcast %cst_176 : f32 to vector<8x128xf32>
    %599 = arith.addf %598, %597 : vector<8x128xf32>
    %600 = arith.divf %598, %599 : vector<8x128xf32>
    %601 = vector.extract_strided_slice %581 {offsets = [0, 256], sizes = [8, 128], strides = [1, 1]} : vector<8x384xf32> to vector<8x128xf32>
    %602 = vector.extract_strided_slice %584 {offsets = [0, 256], sizes = [8, 128], strides = [1, 1]} : vector<8x384xf32> to vector<8x128xf32>
    %c0_177 = arith.constant 0 : index
    %c0_178 = arith.constant 0 : index
    %603 = vector.load %arg4[%c0_177, %c0_178] : memref<1x128xf32, #tpu.memory_space<vmem>>, vector<1x128xf32>
    %604 = vector.broadcast %603 : vector<1x128xf32> to vector<8x128xf32>
    %605 = arith.addf %602, %604 : vector<8x128xf32>
    %606 = arith.mulf %592, %605 : vector<8x128xf32>
    %607 = arith.addf %601, %606 : vector<8x128xf32>
    %608 = math.tanh %607 : vector<8x128xf32>
    %cst_179 = arith.constant 1.000000e+00 : f32
    %609 = vector.broadcast %cst_179 : f32 to vector<8x128xf32>
    %610 = arith.subf %609, %600 : vector<8x128xf32>
    %611 = arith.mulf %610, %608 : vector<8x128xf32>
    %612 = arith.mulf %600, %572 : vector<8x128xf32>
    %613 = arith.addf %611, %612 : vector<8x128xf32>
    %614 = arith.truncf %613 : vector<8x128xf32> to vector<8x128xbf16>
    %615 = arith.index_cast %c14_i32 : i32 to index
    %c0_180 = arith.constant 0 : index
    %c0_181 = arith.constant 0 : index
    %616 = vector.load %arg5[%615, %c0_180, %c0_181] : memref<16x8x128xbf16, #tpu.memory_space<vmem>>, vector<1x8x128xbf16>
    %617 = vector.shape_cast %616 : vector<1x8x128xbf16> to vector<8x128xbf16>
    %618 = vector.shape_cast %614 : vector<8x128xbf16> to vector<1x8x128xbf16>
    tpu.vector_store %arg5[%615, %c0_180, %c0_181], %618 {strides = array<i32>} : memref<16x8x128xbf16, #tpu.memory_space<vmem>>, vector<1x8x128xbf16>,
    %c15_i32 = arith.constant 15 : i32
    %619 = arith.index_cast %c15_i32 : i32 to index
    %c0_182 = arith.constant 0 : index
    %c0_183 = arith.constant 0 : index
    %620 = vector.load %arg1[%619, %c0_182, %c0_183] : memref<16x8x384xbf16, #tpu.memory_space<vmem>>, vector<1x8x384xbf16>
    %621 = vector.shape_cast %620 : vector<1x8x384xbf16> to vector<8x384xbf16>
    %622 = arith.extf %621 : vector<8x384xbf16> to vector<8x384xf32>
    %623 = arith.truncf %613 : vector<8x128xf32> to vector<8x128xbf16>
    %c0_184 = arith.constant 0 : index
    %c0_185 = arith.constant 0 : index
    %624 = vector.load %arg3[%c0_184, %c0_185] : memref<128x384xbf16, #tpu.memory_space<vmem>>, vector<128x384xbf16>
    %cst_186 = arith.constant dense<0.000000e+00> : vector<8x384xf32>
    %625 = tpu.matmul %623, %624, %cst_186 {dimension_numbers = #tpu.dot_dimension_numbers<[1], [0], [0], [1], [0, 0, 1, 1], [], []>} : vector<8x128xbf16>, vector<128x384xbf16>, vector<8x384xf32> -> vector<8x384xf32>
    %626 = vector.extract_strided_slice %622 {offsets = [0, 0], sizes = [8, 128], strides = [1, 1]} : vector<8x384xf32> to vector<8x128xf32>
    %627 = vector.extract_strided_slice %625 {offsets = [0, 0], sizes = [8, 128], strides = [1, 1]} : vector<8x384xf32> to vector<8x128xf32>
    %628 = arith.addf %626, %627 : vector<8x128xf32>
    %629 = arith.negf %628 : vector<8x128xf32>
    %630 = math.exp %629 : vector<8x128xf32>
    %cst_187 = arith.constant 1.000000e+00 : f32
    %631 = vector.broadcast %cst_187 : f32 to vector<8x128xf32>
    %632 = arith.addf %631, %630 : vector<8x128xf32>
    %633 = arith.divf %631, %632 : vector<8x128xf32>
    %634 = vector.extract_strided_slice %622 {offsets = [0, 128], sizes = [8, 128], strides = [1, 1]} : vector<8x384xf32> to vector<8x128xf32>
    %635 = vector.extract_strided_slice %625 {offsets = [0, 128], sizes = [8, 128], strides = [1, 1]} : vector<8x384xf32> to vector<8x128xf32>
    %636 = arith.addf %634, %635 : vector<8x128xf32>
    %637 = arith.negf %636 : vector<8x128xf32>
    %638 = math.exp %637 : vector<8x128xf32>
    %cst_188 = arith.constant 1.000000e+00 : f32
    %639 = vector.broadcast %cst_188 : f32 to vector<8x128xf32>
    %640 = arith.addf %639, %638 : vector<8x128xf32>
    %641 = arith.divf %639, %640 : vector<8x128xf32>
    %642 = vector.extract_strided_slice %622 {offsets = [0, 256], sizes = [8, 128], strides = [1, 1]} : vector<8x384xf32> to vector<8x128xf32>
    %643 = vector.extract_strided_slice %625 {offsets = [0, 256], sizes = [8, 128], strides = [1, 1]} : vector<8x384xf32> to vector<8x128xf32>
    %c0_189 = arith.constant 0 : index
    %c0_190 = arith.constant 0 : index
    %644 = vector.load %arg4[%c0_189, %c0_190] : memref<1x128xf32, #tpu.memory_space<vmem>>, vector<1x128xf32>
    %645 = vector.broadcast %644 : vector<1x128xf32> to vector<8x128xf32>
    %646 = arith.addf %643, %645 : vector<8x128xf32>
    %647 = arith.mulf %633, %646 : vector<8x128xf32>
    %648 = arith.addf %642, %647 : vector<8x128xf32>
    %649 = math.tanh %648 : vector<8x128xf32>
    %cst_191 = arith.constant 1.000000e+00 : f32
    %650 = vector.broadcast %cst_191 : f32 to vector<8x128xf32>
    %651 = arith.subf %650, %641 : vector<8x128xf32>
    %652 = arith.mulf %651, %649 : vector<8x128xf32>
    %653 = arith.mulf %641, %613 : vector<8x128xf32>
    %654 = arith.addf %652, %653 : vector<8x128xf32>
    %655 = arith.truncf %654 : vector<8x128xf32> to vector<8x128xbf16>
    %656 = arith.index_cast %c15_i32 : i32 to index
    %c0_192 = arith.constant 0 : index
    %c0_193 = arith.constant 0 : index
    %657 = vector.load %arg5[%656, %c0_192, %c0_193] : memref<16x8x128xbf16, #tpu.memory_space<vmem>>, vector<1x8x128xbf16>
    %658 = vector.shape_cast %657 : vector<1x8x128xbf16> to vector<8x128xbf16>
    %659 = vector.shape_cast %655 : vector<8x128xbf16> to vector<1x8x128xbf16>
    tpu.vector_store %arg5[%656, %c0_192, %c0_193], %659 {strides = array<i32>} : memref<16x8x128xbf16, #tpu.memory_space<vmem>>, vector<1x8x128xbf16>,
    %c16_i32 = arith.constant 16 : i32
    %c0_194 = arith.constant 0 : index
    %c0_195 = arith.constant 0 : index
    %660 = vector.load %arg6[%c0_194, %c0_195] : memref<8x128xf32, #tpu.memory_space<vmem>>, vector<8x128xf32>
    tpu.vector_store %arg6[%c0_194, %c0_195], %654 {strides = array<i32>} : memref<8x128xf32, #tpu.memory_space<vmem>>, vector<8x128xf32>,
    return
  }
  func.func @transform_0(%arg0: i32) -> (i32, i32, i32) {
    %c0_i32 = arith.constant 0 : i32
    %c0_i32_0 = arith.constant 0 : i32
    %c0_i32_1 = arith.constant 0 : i32
    return %arg0, %c0_i32, %c0_i32_0 : i32, i32, i32
  }
  func.func @transform_1(%arg0: i32) -> (i32, i32) {
    %c0_i32 = arith.constant 0 : i32
    %c0_i32_0 = arith.constant 0 : i32
    %c0_i32_1 = arith.constant 0 : i32
    return %c0_i32, %c0_i32_0 : i32, i32
  }
  func.func @transform_2(%arg0: i32) -> (i32, i32) {
    %c0_i32 = arith.constant 0 : i32
    %c0_i32_0 = arith.constant 0 : i32
    %c0_i32_1 = arith.constant 0 : i32
    return %c0_i32, %c0_i32_0 : i32, i32
  }
  func.func @transform_3(%arg0: i32) -> (i32, i32) {
    %c0_i32 = arith.constant 0 : i32
    %c0_i32_0 = arith.constant 0 : i32
    %c0_i32_1 = arith.constant 0 : i32
    return %c0_i32, %c0_i32_0 : i32, i32
  }
  func.func @transform_4(%arg0: i32) -> (i32, i32, i32) {
    %c0_i32 = arith.constant 0 : i32
    %c0_i32_0 = arith.constant 0 : i32
    %c0_i32_1 = arith.constant 0 : i32
    return %arg0, %c0_i32, %c0_i32_0 : i32, i32, i32
  }
  func.func @transform_5(%arg0: i32) -> (i32, i32) {
    %c0_i32 = arith.constant 0 : i32
    %c0_i32_0 = arith.constant 0 : i32
    %c0_i32_1 = arith.constant 0 : i32
    return %c0_i32, %c0_i32_0 : i32, i32
  }
}

module attributes {stable_mosaic.version = 11 : i64} {
  func.func @_mlp_kernel(%arg0: i32, %arg1: memref<128x128xbf16, #tpu.memory_space<vmem>>, %arg2: memref<128x64xbf16, #tpu.memory_space<vmem>>, %arg3: memref<1x64xf32, #tpu.memory_space<vmem>>, %arg4: memref<64x32xbf16, #tpu.memory_space<vmem>>, %arg5: memref<1x32xf32, #tpu.memory_space<vmem>>, %arg6: memref<32x128xbf16, #tpu.memory_space<vmem>>, %arg7: memref<1x128xf32, #tpu.memory_space<vmem>>, %arg8: memref<128x128xf32, #tpu.memory_space<vmem>>) attributes {dimension_semantics = [#tpu.dimension_semantics<parallel>], iteration_bounds = array<i64: 2>, scalar_prefetch = 0 : i64, scratch_operands = 0 : i64, tpu.core_type = #tpu.core_type<tc>, window_params = [{transform_indices = @transform_0, window_bounds = array<i64: 128, 128>}, {pipeline_mode = #tpu.pipeline_mode<synchronous>, transform_indices = @transform_1, window_bounds = array<i64: 128, 64>}, {pipeline_mode = #tpu.pipeline_mode<synchronous>, transform_indices = @transform_2, window_bounds = array<i64: 1, 64>}, {pipeline_mode = #tpu.pipeline_mode<synchronous>, transform_indices = @transform_3, window_bounds = array<i64: 64, 32>}, {pipeline_mode = #tpu.pipeline_mode<synchronous>, transform_indices = @transform_4, window_bounds = array<i64: 1, 32>}, {pipeline_mode = #tpu.pipeline_mode<synchronous>, transform_indices = @transform_5, window_bounds = array<i64: 32, 128>}, {pipeline_mode = #tpu.pipeline_mode<synchronous>, transform_indices = @transform_6, window_bounds = array<i64: 1, 128>}, {transform_indices = @transform_7, window_bounds = array<i64: 128, 128>}]} {
    %c0 = arith.constant 0 : index
    %c0_0 = arith.constant 0 : index
    %0 = vector.load %arg1[%c0, %c0_0] : memref<128x128xbf16, #tpu.memory_space<vmem>>, vector<128x128xbf16>
    %c0_1 = arith.constant 0 : index
    %c0_2 = arith.constant 0 : index
    %1 = vector.load %arg2[%c0_1, %c0_2] : memref<128x64xbf16, #tpu.memory_space<vmem>>, vector<128x64xbf16>
    %cst = arith.constant dense<0.000000e+00> : vector<128x64xf32>
    %2 = tpu.matmul %0, %1, %cst {dimension_numbers = #tpu.dot_dimension_numbers<[1], [0], [0], [1], [0, 0, 1, 1], [], []>} : vector<128x128xbf16>, vector<128x64xbf16>, vector<128x64xf32> -> vector<128x64xf32>
    %c0_3 = arith.constant 0 : index
    %c0_4 = arith.constant 0 : index
    %3 = vector.load %arg3[%c0_3, %c0_4] : memref<1x64xf32, #tpu.memory_space<vmem>>, vector<1x64xf32>
    %4 = vector.broadcast %3 : vector<1x64xf32> to vector<128x64xf32>
    %5 = arith.addf %2, %4 : vector<128x64xf32>
    %cst_5 = arith.constant 0.000000e+00 : f32
    %6 = vector.broadcast %cst_5 : f32 to vector<128x64xf32>
    %7 = arith.cmpf ogt, %5, %6 : vector<128x64xf32>
    %cst_6 = arith.constant 0.00999999977 : f32
    %8 = vector.broadcast %cst_6 : f32 to vector<128x64xf32>
    %9 = arith.mulf %8, %5 : vector<128x64xf32>
    %10 = arith.select %7, %5, %9 : vector<128x64xi1>, vector<128x64xf32>
    %11 = arith.truncf %10 : vector<128x64xf32> to vector<128x64xbf16>
    %c0_7 = arith.constant 0 : index
    %c0_8 = arith.constant 0 : index
    %12 = vector.load %arg4[%c0_7, %c0_8] : memref<64x32xbf16, #tpu.memory_space<vmem>>, vector<64x32xbf16>
    %cst_9 = arith.constant dense<0.000000e+00> : vector<128x32xf32>
    %13 = tpu.matmul %11, %12, %cst_9 {dimension_numbers = #tpu.dot_dimension_numbers<[1], [0], [0], [1], [0, 0, 1, 1], [], []>} : vector<128x64xbf16>, vector<64x32xbf16>, vector<128x32xf32> -> vector<128x32xf32>
    %c0_10 = arith.constant 0 : index
    %c0_11 = arith.constant 0 : index
    %14 = vector.load %arg5[%c0_10, %c0_11] : memref<1x32xf32, #tpu.memory_space<vmem>>, vector<1x32xf32>
    %15 = vector.broadcast %14 : vector<1x32xf32> to vector<128x32xf32>
    %16 = arith.addf %13, %15 : vector<128x32xf32>
    %cst_12 = arith.constant 0.000000e+00 : f32
    %17 = vector.broadcast %cst_12 : f32 to vector<128x32xf32>
    %18 = arith.cmpf ogt, %16, %17 : vector<128x32xf32>
    %cst_13 = arith.constant 0.00999999977 : f32
    %19 = vector.broadcast %cst_13 : f32 to vector<128x32xf32>
    %20 = arith.mulf %19, %16 : vector<128x32xf32>
    %21 = arith.select %18, %16, %20 : vector<128x32xi1>, vector<128x32xf32>
    %22 = arith.truncf %21 : vector<128x32xf32> to vector<128x32xbf16>
    %c0_14 = arith.constant 0 : index
    %c0_15 = arith.constant 0 : index
    %23 = vector.load %arg6[%c0_14, %c0_15] : memref<32x128xbf16, #tpu.memory_space<vmem>>, vector<32x128xbf16>
    %cst_16 = arith.constant dense<0.000000e+00> : vector<128x128xf32>
    %24 = tpu.matmul %22, %23, %cst_16 {dimension_numbers = #tpu.dot_dimension_numbers<[1], [0], [0], [1], [0, 0, 1, 1], [], []>} : vector<128x32xbf16>, vector<32x128xbf16>, vector<128x128xf32> -> vector<128x128xf32>
    %c0_17 = arith.constant 0 : index
    %c0_18 = arith.constant 0 : index
    %25 = vector.load %arg7[%c0_17, %c0_18] : memref<1x128xf32, #tpu.memory_space<vmem>>, vector<1x128xf32>
    %26 = vector.broadcast %25 : vector<1x128xf32> to vector<128x128xf32>
    %27 = arith.addf %24, %26 : vector<128x128xf32>
    %c0_19 = arith.constant 0 : index
    %c0_20 = arith.constant 0 : index
    %28 = vector.load %arg8[%c0_19, %c0_20] : memref<128x128xf32, #tpu.memory_space<vmem>>, vector<128x128xf32>
    tpu.vector_store %arg8[%c0_19, %c0_20], %27 {strides = array<i32>} : memref<128x128xf32, #tpu.memory_space<vmem>>, vector<128x128xf32>,
    return
  }
  func.func @transform_0(%arg0: i32) -> (i32, i32) {
    %c0_i32 = arith.constant 0 : i32
    %c0_i32_0 = arith.constant 0 : i32
    return %arg0, %c0_i32 : i32, i32
  }
  func.func @transform_1(%arg0: i32) -> (i32, i32) {
    %c0_i32 = arith.constant 0 : i32
    %c0_i32_0 = arith.constant 0 : i32
    %c0_i32_1 = arith.constant 0 : i32
    return %c0_i32, %c0_i32_0 : i32, i32
  }
  func.func @transform_2(%arg0: i32) -> (i32, i32) {
    %c0_i32 = arith.constant 0 : i32
    %c0_i32_0 = arith.constant 0 : i32
    %c0_i32_1 = arith.constant 0 : i32
    return %c0_i32, %c0_i32_0 : i32, i32
  }
  func.func @transform_3(%arg0: i32) -> (i32, i32) {
    %c0_i32 = arith.constant 0 : i32
    %c0_i32_0 = arith.constant 0 : i32
    %c0_i32_1 = arith.constant 0 : i32
    return %c0_i32, %c0_i32_0 : i32, i32
  }
  func.func @transform_4(%arg0: i32) -> (i32, i32) {
    %c0_i32 = arith.constant 0 : i32
    %c0_i32_0 = arith.constant 0 : i32
    %c0_i32_1 = arith.constant 0 : i32
    return %c0_i32, %c0_i32_0 : i32, i32
  }
  func.func @transform_5(%arg0: i32) -> (i32, i32) {
    %c0_i32 = arith.constant 0 : i32
    %c0_i32_0 = arith.constant 0 : i32
    %c0_i32_1 = arith.constant 0 : i32
    return %c0_i32, %c0_i32_0 : i32, i32
  }
  func.func @transform_6(%arg0: i32) -> (i32, i32) {
    %c0_i32 = arith.constant 0 : i32
    %c0_i32_0 = arith.constant 0 : i32
    %c0_i32_1 = arith.constant 0 : i32
    return %c0_i32, %c0_i32_0 : i32, i32
  }
  func.func @transform_7(%arg0: i32) -> (i32, i32) {
    %c0_i32 = arith.constant 0 : i32
    %c0_i32_0 = arith.constant 0 : i32
    return %arg0, %c0_i32 : i32, i32
  }
}

</mosaic_0001>

<llo_original>
// kernel: _lambda_.3
$region0: #{_lambda_.3}
  #allocation0 [shape = 'u32[]', space=smem, size = 0x4, offset = 0x4, fixed_abs, tag = 'smem constant byte address 0x4 - core index']
  #allocation1 [shape = 'u32[144,128]{1,0:T(1,128)}', space=vmem, size = 0x12000, scoped, tag = 'internal scratch']
  %s0 = inlined_call_operand.hbm [shape: f32[256,40], index: 0, kind: input, shape index: {}]
  %s1 = inlined_call_operand.hbm [shape: bf16[40,384], index: 1, kind: input, shape index: {}]
  %s2 = inlined_call_operand.vmem [shape: f32[1,384], index: 2, kind: input, shape index: {}]
  %s3 = inlined_call_operand.vmem [shape: bf16[256,384], index: 3, kind: output, shape index: {}]
  %s4 = sld [smem:[#allocation0]]
  $region53: #{_lambda_.3} parent=0
    _
  %s6 = ssub.s32 1, %s4
  %s7 = scalar_select 0, %s6, %s4
  $region1: #{_lambda_.3} parent=0
    #allocation2 [shape = 'u8[131072]{0}', space=vmem, size = 0x20000, scoped, tag = 'input window, operand 0']
    #allocation3 [shape = 's32[2]{0}', space=sflag, size = 0x8, scoped, tag = 'scoped memory for _lambda_.3']
    #allocation4 [shape = 'u8[30720]{0}', space=vmem, size = 0x7800, scoped, tag = 'input window, operand 1, single buffered']
    #allocation5 [shape = 's32[1]{0}', space=sflag, size = 0x4, scoped, tag = 'scoped memory for _lambda_.3']
    %8 = vsyncpa [#allocation3], 0
    %s9 = scalar_lea.sflag [#allocation3], 1
    %10 = vsyncpa %s9, 0
    %11 = vsyncpa [#allocation5], 0
    loop: start=0, step=1, limit=4
    $region2: #{_lambda_.3} parent=1 // loop_pre_header
      _
    $region3: #{_lambda_.3} parent=1 // loop_header
      %s13 = sphi 0, %s17
      %p14 = scmp.ge.s32.totalorder %s13, 4
      %s23 = sphi 0, %s25
      %s26 = sphi 0, %s23
      %s27 = sphi 0, %s26
      %s43 = sphi 0, %s27
      %s47 = sphi 0, %s47
      %s49 = sphi 0, %s47
      %s50 = sphi 0, %s49
      %s64 = sphi 0, %s50
      %s68 = sphi 0, %s68
      %s70 = sphi 0, %s68
      %s71 = sphi 0, %s70
      %s85 = sphi 0, %s71
      %s91 = sphi 0, %s93
      %s94 = sphi 0, %s91
      %s95 = sphi 0, %s94
      %s111 = sphi 0, %s95
    $region4: #{_lambda_.3} parent=1 // loop_header_branch
      %16 = sbr.rel (%p14) target = $region8
    $region5: #{_lambda_.3} parent=1 // loop_body
      %s18 = ssub.s32 %s13, 1
      %s19 = ssub.s32 %s13, 2
      %s20 = sadd.s32 %s13, 1
      %s21 = ssub.s32 %s13, %s20
      %p22 = scmp.eq.s32.totalorder %s21, 0
      %s24 = sadd.s32 %s23, 1
      %s25 = scalar_select %p22, %s23, %s24
      %p28 = pneg %p22
      %p29 = scmp.eq.s32.totalorder %s13, 1
      %p30 = por %p28, %p29
      %p31 = scmp.ne.s32.totalorder %s23, %s26
      %p32 = scmp.eq.s32.totalorder %s13, 0
      %p33 = por %p31, %p32
      %p34 = scmp.ne.s32.totalorder %s23, %s26
      %p35 = scmp.eq.s32.totalorder %s18, 1
      %p36 = por %p34, %p35
      %p37 = scmp.ne.s32.totalorder %s26, %s27
      %p38 = scmp.eq.s32.totalorder %s18, 0
      %p39 = por %p37, %p38
      %p40 = scmp.ne.s32.totalorder %s26, %s27
      %p41 = scmp.eq.s32.totalorder %s19, 1
      %p42 = por %p40, %p41
      %p44 = scmp.ne.s32.totalorder %s27, %s43
      %p45 = scmp.eq.s32.totalorder %s19, 0
      %p46 = por %p44, %p45
      %s48 = sadd.s32 %s47, 1
      %p51 = scmp.eq.s32.totalorder %s13, 1
      %p52 = scmp.ne.s32.totalorder %s47, %s49
      %p53 = scmp.eq.s32.totalorder %s13, 0
      %p54 = por %p52, %p53
      %p55 = scmp.ne.s32.totalorder %s47, %s49
      %p56 = scmp.eq.s32.totalorder %s18, 1
      %p57 = por %p55, %p56
      %p58 = scmp.ne.s32.totalorder %s49, %s50
      %p59 = scmp.eq.s32.totalorder %s18, 0
      %p60 = por %p58, %p59
      %p61 = scmp.ne.s32.totalorder %s49, %s50
      %p62 = scmp.eq.s32.totalorder %s19, 1
      %p63 = por %p61, %p62
      %p65 = scmp.ne.s32.totalorder %s50, %s64
      %p66 = scmp.eq.s32.totalorder %s19, 0
      %p67 = por %p65, %p66
      %s69 = sadd.s32 %s68, 1
      %p72 = scmp.eq.s32.totalorder %s13, 1
      %p73 = scmp.ne.s32.totalorder %s68, %s70
      %p74 = scmp.eq.s32.totalorder %s13, 0
      %p75 = por %p73, %p74
      %p76 = scmp.ne.s32.totalorder %s68, %s70
      %p77 = scmp.eq.s32.totalorder %s18, 1
      %p78 = por %p76, %p77
      %p79 = scmp.ne.s32.totalorder %s70, %s71
      %p80 = scmp.eq.s32.totalorder %s18, 0
      %p81 = por %p79, %p80
      %p82 = scmp.ne.s32.totalorder %s70, %s71
      %p83 = scmp.eq.s32.totalorder %s19, 1
      %p84 = por %p82, %p83
      %p86 = scmp.ne.s32.totalorder %s71, %s85
      %p87 = scmp.eq.s32.totalorder %s19, 0
      %p88 = por %p86, %p87
      %s89 = ssub.s32 %s13, %s20
      %p90 = scmp.eq.s32.totalorder %s89, 0
      %s92 = sadd.s32 %s91, 1
      %s93 = scalar_select %p90, %s91, %s92
      %p96 = pneg %p90
      %p97 = scmp.eq.s32.totalorder %s13, 1
      %p98 = por %p96, %p97
      %p99 = scmp.ne.s32.totalorder %s91, %s94
      %p100 = scmp.eq.s32.totalorder %s13, 0
      %p101 = por %p99, %p100
      %p102 = scmp.ne.s32.totalorder %s91, %s94
      %p103 = scmp.eq.s32.totalorder %s18, 1
      %p104 = por %p102, %p103
      %p105 = scmp.ne.s32.totalorder %s94, %s95
      %p106 = scmp.eq.s32.totalorder %s18, 0
      %p107 = por %p105, %p106
      %p108 = scmp.ne.s32.totalorder %s94, %s95
      %p109 = scmp.eq.s32.totalorder %s19, 1
      %p110 = por %p108, %p109
      %p112 = scmp.ne.s32.totalorder %s95, %s111
      %p113 = scmp.eq.s32.totalorder %s19, 0
      %p114 = por %p112, %p113
      %p115 = scmp.le.s32.totalorder 1, %s13
      %p116 = scmp.lt.s32.totalorder %s13, 3
      %p117 = pnand %p115, %p116
      %p118 = pneg %p117
      // Predicated region
      $region9: #{_lambda_.3} parent=5 // pred_check
        _
      $region10: #{_lambda_.3} parent=5 // pred_check_branch
        %120 = sbr.rel (%p117) target = $region12
      $region11: #{_lambda_.3} parent=5 // pred_region
        %s121 = ssub.s32 %s13, 1
        // Predicated region
        $region13: #{_lambda_.3} parent=11 // pred_check
          %p122 = pneg %p60
        $region14: #{_lambda_.3} parent=11 // pred_check_branch
          %124 = sbr.rel (%p122) target = $region16
        $region15: #{_lambda_.3} parent=11 // pred_region
          %s126 = ssub.s32 960, 960
          %127 = vsyncadd [#allocation5], %s126
          %s128 = sshll.u32 [#allocation4], 4
          %s129 = int_to_ptr.vmem [resolvable:$true] %s128
          %134 = dma.hbm_to_vmem [thread:$0]  %s1, 960, %s129, [#allocation5], 192, 192, 12
        $region16: #{_lambda_.3} parent=11 // pred_fallthru
          _
        // Predicated region
        $region17: #{_lambda_.3} parent=11 // pred_check
          %p135 = pneg %p81
        $region18: #{_lambda_.3} parent=11 // pred_check_branch
          %137 = sbr.rel (%p135) target = $region20
        $region19: #{_lambda_.3} parent=11 // pred_region
          _
        $region20: #{_lambda_.3} parent=11 // pred_fallthru
          _
      $region12: #{_lambda_.3} parent=5 // pred_fallthru
        _
      %p138 = scmp.lt.s32.totalorder %s13, 2
      // Predicated region
      $region21: #{_lambda_.3} parent=5 // pred_check
        %p139 = pneg %p138
      $region22: #{_lambda_.3} parent=5 // pred_check_branch
        %141 = sbr.rel (%p139) target = $region24
      $region23: #{_lambda_.3} parent=5 // pred_region
        // Predicated region
        $region25: #{_lambda_.3} parent=23 // pred_check
          %p142 = pneg %p33
        $region26: #{_lambda_.3} parent=23 // pred_check_branch
          %144 = sbr.rel (%p142) target = $region28
        $region27: #{_lambda_.3} parent=23 // pred_region
          %s145 = sand.u32 %s23, 1
          %s146 = scalar_lea.sflag [#allocation3], %s145
          %s147 = sand.u32 %s23, 1
          %s148 = smul.addr %s147, 128
          %s149 = scalar_lea.vmem [#allocation2], %s148
          %s150 = smul.u32 16, %s13
          %s152 = ssub.s32 2048, 2048
          %153 = vsyncadd %s146, %s152
          %s154 = smul.addr %s150, 128
          %s155 = scalar_lea.hbm %s0, %s154
          %s156 = sshll.u32 %s149, 4
          %s157 = int_to_ptr.vmem [resolvable:$true] %s156
          %162 = dma.hbm_to_vmem [thread:$0]  %s155, 2048, %s157, %s146, 128, 128, 8
        $region28: #{_lambda_.3} parent=23 // pred_fallthru
          _
      $region24: #{_lambda_.3} parent=5 // pred_fallthru
        _
      %p163 = scmp.le.s32.totalorder 1, %s13
      %p164 = scmp.lt.s32.totalorder %s13, 3
      %p165 = pnand %p163, %p164
      %p166 = pneg %p165
      // Predicated region
      $region29: #{_lambda_.3} parent=5 // pred_check
        _
      $region30: #{_lambda_.3} parent=5 // pred_check_branch
        %168 = sbr.rel (%p165) target = $region32
      $region31: #{_lambda_.3} parent=5 // pred_region
        %s169 = ssub.s32 %s13, 1
        %s170 = sand.u32 %s26, 1
        %s171 = scalar_lea.sflag [#allocation3], %s170
        %s172 = sand.u32 %s26, 1
        %s173 = smul.addr %s172, 128
        %s174 = scalar_lea.vmem [#allocation2], %s173
        // Predicated region
        $region33: #{_lambda_.3} parent=31 // pred_check
          %p175 = pneg %p39
        $region34: #{_lambda_.3} parent=31 // pred_check_branch
          %177 = sbr.rel (%p175) target = $region36
        $region35: #{_lambda_.3} parent=31 // pred_region
          %178 = dma.done %s171, 2048
        $region36: #{_lambda_.3} parent=31 // pred_fallthru
          _
        // Predicated region
        $region37: #{_lambda_.3} parent=31 // pred_check
          %p179 = pneg %p60
        $region38: #{_lambda_.3} parent=31 // pred_check_branch
          %181 = sbr.rel (%p179) target = $region40
        $region39: #{_lambda_.3} parent=31 // pred_region
          %182 = dma.done [#allocation5], 960
        $region40: #{_lambda_.3} parent=31 // pred_fallthru
          _
        %s183 = sand.u32 %s26, 1
        %s184 = scalar_lea.sflag [#allocation3], %s183
        %s185 = sand.u32 %s26, 1
        %s186 = smul.addr %s185, 128
        %s187 = scalar_lea.vmem [#allocation2], %s186
        %p188 = pneg %p39
        %p189 = pneg %p36
        %p190 = pneg %p60
        %p191 = pneg %p57
        %p192 = pneg %p81
        %p193 = pneg %p78
        %p194 = pneg %p107
        %p195 = pneg %p104
        %s196 = smul.u32 16, %s18
        %p197 = scmp.lt.s32.totalorder %s196, 31
        %s198 = scalar_select %p197, %s196, 31
        %s199 = smul.addr %s198, 3
        %s200 = smul.addr %s199, 4
        %s201 = scalar_lea.vmem %s3, %s200
        %s202 = smul.u32 16, %s18
        %s203 = smul.u32 16, %s18
        %p204 = scmp.lt.s32.totalorder %s203, 31
        %s205 = scalar_select %p204, %s203, 31
        %s206 = smul.addr %s205, 3
        %s207 = smul.addr %s206, 4
        %s208 = scalar_lea.vmem %s3, %s207
        %s209 = smul.u32 16, %s18
        %v211 = vld [vmem:[%s174] sm:$0xff]
        %v212 = vld [vmem:[%s174 + $0x8] sm:$0xff]
        %v213 = vld [vmem:[%s174 + $0x10] sm:$0xff]
        %v214 = vld [vmem:[%s174 + $0x18] sm:$0xff]
        %v215 = vld [vmem:[%s174 + $0x20] sm:$0xff]
        %v216 = vld [vmem:[%s174 + $0x28] sm:$0xff]
        %v217 = vld [vmem:[%s174 + $0x30] sm:$0xff]
        %v218 = vld [vmem:[%s174 + $0x38] sm:$0xff]
        %v219 = vld [vmem:[%s174 + $0x40] sm:$0xff]
        %v220 = vld [vmem:[%s174 + $0x48] sm:$0xff]
        %v221 = vld [vmem:[%s174 + $0x50] sm:$0xff]
        %v222 = vld [vmem:[%s174 + $0x58] sm:$0xff]
        %v223 = vld [vmem:[%s174 + $0x60] sm:$0xff]
        %v224 = vld [vmem:[%s174 + $0x68] sm:$0xff]
        %v225 = vld [vmem:[%s174 + $0x70] sm:$0xff]
        %v226 = vld [vmem:[%s174 + $0x78] sm:$0xff]
        %v227 = vpack.c.bf16 %v212, %v211
        %v228 = vpack.c.bf16 %v214, %v213
        %v229 = vpack.c.bf16 %v216, %v215
        %v230 = vpack.c.bf16 %v218, %v217
        %v231 = vpack.c.bf16 %v220, %v219
        %v232 = vpack.c.bf16 %v222, %v221
        %v233 = vpack.c.bf16 %v224, %v223
        %v234 = vpack.c.bf16 %v226, %v225
        %v235 = vld [vmem:[#allocation4] sm:$0xff]
        %v236 = vld [vmem:[#allocation4 + $0x8] sm:$0xf]
        %v237 = vld [vmem:[#allocation4 + $0xc] sm:$0xff]
        %v238 = vld [vmem:[#allocation4 + $0x14] sm:$0xf]
        %v239 = vld [vmem:[#allocation4 + $0x18] sm:$0xff]
        %v240 = vld [vmem:[#allocation4 + $0x20] sm:$0xf]
        %v241 = vld [vmem:[#allocation4 + $0x24] sm:$0xff]
        %v242 = vld [vmem:[#allocation4 + $0x2c] sm:$0xf]
        %v243 = vld [vmem:[#allocation4 + $0x30] sm:$0xff]
        %v244 = vld [vmem:[#allocation4 + $0x38] sm:$0xf]
        %v245 = vld [vmem:[%s2] sm:$0x7]
        %v247 = vlaneseq
        %v248 = vshrl.u32 %v247, 7
        %v249 = vsub.s32 0, %v248
        %v250 = vrot.slane %v245, %v249
        %v251 = vlaneseq
        %v252 = vshrl.u32 %v251, 7
        %v253 = vsub.s32 1, %v252
        %v254 = vrot.slane %v245, %v253
        %v255 = vlaneseq
        %v256 = vshrl.u32 %v255, 7
        %v257 = vsub.s32 2, %v256
        %v258 = vrot.slane %v245, %v257
        %v272 = vunpack.c.l.b16 %v235
        %v273 = vunpack.c.h.b16 %v235
        %v274 = vunpack.c.l.b16 %v236
        %v275 = vunpack.c.l.b16 %v237
        %v276 = vunpack.c.h.b16 %v237
        %v277 = vunpack.c.l.b16 %v238
        %v278 = vunpack.c.l.b16 %v239
        %v279 = vunpack.c.h.b16 %v239
        %v280 = vunpack.c.l.b16 %v240
        %v281 = vunpack.c.l.b16 %v241
        %v282 = vunpack.c.h.b16 %v241
        %v283 = vunpack.c.l.b16 %v242
        %v284 = vunpack.c.l.b16 %v243
        %v285 = vunpack.c.h.b16 %v243
        %v286 = vunpack.c.l.b16 %v244
        %v287 = vpack.c.b16 %v275, %v272
        %v288 = vpack.c.b16 %v276, %v273
        %v289 = vpack.c.b16 %v277, %v274
        %v290 = vpack.c.b16 %v281, %v278
        %v291 = vpack.c.b16 %v282, %v279
        %v292 = vpack.c.b16 %v283, %v280
        %v293 = vpack.c.b16 %v284, %v284
        %v294 = vpack.c.b16 %v285, %v285
        %v295 = vpack.c.b16 %v286, %v286
        %vm302 = vcmask 326656
        %v304 = vsel %vm302, %v227, 0
        %v307 = vsel %vm302, %v228, 0
        %v310 = vsel %vm302, %v229, 0
        %v313 = vsel %vm302, %v230, 0
        %v316 = vsel %vm302, %v231, 0
        %v319 = vsel %vm302, %v232, 0
        %v322 = vsel %vm302, %v233, 0
        %v325 = vsel %vm302, %v234, 0
        %vm327 = vcmask 1043456
        %v329 = vsel %vm327, %v293, 0
        %v332 = vsel %vm327, %v294, 0
        %v335 = vsel %vm327, %v295, 0
        %337 = vmatprep.subr.bf16.mxu0 0
        %338 = vmatpush1.bf16.msra.mxu0 0
        %339 = vmatprep.subr.bf16.mxu0 0
        %340 = vmatpush1.bf16.msra.mxu0 0
        %341 = vmatprep.subr.bf16.mxu0 0
        %342 = vmatpush1.bf16.msra.mxu0 0
        %343 = vmatprep.subr.bf16.mxu0 0
        %344 = vmatpush1.bf16.msra.mxu0 0
        %345 = vmatprep.subr.bf16.mxu0 0
        %346 = vmatpush1.bf16.msra.mxu0 0
        %347 = vmatprep.subr.bf16.mxu0 %v332
        %348 = vmatpush1.bf16.msra.mxu0 %v329
        %349 = vmatprep.subr.bf16.mxu0 %v291
        %350 = vmatpush1.bf16.msra.mxu0 %v290
        %351 = vmatprep.subr.bf16.mxu0 %v288
        %352 = vmatpush1.bf16.msra.mxu0 %v287
        %353 = vmatprep.subr.bf16.mxu0 0
        %354 = vmatpush2.bf16.msra.mxu0 0
        %355 = vmatprep.subr.bf16.mxu0 0
        %356 = vmatpush2.bf16.msra.mxu0 0
        %357 = vmatprep.subr.bf16.mxu0 0
        %358 = vmatpush2.bf16.msra.mxu0 0
        %359 = vmatprep.subr.bf16.mxu0 0
        %360 = vmatpush2.bf16.msra.mxu0 0
        %361 = vmatprep.subr.bf16.mxu0 0
        %362 = vmatpush2.bf16.msra.mxu0 0
        %363 = vmatprep.subr.bf16.mxu0 0
        %364 = vmatpush2.bf16.msra.mxu0 0
        %365 = vmatprep.subr.bf16.mxu0 0
        %366 = vmatpush2.bf16.msra.mxu0 0
        %367 = vmatprep.subr.bf16.mxu0 0
        %368 = vmatpush2.bf16.msra.mxu0 0
        %369 = vmatprep.mubr.bf16.mxu0 0
        %370 = vmatmul.mubr.bf16.gmra.mxu0 %v304
        %v371 = vpop.f32.mrf.mxu0
        %v372 = vadd.f32 %v250, %v371
        %v373 = vpop.f32.mrf.mxu0
        %v374 = vadd.f32 %v254, %v373
        %v375 = vpop.f32.mrf.mxu0
        %v376 = vadd.f32 %v250, %v375
        %v377 = vpop.f32.mrf.mxu0
        %v378 = vadd.f32 %v254, %v377
        %379 = vmatprep.mubr.bf16.mxu0 0
        %380 = vmatmul.mubr.bf16.gmra.mxu0 %v307
        %v381 = vpop.f32.mrf.mxu0
        %v382 = vadd.f32 %v250, %v381
        %v383 = vpop.f32.mrf.mxu0
        %v384 = vadd.f32 %v254, %v383
        %v385 = vpop.f32.mrf.mxu0
        %v386 = vadd.f32 %v250, %v385
        %v387 = vpop.f32.mrf.mxu0
        %v388 = vadd.f32 %v254, %v387
        %389 = vmatprep.mubr.bf16.mxu0 0
        %390 = vmatmul.mubr.bf16.gmra.mxu0 %v310
        %v391 = vpop.f32.mrf.mxu0
        %v392 = vadd.f32 %v250, %v391
        %v393 = vpop.f32.mrf.mxu0
        %v394 = vadd.f32 %v254, %v393
        %v395 = vpop.f32.mrf.mxu0
        %v396 = vadd.f32 %v250, %v395
        %v397 = vpop.f32.mrf.mxu0
        %v398 = vadd.f32 %v254, %v397
        %399 = vmatprep.mubr.bf16.mxu0 0
        %400 = vmatmul.mubr.bf16.gmra.mxu0 %v313
        %v401 = vpop.f32.mrf.mxu0
        %v402 = vadd.f32 %v250, %v401
        %v403 = vpop.f32.mrf.mxu0
        %v404 = vadd.f32 %v254, %v403
        %v405 = vpop.f32.mrf.mxu0
        %v406 = vadd.f32 %v250, %v405
        %v407 = vpop.f32.mrf.mxu0
        %v408 = vadd.f32 %v254, %v407
        %409 = vmatprep.mubr.bf16.mxu0 0
        %410 = vmatmul.mubr.bf16.gmra.mxu0 %v316
        %v411 = vpop.f32.mrf.mxu0
        %v412 = vadd.f32 %v250, %v411
        %v413 = vpop.f32.mrf.mxu0
        %v414 = vadd.f32 %v254, %v413
        %v415 = vpop.f32.mrf.mxu0
        %v416 = vadd.f32 %v250, %v415
        %v417 = vpop.f32.mrf.mxu0
        %v418 = vadd.f32 %v254, %v417
        %419 = vmatprep.mubr.bf16.mxu0 0
        %420 = vmatmul.mubr.bf16.gmra.mxu0 %v319
        %v421 = vpop.f32.mrf.mxu0
        %v422 = vadd.f32 %v250, %v421
        %v423 = vpop.f32.mrf.mxu0
        %v424 = vadd.f32 %v254, %v423
        %v425 = vpop.f32.mrf.mxu0
        %v426 = vadd.f32 %v250, %v425
        %v427 = vpop.f32.mrf.mxu0
        %v428 = vadd.f32 %v254, %v427
        %429 = vmatprep.mubr.bf16.mxu0 0
        %430 = vmatmul.mubr.bf16.gmra.mxu0 %v322
        %v431 = vpop.f32.mrf.mxu0
        %v432 = vadd.f32 %v250, %v431
        %v433 = vpop.f32.mrf.mxu0
        %v434 = vadd.f32 %v254, %v433
        %v435 = vpop.f32.mrf.mxu0
        %v436 = vadd.f32 %v250, %v435
        %v437 = vpop.f32.mrf.mxu0
        %v438 = vadd.f32 %v254, %v437
        %439 = vmatprep.mubr.bf16.mxu0 0
        %440 = vmatmul.mubr.bf16.gmra.mxu0 %v325
        %v441 = vpop.f32.mrf.mxu0
        %v442 = vadd.f32 %v250, %v441
        %v443 = vpop.f32.mrf.mxu0
        %v444 = vadd.f32 %v254, %v443
        %v445 = vpop.f32.mrf.mxu0
        %v446 = vadd.f32 %v250, %v445
        %v447 = vpop.f32.mrf.mxu0
        %v448 = vadd.f32 %v254, %v447
        %449 = vdwg.mxu0
        %450 = vmatprep.subr.bf16.mxu0 0
        %451 = vmatpush1.bf16.msra.mxu0 0
        %452 = vmatprep.subr.bf16.mxu0 0
        %453 = vmatpush1.bf16.msra.mxu0 0
        %454 = vmatprep.subr.bf16.mxu0 0
        %455 = vmatpush1.bf16.msra.mxu0 0
        %456 = vmatprep.subr.bf16.mxu0 0
        %457 = vmatpush1.bf16.msra.mxu0 0
        %458 = vmatprep.subr.bf16.mxu0 0
        %459 = vmatpush1.bf16.msra.mxu0 0
        %460 = vmatprep.subr.bf16.mxu0 0
        %461 = vmatpush1.bf16.msra.mxu0 %v335
        %462 = vmatprep.subr.bf16.mxu0 0
        %463 = vmatpush1.bf16.msra.mxu0 %v292
        %464 = vmatprep.subr.bf16.mxu0 0
        %465 = vmatpush1.bf16.msra.mxu0 %v289
        %466 = vmatprep.subr.bf16.mxu0 0
        %467 = vmatpush2.bf16.msra.mxu0 0
        %468 = vmatprep.subr.bf16.mxu0 0
        %469 = vmatpush2.bf16.msra.mxu0 0
        %470 = vmatprep.subr.bf16.mxu0 0
        %471 = vmatpush2.bf16.msra.mxu0 0
        %472 = vmatprep.subr.bf16.mxu0 0
        %473 = vmatpush2.bf16.msra.mxu0 0
        %474 = vmatprep.subr.bf16.mxu0 0
        %475 = vmatpush2.bf16.msra.mxu0 0
        %476 = vmatprep.subr.bf16.mxu0 0
        %477 = vmatpush2.bf16.msra.mxu0 0
        %478 = vmatprep.subr.bf16.mxu0 0
        %479 = vmatpush2.bf16.msra.mxu0 0
        %480 = vmatprep.subr.bf16.mxu0 0
        %481 = vmatpush2.bf16.msra.mxu0 0
        %482 = vmatprep.mubr.bf16.mxu0 0
        %483 = vmatmul.mubr.bf16.gmra.mxu0 %v304
        %v484 = vpop.f32.mrf.mxu0
        %v485 = vadd.f32 %v258, %v484
        %v486 = vpop.f32.mrf.mxu0
        %v487 = vpop.f32.mrf.mxu0
        %v488 = vadd.f32 %v258, %v487
        %v489 = vpop.f32.mrf.mxu0
        %490 = vmatprep.mubr.bf16.mxu0 0
        %491 = vmatmul.mubr.bf16.gmra.mxu0 %v307
        %v492 = vpop.f32.mrf.mxu0
        %v493 = vadd.f32 %v258, %v492
        %v494 = vpop.f32.mrf.mxu0
        %v495 = vpop.f32.mrf.mxu0
        %v496 = vadd.f32 %v258, %v495
        %v497 = vpop.f32.mrf.mxu0
        %498 = vmatprep.mubr.bf16.mxu0 0
        %499 = vmatmul.mubr.bf16.gmra.mxu0 %v310
        %v500 = vpop.f32.mrf.mxu0
        %v501 = vadd.f32 %v258, %v500
        %v502 = vpop.f32.mrf.mxu0
        %v503 = vpop.f32.mrf.mxu0
        %v504 = vadd.f32 %v258, %v503
        %v505 = vpop.f32.mrf.mxu0
        %506 = vmatprep.mubr.bf16.mxu0 0
        %507 = vmatmul.mubr.bf16.gmra.mxu0 %v313
        %v508 = vpop.f32.mrf.mxu0
        %v509 = vadd.f32 %v258, %v508
        %v510 = vpop.f32.mrf.mxu0
        %v511 = vpop.f32.mrf.mxu0
        %v512 = vadd.f32 %v258, %v511
        %v513 = vpop.f32.mrf.mxu0
        %514 = vmatprep.mubr.bf16.mxu0 0
        %515 = vmatmul.mubr.bf16.gmra.mxu0 %v316
        %v516 = vpop.f32.mrf.mxu0
        %v517 = vadd.f32 %v258, %v516
        %v518 = vpop.f32.mrf.mxu0
        %v519 = vpop.f32.mrf.mxu0
        %v520 = vadd.f32 %v258, %v519
        %v521 = vpop.f32.mrf.mxu0
        %522 = vmatprep.mubr.bf16.mxu0 0
        %523 = vmatmul.mubr.bf16.gmra.mxu0 %v319
        %v524 = vpop.f32.mrf.mxu0
        %v525 = vadd.f32 %v258, %v524
        %v526 = vpop.f32.mrf.mxu0
        %v527 = vpop.f32.mrf.mxu0
        %v528 = vadd.f32 %v258, %v527
        %v529 = vpop.f32.mrf.mxu0
        %530 = vmatprep.mubr.bf16.mxu0 0
        %531 = vmatmul.mubr.bf16.gmra.mxu0 %v322
        %v532 = vpop.f32.mrf.mxu0
        %v533 = vadd.f32 %v258, %v532
        %v534 = vpop.f32.mrf.mxu0
        %v535 = vpop.f32.mrf.mxu0
        %v536 = vadd.f32 %v258, %v535
        %v537 = vpop.f32.mrf.mxu0
        %538 = vmatprep.mubr.bf16.mxu0 0
        %539 = vmatmul.mubr.bf16.gmra.mxu0 %v325
        %v540 = vpop.f32.mrf.mxu0
        %v541 = vadd.f32 %v258, %v540
        %v542 = vpop.f32.mrf.mxu0
        %v543 = vpop.f32.mrf.mxu0
        %v544 = vadd.f32 %v258, %v543
        %v545 = vpop.f32.mrf.mxu0
        %546 = vdwg.mxu0
        %v547 = vpack.c.bf16 %v376, %v372
        %v548 = vpack.c.bf16 %v378, %v374
        %v549 = vpack.c.bf16 %v488, %v485
        %v550 = vpack.c.bf16 %v386, %v382
        %v551 = vpack.c.bf16 %v388, %v384
        %v552 = vpack.c.bf16 %v496, %v493
        %v553 = vpack.c.bf16 %v396, %v392
        %v554 = vpack.c.bf16 %v398, %v394
        %v555 = vpack.c.bf16 %v504, %v501
        %v556 = vpack.c.bf16 %v406, %v402
        %v557 = vpack.c.bf16 %v408, %v404
        %v558 = vpack.c.bf16 %v512, %v509
        %v559 = vpack.c.bf16 %v416, %v412
        %v560 = vpack.c.bf16 %v418, %v414
        %v561 = vpack.c.bf16 %v520, %v517
        %v562 = vpack.c.bf16 %v426, %v422
        %v563 = vpack.c.bf16 %v428, %v424
        %v564 = vpack.c.bf16 %v528, %v525
        %v565 = vpack.c.bf16 %v436, %v432
        %v566 = vpack.c.bf16 %v438, %v434
        %v567 = vpack.c.bf16 %v536, %v533
        %v568 = vpack.c.bf16 %v446, %v442
        %v569 = vpack.c.bf16 %v448, %v444
        %v570 = vpack.c.bf16 %v544, %v541
        %v595 = vunpack.c.l.b16 %v547
        %v596 = vunpack.c.l.b16 %v548
        %v597 = vunpack.c.l.b16 %v549
        %v598 = vunpack.c.h.b16 %v547
        %v599 = vunpack.c.h.b16 %v548
        %v600 = vunpack.c.h.b16 %v549
        %v601 = vunpack.c.l.b16 %v550
        %v602 = vunpack.c.l.b16 %v551
        %v603 = vunpack.c.l.b16 %v552
        %v604 = vunpack.c.h.b16 %v550
        %v605 = vunpack.c.h.b16 %v551
        %v606 = vunpack.c.h.b16 %v552
        %v607 = vunpack.c.l.b16 %v553
        %v608 = vunpack.c.l.b16 %v554
        %v609 = vunpack.c.l.b16 %v555
        %v610 = vunpack.c.h.b16 %v553
        %v611 = vunpack.c.h.b16 %v554
        %v612 = vunpack.c.h.b16 %v555
        %v613 = vunpack.c.l.b16 %v556
        %v614 = vunpack.c.l.b16 %v557
        %v615 = vunpack.c.l.b16 %v558
        %v616 = vunpack.c.h.b16 %v556
        %v617 = vunpack.c.h.b16 %v557
        %v618 = vunpack.c.h.b16 %v558
        %v619 = vunpack.c.l.b16 %v559
        %v620 = vunpack.c.l.b16 %v560
        %v621 = vunpack.c.l.b16 %v561
        %v622 = vunpack.c.h.b16 %v559
        %v623 = vunpack.c.h.b16 %v560
        %v624 = vunpack.c.h.b16 %v561
        %v625 = vunpack.c.l.b16 %v562
        %v626 = vunpack.c.l.b16 %v563
        %v627 = vunpack.c.l.b16 %v564
        %v628 = vunpack.c.h.b16 %v562
        %v629 = vunpack.c.h.b16 %v563
        %v630 = vunpack.c.h.b16 %v564
        %v631 = vunpack.c.l.b16 %v565
        %v632 = vunpack.c.l.b16 %v566
        %v633 = vunpack.c.l.b16 %v567
        %v634 = vunpack.c.h.b16 %v565
        %v635 = vunpack.c.h.b16 %v566
        %v636 = vunpack.c.h.b16 %v567
        %v637 = vunpack.c.l.b16 %v568
        %v638 = vunpack.c.l.b16 %v569
        %v639 = vunpack.c.l.b16 %v570
        %v640 = vunpack.c.h.b16 %v568
        %v641 = vunpack.c.h.b16 %v569
        %v642 = vunpack.c.h.b16 %v570
        %v643 = vpack.c.b16 %v596, %v595
        %v644 = vpack.c.b16 %v597, %v597
        %v645 = vpack.c.b16 %v599, %v598
        %v646 = vpack.c.b16 %v600, %v600
        %v647 = vpack.c.b16 %v602, %v601
        %v648 = vpack.c.b16 %v603, %v603
        %v649 = vpack.c.b16 %v605, %v604
        %v650 = vpack.c.b16 %v606, %v606
        %v651 = vpack.c.b16 %v608, %v607
        %v652 = vpack.c.b16 %v609, %v609
        %v653 = vpack.c.b16 %v611, %v610
        %v654 = vpack.c.b16 %v612, %v612
        %v655 = vpack.c.b16 %v614, %v613
        %v656 = vpack.c.b16 %v615, %v615
        %v657 = vpack.c.b16 %v617, %v616
        %v658 = vpack.c.b16 %v618, %v618
        %v659 = vpack.c.b16 %v620, %v619
        %v660 = vpack.c.b16 %v621, %v621
        %v661 = vpack.c.b16 %v623, %v622
        %v662 = vpack.c.b16 %v624, %v624
        %v663 = vpack.c.b16 %v626, %v625
        %v664 = vpack.c.b16 %v627, %v627
        %v665 = vpack.c.b16 %v629, %v628
        %v666 = vpack.c.b16 %v630, %v630
        %v667 = vpack.c.b16 %v632, %v631
        %v668 = vpack.c.b16 %v633, %v633
        %v669 = vpack.c.b16 %v635, %v634
        %v670 = vpack.c.b16 %v636, %v636
        %v671 = vpack.c.b16 %v638, %v637
        %v672 = vpack.c.b16 %v639, %v639
        %v673 = vpack.c.b16 %v641, %v640
        %v674 = vpack.c.b16 %v642, %v642
        %707 = vst [vmem:[%s208] sm:$0xff] %v643
        %708 = vst [vmem:[%s208 + $0x8] sm:$0xf] %v644
        %709 = vst [vmem:[%s208 + $0xc] sm:$0xff] %v645
        %710 = vst [vmem:[%s208 + $0x14] sm:$0xf] %v646
        %711 = vst [vmem:[%s208 + $0x18] sm:$0xff] %v647
        %712 = vst [vmem:[%s208 + $0x20] sm:$0xf] %v648
        %713 = vst [vmem:[%s208 + $0x24] sm:$0xff] %v649
        %714 = vst [vmem:[%s208 + $0x2c] sm:$0xf] %v650
        %715 = vst [vmem:[%s208 + $0x30] sm:$0xff] %v651
        %716 = vst [vmem:[%s208 + $0x38] sm:$0xf] %v652
        %717 = vst [vmem:[%s208 + $0x3c] sm:$0xff] %v653
        %718 = vst [vmem:[%s208 + $0x44] sm:$0xf] %v654
        %719 = vst [vmem:[%s208 + $0x48] sm:$0xff] %v655
        %720 = vst [vmem:[%s208 + $0x50] sm:$0xf] %v656
        %721 = vst [vmem:[%s208 + $0x54] sm:$0xff] %v657
        %722 = vst [vmem:[%s208 + $0x5c] sm:$0xf] %v658
        %723 = vst [vmem:[%s208 + $0x60] sm:$0xff] %v659
        %724 = vst [vmem:[%s208 + $0x68] sm:$0xf] %v660
        %725 = vst [vmem:[%s208 + $0x6c] sm:$0xff] %v661
        %726 = vst [vmem:[%s208 + $0x74] sm:$0xf] %v662
        %727 = vst [vmem:[%s208 + $0x78] sm:$0xff] %v663
        %728 = vst [vmem:[%s208 + $0x80] sm:$0xf] %v664
        %729 = vst [vmem:[%s208 + $0x84] sm:$0xff] %v665
        %730 = vst [vmem:[%s208 + $0x8c] sm:$0xf] %v666
        %731 = vst [vmem:[%s208 + $0x90] sm:$0xff] %v667
        %732 = vst [vmem:[%s208 + $0x98] sm:$0xf] %v668
        %733 = vst [vmem:[%s208 + $0x9c] sm:$0xff] %v669
        %734 = vst [vmem:[%s208 + $0xa4] sm:$0xf] %v670
        %735 = vst [vmem:[%s208 + $0xa8] sm:$0xff] %v671
        %736 = vst [vmem:[%s208 + $0xb0] sm:$0xf] %v672
        %737 = vst [vmem:[%s208 + $0xb4] sm:$0xff] %v673
        %738 = vst [vmem:[%s208 + $0xbc] sm:$0xf] %v674
        %s739 = smul.u32 16, %s18
        %p740 = scmp.lt.s32.totalorder %s739, 31
        %s741 = scalar_select %p740, %s739, 31
        %s742 = smul.addr %s741, 3
        %s743 = smul.addr %s742, 4
        %s744 = scalar_lea.vmem %s3, %s743
        // Predicated region
        $region41: #{_lambda_.3} parent=31 // pred_check
          %p745 = pneg %p104
        $region42: #{_lambda_.3} parent=31 // pred_check_branch
          %747 = sbr.rel (%p745) target = $region44
        $region43: #{_lambda_.3} parent=31 // pred_region
          %s748 = smul.u32 16, %s18
        $region44: #{_lambda_.3} parent=31 // pred_fallthru
          _
      $region32: #{_lambda_.3} parent=5 // pred_fallthru
        _
      %p749 = scmp.le.s32.totalorder 2, %s13
      // Predicated region
      $region45: #{_lambda_.3} parent=5 // pred_check
        %p750 = pneg %p749
      $region46: #{_lambda_.3} parent=5 // pred_check_branch
        %752 = sbr.rel (%p750) target = $region48
      $region47: #{_lambda_.3} parent=5 // pred_region
        %s753 = ssub.s32 %s13, 2
        // Predicated region
        $region49: #{_lambda_.3} parent=47 // pred_check
          %p754 = pneg %p110
        $region50: #{_lambda_.3} parent=47 // pred_check_branch
          %756 = sbr.rel (%p754) target = $region52
        $region51: #{_lambda_.3} parent=47 // pred_region
          %s757 = smul.u32 16, %s19
          %p758 = scmp.lt.s32.totalorder %s757, 31
          %s759 = scalar_select %p758, %s757, 31
          %s760 = smul.addr %s759, 3
          %s761 = smul.addr %s760, 4
          %s762 = scalar_lea.vmem %s3, %s761
        $region52: #{_lambda_.3} parent=47 // pred_fallthru
          _
      $region48: #{_lambda_.3} parent=5 // pred_fallthru
        _
    $region6: #{_lambda_.3} parent=1 // loop_footer
      %s17 = sadd.s32 1, %s13
    $region7: #{_lambda_.3} parent=1 // loop_footer_branch
      %12 = sbr.rel target = $region3
    $region8: #{_lambda_.3} parent=1 // loop_exit
      _
    %763 = vsyncpa [#allocation3], 1
    %s764 = scalar_lea.sflag [#allocation3], 1
    %765 = vsyncpa %s764, 1
    %766 = vsyncpa [#allocation5], 1

// kernel: _lambda_.5
$region0: #{_lambda_.5}
  #allocation0 [shape = 'u32[]', space=smem, size = 0x4, offset = 0x4, fixed_abs, tag = 'smem constant byte address 0x4 - core index']
  #allocation1 [shape = 'u32[144,128]{1,0:T(1,128)}', space=vmem, size = 0x12000, scoped, tag = 'internal scratch']
  %s0 = inlined_call_operand.vmem [shape: bf16[256,128], index: 0, kind: input, shape index: {}]
  %s1 = inlined_call_operand.vmem [shape: bf16[128,64], index: 1, kind: input, shape index: {}]
  %s2 = inlined_call_operand.vmem [shape: f32[1,64], index: 2, kind: input, shape index: {}]
  %s3 = inlined_call_operand.vmem [shape: bf16[64,32], index: 3, kind: input, shape index: {}]
  %s4 = inlined_call_operand.vmem [shape: f32[1,32], index: 4, kind: input, shape index: {}]
  %s5 = inlined_call_operand.vmem [shape: bf16[32,128], index: 5, kind: input, shape index: {}]
  %s6 = inlined_call_operand.vmem [shape: f32[1,128], index: 6, kind: input, shape index: {}]
  %s7 = inlined_call_operand.vmem [shape: f32[256,128], index: 7, kind: output, shape index: {}]
  %s8 = sld [smem:[#allocation0]]
  $region61: #{_lambda_.5} parent=0
    _
  %s10 = ssub.s32 1, %s8
  %s11 = scalar_select 0, %s10, %s8
  loop: start=0, step=1, limit=4
  $region2: #{_lambda_.5} parent=0 // loop_pre_header
    _
  $region3: #{_lambda_.5} parent=0 // loop_header
    %s13 = sphi 0, %s17
    %p14 = scmp.ge.s32.totalorder %s13, 4
    %s23 = sphi 0, %s25
    %s26 = sphi 0, %s23
    %s27 = sphi 0, %s26
    %s43 = sphi 0, %s27
    %s47 = sphi 0, %s47
    %s49 = sphi 0, %s47
    %s50 = sphi 0, %s49
    %s64 = sphi 0, %s50
    %s68 = sphi 0, %s68
    %s70 = sphi 0, %s68
    %s71 = sphi 0, %s70
    %s85 = sphi 0, %s71
    %s89 = sphi 0, %s89
    %s91 = sphi 0, %s89
    %s92 = sphi 0, %s91
    %s106 = sphi 0, %s92
    %s110 = sphi 0, %s110
    %s112 = sphi 0, %s110
    %s113 = sphi 0, %s112
    %s127 = sphi 0, %s113
    %s131 = sphi 0, %s131
    %s133 = sphi 0, %s131
    %s134 = sphi 0, %s133
    %s148 = sphi 0, %s134
    %s152 = sphi 0, %s152
    %s154 = sphi 0, %s152
    %s155 = sphi 0, %s154
    %s169 = sphi 0, %s155
    %s175 = sphi 0, %s177
    %s178 = sphi 0, %s175
    %s179 = sphi 0, %s178
    %s195 = sphi 0, %s179
  $region4: #{_lambda_.5} parent=0 // loop_header_branch
    %16 = sbr.rel (%p14) target = $region8
  $region5: #{_lambda_.5} parent=0 // loop_body
    %s18 = ssub.s32 %s13, 1
    %s19 = ssub.s32 %s13, 2
    %s20 = sadd.s32 %s13, 1
    %s21 = ssub.s32 %s13, %s20
    %p22 = scmp.eq.s32.totalorder %s21, 0
    %s24 = sadd.s32 %s23, 1
    %s25 = scalar_select %p22, %s23, %s24
    %p28 = pneg %p22
    %p29 = scmp.eq.s32.totalorder %s13, 1
    %p30 = por %p28, %p29
    %p31 = scmp.ne.s32.totalorder %s23, %s26
    %p32 = scmp.eq.s32.totalorder %s13, 0
    %p33 = por %p31, %p32
    %p34 = scmp.ne.s32.totalorder %s23, %s26
    %p35 = scmp.eq.s32.totalorder %s18, 1
    %p36 = por %p34, %p35
    %p37 = scmp.ne.s32.totalorder %s26, %s27
    %p38 = scmp.eq.s32.totalorder %s18, 0
    %p39 = por %p37, %p38
    %p40 = scmp.ne.s32.totalorder %s26, %s27
    %p41 = scmp.eq.s32.totalorder %s19, 1
    %p42 = por %p40, %p41
    %p44 = scmp.ne.s32.totalorder %s27, %s43
    %p45 = scmp.eq.s32.totalorder %s19, 0
    %p46 = por %p44, %p45
    %s48 = sadd.s32 %s47, 1
    %p51 = scmp.eq.s32.totalorder %s13, 1
    %p52 = scmp.ne.s32.totalorder %s47, %s49
    %p53 = scmp.eq.s32.totalorder %s13, 0
    %p54 = por %p52, %p53
    %p55 = scmp.ne.s32.totalorder %s47, %s49
    %p56 = scmp.eq.s32.totalorder %s18, 1
    %p57 = por %p55, %p56
    %p58 = scmp.ne.s32.totalorder %s49, %s50
    %p59 = scmp.eq.s32.totalorder %s18, 0
    %p60 = por %p58, %p59
    %p61 = scmp.ne.s32.totalorder %s49, %s50
    %p62 = scmp.eq.s32.totalorder %s19, 1
    %p63 = por %p61, %p62
    %p65 = scmp.ne.s32.totalorder %s50, %s64
    %p66 = scmp.eq.s32.totalorder %s19, 0
    %p67 = por %p65, %p66
    %s69 = sadd.s32 %s68, 1
    %p72 = scmp.eq.s32.totalorder %s13, 1
    %p73 = scmp.ne.s32.totalorder %s68, %s70
    %p74 = scmp.eq.s32.totalorder %s13, 0
    %p75 = por %p73, %p74
    %p76 = scmp.ne.s32.totalorder %s68, %s70
    %p77 = scmp.eq.s32.totalorder %s18, 1
    %p78 = por %p76, %p77
    %p79 = scmp.ne.s32.totalorder %s70, %s71
    %p80 = scmp.eq.s32.totalorder %s18, 0
    %p81 = por %p79, %p80
    %p82 = scmp.ne.s32.totalorder %s70, %s71
    %p83 = scmp.eq.s32.totalorder %s19, 1
    %p84 = por %p82, %p83
    %p86 = scmp.ne.s32.totalorder %s71, %s85
    %p87 = scmp.eq.s32.totalorder %s19, 0
    %p88 = por %p86, %p87
    %s90 = sadd.s32 %s89, 1
    %p93 = scmp.eq.s32.totalorder %s13, 1
    %p94 = scmp.ne.s32.totalorder %s89, %s91
    %p95 = scmp.eq.s32.totalorder %s13, 0
    %p96 = por %p94, %p95
    %p97 = scmp.ne.s32.totalorder %s89, %s91
    %p98 = scmp.eq.s32.totalorder %s18, 1
    %p99 = por %p97, %p98
    %p100 = scmp.ne.s32.totalorder %s91, %s92
    %p101 = scmp.eq.s32.totalorder %s18, 0
    %p102 = por %p100, %p101
    %p103 = scmp.ne.s32.totalorder %s91, %s92
    %p104 = scmp.eq.s32.totalorder %s19, 1
    %p105 = por %p103, %p104
    %p107 = scmp.ne.s32.totalorder %s92, %s106
    %p108 = scmp.eq.s32.totalorder %s19, 0
    %p109 = por %p107, %p108
    %s111 = sadd.s32 %s110, 1
    %p114 = scmp.eq.s32.totalorder %s13, 1
    %p115 = scmp.ne.s32.totalorder %s110, %s112
    %p116 = scmp.eq.s32.totalorder %s13, 0
    %p117 = por %p115, %p116
    %p118 = scmp.ne.s32.totalorder %s110, %s112
    %p119 = scmp.eq.s32.totalorder %s18, 1
    %p120 = por %p118, %p119
    %p121 = scmp.ne.s32.totalorder %s112, %s113
    %p122 = scmp.eq.s32.totalorder %s18, 0
    %p123 = por %p121, %p122
    %p124 = scmp.ne.s32.totalorder %s112, %s113
    %p125 = scmp.eq.s32.totalorder %s19, 1
    %p126 = por %p124, %p125
    %p128 = scmp.ne.s32.totalorder %s113, %s127
    %p129 = scmp.eq.s32.totalorder %s19, 0
    %p130 = por %p128, %p129
    %s132 = sadd.s32 %s131, 1
    %p135 = scmp.eq.s32.totalorder %s13, 1
    %p136 = scmp.ne.s32.totalorder %s131, %s133
    %p137 = scmp.eq.s32.totalorder %s13, 0
    %p138 = por %p136, %p137
    %p139 = scmp.ne.s32.totalorder %s131, %s133
    %p140 = scmp.eq.s32.totalorder %s18, 1
    %p141 = por %p139, %p140
    %p142 = scmp.ne.s32.totalorder %s133, %s134
    %p143 = scmp.eq.s32.totalorder %s18, 0
    %p144 = por %p142, %p143
    %p145 = scmp.ne.s32.totalorder %s133, %s134
    %p146 = scmp.eq.s32.totalorder %s19, 1
    %p147 = por %p145, %p146
    %p149 = scmp.ne.s32.totalorder %s134, %s148
    %p150 = scmp.eq.s32.totalorder %s19, 0
    %p151 = por %p149, %p150
    %s153 = sadd.s32 %s152, 1
    %p156 = scmp.eq.s32.totalorder %s13, 1
    %p157 = scmp.ne.s32.totalorder %s152, %s154
    %p158 = scmp.eq.s32.totalorder %s13, 0
    %p159 = por %p157, %p158
    %p160 = scmp.ne.s32.totalorder %s152, %s154
    %p161 = scmp.eq.s32.totalorder %s18, 1
    %p162 = por %p160, %p161
    %p163 = scmp.ne.s32.totalorder %s154, %s155
    %p164 = scmp.eq.s32.totalorder %s18, 0
    %p165 = por %p163, %p164
    %p166 = scmp.ne.s32.totalorder %s154, %s155
    %p167 = scmp.eq.s32.totalorder %s19, 1
    %p168 = por %p166, %p167
    %p170 = scmp.ne.s32.totalorder %s155, %s169
    %p171 = scmp.eq.s32.totalorder %s19, 0
    %p172 = por %p170, %p171
    %s173 = ssub.s32 %s13, %s20
    %p174 = scmp.eq.s32.totalorder %s173, 0
    %s176 = sadd.s32 %s175, 1
    %s177 = scalar_select %p174, %s175, %s176
    %p180 = pneg %p174
    %p181 = scmp.eq.s32.totalorder %s13, 1
    %p182 = por %p180, %p181
    %p183 = scmp.ne.s32.totalorder %s175, %s178
    %p184 = scmp.eq.s32.totalorder %s13, 0
    %p185 = por %p183, %p184
    %p186 = scmp.ne.s32.totalorder %s175, %s178
    %p187 = scmp.eq.s32.totalorder %s18, 1
    %p188 = por %p186, %p187
    %p189 = scmp.ne.s32.totalorder %s178, %s179
    %p190 = scmp.eq.s32.totalorder %s18, 0
    %p191 = por %p189, %p190
    %p192 = scmp.ne.s32.totalorder %s178, %s179
    %p193 = scmp.eq.s32.totalorder %s19, 1
    %p194 = por %p192, %p193
    %p196 = scmp.ne.s32.totalorder %s179, %s195
    %p197 = scmp.eq.s32.totalorder %s19, 0
    %p198 = por %p196, %p197
    %p199 = scmp.le.s32.totalorder 1, %s13
    %p200 = scmp.lt.s32.totalorder %s13, 3
    %p201 = pnand %p199, %p200
    %p202 = pneg %p201
    // Predicated region
    $region9: #{_lambda_.5} parent=5 // pred_check
      _
    $region10: #{_lambda_.5} parent=5 // pred_check_branch
      %204 = sbr.rel (%p201) target = $region12
    $region11: #{_lambda_.5} parent=5 // pred_region
      %s205 = ssub.s32 %s13, 1
      // Predicated region
      $region13: #{_lambda_.5} parent=11 // pred_check
        %p206 = pneg %p60
      $region14: #{_lambda_.5} parent=11 // pred_check_branch
        %208 = sbr.rel (%p206) target = $region16
      $region15: #{_lambda_.5} parent=11 // pred_region
        _
      $region16: #{_lambda_.5} parent=11 // pred_fallthru
        _
      // Predicated region
      $region17: #{_lambda_.5} parent=11 // pred_check
        %p209 = pneg %p81
      $region18: #{_lambda_.5} parent=11 // pred_check_branch
        %211 = sbr.rel (%p209) target = $region20
      $region19: #{_lambda_.5} parent=11 // pred_region
        _
      $region20: #{_lambda_.5} parent=11 // pred_fallthru
        _
      // Predicated region
      $region21: #{_lambda_.5} parent=11 // pred_check
        %p212 = pneg %p102
      $region22: #{_lambda_.5} parent=11 // pred_check_branch
        %214 = sbr.rel (%p212) target = $region24
      $region23: #{_lambda_.5} parent=11 // pred_region
        _
      $region24: #{_lambda_.5} parent=11 // pred_fallthru
        _
      // Predicated region
      $region25: #{_lambda_.5} parent=11 // pred_check
        %p215 = pneg %p123
      $region26: #{_lambda_.5} parent=11 // pred_check_branch
        %217 = sbr.rel (%p215) target = $region28
      $region27: #{_lambda_.5} parent=11 // pred_region
        _
      $region28: #{_lambda_.5} parent=11 // pred_fallthru
        _
      // Predicated region
      $region29: #{_lambda_.5} parent=11 // pred_check
        %p218 = pneg %p144
      $region30: #{_lambda_.5} parent=11 // pred_check_branch
        %220 = sbr.rel (%p218) target = $region32
      $region31: #{_lambda_.5} parent=11 // pred_region
        _
      $region32: #{_lambda_.5} parent=11 // pred_fallthru
        _
      // Predicated region
      $region33: #{_lambda_.5} parent=11 // pred_check
        %p221 = pneg %p165
      $region34: #{_lambda_.5} parent=11 // pred_check_branch
        %223 = sbr.rel (%p221) target = $region36
      $region35: #{_lambda_.5} parent=11 // pred_region
        _
      $region36: #{_lambda_.5} parent=11 // pred_fallthru
        _
    $region12: #{_lambda_.5} parent=5 // pred_fallthru
      _
    %p224 = scmp.lt.s32.totalorder %s13, 2
    // Predicated region
    $region37: #{_lambda_.5} parent=5 // pred_check
      %p225 = pneg %p224
    $region38: #{_lambda_.5} parent=5 // pred_check_branch
      %227 = sbr.rel (%p225) target = $region40
    $region39: #{_lambda_.5} parent=5 // pred_region
      // Predicated region
      $region41: #{_lambda_.5} parent=39 // pred_check
        %p228 = pneg %p33
      $region42: #{_lambda_.5} parent=39 // pred_check_branch
        %230 = sbr.rel (%p228) target = $region44
      $region43: #{_lambda_.5} parent=39 // pred_region
        %s231 = smul.u32 16, %s13
        %p232 = scmp.lt.s32.totalorder %s231, 31
        %s233 = scalar_select %p232, %s231, 31
        %s234 = smul.addr %s233, 4
        %s235 = scalar_lea.vmem %s0, %s234
        %s236 = smul.u32 16, %s13
      $region44: #{_lambda_.5} parent=39 // pred_fallthru
        _
    $region40: #{_lambda_.5} parent=5 // pred_fallthru
      _
    %p237 = scmp.le.s32.totalorder 1, %s13
    %p238 = scmp.lt.s32.totalorder %s13, 3
    %p239 = pnand %p237, %p238
    %p240 = pneg %p239
    // Predicated region
    $region45: #{_lambda_.5} parent=5 // pred_check
      _
    $region46: #{_lambda_.5} parent=5 // pred_check_branch
      %242 = sbr.rel (%p239) target = $region48
    $region47: #{_lambda_.5} parent=5 // pred_region
      %s243 = ssub.s32 %s13, 1
      %s244 = smul.u32 16, %s18
      %p245 = scmp.lt.s32.totalorder %s244, 31
      %s246 = scalar_select %p245, %s244, 31
      %s247 = smul.addr %s246, 4
      %s248 = scalar_lea.vmem %s0, %s247
      %p249 = pneg %p39
      %p250 = pneg %p36
      %p251 = pneg %p60
      %p252 = pneg %p57
      %p253 = pneg %p81
      %p254 = pneg %p78
      %p255 = pneg %p102
      %p256 = pneg %p99
      %p257 = pneg %p123
      %p258 = pneg %p120
      %p259 = pneg %p144
      %p260 = pneg %p141
      %p261 = pneg %p165
      %p262 = pneg %p162
      %p263 = pneg %p191
      %p264 = pneg %p188
      %s265 = smul.u32 16, %s18
      %p266 = scmp.lt.s32.totalorder %s265, 31
      %s267 = scalar_select %p266, %s265, 31
      %s268 = smul.addr %s267, 8
      %s269 = scalar_lea.vmem %s7, %s268
      %s270 = smul.u32 16, %s18
      %p271 = scmp.lt.s32.totalorder %s270, 31
      %s272 = scalar_select %p271, %s270, 31
      %s273 = smul.addr %s272, 4
      %s274 = scalar_lea.vmem %s0, %s273
      %s275 = smul.u32 16, %s18
      %s276 = smul.u32 16, %s18
      %p277 = scmp.lt.s32.totalorder %s276, 31
      %s278 = scalar_select %p277, %s276, 31
      %s279 = smul.addr %s278, 8
      %s280 = scalar_lea.vmem %s7, %s279
      %s281 = smul.u32 16, %s18
      %v283 = vld [vmem:[%s274] sm:$0xf]
      %v284 = vld [vmem:[%s274 + $0x4] sm:$0xf]
      %v285 = vld [vmem:[%s274 + $0x8] sm:$0xf]
      %v286 = vld [vmem:[%s274 + $0xc] sm:$0xf]
      %v287 = vld [vmem:[%s274 + $0x10] sm:$0xf]
      %v288 = vld [vmem:[%s274 + $0x14] sm:$0xf]
      %v289 = vld [vmem:[%s274 + $0x18] sm:$0xf]
      %v290 = vld [vmem:[%s274 + $0x1c] sm:$0xf]
      %v291 = vld [vmem:[%s274 + $0x20] sm:$0xf]
      %v292 = vld [vmem:[%s274 + $0x24] sm:$0xf]
      %v293 = vld [vmem:[%s274 + $0x28] sm:$0xf]
      %v294 = vld [vmem:[%s274 + $0x2c] sm:$0xf]
      %v295 = vld [vmem:[%s274 + $0x30] sm:$0xf]
      %v296 = vld [vmem:[%s274 + $0x34] sm:$0xf]
      %v297 = vld [vmem:[%s274 + $0x38] sm:$0xf]
      %v298 = vld [vmem:[%s274 + $0x3c] sm:$0xf]
      %v299 = vld [vmem:[%s1] sm:$0xf]
      %v300 = vld [vmem:[%s1 + $0x4] sm:$0xf]
      %v301 = vld [vmem:[%s1 + $0x8] sm:$0xf]
      %v302 = vld [vmem:[%s1 + $0xc] sm:$0xf]
      %v303 = vld [vmem:[%s1 + $0x10] sm:$0xf]
      %v304 = vld [vmem:[%s1 + $0x14] sm:$0xf]
      %v305 = vld [vmem:[%s1 + $0x18] sm:$0xf]
      %v306 = vld [vmem:[%s1 + $0x1c] sm:$0xf]
      %v307 = vld [vmem:[%s1 + $0x20] sm:$0xf]
      %v308 = vld [vmem:[%s1 + $0x24] sm:$0xf]
      %v309 = vld [vmem:[%s1 + $0x28] sm:$0xf]
      %v310 = vld [vmem:[%s1 + $0x2c] sm:$0xf]
      %v311 = vld [vmem:[%s1 + $0x30] sm:$0xf]
      %v312 = vld [vmem:[%s1 + $0x34] sm:$0xf]
      %v313 = vld [vmem:[%s1 + $0x38] sm:$0xf]
      %v314 = vld [vmem:[%s1 + $0x3c] sm:$0xf]
      %v315 = vld [vmem:[%s2] sm:$0x1]
      %v317 = vlaneseq
      %v318 = vshrl.u32 %v317, 7
      %v319 = vsub.s32 0, %v318
      %v320 = vrot.slane %v315, %v319
      %v338 = vunpack.c.l.b16 %v283
      %v339 = vunpack.c.l.b16 %v284
      %v340 = vunpack.c.l.b16 %v285
      %v341 = vunpack.c.l.b16 %v286
      %v342 = vunpack.c.l.b16 %v287
      %v343 = vunpack.c.l.b16 %v288
      %v344 = vunpack.c.l.b16 %v289
      %v345 = vunpack.c.l.b16 %v290
      %v346 = vunpack.c.l.b16 %v291
      %v347 = vunpack.c.l.b16 %v292
      %v348 = vunpack.c.l.b16 %v293
      %v349 = vunpack.c.l.b16 %v294
      %v350 = vunpack.c.l.b16 %v295
      %v351 = vunpack.c.l.b16 %v296
      %v352 = vunpack.c.l.b16 %v297
      %v353 = vunpack.c.l.b16 %v298
      %v354 = vpack.c.b16 %v339, %v338
      %v355 = vpack.c.b16 %v341, %v340
      %v356 = vpack.c.b16 %v343, %v342
      %v357 = vpack.c.b16 %v345, %v344
      %v358 = vpack.c.b16 %v347, %v346
      %v359 = vpack.c.b16 %v349, %v348
      %v360 = vpack.c.b16 %v351, %v350
      %v361 = vpack.c.b16 %v353, %v352
      %v386 = vunpack.c.l.b16 %v299
      %v387 = vunpack.c.l.b16 %v300
      %v388 = vunpack.c.l.b16 %v301
      %v389 = vunpack.c.l.b16 %v302
      %v390 = vunpack.c.l.b16 %v303
      %v391 = vunpack.c.l.b16 %v304
      %v392 = vunpack.c.l.b16 %v305
      %v393 = vunpack.c.l.b16 %v306
      %v394 = vunpack.c.l.b16 %v307
      %v395 = vunpack.c.l.b16 %v308
      %v396 = vunpack.c.l.b16 %v309
      %v397 = vunpack.c.l.b16 %v310
      %v398 = vunpack.c.l.b16 %v311
      %v399 = vunpack.c.l.b16 %v312
      %v400 = vunpack.c.l.b16 %v313
      %v401 = vunpack.c.l.b16 %v314
      %v402 = vpack.c.b16 %v387, %v386
      %v403 = vpack.c.b16 %v389, %v388
      %v404 = vpack.c.b16 %v391, %v390
      %v405 = vpack.c.b16 %v393, %v392
      %v406 = vpack.c.b16 %v395, %v394
      %v407 = vpack.c.b16 %v397, %v396
      %v408 = vpack.c.b16 %v399, %v398
      %v409 = vpack.c.b16 %v401, %v400
      %418 = vmatprep.subr.bf16.mxu0 0
      %419 = vmatpush1.bf16.msra.mxu0 %v409
      %420 = vmatprep.subr.bf16.mxu0 0
      %421 = vmatpush1.bf16.msra.mxu0 %v408
      %422 = vmatprep.subr.bf16.mxu0 0
      %423 = vmatpush1.bf16.msra.mxu0 %v407
      %424 = vmatprep.subr.bf16.mxu0 0
      %425 = vmatpush1.bf16.msra.mxu0 %v406
      %426 = vmatprep.subr.bf16.mxu0 0
      %427 = vmatpush1.bf16.msra.mxu0 %v405
      %428 = vmatprep.subr.bf16.mxu0 0
      %429 = vmatpush1.bf16.msra.mxu0 %v404
      %430 = vmatprep.subr.bf16.mxu0 0
      %431 = vmatpush1.bf16.msra.mxu0 %v403
      %432 = vmatprep.subr.bf16.mxu0 0
      %433 = vmatpush1.bf16.msra.mxu0 %v402
      %434 = vmatprep.subr.bf16.mxu0 0
      %435 = vmatpush2.bf16.msra.mxu0 0
      %436 = vmatprep.subr.bf16.mxu0 0
      %437 = vmatpush2.bf16.msra.mxu0 0
      %438 = vmatprep.subr.bf16.mxu0 0
      %439 = vmatpush2.bf16.msra.mxu0 0
      %440 = vmatprep.subr.bf16.mxu0 0
      %441 = vmatpush2.bf16.msra.mxu0 0
      %442 = vmatprep.subr.bf16.mxu0 0
      %443 = vmatpush2.bf16.msra.mxu0 0
      %444 = vmatprep.subr.bf16.mxu0 0
      %445 = vmatpush2.bf16.msra.mxu0 0
      %446 = vmatprep.subr.bf16.mxu0 0
      %447 = vmatpush2.bf16.msra.mxu0 0
      %448 = vmatprep.subr.bf16.mxu0 0
      %449 = vmatpush2.bf16.msra.mxu0 0
      %450 = vmatprep.mubr.bf16.mxu0 0
      %451 = vmatmul.mubr.bf16.gmra.mxu0 %v354
      %v452 = vpop.f32.mrf.mxu0
      %v453 = vadd.f32 %v320, %v452
      %v454 = vpop.f32.mrf.mxu0
      %v455 = vpop.f32.mrf.mxu0
      %v456 = vadd.f32 %v320, %v455
      %v457 = vpop.f32.mrf.mxu0
      %458 = vmatprep.mubr.bf16.mxu0 0
      %459 = vmatmul.mubr.bf16.gmra.mxu0 %v355
      %v460 = vpop.f32.mrf.mxu0
      %v461 = vadd.f32 %v320, %v460
      %v462 = vpop.f32.mrf.mxu0
      %v463 = vpop.f32.mrf.mxu0
      %v464 = vadd.f32 %v320, %v463
      %v465 = vpop.f32.mrf.mxu0
      %466 = vmatprep.mubr.bf16.mxu0 0
      %467 = vmatmul.mubr.bf16.gmra.mxu0 %v356
      %v468 = vpop.f32.mrf.mxu0
      %v469 = vadd.f32 %v320, %v468
      %v470 = vpop.f32.mrf.mxu0
      %v471 = vpop.f32.mrf.mxu0
      %v472 = vadd.f32 %v320, %v471
      %v473 = vpop.f32.mrf.mxu0
      %474 = vmatprep.mubr.bf16.mxu0 0
      %475 = vmatmul.mubr.bf16.gmra.mxu0 %v357
      %v476 = vpop.f32.mrf.mxu0
      %v477 = vadd.f32 %v320, %v476
      %v478 = vpop.f32.mrf.mxu0
      %v479 = vpop.f32.mrf.mxu0
      %v480 = vadd.f32 %v320, %v479
      %v481 = vpop.f32.mrf.mxu0
      %482 = vmatprep.mubr.bf16.mxu0 0
      %483 = vmatmul.mubr.bf16.gmra.mxu0 %v358
      %v484 = vpop.f32.mrf.mxu0
      %v485 = vadd.f32 %v320, %v484
      %v486 = vpop.f32.mrf.mxu0
      %v487 = vpop.f32.mrf.mxu0
      %v488 = vadd.f32 %v320, %v487
      %v489 = vpop.f32.mrf.mxu0
      %490 = vmatprep.mubr.bf16.mxu0 0
      %491 = vmatmul.mubr.bf16.gmra.mxu0 %v359
      %v492 = vpop.f32.mrf.mxu0
      %v493 = vadd.f32 %v320, %v492
      %v494 = vpop.f32.mrf.mxu0
      %v495 = vpop.f32.mrf.mxu0
      %v496 = vadd.f32 %v320, %v495
      %v497 = vpop.f32.mrf.mxu0
      %498 = vmatprep.mubr.bf16.mxu0 0
      %499 = vmatmul.mubr.bf16.gmra.mxu0 %v360
      %v500 = vpop.f32.mrf.mxu0
      %v501 = vadd.f32 %v320, %v500
      %v502 = vpop.f32.mrf.mxu0
      %v503 = vpop.f32.mrf.mxu0
      %v504 = vadd.f32 %v320, %v503
      %v505 = vpop.f32.mrf.mxu0
      %506 = vmatprep.mubr.bf16.mxu0 0
      %507 = vmatmul.mubr.bf16.gmra.mxu0 %v361
      %v508 = vpop.f32.mrf.mxu0
      %v509 = vadd.f32 %v320, %v508
      %v510 = vpop.f32.mrf.mxu0
      %v511 = vpop.f32.mrf.mxu0
      %v512 = vadd.f32 %v320, %v511
      %v513 = vpop.f32.mrf.mxu0
      %514 = vdwg.mxu0
      %vm515 = vcmp.gt.f32.partialorder %v453, 0.0
      %vm516 = vcmp.gt.f32.partialorder %v456, 0.0
      %vm517 = vcmp.gt.f32.partialorder %v461, 0.0
      %vm518 = vcmp.gt.f32.partialorder %v464, 0.0
      %vm519 = vcmp.gt.f32.partialorder %v469, 0.0
      %vm520 = vcmp.gt.f32.partialorder %v472, 0.0
      %vm521 = vcmp.gt.f32.partialorder %v477, 0.0
      %vm522 = vcmp.gt.f32.partialorder %v480, 0.0
      %vm523 = vcmp.gt.f32.partialorder %v485, 0.0
      %vm524 = vcmp.gt.f32.partialorder %v488, 0.0
      %vm525 = vcmp.gt.f32.partialorder %v493, 0.0
      %vm526 = vcmp.gt.f32.partialorder %v496, 0.0
      %vm527 = vcmp.gt.f32.partialorder %v501, 0.0
      %vm528 = vcmp.gt.f32.partialorder %v504, 0.0
      %vm529 = vcmp.gt.f32.partialorder %v509, 0.0
      %vm530 = vcmp.gt.f32.partialorder %v512, 0.0
      %v531 = vmul.f32 %v453, 0.01
      %v532 = vmul.f32 %v456, 0.01
      %v533 = vmul.f32 %v461, 0.01
      %v534 = vmul.f32 %v464, 0.01
      %v535 = vmul.f32 %v469, 0.01
      %v536 = vmul.f32 %v472, 0.01
      %v537 = vmul.f32 %v477, 0.01
      %v538 = vmul.f32 %v480, 0.01
      %v539 = vmul.f32 %v485, 0.01
      %v540 = vmul.f32 %v488, 0.01
      %v541 = vmul.f32 %v493, 0.01
      %v542 = vmul.f32 %v496, 0.01
      %v543 = vmul.f32 %v501, 0.01
      %v544 = vmul.f32 %v504, 0.01
      %v545 = vmul.f32 %v509, 0.01
      %v546 = vmul.f32 %v512, 0.01
      %v547 = vsel %vm515, %v453, %v531
      %v548 = vsel %vm516, %v456, %v532
      %v549 = vsel %vm517, %v461, %v533
      %v550 = vsel %vm518, %v464, %v534
      %v551 = vsel %vm519, %v469, %v535
      %v552 = vsel %vm520, %v472, %v536
      %v553 = vsel %vm521, %v477, %v537
      %v554 = vsel %vm522, %v480, %v538
      %v555 = vsel %vm523, %v485, %v539
      %v556 = vsel %vm524, %v488, %v540
      %v557 = vsel %vm525, %v493, %v541
      %v558 = vsel %vm526, %v496, %v542
      %v559 = vsel %vm527, %v501, %v543
      %v560 = vsel %vm528, %v504, %v544
      %v561 = vsel %vm529, %v509, %v545
      %v562 = vsel %vm530, %v512, %v546
      %v563 = vpack.c.bf16 %v548, %v547
      %v564 = vpack.c.bf16 %v550, %v549
      %v565 = vpack.c.bf16 %v552, %v551
      %v566 = vpack.c.bf16 %v554, %v553
      %v567 = vpack.c.bf16 %v556, %v555
      %v568 = vpack.c.bf16 %v558, %v557
      %v569 = vpack.c.bf16 %v560, %v559
      %v570 = vpack.c.bf16 %v562, %v561
      %v571 = vld [vmem:[%s3] sm:$0xf]
      %v572 = vld [vmem:[%s3 + $0x4] sm:$0xf]
      %v573 = vld [vmem:[%s3 + $0x8] sm:$0xf]
      %v574 = vld [vmem:[%s3 + $0xc] sm:$0xf]
      %v575 = vld [vmem:[%s3 + $0x10] sm:$0xf]
      %v576 = vld [vmem:[%s3 + $0x14] sm:$0xf]
      %v577 = vld [vmem:[%s3 + $0x18] sm:$0xf]
      %v578 = vld [vmem:[%s3 + $0x1c] sm:$0xf]
      %v579 = vld [vmem:[%s4] sm:$0x1]
      %v581 = vlaneseq
      %v582 = vshrl.u32 %v581, 7
      %v583 = vsub.s32 0, %v582
      %v584 = vrot.slane %v579, %v583
      %v594 = vunpack.c.l.b16 %v571
      %v595 = vunpack.c.l.b16 %v572
      %v596 = vunpack.c.l.b16 %v573
      %v597 = vunpack.c.l.b16 %v574
      %v598 = vunpack.c.l.b16 %v575
      %v599 = vunpack.c.l.b16 %v576
      %v600 = vunpack.c.l.b16 %v577
      %v601 = vunpack.c.l.b16 %v578
      %v602 = vpack.c.b16 %v595, %v594
      %v603 = vpack.c.b16 %v597, %v596
      %v604 = vpack.c.b16 %v599, %v598
      %v605 = vpack.c.b16 %v601, %v600
      %vm610 = vcmask 523264
      %v612 = vsel %vm610, %v563, 0
      %v615 = vsel %vm610, %v564, 0
      %v618 = vsel %vm610, %v565, 0
      %v621 = vsel %vm610, %v566, 0
      %v624 = vsel %vm610, %v567, 0
      %v627 = vsel %vm610, %v568, 0
      %v630 = vsel %vm610, %v569, 0
      %v633 = vsel %vm610, %v570, 0
      %635 = vmatprep.subr.bf16.mxu0 0
      %636 = vmatpush1.bf16.msra.mxu0 0
      %637 = vmatprep.subr.bf16.mxu0 0
      %638 = vmatpush1.bf16.msra.mxu0 0
      %639 = vmatprep.subr.bf16.mxu0 0
      %640 = vmatpush1.bf16.msra.mxu0 0
      %641 = vmatprep.subr.bf16.mxu0 0
      %642 = vmatpush1.bf16.msra.mxu0 0
      %643 = vmatprep.subr.bf16.mxu0 0
      %644 = vmatpush1.bf16.msra.mxu0 %v605
      %645 = vmatprep.subr.bf16.mxu0 0
      %646 = vmatpush1.bf16.msra.mxu0 %v604
      %647 = vmatprep.subr.bf16.mxu0 0
      %648 = vmatpush1.bf16.msra.mxu0 %v603
      %649 = vmatprep.subr.bf16.mxu0 0
      %650 = vmatpush1.bf16.msra.mxu0 %v602
      %651 = vmatprep.subr.bf16.mxu0 0
      %652 = vmatpush2.bf16.msra.mxu0 0
      %653 = vmatprep.subr.bf16.mxu0 0
      %654 = vmatpush2.bf16.msra.mxu0 0
      %655 = vmatprep.subr.bf16.mxu0 0
      %656 = vmatpush2.bf16.msra.mxu0 0
      %657 = vmatprep.subr.bf16.mxu0 0
      %658 = vmatpush2.bf16.msra.mxu0 0
      %659 = vmatprep.subr.bf16.mxu0 0
      %660 = vmatpush2.bf16.msra.mxu0 0
      %661 = vmatprep.subr.bf16.mxu0 0
      %662 = vmatpush2.bf16.msra.mxu0 0
      %663 = vmatprep.subr.bf16.mxu0 0
      %664 = vmatpush2.bf16.msra.mxu0 0
      %665 = vmatprep.subr.bf16.mxu0 0
      %666 = vmatpush2.bf16.msra.mxu0 0
      %667 = vmatprep.mubr.bf16.mxu0 0
      %668 = vmatmul.mubr.bf16.gmra.mxu0 %v612
      %v669 = vpop.f32.mrf.mxu0
      %v670 = vadd.f32 %v584, %v669
      %v671 = vpop.f32.mrf.mxu0
      %v672 = vpop.f32.mrf.mxu0
      %v673 = vadd.f32 %v584, %v672
      %v674 = vpop.f32.mrf.mxu0
      %675 = vmatprep.mubr.bf16.mxu0 0
      %676 = vmatmul.mubr.bf16.gmra.mxu0 %v615
      %v677 = vpop.f32.mrf.mxu0
      %v678 = vadd.f32 %v584, %v677
      %v679 = vpop.f32.mrf.mxu0
      %v680 = vpop.f32.mrf.mxu0
      %v681 = vadd.f32 %v584, %v680
      %v682 = vpop.f32.mrf.mxu0
      %683 = vmatprep.mubr.bf16.mxu0 0
      %684 = vmatmul.mubr.bf16.gmra.mxu0 %v618
      %v685 = vpop.f32.mrf.mxu0
      %v686 = vadd.f32 %v584, %v685
      %v687 = vpop.f32.mrf.mxu0
      %v688 = vpop.f32.mrf.mxu0
      %v689 = vadd.f32 %v584, %v688
      %v690 = vpop.f32.mrf.mxu0
      %691 = vmatprep.mubr.bf16.mxu0 0
      %692 = vmatmul.mubr.bf16.gmra.mxu0 %v621
      %v693 = vpop.f32.mrf.mxu0
      %v694 = vadd.f32 %v584, %v693
      %v695 = vpop.f32.mrf.mxu0
      %v696 = vpop.f32.mrf.mxu0
      %v697 = vadd.f32 %v584, %v696
      %v698 = vpop.f32.mrf.mxu0
      %699 = vmatprep.mubr.bf16.mxu0 0
      %700 = vmatmul.mubr.bf16.gmra.mxu0 %v624
      %v701 = vpop.f32.mrf.mxu0
      %v702 = vadd.f32 %v584, %v701
      %v703 = vpop.f32.mrf.mxu0
      %v704 = vpop.f32.mrf.mxu0
      %v705 = vadd.f32 %v584, %v704
      %v706 = vpop.f32.mrf.mxu0
      %707 = vmatprep.mubr.bf16.mxu0 0
      %708 = vmatmul.mubr.bf16.gmra.mxu0 %v627
      %v709 = vpop.f32.mrf.mxu0
      %v710 = vadd.f32 %v584, %v709
      %v711 = vpop.f32.mrf.mxu0
      %v712 = vpop.f32.mrf.mxu0
      %v713 = vadd.f32 %v584, %v712
      %v714 = vpop.f32.mrf.mxu0
      %715 = vmatprep.mubr.bf16.mxu0 0
      %716 = vmatmul.mubr.bf16.gmra.mxu0 %v630
      %v717 = vpop.f32.mrf.mxu0
      %v718 = vadd.f32 %v584, %v717
      %v719 = vpop.f32.mrf.mxu0
      %v720 = vpop.f32.mrf.mxu0
      %v721 = vadd.f32 %v584, %v720
      %v722 = vpop.f32.mrf.mxu0
      %723 = vmatprep.mubr.bf16.mxu0 0
      %724 = vmatmul.mubr.bf16.gmra.mxu0 %v633
      %v725 = vpop.f32.mrf.mxu0
      %v726 = vadd.f32 %v584, %v725
      %v727 = vpop.f32.mrf.mxu0
      %v728 = vpop.f32.mrf.mxu0
      %v729 = vadd.f32 %v584, %v728
      %v730 = vpop.f32.mrf.mxu0
      %731 = vdwg.mxu0
      %vm732 = vcmp.gt.f32.partialorder %v670, 0.0
      %vm733 = vcmp.gt.f32.partialorder %v673, 0.0
      %vm734 = vcmp.gt.f32.partialorder %v678, 0.0
      %vm735 = vcmp.gt.f32.partialorder %v681, 0.0
      %vm736 = vcmp.gt.f32.partialorder %v686, 0.0
      %vm737 = vcmp.gt.f32.partialorder %v689, 0.0
      %vm738 = vcmp.gt.f32.partialorder %v694, 0.0
      %vm739 = vcmp.gt.f32.partialorder %v697, 0.0
      %vm740 = vcmp.gt.f32.partialorder %v702, 0.0
      %vm741 = vcmp.gt.f32.partialorder %v705, 0.0
      %vm742 = vcmp.gt.f32.partialorder %v710, 0.0
      %vm743 = vcmp.gt.f32.partialorder %v713, 0.0
      %vm744 = vcmp.gt.f32.partialorder %v718, 0.0
      %vm745 = vcmp.gt.f32.partialorder %v721, 0.0
      %vm746 = vcmp.gt.f32.partialorder %v726, 0.0
      %vm747 = vcmp.gt.f32.partialorder %v729, 0.0
      %v748 = vmul.f32 %v670, 0.01
      %v749 = vmul.f32 %v673, 0.01
      %v750 = vmul.f32 %v678, 0.01
      %v751 = vmul.f32 %v681, 0.01
      %v752 = vmul.f32 %v686, 0.01
      %v753 = vmul.f32 %v689, 0.01
      %v754 = vmul.f32 %v694, 0.01
      %v755 = vmul.f32 %v697, 0.01
      %v756 = vmul.f32 %v702, 0.01
      %v757 = vmul.f32 %v705, 0.01
      %v758 = vmul.f32 %v710, 0.01
      %v759 = vmul.f32 %v713, 0.01
      %v760 = vmul.f32 %v718, 0.01
      %v761 = vmul.f32 %v721, 0.01
      %v762 = vmul.f32 %v726, 0.01
      %v763 = vmul.f32 %v729, 0.01
      %v764 = vsel %vm732, %v670, %v748
      %v765 = vsel %vm733, %v673, %v749
      %v766 = vsel %vm734, %v678, %v750
      %v767 = vsel %vm735, %v681, %v751
      %v768 = vsel %vm736, %v686, %v752
      %v769 = vsel %vm737, %v689, %v753
      %v770 = vsel %vm738, %v694, %v754
      %v771 = vsel %vm739, %v697, %v755
      %v772 = vsel %vm740, %v702, %v756
      %v773 = vsel %vm741, %v705, %v757
      %v774 = vsel %vm742, %v710, %v758
      %v775 = vsel %vm743, %v713, %v759
      %v776 = vsel %vm744, %v718, %v760
      %v777 = vsel %vm745, %v721, %v761
      %v778 = vsel %vm746, %v726, %v762
      %v779 = vsel %vm747, %v729, %v763
      %v780 = vpack.c.bf16 %v765, %v764
      %v781 = vpack.c.bf16 %v767, %v766
      %v782 = vpack.c.bf16 %v769, %v768
      %v783 = vpack.c.bf16 %v771, %v770
      %v784 = vpack.c.bf16 %v773, %v772
      %v785 = vpack.c.bf16 %v775, %v774
      %v786 = vpack.c.bf16 %v777, %v776
      %v787 = vpack.c.bf16 %v779, %v778
      %v788 = vld [vmem:[%s5] sm:$0xf]
      %v789 = vld [vmem:[%s5 + $0x4] sm:$0xf]
      %v790 = vld [vmem:[%s5 + $0x8] sm:$0xf]
      %v791 = vld [vmem:[%s5 + $0xc] sm:$0xf]
      %v792 = vld [vmem:[%s6] sm:$0x1]
      %v794 = vlaneseq
      %v795 = vshrl.u32 %v794, 7
      %v796 = vsub.s32 0, %v795
      %v797 = vrot.slane %v792, %v796
      %v803 = vunpack.c.l.b16 %v788
      %v804 = vunpack.c.l.b16 %v789
      %v805 = vunpack.c.l.b16 %v790
      %v806 = vunpack.c.l.b16 %v791
      %v807 = vpack.c.b16 %v804, %v803
      %v808 = vpack.c.b16 %v806, %v805
      %vm811 = vcmask 261120
      %v813 = vsel %vm811, %v780, 0
      %v816 = vsel %vm811, %v781, 0
      %v819 = vsel %vm811, %v782, 0
      %v822 = vsel %vm811, %v783, 0
      %v825 = vsel %vm811, %v784, 0
      %v828 = vsel %vm811, %v785, 0
      %v831 = vsel %vm811, %v786, 0
      %v834 = vsel %vm811, %v787, 0
      %836 = vmatprep.subr.bf16.mxu0 0
      %837 = vmatpush1.bf16.msra.mxu0 0
      %838 = vmatprep.subr.bf16.mxu0 0
      %839 = vmatpush1.bf16.msra.mxu0 0
      %840 = vmatprep.subr.bf16.mxu0 0
      %841 = vmatpush1.bf16.msra.mxu0 0
      %842 = vmatprep.subr.bf16.mxu0 0
      %843 = vmatpush1.bf16.msra.mxu0 0
      %844 = vmatprep.subr.bf16.mxu0 0
      %845 = vmatpush1.bf16.msra.mxu0 0
      %846 = vmatprep.subr.bf16.mxu0 0
      %847 = vmatpush1.bf16.msra.mxu0 0
      %848 = vmatprep.subr.bf16.mxu0 0
      %849 = vmatpush1.bf16.msra.mxu0 %v808
      %850 = vmatprep.subr.bf16.mxu0 0
      %851 = vmatpush1.bf16.msra.mxu0 %v807
      %852 = vmatprep.subr.bf16.mxu0 0
      %853 = vmatpush2.bf16.msra.mxu0 0
      %854 = vmatprep.subr.bf16.mxu0 0
      %855 = vmatpush2.bf16.msra.mxu0 0
      %856 = vmatprep.subr.bf16.mxu0 0
      %857 = vmatpush2.bf16.msra.mxu0 0
      %858 = vmatprep.subr.bf16.mxu0 0
      %859 = vmatpush2.bf16.msra.mxu0 0
      %860 = vmatprep.subr.bf16.mxu0 0
      %861 = vmatpush2.bf16.msra.mxu0 0
      %862 = vmatprep.subr.bf16.mxu0 0
      %863 = vmatpush2.bf16.msra.mxu0 0
      %864 = vmatprep.subr.bf16.mxu0 0
      %865 = vmatpush2.bf16.msra.mxu0 0
      %866 = vmatprep.subr.bf16.mxu0 0
      %867 = vmatpush2.bf16.msra.mxu0 0
      %868 = vmatprep.mubr.bf16.mxu0 0
      %869 = vmatmul.mubr.bf16.gmra.mxu0 %v813
      %v870 = vpop.f32.mrf.mxu0
      %v871 = vadd.f32 %v797, %v870
      %v872 = vpop.f32.mrf.mxu0
      %v873 = vpop.f32.mrf.mxu0
      %v874 = vadd.f32 %v797, %v873
      %v875 = vpop.f32.mrf.mxu0
      %876 = vmatprep.mubr.bf16.mxu0 0
      %877 = vmatmul.mubr.bf16.gmra.mxu0 %v816
      %v878 = vpop.f32.mrf.mxu0
      %v879 = vadd.f32 %v797, %v878
      %v880 = vpop.f32.mrf.mxu0
      %v881 = vpop.f32.mrf.mxu0
      %v882 = vadd.f32 %v797, %v881
      %v883 = vpop.f32.mrf.mxu0
      %884 = vmatprep.mubr.bf16.mxu0 0
      %885 = vmatmul.mubr.bf16.gmra.mxu0 %v819
      %v886 = vpop.f32.mrf.mxu0
      %v887 = vadd.f32 %v797, %v886
      %v888 = vpop.f32.mrf.mxu0
      %v889 = vpop.f32.mrf.mxu0
      %v890 = vadd.f32 %v797, %v889
      %v891 = vpop.f32.mrf.mxu0
      %892 = vmatprep.mubr.bf16.mxu0 0
      %893 = vmatmul.mubr.bf16.gmra.mxu0 %v822
      %v894 = vpop.f32.mrf.mxu0
      %v895 = vadd.f32 %v797, %v894
      %v896 = vpop.f32.mrf.mxu0
      %v897 = vpop.f32.mrf.mxu0
      %v898 = vadd.f32 %v797, %v897
      %v899 = vpop.f32.mrf.mxu0
      %900 = vmatprep.mubr.bf16.mxu0 0
      %901 = vmatmul.mubr.bf16.gmra.mxu0 %v825
      %v902 = vpop.f32.mrf.mxu0
      %v903 = vadd.f32 %v797, %v902
      %v904 = vpop.f32.mrf.mxu0
      %v905 = vpop.f32.mrf.mxu0
      %v906 = vadd.f32 %v797, %v905
      %v907 = vpop.f32.mrf.mxu0
      %908 = vmatprep.mubr.bf16.mxu0 0
      %909 = vmatmul.mubr.bf16.gmra.mxu0 %v828
      %v910 = vpop.f32.mrf.mxu0
      %v911 = vadd.f32 %v797, %v910
      %v912 = vpop.f32.mrf.mxu0
      %v913 = vpop.f32.mrf.mxu0
      %v914 = vadd.f32 %v797, %v913
      %v915 = vpop.f32.mrf.mxu0
      %916 = vmatprep.mubr.bf16.mxu0 0
      %917 = vmatmul.mubr.bf16.gmra.mxu0 %v831
      %v918 = vpop.f32.mrf.mxu0
      %v919 = vadd.f32 %v797, %v918
      %v920 = vpop.f32.mrf.mxu0
      %v921 = vpop.f32.mrf.mxu0
      %v922 = vadd.f32 %v797, %v921
      %v923 = vpop.f32.mrf.mxu0
      %924 = vmatprep.mubr.bf16.mxu0 0
      %925 = vmatmul.mubr.bf16.gmra.mxu0 %v834
      %v926 = vpop.f32.mrf.mxu0
      %v927 = vadd.f32 %v797, %v926
      %v928 = vpop.f32.mrf.mxu0
      %v929 = vpop.f32.mrf.mxu0
      %v930 = vadd.f32 %v797, %v929
      %v931 = vpop.f32.mrf.mxu0
      %932 = vdwg.mxu0
      %933 = vst [vmem:[%s280] sm:$0xff] %v871
      %934 = vst [vmem:[%s280 + $0x8] sm:$0xff] %v874
      %935 = vst [vmem:[%s280 + $0x10] sm:$0xff] %v879
      %936 = vst [vmem:[%s280 + $0x18] sm:$0xff] %v882
      %937 = vst [vmem:[%s280 + $0x20] sm:$0xff] %v887
      %938 = vst [vmem:[%s280 + $0x28] sm:$0xff] %v890
      %939 = vst [vmem:[%s280 + $0x30] sm:$0xff] %v895
      %940 = vst [vmem:[%s280 + $0x38] sm:$0xff] %v898
      %941 = vst [vmem:[%s280 + $0x40] sm:$0xff] %v903
      %942 = vst [vmem:[%s280 + $0x48] sm:$0xff] %v906
      %943 = vst [vmem:[%s280 + $0x50] sm:$0xff] %v911
      %944 = vst [vmem:[%s280 + $0x58] sm:$0xff] %v914
      %945 = vst [vmem:[%s280 + $0x60] sm:$0xff] %v919
      %946 = vst [vmem:[%s280 + $0x68] sm:$0xff] %v922
      %947 = vst [vmem:[%s280 + $0x70] sm:$0xff] %v927
      %948 = vst [vmem:[%s280 + $0x78] sm:$0xff] %v930
      %s949 = smul.u32 16, %s18
      %p950 = scmp.lt.s32.totalorder %s949, 31
      %s951 = scalar_select %p950, %s949, 31
      %s952 = smul.addr %s951, 8
      %s953 = scalar_lea.vmem %s7, %s952
      // Predicated region
      $region49: #{_lambda_.5} parent=47 // pred_check
        %p954 = pneg %p188
      $region50: #{_lambda_.5} parent=47 // pred_check_branch
        %956 = sbr.rel (%p954) target = $region52
      $region51: #{_lambda_.5} parent=47 // pred_region
        %s957 = smul.u32 16, %s18
      $region52: #{_lambda_.5} parent=47 // pred_fallthru
        _
    $region48: #{_lambda_.5} parent=5 // pred_fallthru
      _
    %p958 = scmp.le.s32.totalorder 2, %s13
    // Predicated region
    $region53: #{_lambda_.5} parent=5 // pred_check
      %p959 = pneg %p958
    $region54: #{_lambda_.5} parent=5 // pred_check_branch
      %961 = sbr.rel (%p959) target = $region56
    $region55: #{_lambda_.5} parent=5 // pred_region
      %s962 = ssub.s32 %s13, 2
      // Predicated region
      $region57: #{_lambda_.5} parent=55 // pred_check
        %p963 = pneg %p194
      $region58: #{_lambda_.5} parent=55 // pred_check_branch
        %965 = sbr.rel (%p963) target = $region60
      $region59: #{_lambda_.5} parent=55 // pred_region
        %s966 = smul.u32 16, %s19
        %p967 = scmp.lt.s32.totalorder %s966, 31
        %s968 = scalar_select %p967, %s966, 31
        %s969 = smul.addr %s968, 8
        %s970 = scalar_lea.vmem %s7, %s969
      $region60: #{_lambda_.5} parent=55 // pred_fallthru
        _
    $region56: #{_lambda_.5} parent=5 // pred_fallthru
      _
  $region6: #{_lambda_.5} parent=0 // loop_footer
    %s17 = sadd.s32 1, %s13
  $region7: #{_lambda_.5} parent=0 // loop_footer_branch
    %12 = sbr.rel target = $region3
  $region8: #{_lambda_.5} parent=0 // loop_exit
    _

// kernel: _lambda_.4
$region0: #{_lambda_.4}
  #allocation0 [shape = 'u32[]', space=smem, size = 0x4, offset = 0x4, fixed_abs, tag = 'smem constant byte address 0x4 - core index']
  #allocation1 [shape = 'u32[144,128]{1,0:T(1,128)}', space=vmem, size = 0x12000, scoped, tag = 'internal scratch']
  %s0 = inlined_call_operand.vmem [shape: bf16[32,8,384], index: 0, kind: input, shape index: {}]
  %s1 = inlined_call_operand.vmem [shape: f32[8,128], index: 1, kind: input, shape index: {}]
  %s2 = inlined_call_operand.vmem [shape: bf16[128,384], index: 2, kind: input, shape index: {}]
  %s3 = inlined_call_operand.vmem [shape: f32[1,128], index: 3, kind: input, shape index: {}]
  %s4 = inlined_call_operand.vmem [shape: bf16[32,8,128], index: 4, kind: output, shape index: {0}]
  %s5 = inlined_call_operand.hbm [shape: f32[8,128], index: 5, kind: output, shape index: {1}]
  %6 = xla_tuple %s4, %s5
  %s7 = sld [smem:[#allocation0]]
  $region61: #{_lambda_.4} parent=0
    _
  %s9 = ssub.s32 1, %s7
  %s10 = scalar_select 0, %s9, %s7
  $region1: #{_lambda_.4} parent=0
    #allocation2 [shape = 'u8[4096]{0}', space=vmem, size = 0x1000, scoped, tag = 'output window, operand 1, single buffered']
    #allocation3 [shape = 's32[2]{0}', space=sflag, size = 0x8, scoped, tag = 'scoped memory for _lambda_.4']
    %11 = vsyncpa [#allocation3], 0
    loop: start=0, step=1, limit=4
    $region2: #{_lambda_.4} parent=1 // loop_pre_header
      _
    $region3: #{_lambda_.4} parent=1 // loop_header
      %s13 = sphi 0, %s17
      %p14 = scmp.ge.s32.totalorder %s13, 4
      %s23 = sphi 0, %s25
      %s26 = sphi 0, %s23
      %s27 = sphi 0, %s26
      %s43 = sphi 0, %s27
      %s47 = sphi 0, %s47
      %s49 = sphi 0, %s47
      %s50 = sphi 0, %s49
      %s64 = sphi 0, %s50
      %s68 = sphi 0, %s68
      %s70 = sphi 0, %s68
      %s71 = sphi 0, %s70
      %s85 = sphi 0, %s71
      %s89 = sphi 0, %s89
      %s91 = sphi 0, %s89
      %s92 = sphi 0, %s91
      %s106 = sphi 0, %s92
      %s112 = sphi 0, %s114
      %s115 = sphi 0, %s112
      %s116 = sphi 0, %s115
      %s132 = sphi 0, %s116
      %s136 = sphi 0, %s136
      %s138 = sphi 0, %s136
      %s139 = sphi 0, %s138
      %s153 = sphi 0, %s139
    $region4: #{_lambda_.4} parent=1 // loop_header_branch
      %16 = sbr.rel (%p14) target = $region8
    $region5: #{_lambda_.4} parent=1 // loop_body
      %s18 = ssub.s32 %s13, 1
      %s19 = ssub.s32 %s13, 2
      %s20 = sadd.s32 %s13, 1
      %s21 = ssub.s32 %s13, %s20
      %p22 = scmp.eq.s32.totalorder %s21, 0
      %s24 = sadd.s32 %s23, 1
      %s25 = scalar_select %p22, %s23, %s24
      %p28 = pneg %p22
      %p29 = scmp.eq.s32.totalorder %s13, 1
      %p30 = por %p28, %p29
      %p31 = scmp.ne.s32.totalorder %s23, %s26
      %p32 = scmp.eq.s32.totalorder %s13, 0
      %p33 = por %p31, %p32
      %p34 = scmp.ne.s32.totalorder %s23, %s26
      %p35 = scmp.eq.s32.totalorder %s18, 1
      %p36 = por %p34, %p35
      %p37 = scmp.ne.s32.totalorder %s26, %s27
      %p38 = scmp.eq.s32.totalorder %s18, 0
      %p39 = por %p37, %p38
      %p40 = scmp.ne.s32.totalorder %s26, %s27
      %p41 = scmp.eq.s32.totalorder %s19, 1
      %p42 = por %p40, %p41
      %p44 = scmp.ne.s32.totalorder %s27, %s43
      %p45 = scmp.eq.s32.totalorder %s19, 0
      %p46 = por %p44, %p45
      %s48 = sadd.s32 %s47, 1
      %p51 = scmp.eq.s32.totalorder %s13, 1
      %p52 = scmp.ne.s32.totalorder %s47, %s49
      %p53 = scmp.eq.s32.totalorder %s13, 0
      %p54 = por %p52, %p53
      %p55 = scmp.ne.s32.totalorder %s47, %s49
      %p56 = scmp.eq.s32.totalorder %s18, 1
      %p57 = por %p55, %p56
      %p58 = scmp.ne.s32.totalorder %s49, %s50
      %p59 = scmp.eq.s32.totalorder %s18, 0
      %p60 = por %p58, %p59
      %p61 = scmp.ne.s32.totalorder %s49, %s50
      %p62 = scmp.eq.s32.totalorder %s19, 1
      %p63 = por %p61, %p62
      %p65 = scmp.ne.s32.totalorder %s50, %s64
      %p66 = scmp.eq.s32.totalorder %s19, 0
      %p67 = por %p65, %p66
      %s69 = sadd.s32 %s68, 1
      %p72 = scmp.eq.s32.totalorder %s13, 1
      %p73 = scmp.ne.s32.totalorder %s68, %s70
      %p74 = scmp.eq.s32.totalorder %s13, 0
      %p75 = por %p73, %p74
      %p76 = scmp.ne.s32.totalorder %s68, %s70
      %p77 = scmp.eq.s32.totalorder %s18, 1
      %p78 = por %p76, %p77
      %p79 = scmp.ne.s32.totalorder %s70, %s71
      %p80 = scmp.eq.s32.totalorder %s18, 0
      %p81 = por %p79, %p80
      %p82 = scmp.ne.s32.totalorder %s70, %s71
      %p83 = scmp.eq.s32.totalorder %s19, 1
      %p84 = por %p82, %p83
      %p86 = scmp.ne.s32.totalorder %s71, %s85
      %p87 = scmp.eq.s32.totalorder %s19, 0
      %p88 = por %p86, %p87
      %s90 = sadd.s32 %s89, 1
      %p93 = scmp.eq.s32.totalorder %s13, 1
      %p94 = scmp.ne.s32.totalorder %s89, %s91
      %p95 = scmp.eq.s32.totalorder %s13, 0
      %p96 = por %p94, %p95
      %p97 = scmp.ne.s32.totalorder %s89, %s91
      %p98 = scmp.eq.s32.totalorder %s18, 1
      %p99 = por %p97, %p98
      %p100 = scmp.ne.s32.totalorder %s91, %s92
      %p101 = scmp.eq.s32.totalorder %s18, 0
      %p102 = por %p100, %p101
      %p103 = scmp.ne.s32.totalorder %s91, %s92
      %p104 = scmp.eq.s32.totalorder %s19, 1
      %p105 = por %p103, %p104
      %p107 = scmp.ne.s32.totalorder %s92, %s106
      %p108 = scmp.eq.s32.totalorder %s19, 0
      %p109 = por %p107, %p108
      %s110 = ssub.s32 %s13, %s20
      %p111 = scmp.eq.s32.totalorder %s110, 0
      %s113 = sadd.s32 %s112, 1
      %s114 = scalar_select %p111, %s112, %s113
      %p117 = pneg %p111
      %p118 = scmp.eq.s32.totalorder %s13, 1
      %p119 = por %p117, %p118
      %p120 = scmp.ne.s32.totalorder %s112, %s115
      %p121 = scmp.eq.s32.totalorder %s13, 0
      %p122 = por %p120, %p121
      %p123 = scmp.ne.s32.totalorder %s112, %s115
      %p124 = scmp.eq.s32.totalorder %s18, 1
      %p125 = por %p123, %p124
      %p126 = scmp.ne.s32.totalorder %s115, %s116
      %p127 = scmp.eq.s32.totalorder %s18, 0
      %p128 = por %p126, %p127
      %p129 = scmp.ne.s32.totalorder %s115, %s116
      %p130 = scmp.eq.s32.totalorder %s19, 1
      %p131 = por %p129, %p130
      %p133 = scmp.ne.s32.totalorder %s116, %s132
      %p134 = scmp.eq.s32.totalorder %s19, 0
      %p135 = por %p133, %p134
      %s137 = sadd.s32 %s136, 1
      %p140 = scmp.eq.s32.totalorder %s13, 1
      %p141 = scmp.ne.s32.totalorder %s136, %s138
      %p142 = scmp.eq.s32.totalorder %s13, 0
      %p143 = por %p141, %p142
      %p144 = scmp.ne.s32.totalorder %s136, %s138
      %p145 = scmp.eq.s32.totalorder %s18, 1
      %p146 = por %p144, %p145
      %p147 = scmp.ne.s32.totalorder %s138, %s139
      %p148 = scmp.eq.s32.totalorder %s18, 0
      %p149 = por %p147, %p148
      %p150 = scmp.ne.s32.totalorder %s138, %s139
      %p151 = scmp.eq.s32.totalorder %s19, 1
      %p152 = por %p150, %p151
      %p154 = scmp.ne.s32.totalorder %s139, %s153
      %p155 = scmp.eq.s32.totalorder %s19, 0
      %p156 = por %p154, %p155
      %p157 = scmp.le.s32.totalorder 1, %s13
      %p158 = scmp.lt.s32.totalorder %s13, 3
      %p159 = pnand %p157, %p158
      %p160 = pneg %p159
      // Predicated region
      $region9: #{_lambda_.4} parent=5 // pred_check
        _
      $region10: #{_lambda_.4} parent=5 // pred_check_branch
        %162 = sbr.rel (%p159) target = $region12
      $region11: #{_lambda_.4} parent=5 // pred_region
        %s163 = ssub.s32 %s13, 1
        // Predicated region
        $region13: #{_lambda_.4} parent=11 // pred_check
          %p164 = pneg %p60
        $region14: #{_lambda_.4} parent=11 // pred_check_branch
          %166 = sbr.rel (%p164) target = $region16
        $region15: #{_lambda_.4} parent=11 // pred_region
          _
        $region16: #{_lambda_.4} parent=11 // pred_fallthru
          _
        // Predicated region
        $region17: #{_lambda_.4} parent=11 // pred_check
          %p167 = pneg %p81
        $region18: #{_lambda_.4} parent=11 // pred_check_branch
          %169 = sbr.rel (%p167) target = $region20
        $region19: #{_lambda_.4} parent=11 // pred_region
          _
        $region20: #{_lambda_.4} parent=11 // pred_fallthru
          _
        // Predicated region
        $region21: #{_lambda_.4} parent=11 // pred_check
          %p170 = pneg %p102
        $region22: #{_lambda_.4} parent=11 // pred_check_branch
          %172 = sbr.rel (%p170) target = $region24
        $region23: #{_lambda_.4} parent=11 // pred_region
          _
        $region24: #{_lambda_.4} parent=11 // pred_fallthru
          _
      $region12: #{_lambda_.4} parent=5 // pred_fallthru
        _
      %p173 = scmp.lt.s32.totalorder %s13, 2
      // Predicated region
      $region25: #{_lambda_.4} parent=5 // pred_check
        %p174 = pneg %p173
      $region26: #{_lambda_.4} parent=5 // pred_check_branch
        %176 = sbr.rel (%p174) target = $region28
      $region27: #{_lambda_.4} parent=5 // pred_region
        // Predicated region
        $region29: #{_lambda_.4} parent=27 // pred_check
          %p177 = pneg %p33
        $region30: #{_lambda_.4} parent=27 // pred_check_branch
          %179 = sbr.rel (%p177) target = $region32
        $region31: #{_lambda_.4} parent=27 // pred_region
          %s180 = smul.u32 16, %s13
          %p181 = scmp.lt.s32.totalorder %s180, 31
          %s182 = scalar_select %p181, %s180, 31
          %s183 = smul.addr %s182, 3
          %s184 = smul.addr %s183, 4
          %s185 = scalar_lea.vmem %s0, %s184
          %s186 = smul.u32 16, %s13
        $region32: #{_lambda_.4} parent=27 // pred_fallthru
          _
      $region28: #{_lambda_.4} parent=5 // pred_fallthru
        _
      %p187 = scmp.le.s32.totalorder 1, %s13
      %p188 = scmp.lt.s32.totalorder %s13, 3
      %p189 = pnand %p187, %p188
      %p190 = pneg %p189
      // Predicated region
      $region33: #{_lambda_.4} parent=5 // pred_check
        _
      $region34: #{_lambda_.4} parent=5 // pred_check_branch
        %192 = sbr.rel (%p189) target = $region36
      $region35: #{_lambda_.4} parent=5 // pred_region
        %s193 = ssub.s32 %s13, 1
        %s194 = smul.u32 16, %s18
        %p195 = scmp.lt.s32.totalorder %s194, 31
        %s196 = scalar_select %p195, %s194, 31
        %s197 = smul.addr %s196, 3
        %s198 = smul.addr %s197, 4
        %s199 = scalar_lea.vmem %s0, %s198
        %p200 = pneg %p39
        %p201 = pneg %p36
        %p202 = pneg %p60
        %p203 = pneg %p57
        %p204 = pneg %p81
        %p205 = pneg %p78
        %p206 = pneg %p102
        %p207 = pneg %p99
        %p208 = pneg %p128
        %p209 = pneg %p125
        %s210 = smul.u32 16, %s18
        %p211 = scmp.lt.s32.totalorder %s210, 31
        %s212 = scalar_select %p211, %s210, 31
        %s213 = smul.addr %s212, 4
        %s214 = scalar_lea.vmem %s4, %s213
        %p215 = pneg %p149
        %p216 = pneg %p146
        %s217 = smul.u32 16, %s18
        %p218 = scmp.lt.s32.totalorder %s217, 31
        %s219 = scalar_select %p218, %s217, 31
        %s220 = smul.addr %s219, 3
        %s221 = smul.addr %s220, 4
        %s222 = scalar_lea.vmem %s0, %s221
        %s223 = smul.u32 16, %s18
        %s224 = smul.u32 16, %s18
        %p225 = scmp.lt.s32.totalorder %s224, 31
        %s226 = scalar_select %p225, %s224, 31
        %s227 = smul.addr %s226, 4
        %s228 = scalar_lea.vmem %s4, %s227
        %s229 = smul.u32 16, %s18
        %p231 = scmp.eq.s32.totalorder %s18, 0
        // Predicated region
        $region37: #{_lambda_.4} parent=35 // pred_check
          %p232 = pneg %p231
        $region38: #{_lambda_.4} parent=35 // pred_check_branch
          %234 = sbr.rel (%p232) target = $region40
        $region39: #{_lambda_.4} parent=35 // pred_region
          %v235 = vld [vmem:[%s1] sm:$0xff]
          %236 = vst [vmem:[#allocation2] sm:$0xff] %v235
        $region40: #{_lambda_.4} parent=35 // pred_fallthru
          _
        %v237 = vld [vmem:[#allocation2] sm:$0xff]
        %v238 = vld [vmem:[%s222] sm:$0xff]
        %v239 = vld [vmem:[%s222 + $0x8] sm:$0xf]
        %v240 = vunpack.c.l.bf16 %v238
        %v241 = vunpack.c.h.bf16 %v238
        %v242 = vunpack.c.l.bf16 %v239
        %v243 = vpack.c.bf16 %v237, %v237
        %v244 = vld [vmem:[%s2] sm:$0xff]
        %v245 = vld [vmem:[%s2 + $0x8] sm:$0xf]
        %v246 = vld [vmem:[%s2 + $0xc] sm:$0xff]
        %v247 = vld [vmem:[%s2 + $0x14] sm:$0xf]
        %v248 = vld [vmem:[%s2 + $0x18] sm:$0xff]
        %v249 = vld [vmem:[%s2 + $0x20] sm:$0xf]
        %v250 = vld [vmem:[%s2 + $0x24] sm:$0xff]
        %v251 = vld [vmem:[%s2 + $0x2c] sm:$0xf]
        %v252 = vld [vmem:[%s2 + $0x30] sm:$0xff]
        %v253 = vld [vmem:[%s2 + $0x38] sm:$0xf]
        %v254 = vld [vmem:[%s2 + $0x3c] sm:$0xff]
        %v255 = vld [vmem:[%s2 + $0x44] sm:$0xf]
        %v256 = vld [vmem:[%s2 + $0x48] sm:$0xff]
        %v257 = vld [vmem:[%s2 + $0x50] sm:$0xf]
        %v258 = vld [vmem:[%s2 + $0x54] sm:$0xff]
        %v259 = vld [vmem:[%s2 + $0x5c] sm:$0xf]
        %v260 = vld [vmem:[%s2 + $0x60] sm:$0xff]
        %v261 = vld [vmem:[%s2 + $0x68] sm:$0xf]
        %v262 = vld [vmem:[%s2 + $0x6c] sm:$0xff]
        %v263 = vld [vmem:[%s2 + $0x74] sm:$0xf]
        %v264 = vld [vmem:[%s2 + $0x78] sm:$0xff]
        %v265 = vld [vmem:[%s2 + $0x80] sm:$0xf]
        %v266 = vld [vmem:[%s2 + $0x84] sm:$0xff]
        %v267 = vld [vmem:[%s2 + $0x8c] sm:$0xf]
        %v268 = vld [vmem:[%s2 + $0x90] sm:$0xff]
        %v269 = vld [vmem:[%s2 + $0x98] sm:$0xf]
        %v270 = vld [vmem:[%s2 + $0x9c] sm:$0xff]
        %v271 = vld [vmem:[%s2 + $0xa4] sm:$0xf]
        %v272 = vld [vmem:[%s2 + $0xa8] sm:$0xff]
        %v273 = vld [vmem:[%s2 + $0xb0] sm:$0xf]
        %v274 = vld [vmem:[%s2 + $0xb4] sm:$0xff]
        %v275 = vld [vmem:[%s2 + $0xbc] sm:$0xf]
        %v308 = vunpack.c.l.b16 %v244
        %v309 = vunpack.c.h.b16 %v244
        %v310 = vunpack.c.l.b16 %v245
        %v311 = vunpack.c.l.b16 %v246
        %v312 = vunpack.c.h.b16 %v246
        %v313 = vunpack.c.l.b16 %v247
        %v314 = vunpack.c.l.b16 %v248
        %v315 = vunpack.c.h.b16 %v248
        %v316 = vunpack.c.l.b16 %v249
        %v317 = vunpack.c.l.b16 %v250
        %v318 = vunpack.c.h.b16 %v250
        %v319 = vunpack.c.l.b16 %v251
        %v320 = vunpack.c.l.b16 %v252
        %v321 = vunpack.c.h.b16 %v252
        %v322 = vunpack.c.l.b16 %v253
        %v323 = vunpack.c.l.b16 %v254
        %v324 = vunpack.c.h.b16 %v254
        %v325 = vunpack.c.l.b16 %v255
        %v326 = vunpack.c.l.b16 %v256
        %v327 = vunpack.c.h.b16 %v256
        %v328 = vunpack.c.l.b16 %v257
        %v329 = vunpack.c.l.b16 %v258
        %v330 = vunpack.c.h.b16 %v258
        %v331 = vunpack.c.l.b16 %v259
        %v332 = vunpack.c.l.b16 %v260
        %v333 = vunpack.c.h.b16 %v260
        %v334 = vunpack.c.l.b16 %v261
        %v335 = vunpack.c.l.b16 %v262
        %v336 = vunpack.c.h.b16 %v262
        %v337 = vunpack.c.l.b16 %v263
        %v338 = vunpack.c.l.b16 %v264
        %v339 = vunpack.c.h.b16 %v264
        %v340 = vunpack.c.l.b16 %v265
        %v341 = vunpack.c.l.b16 %v266
        %v342 = vunpack.c.h.b16 %v266
        %v343 = vunpack.c.l.b16 %v267
        %v344 = vunpack.c.l.b16 %v268
        %v345 = vunpack.c.h.b16 %v268
        %v346 = vunpack.c.l.b16 %v269
        %v347 = vunpack.c.l.b16 %v270
        %v348 = vunpack.c.h.b16 %v270
        %v349 = vunpack.c.l.b16 %v271
        %v350 = vunpack.c.l.b16 %v272
        %v351 = vunpack.c.h.b16 %v272
        %v352 = vunpack.c.l.b16 %v273
        %v353 = vunpack.c.l.b16 %v274
        %v354 = vunpack.c.h.b16 %v274
        %v355 = vunpack.c.l.b16 %v275
        %v356 = vpack.c.b16 %v311, %v308
        %v357 = vpack.c.b16 %v312, %v309
        %v358 = vpack.c.b16 %v313, %v310
        %v359 = vpack.c.b16 %v317, %v314
        %v360 = vpack.c.b16 %v318, %v315
        %v361 = vpack.c.b16 %v319, %v316
        %v362 = vpack.c.b16 %v323, %v320
        %v363 = vpack.c.b16 %v324, %v321
        %v364 = vpack.c.b16 %v325, %v322
        %v365 = vpack.c.b16 %v329, %v326
        %v366 = vpack.c.b16 %v330, %v327
        %v367 = vpack.c.b16 %v331, %v328
        %v368 = vpack.c.b16 %v335, %v332
        %v369 = vpack.c.b16 %v336, %v333
        %v370 = vpack.c.b16 %v337, %v334
        %v371 = vpack.c.b16 %v341, %v338
        %v372 = vpack.c.b16 %v342, %v339
        %v373 = vpack.c.b16 %v343, %v340
        %v374 = vpack.c.b16 %v347, %v344
        %v375 = vpack.c.b16 %v348, %v345
        %v376 = vpack.c.b16 %v349, %v346
        %v377 = vpack.c.b16 %v353, %v350
        %v378 = vpack.c.b16 %v354, %v351
        %v379 = vpack.c.b16 %v355, %v352
        %404 = vmatprep.subr.bf16.mxu0 %v378
        %405 = vmatpush1.bf16.msra.mxu0 %v377
        %406 = vmatprep.subr.bf16.mxu0 %v375
        %407 = vmatpush1.bf16.msra.mxu0 %v374
        %408 = vmatprep.subr.bf16.mxu0 %v372
        %409 = vmatpush1.bf16.msra.mxu0 %v371
        %410 = vmatprep.subr.bf16.mxu0 %v369
        %411 = vmatpush1.bf16.msra.mxu0 %v368
        %412 = vmatprep.subr.bf16.mxu0 %v366
        %413 = vmatpush1.bf16.msra.mxu0 %v365
        %414 = vmatprep.subr.bf16.mxu0 %v363
        %415 = vmatpush1.bf16.msra.mxu0 %v362
        %416 = vmatprep.subr.bf16.mxu0 %v360
        %417 = vmatpush1.bf16.msra.mxu0 %v359
        %418 = vmatprep.subr.bf16.mxu0 %v357
        %419 = vmatpush1.bf16.msra.mxu0 %v356
        %420 = vmatprep.subr.bf16.mxu0 0
        %421 = vmatpush2.bf16.msra.mxu0 0
        %422 = vmatprep.subr.bf16.mxu0 0
        %423 = vmatpush2.bf16.msra.mxu0 0
        %424 = vmatprep.subr.bf16.mxu0 0
        %425 = vmatpush2.bf16.msra.mxu0 0
        %426 = vmatprep.subr.bf16.mxu0 0
        %427 = vmatpush2.bf16.msra.mxu0 0
        %428 = vmatprep.subr.bf16.mxu0 0
        %429 = vmatpush2.bf16.msra.mxu0 0
        %430 = vmatprep.subr.bf16.mxu0 0
        %431 = vmatpush2.bf16.msra.mxu0 0
        %432 = vmatprep.subr.bf16.mxu0 0
        %433 = vmatpush2.bf16.msra.mxu0 0
        %434 = vmatprep.subr.bf16.mxu0 0
        %435 = vmatpush2.bf16.msra.mxu0 0
        %436 = vmatprep.mubr.bf16.mxu0 0
        %437 = vmatmul.mubr.bf16.gmra.mxu0 %v243
        %v438 = vpop.f32.mrf.mxu0
        %v439 = vadd.f32 0.0, %v438
        %v440 = vpop.f32.mrf.mxu0
        %v441 = vadd.f32 0.0, %v440
        %v442 = vpop.f32.mrf.mxu0
        %v443 = vpop.f32.mrf.mxu0
        %444 = vdwg.mxu0
        %445 = vmatprep.subr.bf16.mxu0 0
        %446 = vmatpush1.bf16.msra.mxu0 %v379
        %447 = vmatprep.subr.bf16.mxu0 0
        %448 = vmatpush1.bf16.msra.mxu0 %v376
        %449 = vmatprep.subr.bf16.mxu0 0
        %450 = vmatpush1.bf16.msra.mxu0 %v373
        %451 = vmatprep.subr.bf16.mxu0 0
        %452 = vmatpush1.bf16.msra.mxu0 %v370
        %453 = vmatprep.subr.bf16.mxu0 0
        %454 = vmatpush1.bf16.msra.mxu0 %v367
        %455 = vmatprep.subr.bf16.mxu0 0
        %456 = vmatpush1.bf16.msra.mxu0 %v364
        %457 = vmatprep.subr.bf16.mxu0 0
        %458 = vmatpush1.bf16.msra.mxu0 %v361
        %459 = vmatprep.subr.bf16.mxu0 0
        %460 = vmatpush1.bf16.msra.mxu0 %v358
        %461 = vmatprep.subr.bf16.mxu0 0
        %462 = vmatpush2.bf16.msra.mxu0 0
        %463 = vmatprep.subr.bf16.mxu0 0
        %464 = vmatpush2.bf16.msra.mxu0 0
        %465 = vmatprep.subr.bf16.mxu0 0
        %466 = vmatpush2.bf16.msra.mxu0 0
        %467 = vmatprep.subr.bf16.mxu0 0
        %468 = vmatpush2.bf16.msra.mxu0 0
        %469 = vmatprep.subr.bf16.mxu0 0
        %470 = vmatpush2.bf16.msra.mxu0 0
        %471 = vmatprep.subr.bf16.mxu0 0
        %472 = vmatpush2.bf16.msra.mxu0 0
        %473 = vmatprep.subr.bf16.mxu0 0
        %474 = vmatpush2.bf16.msra.mxu0 0
        %475 = vmatprep.subr.bf16.mxu0 0
        %476 = vmatpush2.bf16.msra.mxu0 0
        %477 = vmatprep.mubr.bf16.mxu0 0
        %478 = vmatmul.mubr.bf16.gmra.mxu0 %v243
        %v479 = vpop.f32.mrf.mxu0
        %v480 = vadd.f32 0.0, %v479
        %v481 = vpop.f32.mrf.mxu0
        %v482 = vpop.f32.mrf.mxu0
        %v483 = vpop.f32.mrf.mxu0
        %484 = vdwg.mxu0
        %v485 = vadd.f32 %v240, %v439
        %v486 = vxor.u32 %v485, 2147483648
        %v487 = vmul.f32 %v486, 1.442695
        %v488 = vpow.pop %v487
        %v489 = vadd.f32 %v488, 1.0
        %v490 = vrcp.pop %v489
        %v491 = vmul.f32 1.0, %v490
        %v492 = vadd.f32 %v241, %v441
        %v493 = vxor.u32 %v492, 2147483648
        %v494 = vmul.f32 %v493, 1.442695
        %v495 = vpow.pop %v494
        %v496 = vadd.f32 %v495, 1.0
        %v497 = vrcp.pop %v496
        %v498 = vmul.f32 1.0, %v497
        %v499 = vld [vmem:[%s3] sm:$0x1]
        %v501 = vlaneseq
        %v502 = vshrl.u32 %v501, 7
        %v503 = vsub.s32 0, %v502
        %v504 = vrot.slane %v499, %v503
        %v506 = vadd.f32 %v480, %v504
        %v507 = vmul.f32 %v491, %v506
        %v508 = vadd.f32 %v242, %v507
        %v509 = vtanh.pop %v508
        %v510 = vsub.f32 1.0, %v498
        %v511 = vmul.f32 %v510, %v509
        %v512 = vmul.f32 %v498, %v237
        %v513 = vadd.f32 %v511, %v512
        %v514 = vpack.c.bf16 %v513, %v513
        %515 = vst [vmem:[%s228] sm:$0xf] %v514
        %s516 = scalar_lea.vmem %s222, 12
        %v517 = vld [vmem:[%s516] sm:$0xff]
        %v518 = vld [vmem:[%s516 + $0x8] sm:$0xf]
        %v519 = vunpack.c.l.bf16 %v517
        %v520 = vunpack.c.h.bf16 %v517
        %v521 = vunpack.c.l.bf16 %v518
        %v522 = vld [vmem:[%s2] sm:$0xff]
        %v523 = vld [vmem:[%s2 + $0x8] sm:$0xf]
        %v524 = vld [vmem:[%s2 + $0xc] sm:$0xff]
        %v525 = vld [vmem:[%s2 + $0x14] sm:$0xf]
        %v526 = vld [vmem:[%s2 + $0x18] sm:$0xff]
        %v527 = vld [vmem:[%s2 + $0x20] sm:$0xf]
        %v528 = vld [vmem:[%s2 + $0x24] sm:$0xff]
        %v529 = vld [vmem:[%s2 + $0x2c] sm:$0xf]
        %v530 = vld [vmem:[%s2 + $0x30] sm:$0xff]
        %v531 = vld [vmem:[%s2 + $0x38] sm:$0xf]
        %v532 = vld [vmem:[%s2 + $0x3c] sm:$0xff]
        %v533 = vld [vmem:[%s2 + $0x44] sm:$0xf]
        %v534 = vld [vmem:[%s2 + $0x48] sm:$0xff]
        %v535 = vld [vmem:[%s2 + $0x50] sm:$0xf]
        %v536 = vld [vmem:[%s2 + $0x54] sm:$0xff]
        %v537 = vld [vmem:[%s2 + $0x5c] sm:$0xf]
        %v538 = vld [vmem:[%s2 + $0x60] sm:$0xff]
        %v539 = vld [vmem:[%s2 + $0x68] sm:$0xf]
        %v540 = vld [vmem:[%s2 + $0x6c] sm:$0xff]
        %v541 = vld [vmem:[%s2 + $0x74] sm:$0xf]
        %v542 = vld [vmem:[%s2 + $0x78] sm:$0xff]
        %v543 = vld [vmem:[%s2 + $0x80] sm:$0xf]
        %v544 = vld [vmem:[%s2 + $0x84] sm:$0xff]
        %v545 = vld [vmem:[%s2 + $0x8c] sm:$0xf]
        %v546 = vld [vmem:[%s2 + $0x90] sm:$0xff]
        %v547 = vld [vmem:[%s2 + $0x98] sm:$0xf]
        %v548 = vld [vmem:[%s2 + $0x9c] sm:$0xff]
        %v549 = vld [vmem:[%s2 + $0xa4] sm:$0xf]
        %v550 = vld [vmem:[%s2 + $0xa8] sm:$0xff]
        %v551 = vld [vmem:[%s2 + $0xb0] sm:$0xf]
        %v552 = vld [vmem:[%s2 + $0xb4] sm:$0xff]
        %v553 = vld [vmem:[%s2 + $0xbc] sm:$0xf]
        %v586 = vunpack.c.l.b16 %v522
        %v587 = vunpack.c.h.b16 %v522
        %v588 = vunpack.c.l.b16 %v523
        %v589 = vunpack.c.l.b16 %v524
        %v590 = vunpack.c.h.b16 %v524
        %v591 = vunpack.c.l.b16 %v525
        %v592 = vunpack.c.l.b16 %v526
        %v593 = vunpack.c.h.b16 %v526
        %v594 = vunpack.c.l.b16 %v527
        %v595 = vunpack.c.l.b16 %v528
        %v596 = vunpack.c.h.b16 %v528
        %v597 = vunpack.c.l.b16 %v529
        %v598 = vunpack.c.l.b16 %v530
        %v599 = vunpack.c.h.b16 %v530
        %v600 = vunpack.c.l.b16 %v531
        %v601 = vunpack.c.l.b16 %v532
        %v602 = vunpack.c.h.b16 %v532
        %v603 = vunpack.c.l.b16 %v533
        %v604 = vunpack.c.l.b16 %v534
        %v605 = vunpack.c.h.b16 %v534
        %v606 = vunpack.c.l.b16 %v535
        %v607 = vunpack.c.l.b16 %v536
        %v608 = vunpack.c.h.b16 %v536
        %v609 = vunpack.c.l.b16 %v537
        %v610 = vunpack.c.l.b16 %v538
        %v611 = vunpack.c.h.b16 %v538
        %v612 = vunpack.c.l.b16 %v539
        %v613 = vunpack.c.l.b16 %v540
        %v614 = vunpack.c.h.b16 %v540
        %v615 = vunpack.c.l.b16 %v541
        %v616 = vunpack.c.l.b16 %v542
        %v617 = vunpack.c.h.b16 %v542
        %v618 = vunpack.c.l.b16 %v543
        %v619 = vunpack.c.l.b16 %v544
        %v620 = vunpack.c.h.b16 %v544
        %v621 = vunpack.c.l.b16 %v545
        %v622 = vunpack.c.l.b16 %v546
        %v623 = vunpack.c.h.b16 %v546
        %v624 = vunpack.c.l.b16 %v547
        %v625 = vunpack.c.l.b16 %v548
        %v626 = vunpack.c.h.b16 %v548
        %v627 = vunpack.c.l.b16 %v549
        %v628 = vunpack.c.l.b16 %v550
        %v629 = vunpack.c.h.b16 %v550
        %v630 = vunpack.c.l.b16 %v551
        %v631 = vunpack.c.l.b16 %v552
        %v632 = vunpack.c.h.b16 %v552
        %v633 = vunpack.c.l.b16 %v553
        %v634 = vpack.c.b16 %v589, %v586
        %v635 = vpack.c.b16 %v590, %v587
        %v636 = vpack.c.b16 %v591, %v588
        %v637 = vpack.c.b16 %v595, %v592
        %v638 = vpack.c.b16 %v596, %v593
        %v639 = vpack.c.b16 %v597, %v594
        %v640 = vpack.c.b16 %v601, %v598
        %v641 = vpack.c.b16 %v602, %v599
        %v642 = vpack.c.b16 %v603, %v600
        %v643 = vpack.c.b16 %v607, %v604
        %v644 = vpack.c.b16 %v608, %v605
        %v645 = vpack.c.b16 %v609, %v606
        %v646 = vpack.c.b16 %v613, %v610
        %v647 = vpack.c.b16 %v614, %v611
        %v648 = vpack.c.b16 %v615, %v612
        %v649 = vpack.c.b16 %v619, %v616
        %v650 = vpack.c.b16 %v620, %v617
        %v651 = vpack.c.b16 %v621, %v618
        %v652 = vpack.c.b16 %v625, %v622
        %v653 = vpack.c.b16 %v626, %v623
        %v654 = vpack.c.b16 %v627, %v624
        %v655 = vpack.c.b16 %v631, %v628
        %v656 = vpack.c.b16 %v632, %v629
        %v657 = vpack.c.b16 %v633, %v630
        %682 = vmatprep.subr.bf16.mxu0 %v656
        %683 = vmatpush1.bf16.msra.mxu0 %v655
        %684 = vmatprep.subr.bf16.mxu0 %v653
        %685 = vmatpush1.bf16.msra.mxu0 %v652
        %686 = vmatprep.subr.bf16.mxu0 %v650
        %687 = vmatpush1.bf16.msra.mxu0 %v649
        %688 = vmatprep.subr.bf16.mxu0 %v647
        %689 = vmatpush1.bf16.msra.mxu0 %v646
        %690 = vmatprep.subr.bf16.mxu0 %v644
        %691 = vmatpush1.bf16.msra.mxu0 %v643
        %692 = vmatprep.subr.bf16.mxu0 %v641
        %693 = vmatpush1.bf16.msra.mxu0 %v640
        %694 = vmatprep.subr.bf16.mxu0 %v638
        %695 = vmatpush1.bf16.msra.mxu0 %v637
        %696 = vmatprep.subr.bf16.mxu0 %v635
        %697 = vmatpush1.bf16.msra.mxu0 %v634
        %698 = vmatprep.subr.bf16.mxu0 0
        %699 = vmatpush2.bf16.msra.mxu0 0
        %700 = vmatprep.subr.bf16.mxu0 0
        %701 = vmatpush2.bf16.msra.mxu0 0
        %702 = vmatprep.subr.bf16.mxu0 0
        %703 = vmatpush2.bf16.msra.mxu0 0
        %704 = vmatprep.subr.bf16.mxu0 0
        %705 = vmatpush2.bf16.msra.mxu0 0
        %706 = vmatprep.subr.bf16.mxu0 0
        %707 = vmatpush2.bf16.msra.mxu0 0
        %708 = vmatprep.subr.bf16.mxu0 0
        %709 = vmatpush2.bf16.msra.mxu0 0
        %710 = vmatprep.subr.bf16.mxu0 0
        %711 = vmatpush2.bf16.msra.mxu0 0
        %712 = vmatprep.subr.bf16.mxu0 0
        %713 = vmatpush2.bf16.msra.mxu0 0
        %714 = vmatprep.mubr.bf16.mxu0 0
        %715 = vmatmul.mubr.bf16.gmra.mxu0 %v514
        %v716 = vpop.f32.mrf.mxu0
        %v717 = vadd.f32 0.0, %v716
        %v718 = vpop.f32.mrf.mxu0
        %v719 = vadd.f32 0.0, %v718
        %v720 = vpop.f32.mrf.mxu0
        %v721 = vpop.f32.mrf.mxu0
        %722 = vdwg.mxu0
        %723 = vmatprep.subr.bf16.mxu0 0
        %724 = vmatpush1.bf16.msra.mxu0 %v657
        %725 = vmatprep.subr.bf16.mxu0 0
        %726 = vmatpush1.bf16.msra.mxu0 %v654
        %727 = vmatprep.subr.bf16.mxu0 0
        %728 = vmatpush1.bf16.msra.mxu0 %v651
        %729 = vmatprep.subr.bf16.mxu0 0
        %730 = vmatpush1.bf16.msra.mxu0 %v648
        %731 = vmatprep.subr.bf16.mxu0 0
        %732 = vmatpush1.bf16.msra.mxu0 %v645
        %733 = vmatprep.subr.bf16.mxu0 0
        %734 = vmatpush1.bf16.msra.mxu0 %v642
        %735 = vmatprep.subr.bf16.mxu0 0
        %736 = vmatpush1.bf16.msra.mxu0 %v639
        %737 = vmatprep.subr.bf16.mxu0 0
        %738 = vmatpush1.bf16.msra.mxu0 %v636
        %739 = vmatprep.subr.bf16.mxu0 0
        %740 = vmatpush2.bf16.msra.mxu0 0
        %741 = vmatprep.subr.bf16.mxu0 0
        %742 = vmatpush2.bf16.msra.mxu0 0
        %743 = vmatprep.subr.bf16.mxu0 0
        %744 = vmatpush2.bf16.msra.mxu0 0
        %745 = vmatprep.subr.bf16.mxu0 0
        %746 = vmatpush2.bf16.msra.mxu0 0
        %747 = vmatprep.subr.bf16.mxu0 0
        %748 = vmatpush2.bf16.msra.mxu0 0
        %749 = vmatprep.subr.bf16.mxu0 0
        %750 = vmatpush2.bf16.msra.mxu0 0
        %751 = vmatprep.subr.bf16.mxu0 0
        %752 = vmatpush2.bf16.msra.mxu0 0
        %753 = vmatprep.subr.bf16.mxu0 0
        %754 = vmatpush2.bf16.msra.mxu0 0
        %755 = vmatprep.mubr.bf16.mxu0 0
        %756 = vmatmul.mubr.bf16.gmra.mxu0 %v514
        %v757 = vpop.f32.mrf.mxu0
        %v758 = vadd.f32 0.0, %v757
        %v759 = vpop.f32.mrf.mxu0
        %v760 = vpop.f32.mrf.mxu0
        %v761 = vpop.f32.mrf.mxu0
        %762 = vdwg.mxu0
        %v763 = vadd.f32 %v519, %v717
        %v764 = vxor.u32 %v763, 2147483648
        %v765 = vmul.f32 %v764, 1.442695
        %v766 = vpow.pop %v765
        %v767 = vadd.f32 %v766, 1.0
        %v768 = vrcp.pop %v767
        %v769 = vmul.f32 1.0, %v768
        %v770 = vadd.f32 %v520, %v719
        %v771 = vxor.u32 %v770, 2147483648
        %v772 = vmul.f32 %v771, 1.442695
        %v773 = vpow.pop %v772
        %v774 = vadd.f32 %v773, 1.0
        %v775 = vrcp.pop %v774
        %v776 = vmul.f32 1.0, %v775
        %v777 = vld [vmem:[%s3] sm:$0x1]
        %v779 = vlaneseq
        %v780 = vshrl.u32 %v779, 7
        %v781 = vsub.s32 0, %v780
        %v782 = vrot.slane %v777, %v781
        %v784 = vadd.f32 %v758, %v782
        %v785 = vmul.f32 %v769, %v784
        %v786 = vadd.f32 %v521, %v785
        %v787 = vtanh.pop %v786
        %v788 = vsub.f32 1.0, %v776
        %v789 = vmul.f32 %v788, %v787
        %v790 = vmul.f32 %v776, %v513
        %v791 = vadd.f32 %v789, %v790
        %v792 = vpack.c.bf16 %v791, %v791
        %s793 = scalar_lea.vmem %s228, 4
        %794 = vst [vmem:[%s793] sm:$0xf] %v792
        %s795 = scalar_lea.vmem %s222, 24
        %v796 = vld [vmem:[%s795] sm:$0xff]
        %v797 = vld [vmem:[%s795 + $0x8] sm:$0xf]
        %v798 = vunpack.c.l.bf16 %v796
        %v799 = vunpack.c.h.bf16 %v796
        %v800 = vunpack.c.l.bf16 %v797
        %v801 = vld [vmem:[%s2] sm:$0xff]
        %v802 = vld [vmem:[%s2 + $0x8] sm:$0xf]
        %v803 = vld [vmem:[%s2 + $0xc] sm:$0xff]
        %v804 = vld [vmem:[%s2 + $0x14] sm:$0xf]
        %v805 = vld [vmem:[%s2 + $0x18] sm:$0xff]
        %v806 = vld [vmem:[%s2 + $0x20] sm:$0xf]
        %v807 = vld [vmem:[%s2 + $0x24] sm:$0xff]
        %v808 = vld [vmem:[%s2 + $0x2c] sm:$0xf]
        %v809 = vld [vmem:[%s2 + $0x30] sm:$0xff]
        %v810 = vld [vmem:[%s2 + $0x38] sm:$0xf]
        %v811 = vld [vmem:[%s2 + $0x3c] sm:$0xff]
        %v812 = vld [vmem:[%s2 + $0x44] sm:$0xf]
        %v813 = vld [vmem:[%s2 + $0x48] sm:$0xff]
        %v814 = vld [vmem:[%s2 + $0x50] sm:$0xf]
        %v815 = vld [vmem:[%s2 + $0x54] sm:$0xff]
        %v816 = vld [vmem:[%s2 + $0x5c] sm:$0xf]
        %v817 = vld [vmem:[%s2 + $0x60] sm:$0xff]
        %v818 = vld [vmem:[%s2 + $0x68] sm:$0xf]
        %v819 = vld [vmem:[%s2 + $0x6c] sm:$0xff]
        %v820 = vld [vmem:[%s2 + $0x74] sm:$0xf]
        %v821 = vld [vmem:[%s2 + $0x78] sm:$0xff]
        %v822 = vld [vmem:[%s2 + $0x80] sm:$0xf]
        %v823 = vld [vmem:[%s2 + $0x84] sm:$0xff]
        %v824 = vld [vmem:[%s2 + $0x8c] sm:$0xf]
        %v825 = vld [vmem:[%s2 + $0x90] sm:$0xff]
        %v826 = vld [vmem:[%s2 + $0x98] sm:$0xf]
        %v827 = vld [vmem:[%s2 + $0x9c] sm:$0xff]
        %v828 = vld [vmem:[%s2 + $0xa4] sm:$0xf]
        %v829 = vld [vmem:[%s2 + $0xa8] sm:$0xff]
        %v830 = vld [vmem:[%s2 + $0xb0] sm:$0xf]
        %v831 = vld [vmem:[%s2 + $0xb4] sm:$0xff]
        %v832 = vld [vmem:[%s2 + $0xbc] sm:$0xf]
        %v865 = vunpack.c.l.b16 %v801
        %v866 = vunpack.c.h.b16 %v801
        %v867 = vunpack.c.l.b16 %v802
        %v868 = vunpack.c.l.b16 %v803
        %v869 = vunpack.c.h.b16 %v803
        %v870 = vunpack.c.l.b16 %v804
        %v871 = vunpack.c.l.b16 %v805
        %v872 = vunpack.c.h.b16 %v805
        %v873 = vunpack.c.l.b16 %v806
        %v874 = vunpack.c.l.b16 %v807
        %v875 = vunpack.c.h.b16 %v807
        %v876 = vunpack.c.l.b16 %v808
        %v877 = vunpack.c.l.b16 %v809
        %v878 = vunpack.c.h.b16 %v809
        %v879 = vunpack.c.l.b16 %v810
        %v880 = vunpack.c.l.b16 %v811
        %v881 = vunpack.c.h.b16 %v811
        %v882 = vunpack.c.l.b16 %v812
        %v883 = vunpack.c.l.b16 %v813
        %v884 = vunpack.c.h.b16 %v813
        %v885 = vunpack.c.l.b16 %v814
        %v886 = vunpack.c.l.b16 %v815
        %v887 = vunpack.c.h.b16 %v815
        %v888 = vunpack.c.l.b16 %v816
        %v889 = vunpack.c.l.b16 %v817
        %v890 = vunpack.c.h.b16 %v817
        %v891 = vunpack.c.l.b16 %v818
        %v892 = vunpack.c.l.b16 %v819
        %v893 = vunpack.c.h.b16 %v819
        %v894 = vunpack.c.l.b16 %v820
        %v895 = vunpack.c.l.b16 %v821
        %v896 = vunpack.c.h.b16 %v821
        %v897 = vunpack.c.l.b16 %v822
        %v898 = vunpack.c.l.b16 %v823
        %v899 = vunpack.c.h.b16 %v823
        %v900 = vunpack.c.l.b16 %v824
        %v901 = vunpack.c.l.b16 %v825
        %v902 = vunpack.c.h.b16 %v825
        %v903 = vunpack.c.l.b16 %v826
        %v904 = vunpack.c.l.b16 %v827
        %v905 = vunpack.c.h.b16 %v827
        %v906 = vunpack.c.l.b16 %v828
        %v907 = vunpack.c.l.b16 %v829
        %v908 = vunpack.c.h.b16 %v829
        %v909 = vunpack.c.l.b16 %v830
        %v910 = vunpack.c.l.b16 %v831
        %v911 = vunpack.c.h.b16 %v831
        %v912 = vunpack.c.l.b16 %v832
        %v913 = vpack.c.b16 %v868, %v865
        %v914 = vpack.c.b16 %v869, %v866
        %v915 = vpack.c.b16 %v870, %v867
        %v916 = vpack.c.b16 %v874, %v871
        %v917 = vpack.c.b16 %v875, %v872
        %v918 = vpack.c.b16 %v876, %v873
        %v919 = vpack.c.b16 %v880, %v877
        %v920 = vpack.c.b16 %v881, %v878
        %v921 = vpack.c.b16 %v882, %v879
        %v922 = vpack.c.b16 %v886, %v883
        %v923 = vpack.c.b16 %v887, %v884
        %v924 = vpack.c.b16 %v888, %v885
        %v925 = vpack.c.b16 %v892, %v889
        %v926 = vpack.c.b16 %v893, %v890
        %v927 = vpack.c.b16 %v894, %v891
        %v928 = vpack.c.b16 %v898, %v895
        %v929 = vpack.c.b16 %v899, %v896
        %v930 = vpack.c.b16 %v900, %v897
        %v931 = vpack.c.b16 %v904, %v901
        %v932 = vpack.c.b16 %v905, %v902
        %v933 = vpack.c.b16 %v906, %v903
        %v934 = vpack.c.b16 %v910, %v907
        %v935 = vpack.c.b16 %v911, %v908
        %v936 = vpack.c.b16 %v912, %v909
        %961 = vmatprep.subr.bf16.mxu0 %v935
        %962 = vmatpush1.bf16.msra.mxu0 %v934
        %963 = vmatprep.subr.bf16.mxu0 %v932
        %964 = vmatpush1.bf16.msra.mxu0 %v931
        %965 = vmatprep.subr.bf16.mxu0 %v929
        %966 = vmatpush1.bf16.msra.mxu0 %v928
        %967 = vmatprep.subr.bf16.mxu0 %v926
        %968 = vmatpush1.bf16.msra.mxu0 %v925
        %969 = vmatprep.subr.bf16.mxu0 %v923
        %970 = vmatpush1.bf16.msra.mxu0 %v922
        %971 = vmatprep.subr.bf16.mxu0 %v920
        %972 = vmatpush1.bf16.msra.mxu0 %v919
        %973 = vmatprep.subr.bf16.mxu0 %v917
        %974 = vmatpush1.bf16.msra.mxu0 %v916
        %975 = vmatprep.subr.bf16.mxu0 %v914
        %976 = vmatpush1.bf16.msra.mxu0 %v913
        %977 = vmatprep.subr.bf16.mxu0 0
        %978 = vmatpush2.bf16.msra.mxu0 0
        %979 = vmatprep.subr.bf16.mxu0 0
        %980 = vmatpush2.bf16.msra.mxu0 0
        %981 = vmatprep.subr.bf16.mxu0 0
        %982 = vmatpush2.bf16.msra.mxu0 0
        %983 = vmatprep.subr.bf16.mxu0 0
        %984 = vmatpush2.bf16.msra.mxu0 0
        %985 = vmatprep.subr.bf16.mxu0 0
        %986 = vmatpush2.bf16.msra.mxu0 0
        %987 = vmatprep.subr.bf16.mxu0 0
        %988 = vmatpush2.bf16.msra.mxu0 0
        %989 = vmatprep.subr.bf16.mxu0 0
        %990 = vmatpush2.bf16.msra.mxu0 0
        %991 = vmatprep.subr.bf16.mxu0 0
        %992 = vmatpush2.bf16.msra.mxu0 0
        %993 = vmatprep.mubr.bf16.mxu0 0
        %994 = vmatmul.mubr.bf16.gmra.mxu0 %v792
        %v995 = vpop.f32.mrf.mxu0
        %v996 = vadd.f32 0.0, %v995
        %v997 = vpop.f32.mrf.mxu0
        %v998 = vadd.f32 0.0, %v997
        %v999 = vpop.f32.mrf.mxu0
        %v1000 = vpop.f32.mrf.mxu0
        %1001 = vdwg.mxu0
        %1002 = vmatprep.subr.bf16.mxu0 0
        %1003 = vmatpush1.bf16.msra.mxu0 %v936
        %1004 = vmatprep.subr.bf16.mxu0 0
        %1005 = vmatpush1.bf16.msra.mxu0 %v933
        %1006 = vmatprep.subr.bf16.mxu0 0
        %1007 = vmatpush1.bf16.msra.mxu0 %v930
        %1008 = vmatprep.subr.bf16.mxu0 0
        %1009 = vmatpush1.bf16.msra.mxu0 %v927
        %1010 = vmatprep.subr.bf16.mxu0 0
        %1011 = vmatpush1.bf16.msra.mxu0 %v924
        %1012 = vmatprep.subr.bf16.mxu0 0
        %1013 = vmatpush1.bf16.msra.mxu0 %v921
        %1014 = vmatprep.subr.bf16.mxu0 0
        %1015 = vmatpush1.bf16.msra.mxu0 %v918
        %1016 = vmatprep.subr.bf16.mxu0 0
        %1017 = vmatpush1.bf16.msra.mxu0 %v915
        %1018 = vmatprep.subr.bf16.mxu0 0
        %1019 = vmatpush2.bf16.msra.mxu0 0
        %1020 = vmatprep.subr.bf16.mxu0 0
        %1021 = vmatpush2.bf16.msra.mxu0 0
        %1022 = vmatprep.subr.bf16.mxu0 0
        %1023 = vmatpush2.bf16.msra.mxu0 0
        %1024 = vmatprep.subr.bf16.mxu0 0
        %1025 = vmatpush2.bf16.msra.mxu0 0
        %1026 = vmatprep.subr.bf16.mxu0 0
        %1027 = vmatpush2.bf16.msra.mxu0 0
        %1028 = vmatprep.subr.bf16.mxu0 0
        %1029 = vmatpush2.bf16.msra.mxu0 0
        %1030 = vmatprep.subr.bf16.mxu0 0
        %1031 = vmatpush2.bf16.msra.mxu0 0
        %1032 = vmatprep.subr.bf16.mxu0 0
        %1033 = vmatpush2.bf16.msra.mxu0 0
        %1034 = vmatprep.mubr.bf16.mxu0 0
        %1035 = vmatmul.mubr.bf16.gmra.mxu0 %v792
        %v1036 = vpop.f32.mrf.mxu0
        %v1037 = vadd.f32 0.0, %v1036
        %v1038 = vpop.f32.mrf.mxu0
        %v1039 = vpop.f32.mrf.mxu0
        %v1040 = vpop.f32.mrf.mxu0
        %1041 = vdwg.mxu0
        %v1042 = vadd.f32 %v798, %v996
        %v1043 = vxor.u32 %v1042, 2147483648
        %v1044 = vmul.f32 %v1043, 1.442695
        %v1045 = vpow.pop %v1044
        %v1046 = vadd.f32 %v1045, 1.0
        %v1047 = vrcp.pop %v1046
        %v1048 = vmul.f32 1.0, %v1047
        %v1049 = vadd.f32 %v799, %v998
        %v1050 = vxor.u32 %v1049, 2147483648
        %v1051 = vmul.f32 %v1050, 1.442695
        %v1052 = vpow.pop %v1051
        %v1053 = vadd.f32 %v1052, 1.0
        %v1054 = vrcp.pop %v1053
        %v1055 = vmul.f32 1.0, %v1054
        %v1056 = vld [vmem:[%s3] sm:$0x1]
        %v1058 = vlaneseq
        %v1059 = vshrl.u32 %v1058, 7
        %v1060 = vsub.s32 0, %v1059
        %v1061 = vrot.slane %v1056, %v1060
        %v1063 = vadd.f32 %v1037, %v1061
        %v1064 = vmul.f32 %v1048, %v1063
        %v1065 = vadd.f32 %v800, %v1064
        %v1066 = vtanh.pop %v1065
        %v1067 = vsub.f32 1.0, %v1055
        %v1068 = vmul.f32 %v1067, %v1066
        %v1069 = vmul.f32 %v1055, %v791
        %v1070 = vadd.f32 %v1068, %v1069
        %v1071 = vpack.c.bf16 %v1070, %v1070
        %s1072 = scalar_lea.vmem %s228, 8
        %1073 = vst [vmem:[%s1072] sm:$0xf] %v1071
        %s1074 = scalar_lea.vmem %s222, 36
        %v1075 = vld [vmem:[%s1074] sm:$0xff]
        %v1076 = vld [vmem:[%s1074 + $0x8] sm:$0xf]
        %v1077 = vunpack.c.l.bf16 %v1075
        %v1078 = vunpack.c.h.bf16 %v1075
        %v1079 = vunpack.c.l.bf16 %v1076
        %v1080 = vld [vmem:[%s2] sm:$0xff]
        %v1081 = vld [vmem:[%s2 + $0x8] sm:$0xf]
        %v1082 = vld [vmem:[%s2 + $0xc] sm:$0xff]
        %v1083 = vld [vmem:[%s2 + $0x14] sm:$0xf]
        %v1084 = vld [vmem:[%s2 + $0x18] sm:$0xff]
        %v1085 = vld [vmem:[%s2 + $0x20] sm:$0xf]
        %v1086 = vld [vmem:[%s2 + $0x24] sm:$0xff]
        %v1087 = vld [vmem:[%s2 + $0x2c] sm:$0xf]
        %v1088 = vld [vmem:[%s2 + $0x30] sm:$0xff]
        %v1089 = vld [vmem:[%s2 + $0x38] sm:$0xf]
        %v1090 = vld [vmem:[%s2 + $0x3c] sm:$0xff]
        %v1091 = vld [vmem:[%s2 + $0x44] sm:$0xf]
        %v1092 = vld [vmem:[%s2 + $0x48] sm:$0xff]
        %v1093 = vld [vmem:[%s2 + $0x50] sm:$0xf]
        %v1094 = vld [vmem:[%s2 + $0x54] sm:$0xff]
        %v1095 = vld [vmem:[%s2 + $0x5c] sm:$0xf]
        %v1096 = vld [vmem:[%s2 + $0x60] sm:$0xff]
        %v1097 = vld [vmem:[%s2 + $0x68] sm:$0xf]
        %v1098 = vld [vmem:[%s2 + $0x6c] sm:$0xff]
        %v1099 = vld [vmem:[%s2 + $0x74] sm:$0xf]
        %v1100 = vld [vmem:[%s2 + $0x78] sm:$0xff]
        %v1101 = vld [vmem:[%s2 + $0x80] sm:$0xf]
        %v1102 = vld [vmem:[%s2 + $0x84] sm:$0xff]
        %v1103 = vld [vmem:[%s2 + $0x8c] sm:$0xf]
        %v1104 = vld [vmem:[%s2 + $0x90] sm:$0xff]
        %v1105 = vld [vmem:[%s2 + $0x98] sm:$0xf]
        %v1106 = vld [vmem:[%s2 + $0x9c] sm:$0xff]
        %v1107 = vld [vmem:[%s2 + $0xa4] sm:$0xf]
        %v1108 = vld [vmem:[%s2 + $0xa8] sm:$0xff]
        %v1109 = vld [vmem:[%s2 + $0xb0] sm:$0xf]
        %v1110 = vld [vmem:[%s2 + $0xb4] sm:$0xff]
        %v1111 = vld [vmem:[%s2 + $0xbc] sm:$0xf]
        %v1144 = vunpack.c.l.b16 %v1080
        %v1145 = vunpack.c.h.b16 %v1080
        %v1146 = vunpack.c.l.b16 %v1081
        %v1147 = vunpack.c.l.b16 %v1082
        %v1148 = vunpack.c.h.b16 %v1082
        %v1149 = vunpack.c.l.b16 %v1083
        %v1150 = vunpack.c.l.b16 %v1084
        %v1151 = vunpack.c.h.b16 %v1084
        %v1152 = vunpack.c.l.b16 %v1085
        %v1153 = vunpack.c.l.b16 %v1086
        %v1154 = vunpack.c.h.b16 %v1086
        %v1155 = vunpack.c.l.b16 %v1087
        %v1156 = vunpack.c.l.b16 %v1088
        %v1157 = vunpack.c.h.b16 %v1088
        %v1158 = vunpack.c.l.b16 %v1089
        %v1159 = vunpack.c.l.b16 %v1090
        %v1160 = vunpack.c.h.b16 %v1090
        %v1161 = vunpack.c.l.b16 %v1091
        %v1162 = vunpack.c.l.b16 %v1092
        %v1163 = vunpack.c.h.b16 %v1092
        %v1164 = vunpack.c.l.b16 %v1093
        %v1165 = vunpack.c.l.b16 %v1094
        %v1166 = vunpack.c.h.b16 %v1094
        %v1167 = vunpack.c.l.b16 %v1095
        %v1168 = vunpack.c.l.b16 %v1096
        %v1169 = vunpack.c.h.b16 %v1096
        %v1170 = vunpack.c.l.b16 %v1097
        %v1171 = vunpack.c.l.b16 %v1098
        %v1172 = vunpack.c.h.b16 %v1098
        %v1173 = vunpack.c.l.b16 %v1099
        %v1174 = vunpack.c.l.b16 %v1100
        %v1175 = vunpack.c.h.b16 %v1100
        %v1176 = vunpack.c.l.b16 %v1101
        %v1177 = vunpack.c.l.b16 %v1102
        %v1178 = vunpack.c.h.b16 %v1102
        %v1179 = vunpack.c.l.b16 %v1103
        %v1180 = vunpack.c.l.b16 %v1104
        %v1181 = vunpack.c.h.b16 %v1104
        %v1182 = vunpack.c.l.b16 %v1105
        %v1183 = vunpack.c.l.b16 %v1106
        %v1184 = vunpack.c.h.b16 %v1106
        %v1185 = vunpack.c.l.b16 %v1107
        %v1186 = vunpack.c.l.b16 %v1108
        %v1187 = vunpack.c.h.b16 %v1108
        %v1188 = vunpack.c.l.b16 %v1109
        %v1189 = vunpack.c.l.b16 %v1110
        %v1190 = vunpack.c.h.b16 %v1110
        %v1191 = vunpack.c.l.b16 %v1111
        %v1192 = vpack.c.b16 %v1147, %v1144
        %v1193 = vpack.c.b16 %v1148, %v1145
        %v1194 = vpack.c.b16 %v1149, %v1146
        %v1195 = vpack.c.b16 %v1153, %v1150
        %v1196 = vpack.c.b16 %v1154, %v1151
        %v1197 = vpack.c.b16 %v1155, %v1152
        %v1198 = vpack.c.b16 %v1159, %v1156
        %v1199 = vpack.c.b16 %v1160, %v1157
        %v1200 = vpack.c.b16 %v1161, %v1158
        %v1201 = vpack.c.b16 %v1165, %v1162
        %v1202 = vpack.c.b16 %v1166, %v1163
        %v1203 = vpack.c.b16 %v1167, %v1164
        %v1204 = vpack.c.b16 %v1171, %v1168
        %v1205 = vpack.c.b16 %v1172, %v1169
        %v1206 = vpack.c.b16 %v1173, %v1170
        %v1207 = vpack.c.b16 %v1177, %v1174
        %v1208 = vpack.c.b16 %v1178, %v1175
        %v1209 = vpack.c.b16 %v1179, %v1176
        %v1210 = vpack.c.b16 %v1183, %v1180
        %v1211 = vpack.c.b16 %v1184, %v1181
        %v1212 = vpack.c.b16 %v1185, %v1182
        %v1213 = vpack.c.b16 %v1189, %v1186
        %v1214 = vpack.c.b16 %v1190, %v1187
        %v1215 = vpack.c.b16 %v1191, %v1188
        %1240 = vmatprep.subr.bf16.mxu0 %v1214
        %1241 = vmatpush1.bf16.msra.mxu0 %v1213
        %1242 = vmatprep.subr.bf16.mxu0 %v1211
        %1243 = vmatpush1.bf16.msra.mxu0 %v1210
        %1244 = vmatprep.subr.bf16.mxu0 %v1208
        %1245 = vmatpush1.bf16.msra.mxu0 %v1207
        %1246 = vmatprep.subr.bf16.mxu0 %v1205
        %1247 = vmatpush1.bf16.msra.mxu0 %v1204
        %1248 = vmatprep.subr.bf16.mxu0 %v1202
        %1249 = vmatpush1.bf16.msra.mxu0 %v1201
        %1250 = vmatprep.subr.bf16.mxu0 %v1199
        %1251 = vmatpush1.bf16.msra.mxu0 %v1198
        %1252 = vmatprep.subr.bf16.mxu0 %v1196
        %1253 = vmatpush1.bf16.msra.mxu0 %v1195
        %1254 = vmatprep.subr.bf16.mxu0 %v1193
        %1255 = vmatpush1.bf16.msra.mxu0 %v1192
        %1256 = vmatprep.subr.bf16.mxu0 0
        %1257 = vmatpush2.bf16.msra.mxu0 0
        %1258 = vmatprep.subr.bf16.mxu0 0
        %1259 = vmatpush2.bf16.msra.mxu0 0
        %1260 = vmatprep.subr.bf16.mxu0 0
        %1261 = vmatpush2.bf16.msra.mxu0 0
        %1262 = vmatprep.subr.bf16.mxu0 0
        %1263 = vmatpush2.bf16.msra.mxu0 0
        %1264 = vmatprep.subr.bf16.mxu0 0
        %1265 = vmatpush2.bf16.msra.mxu0 0
        %1266 = vmatprep.subr.bf16.mxu0 0
        %1267 = vmatpush2.bf16.msra.mxu0 0
        %1268 = vmatprep.subr.bf16.mxu0 0
        %1269 = vmatpush2.bf16.msra.mxu0 0
        %1270 = vmatprep.subr.bf16.mxu0 0
        %1271 = vmatpush2.bf16.msra.mxu0 0
        %1272 = vmatprep.mubr.bf16.mxu0 0
        %1273 = vmatmul.mubr.bf16.gmra.mxu0 %v1071
        %v1274 = vpop.f32.mrf.mxu0
        %v1275 = vadd.f32 0.0, %v1274
        %v1276 = vpop.f32.mrf.mxu0
        %v1277 = vadd.f32 0.0, %v1276
        %v1278 = vpop.f32.mrf.mxu0
        %v1279 = vpop.f32.mrf.mxu0
        %1280 = vdwg.mxu0
        %1281 = vmatprep.subr.bf16.mxu0 0
        %1282 = vmatpush1.bf16.msra.mxu0 %v1215
        %1283 = vmatprep.subr.bf16.mxu0 0
        %1284 = vmatpush1.bf16.msra.mxu0 %v1212
        %1285 = vmatprep.subr.bf16.mxu0 0
        %1286 = vmatpush1.bf16.msra.mxu0 %v1209
        %1287 = vmatprep.subr.bf16.mxu0 0
        %1288 = vmatpush1.bf16.msra.mxu0 %v1206
        %1289 = vmatprep.subr.bf16.mxu0 0
        %1290 = vmatpush1.bf16.msra.mxu0 %v1203
        %1291 = vmatprep.subr.bf16.mxu0 0
        %1292 = vmatpush1.bf16.msra.mxu0 %v1200
        %1293 = vmatprep.subr.bf16.mxu0 0
        %1294 = vmatpush1.bf16.msra.mxu0 %v1197
        %1295 = vmatprep.subr.bf16.mxu0 0
        %1296 = vmatpush1.bf16.msra.mxu0 %v1194
        %1297 = vmatprep.subr.bf16.mxu0 0
        %1298 = vmatpush2.bf16.msra.mxu0 0
        %1299 = vmatprep.subr.bf16.mxu0 0
        %1300 = vmatpush2.bf16.msra.mxu0 0
        %1301 = vmatprep.subr.bf16.mxu0 0
        %1302 = vmatpush2.bf16.msra.mxu0 0
        %1303 = vmatprep.subr.bf16.mxu0 0
        %1304 = vmatpush2.bf16.msra.mxu0 0
        %1305 = vmatprep.subr.bf16.mxu0 0
        %1306 = vmatpush2.bf16.msra.mxu0 0
        %1307 = vmatprep.subr.bf16.mxu0 0
        %1308 = vmatpush2.bf16.msra.mxu0 0
        %1309 = vmatprep.subr.bf16.mxu0 0
        %1310 = vmatpush2.bf16.msra.mxu0 0
        %1311 = vmatprep.subr.bf16.mxu0 0
        %1312 = vmatpush2.bf16.msra.mxu0 0
        %1313 = vmatprep.mubr.bf16.mxu0 0
        %1314 = vmatmul.mubr.bf16.gmra.mxu0 %v1071
        %v1315 = vpop.f32.mrf.mxu0
        %v1316 = vadd.f32 0.0, %v1315
        %v1317 = vpop.f32.mrf.mxu0
        %v1318 = vpop.f32.mrf.mxu0
        %v1319 = vpop.f32.mrf.mxu0
        %1320 = vdwg.mxu0
        %v1321 = vadd.f32 %v1077, %v1275
        %v1322 = vxor.u32 %v1321, 2147483648
        %v1323 = vmul.f32 %v1322, 1.442695
        %v1324 = vpow.pop %v1323
        %v1325 = vadd.f32 %v1324, 1.0
        %v1326 = vrcp.pop %v1325
        %v1327 = vmul.f32 1.0, %v1326
        %v1328 = vadd.f32 %v1078, %v1277
        %v1329 = vxor.u32 %v1328, 2147483648
        %v1330 = vmul.f32 %v1329, 1.442695
        %v1331 = vpow.pop %v1330
        %v1332 = vadd.f32 %v1331, 1.0
        %v1333 = vrcp.pop %v1332
        %v1334 = vmul.f32 1.0, %v1333
        %v1335 = vld [vmem:[%s3] sm:$0x1]
        %v1337 = vlaneseq
        %v1338 = vshrl.u32 %v1337, 7
        %v1339 = vsub.s32 0, %v1338
        %v1340 = vrot.slane %v1335, %v1339
        %v1342 = vadd.f32 %v1316, %v1340
        %v1343 = vmul.f32 %v1327, %v1342
        %v1344 = vadd.f32 %v1079, %v1343
        %v1345 = vtanh.pop %v1344
        %v1346 = vsub.f32 1.0, %v1334
        %v1347 = vmul.f32 %v1346, %v1345
        %v1348 = vmul.f32 %v1334, %v1070
        %v1349 = vadd.f32 %v1347, %v1348
        %v1350 = vpack.c.bf16 %v1349, %v1349
        %s1351 = scalar_lea.vmem %s228, 12
        %1352 = vst [vmem:[%s1351] sm:$0xf] %v1350
        %s1353 = scalar_lea.vmem %s222, 48
        %v1354 = vld [vmem:[%s1353] sm:$0xff]
        %v1355 = vld [vmem:[%s1353 + $0x8] sm:$0xf]
        %v1356 = vunpack.c.l.bf16 %v1354
        %v1357 = vunpack.c.h.bf16 %v1354
        %v1358 = vunpack.c.l.bf16 %v1355
        %v1359 = vld [vmem:[%s2] sm:$0xff]
        %v1360 = vld [vmem:[%s2 + $0x8] sm:$0xf]
        %v1361 = vld [vmem:[%s2 + $0xc] sm:$0xff]
        %v1362 = vld [vmem:[%s2 + $0x14] sm:$0xf]
        %v1363 = vld [vmem:[%s2 + $0x18] sm:$0xff]
        %v1364 = vld [vmem:[%s2 + $0x20] sm:$0xf]
        %v1365 = vld [vmem:[%s2 + $0x24] sm:$0xff]
        %v1366 = vld [vmem:[%s2 + $0x2c] sm:$0xf]
        %v1367 = vld [vmem:[%s2 + $0x30] sm:$0xff]
        %v1368 = vld [vmem:[%s2 + $0x38] sm:$0xf]
        %v1369 = vld [vmem:[%s2 + $0x3c] sm:$0xff]
        %v1370 = vld [vmem:[%s2 + $0x44] sm:$0xf]
        %v1371 = vld [vmem:[%s2 + $0x48] sm:$0xff]
        %v1372 = vld [vmem:[%s2 + $0x50] sm:$0xf]
        %v1373 = vld [vmem:[%s2 + $0x54] sm:$0xff]
        %v1374 = vld [vmem:[%s2 + $0x5c] sm:$0xf]
        %v1375 = vld [vmem:[%s2 + $0x60] sm:$0xff]
        %v1376 = vld [vmem:[%s2 + $0x68] sm:$0xf]
        %v1377 = vld [vmem:[%s2 + $0x6c] sm:$0xff]
        %v1378 = vld [vmem:[%s2 + $0x74] sm:$0xf]
        %v1379 = vld [vmem:[%s2 + $0x78] sm:$0xff]
        %v1380 = vld [vmem:[%s2 + $0x80] sm:$0xf]
        %v1381 = vld [vmem:[%s2 + $0x84] sm:$0xff]
        %v1382 = vld [vmem:[%s2 + $0x8c] sm:$0xf]
        %v1383 = vld [vmem:[%s2 + $0x90] sm:$0xff]
        %v1384 = vld [vmem:[%s2 + $0x98] sm:$0xf]
        %v1385 = vld [vmem:[%s2 + $0x9c] sm:$0xff]
        %v1386 = vld [vmem:[%s2 + $0xa4] sm:$0xf]
        %v1387 = vld [vmem:[%s2 + $0xa8] sm:$0xff]
        %v1388 = vld [vmem:[%s2 + $0xb0] sm:$0xf]
        %v1389 = vld [vmem:[%s2 + $0xb4] sm:$0xff]
        %v1390 = vld [vmem:[%s2 + $0xbc] sm:$0xf]
        %v1423 = vunpack.c.l.b16 %v1359
        %v1424 = vunpack.c.h.b16 %v1359
        %v1425 = vunpack.c.l.b16 %v1360
        %v1426 = vunpack.c.l.b16 %v1361
        %v1427 = vunpack.c.h.b16 %v1361
        %v1428 = vunpack.c.l.b16 %v1362
        %v1429 = vunpack.c.l.b16 %v1363
        %v1430 = vunpack.c.h.b16 %v1363
        %v1431 = vunpack.c.l.b16 %v1364
        %v1432 = vunpack.c.l.b16 %v1365
        %v1433 = vunpack.c.h.b16 %v1365
        %v1434 = vunpack.c.l.b16 %v1366
        %v1435 = vunpack.c.l.b16 %v1367
        %v1436 = vunpack.c.h.b16 %v1367
        %v1437 = vunpack.c.l.b16 %v1368
        %v1438 = vunpack.c.l.b16 %v1369
        %v1439 = vunpack.c.h.b16 %v1369
        %v1440 = vunpack.c.l.b16 %v1370
        %v1441 = vunpack.c.l.b16 %v1371
        %v1442 = vunpack.c.h.b16 %v1371
        %v1443 = vunpack.c.l.b16 %v1372
        %v1444 = vunpack.c.l.b16 %v1373
        %v1445 = vunpack.c.h.b16 %v1373
        %v1446 = vunpack.c.l.b16 %v1374
        %v1447 = vunpack.c.l.b16 %v1375
        %v1448 = vunpack.c.h.b16 %v1375
        %v1449 = vunpack.c.l.b16 %v1376
        %v1450 = vunpack.c.l.b16 %v1377
        %v1451 = vunpack.c.h.b16 %v1377
        %v1452 = vunpack.c.l.b16 %v1378
        %v1453 = vunpack.c.l.b16 %v1379
        %v1454 = vunpack.c.h.b16 %v1379
        %v1455 = vunpack.c.l.b16 %v1380
        %v1456 = vunpack.c.l.b16 %v1381
        %v1457 = vunpack.c.h.b16 %v1381
        %v1458 = vunpack.c.l.b16 %v1382
        %v1459 = vunpack.c.l.b16 %v1383
        %v1460 = vunpack.c.h.b16 %v1383
        %v1461 = vunpack.c.l.b16 %v1384
        %v1462 = vunpack.c.l.b16 %v1385
        %v1463 = vunpack.c.h.b16 %v1385
        %v1464 = vunpack.c.l.b16 %v1386
        %v1465 = vunpack.c.l.b16 %v1387
        %v1466 = vunpack.c.h.b16 %v1387
        %v1467 = vunpack.c.l.b16 %v1388
        %v1468 = vunpack.c.l.b16 %v1389
        %v1469 = vunpack.c.h.b16 %v1389
        %v1470 = vunpack.c.l.b16 %v1390
        %v1471 = vpack.c.b16 %v1426, %v1423
        %v1472 = vpack.c.b16 %v1427, %v1424
        %v1473 = vpack.c.b16 %v1428, %v1425
        %v1474 = vpack.c.b16 %v1432, %v1429
        %v1475 = vpack.c.b16 %v1433, %v1430
        %v1476 = vpack.c.b16 %v1434, %v1431
        %v1477 = vpack.c.b16 %v1438, %v1435
        %v1478 = vpack.c.b16 %v1439, %v1436
        %v1479 = vpack.c.b16 %v1440, %v1437
        %v1480 = vpack.c.b16 %v1444, %v1441
        %v1481 = vpack.c.b16 %v1445, %v1442
        %v1482 = vpack.c.b16 %v1446, %v1443
        %v1483 = vpack.c.b16 %v1450, %v1447
        %v1484 = vpack.c.b16 %v1451, %v1448
        %v1485 = vpack.c.b16 %v1452, %v1449
        %v1486 = vpack.c.b16 %v1456, %v1453
        %v1487 = vpack.c.b16 %v1457, %v1454
        %v1488 = vpack.c.b16 %v1458, %v1455
        %v1489 = vpack.c.b16 %v1462, %v1459
        %v1490 = vpack.c.b16 %v1463, %v1460
        %v1491 = vpack.c.b16 %v1464, %v1461
        %v1492 = vpack.c.b16 %v1468, %v1465
        %v1493 = vpack.c.b16 %v1469, %v1466
        %v1494 = vpack.c.b16 %v1470, %v1467
        %1519 = vmatprep.subr.bf16.mxu0 %v1493
        %1520 = vmatpush1.bf16.msra.mxu0 %v1492
        %1521 = vmatprep.subr.bf16.mxu0 %v1490
        %1522 = vmatpush1.bf16.msra.mxu0 %v1489
        %1523 = vmatprep.subr.bf16.mxu0 %v1487
        %1524 = vmatpush1.bf16.msra.mxu0 %v1486
        %1525 = vmatprep.subr.bf16.mxu0 %v1484
        %1526 = vmatpush1.bf16.msra.mxu0 %v1483
        %1527 = vmatprep.subr.bf16.mxu0 %v1481
        %1528 = vmatpush1.bf16.msra.mxu0 %v1480
        %1529 = vmatprep.subr.bf16.mxu0 %v1478
        %1530 = vmatpush1.bf16.msra.mxu0 %v1477
        %1531 = vmatprep.subr.bf16.mxu0 %v1475
        %1532 = vmatpush1.bf16.msra.mxu0 %v1474
        %1533 = vmatprep.subr.bf16.mxu0 %v1472
        %1534 = vmatpush1.bf16.msra.mxu0 %v1471
        %1535 = vmatprep.subr.bf16.mxu0 0
        %1536 = vmatpush2.bf16.msra.mxu0 0
        %1537 = vmatprep.subr.bf16.mxu0 0
        %1538 = vmatpush2.bf16.msra.mxu0 0
        %1539 = vmatprep.subr.bf16.mxu0 0
        %1540 = vmatpush2.bf16.msra.mxu0 0
        %1541 = vmatprep.subr.bf16.mxu0 0
        %1542 = vmatpush2.bf16.msra.mxu0 0
        %1543 = vmatprep.subr.bf16.mxu0 0
        %1544 = vmatpush2.bf16.msra.mxu0 0
        %1545 = vmatprep.subr.bf16.mxu0 0
        %1546 = vmatpush2.bf16.msra.mxu0 0
        %1547 = vmatprep.subr.bf16.mxu0 0
        %1548 = vmatpush2.bf16.msra.mxu0 0
        %1549 = vmatprep.subr.bf16.mxu0 0
        %1550 = vmatpush2.bf16.msra.mxu0 0
        %1551 = vmatprep.mubr.bf16.mxu0 0
        %1552 = vmatmul.mubr.bf16.gmra.mxu0 %v1350
        %v1553 = vpop.f32.mrf.mxu0
        %v1554 = vadd.f32 0.0, %v1553
        %v1555 = vpop.f32.mrf.mxu0
        %v1556 = vadd.f32 0.0, %v1555
        %v1557 = vpop.f32.mrf.mxu0
        %v1558 = vpop.f32.mrf.mxu0
        %1559 = vdwg.mxu0
        %1560 = vmatprep.subr.bf16.mxu0 0
        %1561 = vmatpush1.bf16.msra.mxu0 %v1494
        %1562 = vmatprep.subr.bf16.mxu0 0
        %1563 = vmatpush1.bf16.msra.mxu0 %v1491
        %1564 = vmatprep.subr.bf16.mxu0 0
        %1565 = vmatpush1.bf16.msra.mxu0 %v1488
        %1566 = vmatprep.subr.bf16.mxu0 0
        %1567 = vmatpush1.bf16.msra.mxu0 %v1485
        %1568 = vmatprep.subr.bf16.mxu0 0
        %1569 = vmatpush1.bf16.msra.mxu0 %v1482
        %1570 = vmatprep.subr.bf16.mxu0 0
        %1571 = vmatpush1.bf16.msra.mxu0 %v1479
        %1572 = vmatprep.subr.bf16.mxu0 0
        %1573 = vmatpush1.bf16.msra.mxu0 %v1476
        %1574 = vmatprep.subr.bf16.mxu0 0
        %1575 = vmatpush1.bf16.msra.mxu0 %v1473
        %1576 = vmatprep.subr.bf16.mxu0 0
        %1577 = vmatpush2.bf16.msra.mxu0 0
        %1578 = vmatprep.subr.bf16.mxu0 0
        %1579 = vmatpush2.bf16.msra.mxu0 0
        %1580 = vmatprep.subr.bf16.mxu0 0
        %1581 = vmatpush2.bf16.msra.mxu0 0
        %1582 = vmatprep.subr.bf16.mxu0 0
        %1583 = vmatpush2.bf16.msra.mxu0 0
        %1584 = vmatprep.subr.bf16.mxu0 0
        %1585 = vmatpush2.bf16.msra.mxu0 0
        %1586 = vmatprep.subr.bf16.mxu0 0
        %1587 = vmatpush2.bf16.msra.mxu0 0
        %1588 = vmatprep.subr.bf16.mxu0 0
        %1589 = vmatpush2.bf16.msra.mxu0 0
        %1590 = vmatprep.subr.bf16.mxu0 0
        %1591 = vmatpush2.bf16.msra.mxu0 0
        %1592 = vmatprep.mubr.bf16.mxu0 0
        %1593 = vmatmul.mubr.bf16.gmra.mxu0 %v1350
        %v1594 = vpop.f32.mrf.mxu0
        %v1595 = vadd.f32 0.0, %v1594
        %v1596 = vpop.f32.mrf.mxu0
        %v1597 = vpop.f32.mrf.mxu0
        %v1598 = vpop.f32.mrf.mxu0
        %1599 = vdwg.mxu0
        %v1600 = vadd.f32 %v1356, %v1554
        %v1601 = vxor.u32 %v1600, 2147483648
        %v1602 = vmul.f32 %v1601, 1.442695
        %v1603 = vpow.pop %v1602
        %v1604 = vadd.f32 %v1603, 1.0
        %v1605 = vrcp.pop %v1604
        %v1606 = vmul.f32 1.0, %v1605
        %v1607 = vadd.f32 %v1357, %v1556
        %v1608 = vxor.u32 %v1607, 2147483648
        %v1609 = vmul.f32 %v1608, 1.442695
        %v1610 = vpow.pop %v1609
        %v1611 = vadd.f32 %v1610, 1.0
        %v1612 = vrcp.pop %v1611
        %v1613 = vmul.f32 1.0, %v1612
        %v1614 = vld [vmem:[%s3] sm:$0x1]
        %v1616 = vlaneseq
        %v1617 = vshrl.u32 %v1616, 7
        %v1618 = vsub.s32 0, %v1617
        %v1619 = vrot.slane %v1614, %v1618
        %v1621 = vadd.f32 %v1595, %v1619
        %v1622 = vmul.f32 %v1606, %v1621
        %v1623 = vadd.f32 %v1358, %v1622
        %v1624 = vtanh.pop %v1623
        %v1625 = vsub.f32 1.0, %v1613
        %v1626 = vmul.f32 %v1625, %v1624
        %v1627 = vmul.f32 %v1613, %v1349
        %v1628 = vadd.f32 %v1626, %v1627
        %v1629 = vpack.c.bf16 %v1628, %v1628
        %s1630 = scalar_lea.vmem %s228, 16
        %1631 = vst [vmem:[%s1630] sm:$0xf] %v1629
        %s1632 = scalar_lea.vmem %s222, 60
        %v1633 = vld [vmem:[%s1632] sm:$0xff]
        %v1634 = vld [vmem:[%s1632 + $0x8] sm:$0xf]
        %v1635 = vunpack.c.l.bf16 %v1633
        %v1636 = vunpack.c.h.bf16 %v1633
        %v1637 = vunpack.c.l.bf16 %v1634
        %v1638 = vld [vmem:[%s2] sm:$0xff]
        %v1639 = vld [vmem:[%s2 + $0x8] sm:$0xf]
        %v1640 = vld [vmem:[%s2 + $0xc] sm:$0xff]
        %v1641 = vld [vmem:[%s2 + $0x14] sm:$0xf]
        %v1642 = vld [vmem:[%s2 + $0x18] sm:$0xff]
        %v1643 = vld [vmem:[%s2 + $0x20] sm:$0xf]
        %v1644 = vld [vmem:[%s2 + $0x24] sm:$0xff]
        %v1645 = vld [vmem:[%s2 + $0x2c] sm:$0xf]
        %v1646 = vld [vmem:[%s2 + $0x30] sm:$0xff]
        %v1647 = vld [vmem:[%s2 + $0x38] sm:$0xf]
        %v1648 = vld [vmem:[%s2 + $0x3c] sm:$0xff]
        %v1649 = vld [vmem:[%s2 + $0x44] sm:$0xf]
        %v1650 = vld [vmem:[%s2 + $0x48] sm:$0xff]
        %v1651 = vld [vmem:[%s2 + $0x50] sm:$0xf]
        %v1652 = vld [vmem:[%s2 + $0x54] sm:$0xff]
        %v1653 = vld [vmem:[%s2 + $0x5c] sm:$0xf]
        %v1654 = vld [vmem:[%s2 + $0x60] sm:$0xff]
        %v1655 = vld [vmem:[%s2 + $0x68] sm:$0xf]
        %v1656 = vld [vmem:[%s2 + $0x6c] sm:$0xff]
        %v1657 = vld [vmem:[%s2 + $0x74] sm:$0xf]
        %v1658 = vld [vmem:[%s2 + $0x78] sm:$0xff]
        %v1659 = vld [vmem:[%s2 + $0x80] sm:$0xf]
        %v1660 = vld [vmem:[%s2 + $0x84] sm:$0xff]
        %v1661 = vld [vmem:[%s2 + $0x8c] sm:$0xf]
        %v1662 = vld [vmem:[%s2 + $0x90] sm:$0xff]
        %v1663 = vld [vmem:[%s2 + $0x98] sm:$0xf]
        %v1664 = vld [vmem:[%s2 + $0x9c] sm:$0xff]
        %v1665 = vld [vmem:[%s2 + $0xa4] sm:$0xf]
        %v1666 = vld [vmem:[%s2 + $0xa8] sm:$0xff]
        %v1667 = vld [vmem:[%s2 + $0xb0] sm:$0xf]
        %v1668 = vld [vmem:[%s2 + $0xb4] sm:$0xff]
        %v1669 = vld [vmem:[%s2 + $0xbc] sm:$0xf]
        %v1702 = vunpack.c.l.b16 %v1638
        %v1703 = vunpack.c.h.b16 %v1638
        %v1704 = vunpack.c.l.b16 %v1639
        %v1705 = vunpack.c.l.b16 %v1640
        %v1706 = vunpack.c.h.b16 %v1640
        %v1707 = vunpack.c.l.b16 %v1641
        %v1708 = vunpack.c.l.b16 %v1642
        %v1709 = vunpack.c.h.b16 %v1642
        %v1710 = vunpack.c.l.b16 %v1643
        %v1711 = vunpack.c.l.b16 %v1644
        %v1712 = vunpack.c.h.b16 %v1644
        %v1713 = vunpack.c.l.b16 %v1645
        %v1714 = vunpack.c.l.b16 %v1646
        %v1715 = vunpack.c.h.b16 %v1646
        %v1716 = vunpack.c.l.b16 %v1647
        %v1717 = vunpack.c.l.b16 %v1648
        %v1718 = vunpack.c.h.b16 %v1648
        %v1719 = vunpack.c.l.b16 %v1649
        %v1720 = vunpack.c.l.b16 %v1650
        %v1721 = vunpack.c.h.b16 %v1650
        %v1722 = vunpack.c.l.b16 %v1651
        %v1723 = vunpack.c.l.b16 %v1652
        %v1724 = vunpack.c.h.b16 %v1652
        %v1725 = vunpack.c.l.b16 %v1653
        %v1726 = vunpack.c.l.b16 %v1654
        %v1727 = vunpack.c.h.b16 %v1654
        %v1728 = vunpack.c.l.b16 %v1655
        %v1729 = vunpack.c.l.b16 %v1656
        %v1730 = vunpack.c.h.b16 %v1656
        %v1731 = vunpack.c.l.b16 %v1657
        %v1732 = vunpack.c.l.b16 %v1658
        %v1733 = vunpack.c.h.b16 %v1658
        %v1734 = vunpack.c.l.b16 %v1659
        %v1735 = vunpack.c.l.b16 %v1660
        %v1736 = vunpack.c.h.b16 %v1660
        %v1737 = vunpack.c.l.b16 %v1661
        %v1738 = vunpack.c.l.b16 %v1662
        %v1739 = vunpack.c.h.b16 %v1662
        %v1740 = vunpack.c.l.b16 %v1663
        %v1741 = vunpack.c.l.b16 %v1664
        %v1742 = vunpack.c.h.b16 %v1664
        %v1743 = vunpack.c.l.b16 %v1665
        %v1744 = vunpack.c.l.b16 %v1666
        %v1745 = vunpack.c.h.b16 %v1666
        %v1746 = vunpack.c.l.b16 %v1667
        %v1747 = vunpack.c.l.b16 %v1668
        %v1748 = vunpack.c.h.b16 %v1668
        %v1749 = vunpack.c.l.b16 %v1669
        %v1750 = vpack.c.b16 %v1705, %v1702
        %v1751 = vpack.c.b16 %v1706, %v1703
        %v1752 = vpack.c.b16 %v1707, %v1704
        %v1753 = vpack.c.b16 %v1711, %v1708
        %v1754 = vpack.c.b16 %v1712, %v1709
        %v1755 = vpack.c.b16 %v1713, %v1710
        %v1756 = vpack.c.b16 %v1717, %v1714
        %v1757 = vpack.c.b16 %v1718, %v1715
        %v1758 = vpack.c.b16 %v1719, %v1716
        %v1759 = vpack.c.b16 %v1723, %v1720
        %v1760 = vpack.c.b16 %v1724, %v1721
        %v1761 = vpack.c.b16 %v1725, %v1722
        %v1762 = vpack.c.b16 %v1729, %v1726
        %v1763 = vpack.c.b16 %v1730, %v1727
        %v1764 = vpack.c.b16 %v1731, %v1728
        %v1765 = vpack.c.b16 %v1735, %v1732
        %v1766 = vpack.c.b16 %v1736, %v1733
        %v1767 = vpack.c.b16 %v1737, %v1734
        %v1768 = vpack.c.b16 %v1741, %v1738
        %v1769 = vpack.c.b16 %v1742, %v1739
        %v1770 = vpack.c.b16 %v1743, %v1740
        %v1771 = vpack.c.b16 %v1747, %v1744
        %v1772 = vpack.c.b16 %v1748, %v1745
        %v1773 = vpack.c.b16 %v1749, %v1746
        %1798 = vmatprep.subr.bf16.mxu0 %v1772
        %1799 = vmatpush1.bf16.msra.mxu0 %v1771
        %1800 = vmatprep.subr.bf16.mxu0 %v1769
        %1801 = vmatpush1.bf16.msra.mxu0 %v1768
        %1802 = vmatprep.subr.bf16.mxu0 %v1766
        %1803 = vmatpush1.bf16.msra.mxu0 %v1765
        %1804 = vmatprep.subr.bf16.mxu0 %v1763
        %1805 = vmatpush1.bf16.msra.mxu0 %v1762
        %1806 = vmatprep.subr.bf16.mxu0 %v1760
        %1807 = vmatpush1.bf16.msra.mxu0 %v1759
        %1808 = vmatprep.subr.bf16.mxu0 %v1757
        %1809 = vmatpush1.bf16.msra.mxu0 %v1756
        %1810 = vmatprep.subr.bf16.mxu0 %v1754
        %1811 = vmatpush1.bf16.msra.mxu0 %v1753
        %1812 = vmatprep.subr.bf16.mxu0 %v1751
        %1813 = vmatpush1.bf16.msra.mxu0 %v1750
        %1814 = vmatprep.subr.bf16.mxu0 0
        %1815 = vmatpush2.bf16.msra.mxu0 0
        %1816 = vmatprep.subr.bf16.mxu0 0
        %1817 = vmatpush2.bf16.msra.mxu0 0
        %1818 = vmatprep.subr.bf16.mxu0 0
        %1819 = vmatpush2.bf16.msra.mxu0 0
        %1820 = vmatprep.subr.bf16.mxu0 0
        %1821 = vmatpush2.bf16.msra.mxu0 0
        %1822 = vmatprep.subr.bf16.mxu0 0
        %1823 = vmatpush2.bf16.msra.mxu0 0
        %1824 = vmatprep.subr.bf16.mxu0 0
        %1825 = vmatpush2.bf16.msra.mxu0 0
        %1826 = vmatprep.subr.bf16.mxu0 0
        %1827 = vmatpush2.bf16.msra.mxu0 0
        %1828 = vmatprep.subr.bf16.mxu0 0
        %1829 = vmatpush2.bf16.msra.mxu0 0
        %1830 = vmatprep.mubr.bf16.mxu0 0
        %1831 = vmatmul.mubr.bf16.gmra.mxu0 %v1629
        %v1832 = vpop.f32.mrf.mxu0
        %v1833 = vadd.f32 0.0, %v1832
        %v1834 = vpop.f32.mrf.mxu0
        %v1835 = vadd.f32 0.0, %v1834
        %v1836 = vpop.f32.mrf.mxu0
        %v1837 = vpop.f32.mrf.mxu0
        %1838 = vdwg.mxu0
        %1839 = vmatprep.subr.bf16.mxu0 0
        %1840 = vmatpush1.bf16.msra.mxu0 %v1773
        %1841 = vmatprep.subr.bf16.mxu0 0
        %1842 = vmatpush1.bf16.msra.mxu0 %v1770
        %1843 = vmatprep.subr.bf16.mxu0 0
        %1844 = vmatpush1.bf16.msra.mxu0 %v1767
        %1845 = vmatprep.subr.bf16.mxu0 0
        %1846 = vmatpush1.bf16.msra.mxu0 %v1764
        %1847 = vmatprep.subr.bf16.mxu0 0
        %1848 = vmatpush1.bf16.msra.mxu0 %v1761
        %1849 = vmatprep.subr.bf16.mxu0 0
        %1850 = vmatpush1.bf16.msra.mxu0 %v1758
        %1851 = vmatprep.subr.bf16.mxu0 0
        %1852 = vmatpush1.bf16.msra.mxu0 %v1755
        %1853 = vmatprep.subr.bf16.mxu0 0
        %1854 = vmatpush1.bf16.msra.mxu0 %v1752
        %1855 = vmatprep.subr.bf16.mxu0 0
        %1856 = vmatpush2.bf16.msra.mxu0 0
        %1857 = vmatprep.subr.bf16.mxu0 0
        %1858 = vmatpush2.bf16.msra.mxu0 0
        %1859 = vmatprep.subr.bf16.mxu0 0
        %1860 = vmatpush2.bf16.msra.mxu0 0
        %1861 = vmatprep.subr.bf16.mxu0 0
        %1862 = vmatpush2.bf16.msra.mxu0 0
        %1863 = vmatprep.subr.bf16.mxu0 0
        %1864 = vmatpush2.bf16.msra.mxu0 0
        %1865 = vmatprep.subr.bf16.mxu0 0
        %1866 = vmatpush2.bf16.msra.mxu0 0
        %1867 = vmatprep.subr.bf16.mxu0 0
        %1868 = vmatpush2.bf16.msra.mxu0 0
        %1869 = vmatprep.subr.bf16.mxu0 0
        %1870 = vmatpush2.bf16.msra.mxu0 0
        %1871 = vmatprep.mubr.bf16.mxu0 0
        %1872 = vmatmul.mubr.bf16.gmra.mxu0 %v1629
        %v1873 = vpop.f32.mrf.mxu0
        %v1874 = vadd.f32 0.0, %v1873
        %v1875 = vpop.f32.mrf.mxu0
        %v1876 = vpop.f32.mrf.mxu0
        %v1877 = vpop.f32.mrf.mxu0
        %1878 = vdwg.mxu0
        %v1879 = vadd.f32 %v1635, %v1833
        %v1880 = vxor.u32 %v1879, 2147483648
        %v1881 = vmul.f32 %v1880, 1.442695
        %v1882 = vpow.pop %v1881
        %v1883 = vadd.f32 %v1882, 1.0
        %v1884 = vrcp.pop %v1883
        %v1885 = vmul.f32 1.0, %v1884
        %v1886 = vadd.f32 %v1636, %v1835
        %v1887 = vxor.u32 %v1886, 2147483648
        %v1888 = vmul.f32 %v1887, 1.442695
        %v1889 = vpow.pop %v1888
        %v1890 = vadd.f32 %v1889, 1.0
        %v1891 = vrcp.pop %v1890
        %v1892 = vmul.f32 1.0, %v1891
        %v1893 = vld [vmem:[%s3] sm:$0x1]
        %v1895 = vlaneseq
        %v1896 = vshrl.u32 %v1895, 7
        %v1897 = vsub.s32 0, %v1896
        %v1898 = vrot.slane %v1893, %v1897
        %v1900 = vadd.f32 %v1874, %v1898
        %v1901 = vmul.f32 %v1885, %v1900
        %v1902 = vadd.f32 %v1637, %v1901
        %v1903 = vtanh.pop %v1902
        %v1904 = vsub.f32 1.0, %v1892
        %v1905 = vmul.f32 %v1904, %v1903
        %v1906 = vmul.f32 %v1892, %v1628
        %v1907 = vadd.f32 %v1905, %v1906
        %v1908 = vpack.c.bf16 %v1907, %v1907
        %s1909 = scalar_lea.vmem %s228, 20
        %1910 = vst [vmem:[%s1909] sm:$0xf] %v1908
        %s1911 = scalar_lea.vmem %s222, 72
        %v1912 = vld [vmem:[%s1911] sm:$0xff]
        %v1913 = vld [vmem:[%s1911 + $0x8] sm:$0xf]
        %v1914 = vunpack.c.l.bf16 %v1912
        %v1915 = vunpack.c.h.bf16 %v1912
        %v1916 = vunpack.c.l.bf16 %v1913
        %v1917 = vld [vmem:[%s2] sm:$0xff]
        %v1918 = vld [vmem:[%s2 + $0x8] sm:$0xf]
        %v1919 = vld [vmem:[%s2 + $0xc] sm:$0xff]
        %v1920 = vld [vmem:[%s2 + $0x14] sm:$0xf]
        %v1921 = vld [vmem:[%s2 + $0x18] sm:$0xff]
        %v1922 = vld [vmem:[%s2 + $0x20] sm:$0xf]
        %v1923 = vld [vmem:[%s2 + $0x24] sm:$0xff]
        %v1924 = vld [vmem:[%s2 + $0x2c] sm:$0xf]
        %v1925 = vld [vmem:[%s2 + $0x30] sm:$0xff]
        %v1926 = vld [vmem:[%s2 + $0x38] sm:$0xf]
        %v1927 = vld [vmem:[%s2 + $0x3c] sm:$0xff]
        %v1928 = vld [vmem:[%s2 + $0x44] sm:$0xf]
        %v1929 = vld [vmem:[%s2 + $0x48] sm:$0xff]
        %v1930 = vld [vmem:[%s2 + $0x50] sm:$0xf]
        %v1931 = vld [vmem:[%s2 + $0x54] sm:$0xff]
        %v1932 = vld [vmem:[%s2 + $0x5c] sm:$0xf]
        %v1933 = vld [vmem:[%s2 + $0x60] sm:$0xff]
        %v1934 = vld [vmem:[%s2 + $0x68] sm:$0xf]
        %v1935 = vld [vmem:[%s2 + $0x6c] sm:$0xff]
        %v1936 = vld [vmem:[%s2 + $0x74] sm:$0xf]
        %v1937 = vld [vmem:[%s2 + $0x78] sm:$0xff]
        %v1938 = vld [vmem:[%s2 + $0x80] sm:$0xf]
        %v1939 = vld [vmem:[%s2 + $0x84] sm:$0xff]
        %v1940 = vld [vmem:[%s2 + $0x8c] sm:$0xf]
        %v1941 = vld [vmem:[%s2 + $0x90] sm:$0xff]
        %v1942 = vld [vmem:[%s2 + $0x98] sm:$0xf]
        %v1943 = vld [vmem:[%s2 + $0x9c] sm:$0xff]
        %v1944 = vld [vmem:[%s2 + $0xa4] sm:$0xf]
        %v1945 = vld [vmem:[%s2 + $0xa8] sm:$0xff]
        %v1946 = vld [vmem:[%s2 + $0xb0] sm:$0xf]
        %v1947 = vld [vmem:[%s2 + $0xb4] sm:$0xff]
        %v1948 = vld [vmem:[%s2 + $0xbc] sm:$0xf]
        %v1981 = vunpack.c.l.b16 %v1917
        %v1982 = vunpack.c.h.b16 %v1917
        %v1983 = vunpack.c.l.b16 %v1918
        %v1984 = vunpack.c.l.b16 %v1919
        %v1985 = vunpack.c.h.b16 %v1919
        %v1986 = vunpack.c.l.b16 %v1920
        %v1987 = vunpack.c.l.b16 %v1921
        %v1988 = vunpack.c.h.b16 %v1921
        %v1989 = vunpack.c.l.b16 %v1922
        %v1990 = vunpack.c.l.b16 %v1923
        %v1991 = vunpack.c.h.b16 %v1923
        %v1992 = vunpack.c.l.b16 %v1924
        %v1993 = vunpack.c.l.b16 %v1925
        %v1994 = vunpack.c.h.b16 %v1925
        %v1995 = vunpack.c.l.b16 %v1926
        %v1996 = vunpack.c.l.b16 %v1927
        %v1997 = vunpack.c.h.b16 %v1927
        %v1998 = vunpack.c.l.b16 %v1928
        %v1999 = vunpack.c.l.b16 %v1929
        %v2000 = vunpack.c.h.b16 %v1929
        %v2001 = vunpack.c.l.b16 %v1930
        %v2002 = vunpack.c.l.b16 %v1931
        %v2003 = vunpack.c.h.b16 %v1931
        %v2004 = vunpack.c.l.b16 %v1932
        %v2005 = vunpack.c.l.b16 %v1933
        %v2006 = vunpack.c.h.b16 %v1933
        %v2007 = vunpack.c.l.b16 %v1934
        %v2008 = vunpack.c.l.b16 %v1935
        %v2009 = vunpack.c.h.b16 %v1935
        %v2010 = vunpack.c.l.b16 %v1936
        %v2011 = vunpack.c.l.b16 %v1937
        %v2012 = vunpack.c.h.b16 %v1937
        %v2013 = vunpack.c.l.b16 %v1938
        %v2014 = vunpack.c.l.b16 %v1939
        %v2015 = vunpack.c.h.b16 %v1939
        %v2016 = vunpack.c.l.b16 %v1940
        %v2017 = vunpack.c.l.b16 %v1941
        %v2018 = vunpack.c.h.b16 %v1941
        %v2019 = vunpack.c.l.b16 %v1942
        %v2020 = vunpack.c.l.b16 %v1943
        %v2021 = vunpack.c.h.b16 %v1943
        %v2022 = vunpack.c.l.b16 %v1944
        %v2023 = vunpack.c.l.b16 %v1945
        %v2024 = vunpack.c.h.b16 %v1945
        %v2025 = vunpack.c.l.b16 %v1946
        %v2026 = vunpack.c.l.b16 %v1947
        %v2027 = vunpack.c.h.b16 %v1947
        %v2028 = vunpack.c.l.b16 %v1948
        %v2029 = vpack.c.b16 %v1984, %v1981
        %v2030 = vpack.c.b16 %v1985, %v1982
        %v2031 = vpack.c.b16 %v1986, %v1983
        %v2032 = vpack.c.b16 %v1990, %v1987
        %v2033 = vpack.c.b16 %v1991, %v1988
        %v2034 = vpack.c.b16 %v1992, %v1989
        %v2035 = vpack.c.b16 %v1996, %v1993
        %v2036 = vpack.c.b16 %v1997, %v1994
        %v2037 = vpack.c.b16 %v1998, %v1995
        %v2038 = vpack.c.b16 %v2002, %v1999
        %v2039 = vpack.c.b16 %v2003, %v2000
        %v2040 = vpack.c.b16 %v2004, %v2001
        %v2041 = vpack.c.b16 %v2008, %v2005
        %v2042 = vpack.c.b16 %v2009, %v2006
        %v2043 = vpack.c.b16 %v2010, %v2007
        %v2044 = vpack.c.b16 %v2014, %v2011
        %v2045 = vpack.c.b16 %v2015, %v2012
        %v2046 = vpack.c.b16 %v2016, %v2013
        %v2047 = vpack.c.b16 %v2020, %v2017
        %v2048 = vpack.c.b16 %v2021, %v2018
        %v2049 = vpack.c.b16 %v2022, %v2019
        %v2050 = vpack.c.b16 %v2026, %v2023
        %v2051 = vpack.c.b16 %v2027, %v2024
        %v2052 = vpack.c.b16 %v2028, %v2025
        %2077 = vmatprep.subr.bf16.mxu0 %v2051
        %2078 = vmatpush1.bf16.msra.mxu0 %v2050
        %2079 = vmatprep.subr.bf16.mxu0 %v2048
        %2080 = vmatpush1.bf16.msra.mxu0 %v2047
        %2081 = vmatprep.subr.bf16.mxu0 %v2045
        %2082 = vmatpush1.bf16.msra.mxu0 %v2044
        %2083 = vmatprep.subr.bf16.mxu0 %v2042
        %2084 = vmatpush1.bf16.msra.mxu0 %v2041
        %2085 = vmatprep.subr.bf16.mxu0 %v2039
        %2086 = vmatpush1.bf16.msra.mxu0 %v2038
        %2087 = vmatprep.subr.bf16.mxu0 %v2036
        %2088 = vmatpush1.bf16.msra.mxu0 %v2035
        %2089 = vmatprep.subr.bf16.mxu0 %v2033
        %2090 = vmatpush1.bf16.msra.mxu0 %v2032
        %2091 = vmatprep.subr.bf16.mxu0 %v2030
        %2092 = vmatpush1.bf16.msra.mxu0 %v2029
        %2093 = vmatprep.subr.bf16.mxu0 0
        %2094 = vmatpush2.bf16.msra.mxu0 0
        %2095 = vmatprep.subr.bf16.mxu0 0
        %2096 = vmatpush2.bf16.msra.mxu0 0
        %2097 = vmatprep.subr.bf16.mxu0 0
        %2098 = vmatpush2.bf16.msra.mxu0 0
        %2099 = vmatprep.subr.bf16.mxu0 0
        %2100 = vmatpush2.bf16.msra.mxu0 0
        %2101 = vmatprep.subr.bf16.mxu0 0
        %2102 = vmatpush2.bf16.msra.mxu0 0
        %2103 = vmatprep.subr.bf16.mxu0 0
        %2104 = vmatpush2.bf16.msra.mxu0 0
        %2105 = vmatprep.subr.bf16.mxu0 0
        %2106 = vmatpush2.bf16.msra.mxu0 0
        %2107 = vmatprep.subr.bf16.mxu0 0
        %2108 = vmatpush2.bf16.msra.mxu0 0
        %2109 = vmatprep.mubr.bf16.mxu0 0
        %2110 = vmatmul.mubr.bf16.gmra.mxu0 %v1908
        %v2111 = vpop.f32.mrf.mxu0
        %v2112 = vadd.f32 0.0, %v2111
        %v2113 = vpop.f32.mrf.mxu0
        %v2114 = vadd.f32 0.0, %v2113
        %v2115 = vpop.f32.mrf.mxu0
        %v2116 = vpop.f32.mrf.mxu0
        %2117 = vdwg.mxu0
        %2118 = vmatprep.subr.bf16.mxu0 0
        %2119 = vmatpush1.bf16.msra.mxu0 %v2052
        %2120 = vmatprep.subr.bf16.mxu0 0
        %2121 = vmatpush1.bf16.msra.mxu0 %v2049
        %2122 = vmatprep.subr.bf16.mxu0 0
        %2123 = vmatpush1.bf16.msra.mxu0 %v2046
        %2124 = vmatprep.subr.bf16.mxu0 0
        %2125 = vmatpush1.bf16.msra.mxu0 %v2043
        %2126 = vmatprep.subr.bf16.mxu0 0
        %2127 = vmatpush1.bf16.msra.mxu0 %v2040
        %2128 = vmatprep.subr.bf16.mxu0 0
        %2129 = vmatpush1.bf16.msra.mxu0 %v2037
        %2130 = vmatprep.subr.bf16.mxu0 0
        %2131 = vmatpush1.bf16.msra.mxu0 %v2034
        %2132 = vmatprep.subr.bf16.mxu0 0
        %2133 = vmatpush1.bf16.msra.mxu0 %v2031
        %2134 = vmatprep.subr.bf16.mxu0 0
        %2135 = vmatpush2.bf16.msra.mxu0 0
        %2136 = vmatprep.subr.bf16.mxu0 0
        %2137 = vmatpush2.bf16.msra.mxu0 0
        %2138 = vmatprep.subr.bf16.mxu0 0
        %2139 = vmatpush2.bf16.msra.mxu0 0
        %2140 = vmatprep.subr.bf16.mxu0 0
        %2141 = vmatpush2.bf16.msra.mxu0 0
        %2142 = vmatprep.subr.bf16.mxu0 0
        %2143 = vmatpush2.bf16.msra.mxu0 0
        %2144 = vmatprep.subr.bf16.mxu0 0
        %2145 = vmatpush2.bf16.msra.mxu0 0
        %2146 = vmatprep.subr.bf16.mxu0 0
        %2147 = vmatpush2.bf16.msra.mxu0 0
        %2148 = vmatprep.subr.bf16.mxu0 0
        %2149 = vmatpush2.bf16.msra.mxu0 0
        %2150 = vmatprep.mubr.bf16.mxu0 0
        %2151 = vmatmul.mubr.bf16.gmra.mxu0 %v1908
        %v2152 = vpop.f32.mrf.mxu0
        %v2153 = vadd.f32 0.0, %v2152
        %v2154 = vpop.f32.mrf.mxu0
        %v2155 = vpop.f32.mrf.mxu0
        %v2156 = vpop.f32.mrf.mxu0
        %2157 = vdwg.mxu0
        %v2158 = vadd.f32 %v1914, %v2112
        %v2159 = vxor.u32 %v2158, 2147483648
        %v2160 = vmul.f32 %v2159, 1.442695
        %v2161 = vpow.pop %v2160
        %v2162 = vadd.f32 %v2161, 1.0
        %v2163 = vrcp.pop %v2162
        %v2164 = vmul.f32 1.0, %v2163
        %v2165 = vadd.f32 %v1915, %v2114
        %v2166 = vxor.u32 %v2165, 2147483648
        %v2167 = vmul.f32 %v2166, 1.442695
        %v2168 = vpow.pop %v2167
        %v2169 = vadd.f32 %v2168, 1.0
        %v2170 = vrcp.pop %v2169
        %v2171 = vmul.f32 1.0, %v2170
        %v2172 = vld [vmem:[%s3] sm:$0x1]
        %v2174 = vlaneseq
        %v2175 = vshrl.u32 %v2174, 7
        %v2176 = vsub.s32 0, %v2175
        %v2177 = vrot.slane %v2172, %v2176
        %v2179 = vadd.f32 %v2153, %v2177
        %v2180 = vmul.f32 %v2164, %v2179
        %v2181 = vadd.f32 %v1916, %v2180
        %v2182 = vtanh.pop %v2181
        %v2183 = vsub.f32 1.0, %v2171
        %v2184 = vmul.f32 %v2183, %v2182
        %v2185 = vmul.f32 %v2171, %v1907
        %v2186 = vadd.f32 %v2184, %v2185
        %v2187 = vpack.c.bf16 %v2186, %v2186
        %s2188 = scalar_lea.vmem %s228, 24
        %2189 = vst [vmem:[%s2188] sm:$0xf] %v2187
        %s2190 = scalar_lea.vmem %s222, 84
        %v2191 = vld [vmem:[%s2190] sm:$0xff]
        %v2192 = vld [vmem:[%s2190 + $0x8] sm:$0xf]
        %v2193 = vunpack.c.l.bf16 %v2191
        %v2194 = vunpack.c.h.bf16 %v2191
        %v2195 = vunpack.c.l.bf16 %v2192
        %v2196 = vld [vmem:[%s2] sm:$0xff]
        %v2197 = vld [vmem:[%s2 + $0x8] sm:$0xf]
        %v2198 = vld [vmem:[%s2 + $0xc] sm:$0xff]
        %v2199 = vld [vmem:[%s2 + $0x14] sm:$0xf]
        %v2200 = vld [vmem:[%s2 + $0x18] sm:$0xff]
        %v2201 = vld [vmem:[%s2 + $0x20] sm:$0xf]
        %v2202 = vld [vmem:[%s2 + $0x24] sm:$0xff]
        %v2203 = vld [vmem:[%s2 + $0x2c] sm:$0xf]
        %v2204 = vld [vmem:[%s2 + $0x30] sm:$0xff]
        %v2205 = vld [vmem:[%s2 + $0x38] sm:$0xf]
        %v2206 = vld [vmem:[%s2 + $0x3c] sm:$0xff]
        %v2207 = vld [vmem:[%s2 + $0x44] sm:$0xf]
        %v2208 = vld [vmem:[%s2 + $0x48] sm:$0xff]
        %v2209 = vld [vmem:[%s2 + $0x50] sm:$0xf]
        %v2210 = vld [vmem:[%s2 + $0x54] sm:$0xff]
        %v2211 = vld [vmem:[%s2 + $0x5c] sm:$0xf]
        %v2212 = vld [vmem:[%s2 + $0x60] sm:$0xff]
        %v2213 = vld [vmem:[%s2 + $0x68] sm:$0xf]
        %v2214 = vld [vmem:[%s2 + $0x6c] sm:$0xff]
        %v2215 = vld [vmem:[%s2 + $0x74] sm:$0xf]
        %v2216 = vld [vmem:[%s2 + $0x78] sm:$0xff]
        %v2217 = vld [vmem:[%s2 + $0x80] sm:$0xf]
        %v2218 = vld [vmem:[%s2 + $0x84] sm:$0xff]
        %v2219 = vld [vmem:[%s2 + $0x8c] sm:$0xf]
        %v2220 = vld [vmem:[%s2 + $0x90] sm:$0xff]
        %v2221 = vld [vmem:[%s2 + $0x98] sm:$0xf]
        %v2222 = vld [vmem:[%s2 + $0x9c] sm:$0xff]
        %v2223 = vld [vmem:[%s2 + $0xa4] sm:$0xf]
        %v2224 = vld [vmem:[%s2 + $0xa8] sm:$0xff]
        %v2225 = vld [vmem:[%s2 + $0xb0] sm:$0xf]
        %v2226 = vld [vmem:[%s2 + $0xb4] sm:$0xff]
        %v2227 = vld [vmem:[%s2 + $0xbc] sm:$0xf]
        %v2260 = vunpack.c.l.b16 %v2196
        %v2261 = vunpack.c.h.b16 %v2196
        %v2262 = vunpack.c.l.b16 %v2197
        %v2263 = vunpack.c.l.b16 %v2198
        %v2264 = vunpack.c.h.b16 %v2198
        %v2265 = vunpack.c.l.b16 %v2199
        %v2266 = vunpack.c.l.b16 %v2200
        %v2267 = vunpack.c.h.b16 %v2200
        %v2268 = vunpack.c.l.b16 %v2201
        %v2269 = vunpack.c.l.b16 %v2202
        %v2270 = vunpack.c.h.b16 %v2202
        %v2271 = vunpack.c.l.b16 %v2203
        %v2272 = vunpack.c.l.b16 %v2204
        %v2273 = vunpack.c.h.b16 %v2204
        %v2274 = vunpack.c.l.b16 %v2205
        %v2275 = vunpack.c.l.b16 %v2206
        %v2276 = vunpack.c.h.b16 %v2206
        %v2277 = vunpack.c.l.b16 %v2207
        %v2278 = vunpack.c.l.b16 %v2208
        %v2279 = vunpack.c.h.b16 %v2208
        %v2280 = vunpack.c.l.b16 %v2209
        %v2281 = vunpack.c.l.b16 %v2210
        %v2282 = vunpack.c.h.b16 %v2210
        %v2283 = vunpack.c.l.b16 %v2211
        %v2284 = vunpack.c.l.b16 %v2212
        %v2285 = vunpack.c.h.b16 %v2212
        %v2286 = vunpack.c.l.b16 %v2213
        %v2287 = vunpack.c.l.b16 %v2214
        %v2288 = vunpack.c.h.b16 %v2214
        %v2289 = vunpack.c.l.b16 %v2215
        %v2290 = vunpack.c.l.b16 %v2216
        %v2291 = vunpack.c.h.b16 %v2216
        %v2292 = vunpack.c.l.b16 %v2217
        %v2293 = vunpack.c.l.b16 %v2218
        %v2294 = vunpack.c.h.b16 %v2218
        %v2295 = vunpack.c.l.b16 %v2219
        %v2296 = vunpack.c.l.b16 %v2220
        %v2297 = vunpack.c.h.b16 %v2220
        %v2298 = vunpack.c.l.b16 %v2221
        %v2299 = vunpack.c.l.b16 %v2222
        %v2300 = vunpack.c.h.b16 %v2222
        %v2301 = vunpack.c.l.b16 %v2223
        %v2302 = vunpack.c.l.b16 %v2224
        %v2303 = vunpack.c.h.b16 %v2224
        %v2304 = vunpack.c.l.b16 %v2225
        %v2305 = vunpack.c.l.b16 %v2226
        %v2306 = vunpack.c.h.b16 %v2226
        %v2307 = vunpack.c.l.b16 %v2227
        %v2308 = vpack.c.b16 %v2263, %v2260
        %v2309 = vpack.c.b16 %v2264, %v2261
        %v2310 = vpack.c.b16 %v2265, %v2262
        %v2311 = vpack.c.b16 %v2269, %v2266
        %v2312 = vpack.c.b16 %v2270, %v2267
        %v2313 = vpack.c.b16 %v2271, %v2268
        %v2314 = vpack.c.b16 %v2275, %v2272
        %v2315 = vpack.c.b16 %v2276, %v2273
        %v2316 = vpack.c.b16 %v2277, %v2274
        %v2317 = vpack.c.b16 %v2281, %v2278
        %v2318 = vpack.c.b16 %v2282, %v2279
        %v2319 = vpack.c.b16 %v2283, %v2280
        %v2320 = vpack.c.b16 %v2287, %v2284
        %v2321 = vpack.c.b16 %v2288, %v2285
        %v2322 = vpack.c.b16 %v2289, %v2286
        %v2323 = vpack.c.b16 %v2293, %v2290
        %v2324 = vpack.c.b16 %v2294, %v2291
        %v2325 = vpack.c.b16 %v2295, %v2292
        %v2326 = vpack.c.b16 %v2299, %v2296
        %v2327 = vpack.c.b16 %v2300, %v2297
        %v2328 = vpack.c.b16 %v2301, %v2298
        %v2329 = vpack.c.b16 %v2305, %v2302
        %v2330 = vpack.c.b16 %v2306, %v2303
        %v2331 = vpack.c.b16 %v2307, %v2304
        %2356 = vmatprep.subr.bf16.mxu0 %v2330
        %2357 = vmatpush1.bf16.msra.mxu0 %v2329
        %2358 = vmatprep.subr.bf16.mxu0 %v2327
        %2359 = vmatpush1.bf16.msra.mxu0 %v2326
        %2360 = vmatprep.subr.bf16.mxu0 %v2324
        %2361 = vmatpush1.bf16.msra.mxu0 %v2323
        %2362 = vmatprep.subr.bf16.mxu0 %v2321
        %2363 = vmatpush1.bf16.msra.mxu0 %v2320
        %2364 = vmatprep.subr.bf16.mxu0 %v2318
        %2365 = vmatpush1.bf16.msra.mxu0 %v2317
        %2366 = vmatprep.subr.bf16.mxu0 %v2315
        %2367 = vmatpush1.bf16.msra.mxu0 %v2314
        %2368 = vmatprep.subr.bf16.mxu0 %v2312
        %2369 = vmatpush1.bf16.msra.mxu0 %v2311
        %2370 = vmatprep.subr.bf16.mxu0 %v2309
        %2371 = vmatpush1.bf16.msra.mxu0 %v2308
        %2372 = vmatprep.subr.bf16.mxu0 0
        %2373 = vmatpush2.bf16.msra.mxu0 0
        %2374 = vmatprep.subr.bf16.mxu0 0
        %2375 = vmatpush2.bf16.msra.mxu0 0
        %2376 = vmatprep.subr.bf16.mxu0 0
        %2377 = vmatpush2.bf16.msra.mxu0 0
        %2378 = vmatprep.subr.bf16.mxu0 0
        %2379 = vmatpush2.bf16.msra.mxu0 0
        %2380 = vmatprep.subr.bf16.mxu0 0
        %2381 = vmatpush2.bf16.msra.mxu0 0
        %2382 = vmatprep.subr.bf16.mxu0 0
        %2383 = vmatpush2.bf16.msra.mxu0 0
        %2384 = vmatprep.subr.bf16.mxu0 0
        %2385 = vmatpush2.bf16.msra.mxu0 0
        %2386 = vmatprep.subr.bf16.mxu0 0
        %2387 = vmatpush2.bf16.msra.mxu0 0
        %2388 = vmatprep.mubr.bf16.mxu0 0
        %2389 = vmatmul.mubr.bf16.gmra.mxu0 %v2187
        %v2390 = vpop.f32.mrf.mxu0
        %v2391 = vadd.f32 0.0, %v2390
        %v2392 = vpop.f32.mrf.mxu0
        %v2393 = vadd.f32 0.0, %v2392
        %v2394 = vpop.f32.mrf.mxu0
        %v2395 = vpop.f32.mrf.mxu0
        %2396 = vdwg.mxu0
        %2397 = vmatprep.subr.bf16.mxu0 0
        %2398 = vmatpush1.bf16.msra.mxu0 %v2331
        %2399 = vmatprep.subr.bf16.mxu0 0
        %2400 = vmatpush1.bf16.msra.mxu0 %v2328
        %2401 = vmatprep.subr.bf16.mxu0 0
        %2402 = vmatpush1.bf16.msra.mxu0 %v2325
        %2403 = vmatprep.subr.bf16.mxu0 0
        %2404 = vmatpush1.bf16.msra.mxu0 %v2322
        %2405 = vmatprep.subr.bf16.mxu0 0
        %2406 = vmatpush1.bf16.msra.mxu0 %v2319
        %2407 = vmatprep.subr.bf16.mxu0 0
        %2408 = vmatpush1.bf16.msra.mxu0 %v2316
        %2409 = vmatprep.subr.bf16.mxu0 0
        %2410 = vmatpush1.bf16.msra.mxu0 %v2313
        %2411 = vmatprep.subr.bf16.mxu0 0
        %2412 = vmatpush1.bf16.msra.mxu0 %v2310
        %2413 = vmatprep.subr.bf16.mxu0 0
        %2414 = vmatpush2.bf16.msra.mxu0 0
        %2415 = vmatprep.subr.bf16.mxu0 0
        %2416 = vmatpush2.bf16.msra.mxu0 0
        %2417 = vmatprep.subr.bf16.mxu0 0
        %2418 = vmatpush2.bf16.msra.mxu0 0
        %2419 = vmatprep.subr.bf16.mxu0 0
        %2420 = vmatpush2.bf16.msra.mxu0 0
        %2421 = vmatprep.subr.bf16.mxu0 0
        %2422 = vmatpush2.bf16.msra.mxu0 0
        %2423 = vmatprep.subr.bf16.mxu0 0
        %2424 = vmatpush2.bf16.msra.mxu0 0
        %2425 = vmatprep.subr.bf16.mxu0 0
        %2426 = vmatpush2.bf16.msra.mxu0 0
        %2427 = vmatprep.subr.bf16.mxu0 0
        %2428 = vmatpush2.bf16.msra.mxu0 0
        %2429 = vmatprep.mubr.bf16.mxu0 0
        %2430 = vmatmul.mubr.bf16.gmra.mxu0 %v2187
        %v2431 = vpop.f32.mrf.mxu0
        %v2432 = vadd.f32 0.0, %v2431
        %v2433 = vpop.f32.mrf.mxu0
        %v2434 = vpop.f32.mrf.mxu0
        %v2435 = vpop.f32.mrf.mxu0
        %2436 = vdwg.mxu0
        %v2437 = vadd.f32 %v2193, %v2391
        %v2438 = vxor.u32 %v2437, 2147483648
        %v2439 = vmul.f32 %v2438, 1.442695
        %v2440 = vpow.pop %v2439
        %v2441 = vadd.f32 %v2440, 1.0
        %v2442 = vrcp.pop %v2441
        %v2443 = vmul.f32 1.0, %v2442
        %v2444 = vadd.f32 %v2194, %v2393
        %v2445 = vxor.u32 %v2444, 2147483648
        %v2446 = vmul.f32 %v2445, 1.442695
        %v2447 = vpow.pop %v2446
        %v2448 = vadd.f32 %v2447, 1.0
        %v2449 = vrcp.pop %v2448
        %v2450 = vmul.f32 1.0, %v2449
        %v2451 = vld [vmem:[%s3] sm:$0x1]
        %v2453 = vlaneseq
        %v2454 = vshrl.u32 %v2453, 7
        %v2455 = vsub.s32 0, %v2454
        %v2456 = vrot.slane %v2451, %v2455
        %v2458 = vadd.f32 %v2432, %v2456
        %v2459 = vmul.f32 %v2443, %v2458
        %v2460 = vadd.f32 %v2195, %v2459
        %v2461 = vtanh.pop %v2460
        %v2462 = vsub.f32 1.0, %v2450
        %v2463 = vmul.f32 %v2462, %v2461
        %v2464 = vmul.f32 %v2450, %v2186
        %v2465 = vadd.f32 %v2463, %v2464
        %v2466 = vpack.c.bf16 %v2465, %v2465
        %s2467 = scalar_lea.vmem %s228, 28
        %2468 = vst [vmem:[%s2467] sm:$0xf] %v2466
        %s2469 = scalar_lea.vmem %s222, 96
        %v2470 = vld [vmem:[%s2469] sm:$0xff]
        %v2471 = vld [vmem:[%s2469 + $0x8] sm:$0xf]
        %v2472 = vunpack.c.l.bf16 %v2470
        %v2473 = vunpack.c.h.bf16 %v2470
        %v2474 = vunpack.c.l.bf16 %v2471
        %v2475 = vld [vmem:[%s2] sm:$0xff]
        %v2476 = vld [vmem:[%s2 + $0x8] sm:$0xf]
        %v2477 = vld [vmem:[%s2 + $0xc] sm:$0xff]
        %v2478 = vld [vmem:[%s2 + $0x14] sm:$0xf]
        %v2479 = vld [vmem:[%s2 + $0x18] sm:$0xff]
        %v2480 = vld [vmem:[%s2 + $0x20] sm:$0xf]
        %v2481 = vld [vmem:[%s2 + $0x24] sm:$0xff]
        %v2482 = vld [vmem:[%s2 + $0x2c] sm:$0xf]
        %v2483 = vld [vmem:[%s2 + $0x30] sm:$0xff]
        %v2484 = vld [vmem:[%s2 + $0x38] sm:$0xf]
        %v2485 = vld [vmem:[%s2 + $0x3c] sm:$0xff]
        %v2486 = vld [vmem:[%s2 + $0x44] sm:$0xf]
        %v2487 = vld [vmem:[%s2 + $0x48] sm:$0xff]
        %v2488 = vld [vmem:[%s2 + $0x50] sm:$0xf]
        %v2489 = vld [vmem:[%s2 + $0x54] sm:$0xff]
        %v2490 = vld [vmem:[%s2 + $0x5c] sm:$0xf]
        %v2491 = vld [vmem:[%s2 + $0x60] sm:$0xff]
        %v2492 = vld [vmem:[%s2 + $0x68] sm:$0xf]
        %v2493 = vld [vmem:[%s2 + $0x6c] sm:$0xff]
        %v2494 = vld [vmem:[%s2 + $0x74] sm:$0xf]
        %v2495 = vld [vmem:[%s2 + $0x78] sm:$0xff]
        %v2496 = vld [vmem:[%s2 + $0x80] sm:$0xf]
        %v2497 = vld [vmem:[%s2 + $0x84] sm:$0xff]
        %v2498 = vld [vmem:[%s2 + $0x8c] sm:$0xf]
        %v2499 = vld [vmem:[%s2 + $0x90] sm:$0xff]
        %v2500 = vld [vmem:[%s2 + $0x98] sm:$0xf]
        %v2501 = vld [vmem:[%s2 + $0x9c] sm:$0xff]
        %v2502 = vld [vmem:[%s2 + $0xa4] sm:$0xf]
        %v2503 = vld [vmem:[%s2 + $0xa8] sm:$0xff]
        %v2504 = vld [vmem:[%s2 + $0xb0] sm:$0xf]
        %v2505 = vld [vmem:[%s2 + $0xb4] sm:$0xff]
        %v2506 = vld [vmem:[%s2 + $0xbc] sm:$0xf]
        %v2539 = vunpack.c.l.b16 %v2475
        %v2540 = vunpack.c.h.b16 %v2475
        %v2541 = vunpack.c.l.b16 %v2476
        %v2542 = vunpack.c.l.b16 %v2477
        %v2543 = vunpack.c.h.b16 %v2477
        %v2544 = vunpack.c.l.b16 %v2478
        %v2545 = vunpack.c.l.b16 %v2479
        %v2546 = vunpack.c.h.b16 %v2479
        %v2547 = vunpack.c.l.b16 %v2480
        %v2548 = vunpack.c.l.b16 %v2481
        %v2549 = vunpack.c.h.b16 %v2481
        %v2550 = vunpack.c.l.b16 %v2482
        %v2551 = vunpack.c.l.b16 %v2483
        %v2552 = vunpack.c.h.b16 %v2483
        %v2553 = vunpack.c.l.b16 %v2484
        %v2554 = vunpack.c.l.b16 %v2485
        %v2555 = vunpack.c.h.b16 %v2485
        %v2556 = vunpack.c.l.b16 %v2486
        %v2557 = vunpack.c.l.b16 %v2487
        %v2558 = vunpack.c.h.b16 %v2487
        %v2559 = vunpack.c.l.b16 %v2488
        %v2560 = vunpack.c.l.b16 %v2489
        %v2561 = vunpack.c.h.b16 %v2489
        %v2562 = vunpack.c.l.b16 %v2490
        %v2563 = vunpack.c.l.b16 %v2491
        %v2564 = vunpack.c.h.b16 %v2491
        %v2565 = vunpack.c.l.b16 %v2492
        %v2566 = vunpack.c.l.b16 %v2493
        %v2567 = vunpack.c.h.b16 %v2493
        %v2568 = vunpack.c.l.b16 %v2494
        %v2569 = vunpack.c.l.b16 %v2495
        %v2570 = vunpack.c.h.b16 %v2495
        %v2571 = vunpack.c.l.b16 %v2496
        %v2572 = vunpack.c.l.b16 %v2497
        %v2573 = vunpack.c.h.b16 %v2497
        %v2574 = vunpack.c.l.b16 %v2498
        %v2575 = vunpack.c.l.b16 %v2499
        %v2576 = vunpack.c.h.b16 %v2499
        %v2577 = vunpack.c.l.b16 %v2500
        %v2578 = vunpack.c.l.b16 %v2501
        %v2579 = vunpack.c.h.b16 %v2501
        %v2580 = vunpack.c.l.b16 %v2502
        %v2581 = vunpack.c.l.b16 %v2503
        %v2582 = vunpack.c.h.b16 %v2503
        %v2583 = vunpack.c.l.b16 %v2504
        %v2584 = vunpack.c.l.b16 %v2505
        %v2585 = vunpack.c.h.b16 %v2505
        %v2586 = vunpack.c.l.b16 %v2506
        %v2587 = vpack.c.b16 %v2542, %v2539
        %v2588 = vpack.c.b16 %v2543, %v2540
        %v2589 = vpack.c.b16 %v2544, %v2541
        %v2590 = vpack.c.b16 %v2548, %v2545
        %v2591 = vpack.c.b16 %v2549, %v2546
        %v2592 = vpack.c.b16 %v2550, %v2547
        %v2593 = vpack.c.b16 %v2554, %v2551
        %v2594 = vpack.c.b16 %v2555, %v2552
        %v2595 = vpack.c.b16 %v2556, %v2553
        %v2596 = vpack.c.b16 %v2560, %v2557
        %v2597 = vpack.c.b16 %v2561, %v2558
        %v2598 = vpack.c.b16 %v2562, %v2559
        %v2599 = vpack.c.b16 %v2566, %v2563
        %v2600 = vpack.c.b16 %v2567, %v2564
        %v2601 = vpack.c.b16 %v2568, %v2565
        %v2602 = vpack.c.b16 %v2572, %v2569
        %v2603 = vpack.c.b16 %v2573, %v2570
        %v2604 = vpack.c.b16 %v2574, %v2571
        %v2605 = vpack.c.b16 %v2578, %v2575
        %v2606 = vpack.c.b16 %v2579, %v2576
        %v2607 = vpack.c.b16 %v2580, %v2577
        %v2608 = vpack.c.b16 %v2584, %v2581
        %v2609 = vpack.c.b16 %v2585, %v2582
        %v2610 = vpack.c.b16 %v2586, %v2583
        %2635 = vmatprep.subr.bf16.mxu0 %v2609
        %2636 = vmatpush1.bf16.msra.mxu0 %v2608
        %2637 = vmatprep.subr.bf16.mxu0 %v2606
        %2638 = vmatpush1.bf16.msra.mxu0 %v2605
        %2639 = vmatprep.subr.bf16.mxu0 %v2603
        %2640 = vmatpush1.bf16.msra.mxu0 %v2602
        %2641 = vmatprep.subr.bf16.mxu0 %v2600
        %2642 = vmatpush1.bf16.msra.mxu0 %v2599
        %2643 = vmatprep.subr.bf16.mxu0 %v2597
        %2644 = vmatpush1.bf16.msra.mxu0 %v2596
        %2645 = vmatprep.subr.bf16.mxu0 %v2594
        %2646 = vmatpush1.bf16.msra.mxu0 %v2593
        %2647 = vmatprep.subr.bf16.mxu0 %v2591
        %2648 = vmatpush1.bf16.msra.mxu0 %v2590
        %2649 = vmatprep.subr.bf16.mxu0 %v2588
        %2650 = vmatpush1.bf16.msra.mxu0 %v2587
        %2651 = vmatprep.subr.bf16.mxu0 0
        %2652 = vmatpush2.bf16.msra.mxu0 0
        %2653 = vmatprep.subr.bf16.mxu0 0
        %2654 = vmatpush2.bf16.msra.mxu0 0
        %2655 = vmatprep.subr.bf16.mxu0 0
        %2656 = vmatpush2.bf16.msra.mxu0 0
        %2657 = vmatprep.subr.bf16.mxu0 0
        %2658 = vmatpush2.bf16.msra.mxu0 0
        %2659 = vmatprep.subr.bf16.mxu0 0
        %2660 = vmatpush2.bf16.msra.mxu0 0
        %2661 = vmatprep.subr.bf16.mxu0 0
        %2662 = vmatpush2.bf16.msra.mxu0 0
        %2663 = vmatprep.subr.bf16.mxu0 0
        %2664 = vmatpush2.bf16.msra.mxu0 0
        %2665 = vmatprep.subr.bf16.mxu0 0
        %2666 = vmatpush2.bf16.msra.mxu0 0
        %2667 = vmatprep.mubr.bf16.mxu0 0
        %2668 = vmatmul.mubr.bf16.gmra.mxu0 %v2466
        %v2669 = vpop.f32.mrf.mxu0
        %v2670 = vadd.f32 0.0, %v2669
        %v2671 = vpop.f32.mrf.mxu0
        %v2672 = vadd.f32 0.0, %v2671
        %v2673 = vpop.f32.mrf.mxu0
        %v2674 = vpop.f32.mrf.mxu0
        %2675 = vdwg.mxu0
        %2676 = vmatprep.subr.bf16.mxu0 0
        %2677 = vmatpush1.bf16.msra.mxu0 %v2610
        %2678 = vmatprep.subr.bf16.mxu0 0
        %2679 = vmatpush1.bf16.msra.mxu0 %v2607
        %2680 = vmatprep.subr.bf16.mxu0 0
        %2681 = vmatpush1.bf16.msra.mxu0 %v2604
        %2682 = vmatprep.subr.bf16.mxu0 0
        %2683 = vmatpush1.bf16.msra.mxu0 %v2601
        %2684 = vmatprep.subr.bf16.mxu0 0
        %2685 = vmatpush1.bf16.msra.mxu0 %v2598
        %2686 = vmatprep.subr.bf16.mxu0 0
        %2687 = vmatpush1.bf16.msra.mxu0 %v2595
        %2688 = vmatprep.subr.bf16.mxu0 0
        %2689 = vmatpush1.bf16.msra.mxu0 %v2592
        %2690 = vmatprep.subr.bf16.mxu0 0
        %2691 = vmatpush1.bf16.msra.mxu0 %v2589
        %2692 = vmatprep.subr.bf16.mxu0 0
        %2693 = vmatpush2.bf16.msra.mxu0 0
        %2694 = vmatprep.subr.bf16.mxu0 0
        %2695 = vmatpush2.bf16.msra.mxu0 0
        %2696 = vmatprep.subr.bf16.mxu0 0
        %2697 = vmatpush2.bf16.msra.mxu0 0
        %2698 = vmatprep.subr.bf16.mxu0 0
        %2699 = vmatpush2.bf16.msra.mxu0 0
        %2700 = vmatprep.subr.bf16.mxu0 0
        %2701 = vmatpush2.bf16.msra.mxu0 0
        %2702 = vmatprep.subr.bf16.mxu0 0
        %2703 = vmatpush2.bf16.msra.mxu0 0
        %2704 = vmatprep.subr.bf16.mxu0 0
        %2705 = vmatpush2.bf16.msra.mxu0 0
        %2706 = vmatprep.subr.bf16.mxu0 0
        %2707 = vmatpush2.bf16.msra.mxu0 0
        %2708 = vmatprep.mubr.bf16.mxu0 0
        %2709 = vmatmul.mubr.bf16.gmra.mxu0 %v2466
        %v2710 = vpop.f32.mrf.mxu0
        %v2711 = vadd.f32 0.0, %v2710
        %v2712 = vpop.f32.mrf.mxu0
        %v2713 = vpop.f32.mrf.mxu0
        %v2714 = vpop.f32.mrf.mxu0
        %2715 = vdwg.mxu0
        %v2716 = vadd.f32 %v2472, %v2670
        %v2717 = vxor.u32 %v2716, 2147483648
        %v2718 = vmul.f32 %v2717, 1.442695
        %v2719 = vpow.pop %v2718
        %v2720 = vadd.f32 %v2719, 1.0
        %v2721 = vrcp.pop %v2720
        %v2722 = vmul.f32 1.0, %v2721
        %v2723 = vadd.f32 %v2473, %v2672
        %v2724 = vxor.u32 %v2723, 2147483648
        %v2725 = vmul.f32 %v2724, 1.442695
        %v2726 = vpow.pop %v2725
        %v2727 = vadd.f32 %v2726, 1.0
        %v2728 = vrcp.pop %v2727
        %v2729 = vmul.f32 1.0, %v2728
        %v2730 = vld [vmem:[%s3] sm:$0x1]
        %v2732 = vlaneseq
        %v2733 = vshrl.u32 %v2732, 7
        %v2734 = vsub.s32 0, %v2733
        %v2735 = vrot.slane %v2730, %v2734
        %v2737 = vadd.f32 %v2711, %v2735
        %v2738 = vmul.f32 %v2722, %v2737
        %v2739 = vadd.f32 %v2474, %v2738
        %v2740 = vtanh.pop %v2739
        %v2741 = vsub.f32 1.0, %v2729
        %v2742 = vmul.f32 %v2741, %v2740
        %v2743 = vmul.f32 %v2729, %v2465
        %v2744 = vadd.f32 %v2742, %v2743
        %v2745 = vpack.c.bf16 %v2744, %v2744
        %s2746 = scalar_lea.vmem %s228, 32
        %2747 = vst [vmem:[%s2746] sm:$0xf] %v2745
        %s2748 = scalar_lea.vmem %s222, 108
        %v2749 = vld [vmem:[%s2748] sm:$0xff]
        %v2750 = vld [vmem:[%s2748 + $0x8] sm:$0xf]
        %v2751 = vunpack.c.l.bf16 %v2749
        %v2752 = vunpack.c.h.bf16 %v2749
        %v2753 = vunpack.c.l.bf16 %v2750
        %v2754 = vld [vmem:[%s2] sm:$0xff]
        %v2755 = vld [vmem:[%s2 + $0x8] sm:$0xf]
        %v2756 = vld [vmem:[%s2 + $0xc] sm:$0xff]
        %v2757 = vld [vmem:[%s2 + $0x14] sm:$0xf]
        %v2758 = vld [vmem:[%s2 + $0x18] sm:$0xff]
        %v2759 = vld [vmem:[%s2 + $0x20] sm:$0xf]
        %v2760 = vld [vmem:[%s2 + $0x24] sm:$0xff]
        %v2761 = vld [vmem:[%s2 + $0x2c] sm:$0xf]
        %v2762 = vld [vmem:[%s2 + $0x30] sm:$0xff]
        %v2763 = vld [vmem:[%s2 + $0x38] sm:$0xf]
        %v2764 = vld [vmem:[%s2 + $0x3c] sm:$0xff]
        %v2765 = vld [vmem:[%s2 + $0x44] sm:$0xf]
        %v2766 = vld [vmem:[%s2 + $0x48] sm:$0xff]
        %v2767 = vld [vmem:[%s2 + $0x50] sm:$0xf]
        %v2768 = vld [vmem:[%s2 + $0x54] sm:$0xff]
        %v2769 = vld [vmem:[%s2 + $0x5c] sm:$0xf]
        %v2770 = vld [vmem:[%s2 + $0x60] sm:$0xff]
        %v2771 = vld [vmem:[%s2 + $0x68] sm:$0xf]
        %v2772 = vld [vmem:[%s2 + $0x6c] sm:$0xff]
        %v2773 = vld [vmem:[%s2 + $0x74] sm:$0xf]
        %v2774 = vld [vmem:[%s2 + $0x78] sm:$0xff]
        %v2775 = vld [vmem:[%s2 + $0x80] sm:$0xf]
        %v2776 = vld [vmem:[%s2 + $0x84] sm:$0xff]
        %v2777 = vld [vmem:[%s2 + $0x8c] sm:$0xf]
        %v2778 = vld [vmem:[%s2 + $0x90] sm:$0xff]
        %v2779 = vld [vmem:[%s2 + $0x98] sm:$0xf]
        %v2780 = vld [vmem:[%s2 + $0x9c] sm:$0xff]
        %v2781 = vld [vmem:[%s2 + $0xa4] sm:$0xf]
        %v2782 = vld [vmem:[%s2 + $0xa8] sm:$0xff]
        %v2783 = vld [vmem:[%s2 + $0xb0] sm:$0xf]
        %v2784 = vld [vmem:[%s2 + $0xb4] sm:$0xff]
        %v2785 = vld [vmem:[%s2 + $0xbc] sm:$0xf]
        %v2818 = vunpack.c.l.b16 %v2754
        %v2819 = vunpack.c.h.b16 %v2754
        %v2820 = vunpack.c.l.b16 %v2755
        %v2821 = vunpack.c.l.b16 %v2756
        %v2822 = vunpack.c.h.b16 %v2756
        %v2823 = vunpack.c.l.b16 %v2757
        %v2824 = vunpack.c.l.b16 %v2758
        %v2825 = vunpack.c.h.b16 %v2758
        %v2826 = vunpack.c.l.b16 %v2759
        %v2827 = vunpack.c.l.b16 %v2760
        %v2828 = vunpack.c.h.b16 %v2760
        %v2829 = vunpack.c.l.b16 %v2761
        %v2830 = vunpack.c.l.b16 %v2762
        %v2831 = vunpack.c.h.b16 %v2762
        %v2832 = vunpack.c.l.b16 %v2763
        %v2833 = vunpack.c.l.b16 %v2764
        %v2834 = vunpack.c.h.b16 %v2764
        %v2835 = vunpack.c.l.b16 %v2765
        %v2836 = vunpack.c.l.b16 %v2766
        %v2837 = vunpack.c.h.b16 %v2766
        %v2838 = vunpack.c.l.b16 %v2767
        %v2839 = vunpack.c.l.b16 %v2768
        %v2840 = vunpack.c.h.b16 %v2768
        %v2841 = vunpack.c.l.b16 %v2769
        %v2842 = vunpack.c.l.b16 %v2770
        %v2843 = vunpack.c.h.b16 %v2770
        %v2844 = vunpack.c.l.b16 %v2771
        %v2845 = vunpack.c.l.b16 %v2772
        %v2846 = vunpack.c.h.b16 %v2772
        %v2847 = vunpack.c.l.b16 %v2773
        %v2848 = vunpack.c.l.b16 %v2774
        %v2849 = vunpack.c.h.b16 %v2774
        %v2850 = vunpack.c.l.b16 %v2775
        %v2851 = vunpack.c.l.b16 %v2776
        %v2852 = vunpack.c.h.b16 %v2776
        %v2853 = vunpack.c.l.b16 %v2777
        %v2854 = vunpack.c.l.b16 %v2778
        %v2855 = vunpack.c.h.b16 %v2778
        %v2856 = vunpack.c.l.b16 %v2779
        %v2857 = vunpack.c.l.b16 %v2780
        %v2858 = vunpack.c.h.b16 %v2780
        %v2859 = vunpack.c.l.b16 %v2781
        %v2860 = vunpack.c.l.b16 %v2782
        %v2861 = vunpack.c.h.b16 %v2782
        %v2862 = vunpack.c.l.b16 %v2783
        %v2863 = vunpack.c.l.b16 %v2784
        %v2864 = vunpack.c.h.b16 %v2784
        %v2865 = vunpack.c.l.b16 %v2785
        %v2866 = vpack.c.b16 %v2821, %v2818
        %v2867 = vpack.c.b16 %v2822, %v2819
        %v2868 = vpack.c.b16 %v2823, %v2820
        %v2869 = vpack.c.b16 %v2827, %v2824
        %v2870 = vpack.c.b16 %v2828, %v2825
        %v2871 = vpack.c.b16 %v2829, %v2826
        %v2872 = vpack.c.b16 %v2833, %v2830
        %v2873 = vpack.c.b16 %v2834, %v2831
        %v2874 = vpack.c.b16 %v2835, %v2832
        %v2875 = vpack.c.b16 %v2839, %v2836
        %v2876 = vpack.c.b16 %v2840, %v2837
        %v2877 = vpack.c.b16 %v2841, %v2838
        %v2878 = vpack.c.b16 %v2845, %v2842
        %v2879 = vpack.c.b16 %v2846, %v2843
        %v2880 = vpack.c.b16 %v2847, %v2844
        %v2881 = vpack.c.b16 %v2851, %v2848
        %v2882 = vpack.c.b16 %v2852, %v2849
        %v2883 = vpack.c.b16 %v2853, %v2850
        %v2884 = vpack.c.b16 %v2857, %v2854
        %v2885 = vpack.c.b16 %v2858, %v2855
        %v2886 = vpack.c.b16 %v2859, %v2856
        %v2887 = vpack.c.b16 %v2863, %v2860
        %v2888 = vpack.c.b16 %v2864, %v2861
        %v2889 = vpack.c.b16 %v2865, %v2862
        %2914 = vmatprep.subr.bf16.mxu0 %v2888
        %2915 = vmatpush1.bf16.msra.mxu0 %v2887
        %2916 = vmatprep.subr.bf16.mxu0 %v2885
        %2917 = vmatpush1.bf16.msra.mxu0 %v2884
        %2918 = vmatprep.subr.bf16.mxu0 %v2882
        %2919 = vmatpush1.bf16.msra.mxu0 %v2881
        %2920 = vmatprep.subr.bf16.mxu0 %v2879
        %2921 = vmatpush1.bf16.msra.mxu0 %v2878
        %2922 = vmatprep.subr.bf16.mxu0 %v2876
        %2923 = vmatpush1.bf16.msra.mxu0 %v2875
        %2924 = vmatprep.subr.bf16.mxu0 %v2873
        %2925 = vmatpush1.bf16.msra.mxu0 %v2872
        %2926 = vmatprep.subr.bf16.mxu0 %v2870
        %2927 = vmatpush1.bf16.msra.mxu0 %v2869
        %2928 = vmatprep.subr.bf16.mxu0 %v2867
        %2929 = vmatpush1.bf16.msra.mxu0 %v2866
        %2930 = vmatprep.subr.bf16.mxu0 0
        %2931 = vmatpush2.bf16.msra.mxu0 0
        %2932 = vmatprep.subr.bf16.mxu0 0
        %2933 = vmatpush2.bf16.msra.mxu0 0
        %2934 = vmatprep.subr.bf16.mxu0 0
        %2935 = vmatpush2.bf16.msra.mxu0 0
        %2936 = vmatprep.subr.bf16.mxu0 0
        %2937 = vmatpush2.bf16.msra.mxu0 0
        %2938 = vmatprep.subr.bf16.mxu0 0
        %2939 = vmatpush2.bf16.msra.mxu0 0
        %2940 = vmatprep.subr.bf16.mxu0 0
        %2941 = vmatpush2.bf16.msra.mxu0 0
        %2942 = vmatprep.subr.bf16.mxu0 0
        %2943 = vmatpush2.bf16.msra.mxu0 0
        %2944 = vmatprep.subr.bf16.mxu0 0
        %2945 = vmatpush2.bf16.msra.mxu0 0
        %2946 = vmatprep.mubr.bf16.mxu0 0
        %2947 = vmatmul.mubr.bf16.gmra.mxu0 %v2745
        %v2948 = vpop.f32.mrf.mxu0
        %v2949 = vadd.f32 0.0, %v2948
        %v2950 = vpop.f32.mrf.mxu0
        %v2951 = vadd.f32 0.0, %v2950
        %v2952 = vpop.f32.mrf.mxu0
        %v2953 = vpop.f32.mrf.mxu0
        %2954 = vdwg.mxu0
        %2955 = vmatprep.subr.bf16.mxu0 0
        %2956 = vmatpush1.bf16.msra.mxu0 %v2889
        %2957 = vmatprep.subr.bf16.mxu0 0
        %2958 = vmatpush1.bf16.msra.mxu0 %v2886
        %2959 = vmatprep.subr.bf16.mxu0 0
        %2960 = vmatpush1.bf16.msra.mxu0 %v2883
        %2961 = vmatprep.subr.bf16.mxu0 0
        %2962 = vmatpush1.bf16.msra.mxu0 %v2880
        %2963 = vmatprep.subr.bf16.mxu0 0
        %2964 = vmatpush1.bf16.msra.mxu0 %v2877
        %2965 = vmatprep.subr.bf16.mxu0 0
        %2966 = vmatpush1.bf16.msra.mxu0 %v2874
        %2967 = vmatprep.subr.bf16.mxu0 0
        %2968 = vmatpush1.bf16.msra.mxu0 %v2871
        %2969 = vmatprep.subr.bf16.mxu0 0
        %2970 = vmatpush1.bf16.msra.mxu0 %v2868
        %2971 = vmatprep.subr.bf16.mxu0 0
        %2972 = vmatpush2.bf16.msra.mxu0 0
        %2973 = vmatprep.subr.bf16.mxu0 0
        %2974 = vmatpush2.bf16.msra.mxu0 0
        %2975 = vmatprep.subr.bf16.mxu0 0
        %2976 = vmatpush2.bf16.msra.mxu0 0
        %2977 = vmatprep.subr.bf16.mxu0 0
        %2978 = vmatpush2.bf16.msra.mxu0 0
        %2979 = vmatprep.subr.bf16.mxu0 0
        %2980 = vmatpush2.bf16.msra.mxu0 0
        %2981 = vmatprep.subr.bf16.mxu0 0
        %2982 = vmatpush2.bf16.msra.mxu0 0
        %2983 = vmatprep.subr.bf16.mxu0 0
        %2984 = vmatpush2.bf16.msra.mxu0 0
        %2985 = vmatprep.subr.bf16.mxu0 0
        %2986 = vmatpush2.bf16.msra.mxu0 0
        %2987 = vmatprep.mubr.bf16.mxu0 0
        %2988 = vmatmul.mubr.bf16.gmra.mxu0 %v2745
        %v2989 = vpop.f32.mrf.mxu0
        %v2990 = vadd.f32 0.0, %v2989
        %v2991 = vpop.f32.mrf.mxu0
        %v2992 = vpop.f32.mrf.mxu0
        %v2993 = vpop.f32.mrf.mxu0
        %2994 = vdwg.mxu0
        %v2995 = vadd.f32 %v2751, %v2949
        %v2996 = vxor.u32 %v2995, 2147483648
        %v2997 = vmul.f32 %v2996, 1.442695
        %v2998 = vpow.pop %v2997
        %v2999 = vadd.f32 %v2998, 1.0
        %v3000 = vrcp.pop %v2999
        %v3001 = vmul.f32 1.0, %v3000
        %v3002 = vadd.f32 %v2752, %v2951
        %v3003 = vxor.u32 %v3002, 2147483648
        %v3004 = vmul.f32 %v3003, 1.442695
        %v3005 = vpow.pop %v3004
        %v3006 = vadd.f32 %v3005, 1.0
        %v3007 = vrcp.pop %v3006
        %v3008 = vmul.f32 1.0, %v3007
        %v3009 = vld [vmem:[%s3] sm:$0x1]
        %v3011 = vlaneseq
        %v3012 = vshrl.u32 %v3011, 7
        %v3013 = vsub.s32 0, %v3012
        %v3014 = vrot.slane %v3009, %v3013
        %v3016 = vadd.f32 %v2990, %v3014
        %v3017 = vmul.f32 %v3001, %v3016
        %v3018 = vadd.f32 %v2753, %v3017
        %v3019 = vtanh.pop %v3018
        %v3020 = vsub.f32 1.0, %v3008
        %v3021 = vmul.f32 %v3020, %v3019
        %v3022 = vmul.f32 %v3008, %v2744
        %v3023 = vadd.f32 %v3021, %v3022
        %v3024 = vpack.c.bf16 %v3023, %v3023
        %s3025 = scalar_lea.vmem %s228, 36
        %3026 = vst [vmem:[%s3025] sm:$0xf] %v3024
        %s3027 = scalar_lea.vmem %s222, 120
        %v3028 = vld [vmem:[%s3027] sm:$0xff]
        %v3029 = vld [vmem:[%s3027 + $0x8] sm:$0xf]
        %v3030 = vunpack.c.l.bf16 %v3028
        %v3031 = vunpack.c.h.bf16 %v3028
        %v3032 = vunpack.c.l.bf16 %v3029
        %v3033 = vld [vmem:[%s2] sm:$0xff]
        %v3034 = vld [vmem:[%s2 + $0x8] sm:$0xf]
        %v3035 = vld [vmem:[%s2 + $0xc] sm:$0xff]
        %v3036 = vld [vmem:[%s2 + $0x14] sm:$0xf]
        %v3037 = vld [vmem:[%s2 + $0x18] sm:$0xff]
        %v3038 = vld [vmem:[%s2 + $0x20] sm:$0xf]
        %v3039 = vld [vmem:[%s2 + $0x24] sm:$0xff]
        %v3040 = vld [vmem:[%s2 + $0x2c] sm:$0xf]
        %v3041 = vld [vmem:[%s2 + $0x30] sm:$0xff]
        %v3042 = vld [vmem:[%s2 + $0x38] sm:$0xf]
        %v3043 = vld [vmem:[%s2 + $0x3c] sm:$0xff]
        %v3044 = vld [vmem:[%s2 + $0x44] sm:$0xf]
        %v3045 = vld [vmem:[%s2 + $0x48] sm:$0xff]
        %v3046 = vld [vmem:[%s2 + $0x50] sm:$0xf]
        %v3047 = vld [vmem:[%s2 + $0x54] sm:$0xff]
        %v3048 = vld [vmem:[%s2 + $0x5c] sm:$0xf]
        %v3049 = vld [vmem:[%s2 + $0x60] sm:$0xff]
        %v3050 = vld [vmem:[%s2 + $0x68] sm:$0xf]
        %v3051 = vld [vmem:[%s2 + $0x6c] sm:$0xff]
        %v3052 = vld [vmem:[%s2 + $0x74] sm:$0xf]
        %v3053 = vld [vmem:[%s2 + $0x78] sm:$0xff]
        %v3054 = vld [vmem:[%s2 + $0x80] sm:$0xf]
        %v3055 = vld [vmem:[%s2 + $0x84] sm:$0xff]
        %v3056 = vld [vmem:[%s2 + $0x8c] sm:$0xf]
        %v3057 = vld [vmem:[%s2 + $0x90] sm:$0xff]
        %v3058 = vld [vmem:[%s2 + $0x98] sm:$0xf]
        %v3059 = vld [vmem:[%s2 + $0x9c] sm:$0xff]
        %v3060 = vld [vmem:[%s2 + $0xa4] sm:$0xf]
        %v3061 = vld [vmem:[%s2 + $0xa8] sm:$0xff]
        %v3062 = vld [vmem:[%s2 + $0xb0] sm:$0xf]
        %v3063 = vld [vmem:[%s2 + $0xb4] sm:$0xff]
        %v3064 = vld [vmem:[%s2 + $0xbc] sm:$0xf]
        %v3097 = vunpack.c.l.b16 %v3033
        %v3098 = vunpack.c.h.b16 %v3033
        %v3099 = vunpack.c.l.b16 %v3034
        %v3100 = vunpack.c.l.b16 %v3035
        %v3101 = vunpack.c.h.b16 %v3035
        %v3102 = vunpack.c.l.b16 %v3036
        %v3103 = vunpack.c.l.b16 %v3037
        %v3104 = vunpack.c.h.b16 %v3037
        %v3105 = vunpack.c.l.b16 %v3038
        %v3106 = vunpack.c.l.b16 %v3039
        %v3107 = vunpack.c.h.b16 %v3039
        %v3108 = vunpack.c.l.b16 %v3040
        %v3109 = vunpack.c.l.b16 %v3041
        %v3110 = vunpack.c.h.b16 %v3041
        %v3111 = vunpack.c.l.b16 %v3042
        %v3112 = vunpack.c.l.b16 %v3043
        %v3113 = vunpack.c.h.b16 %v3043
        %v3114 = vunpack.c.l.b16 %v3044
        %v3115 = vunpack.c.l.b16 %v3045
        %v3116 = vunpack.c.h.b16 %v3045
        %v3117 = vunpack.c.l.b16 %v3046
        %v3118 = vunpack.c.l.b16 %v3047
        %v3119 = vunpack.c.h.b16 %v3047
        %v3120 = vunpack.c.l.b16 %v3048
        %v3121 = vunpack.c.l.b16 %v3049
        %v3122 = vunpack.c.h.b16 %v3049
        %v3123 = vunpack.c.l.b16 %v3050
        %v3124 = vunpack.c.l.b16 %v3051
        %v3125 = vunpack.c.h.b16 %v3051
        %v3126 = vunpack.c.l.b16 %v3052
        %v3127 = vunpack.c.l.b16 %v3053
        %v3128 = vunpack.c.h.b16 %v3053
        %v3129 = vunpack.c.l.b16 %v3054
        %v3130 = vunpack.c.l.b16 %v3055
        %v3131 = vunpack.c.h.b16 %v3055
        %v3132 = vunpack.c.l.b16 %v3056
        %v3133 = vunpack.c.l.b16 %v3057
        %v3134 = vunpack.c.h.b16 %v3057
        %v3135 = vunpack.c.l.b16 %v3058
        %v3136 = vunpack.c.l.b16 %v3059
        %v3137 = vunpack.c.h.b16 %v3059
        %v3138 = vunpack.c.l.b16 %v3060
        %v3139 = vunpack.c.l.b16 %v3061
        %v3140 = vunpack.c.h.b16 %v3061
        %v3141 = vunpack.c.l.b16 %v3062
        %v3142 = vunpack.c.l.b16 %v3063
        %v3143 = vunpack.c.h.b16 %v3063
        %v3144 = vunpack.c.l.b16 %v3064
        %v3145 = vpack.c.b16 %v3100, %v3097
        %v3146 = vpack.c.b16 %v3101, %v3098
        %v3147 = vpack.c.b16 %v3102, %v3099
        %v3148 = vpack.c.b16 %v3106, %v3103
        %v3149 = vpack.c.b16 %v3107, %v3104
        %v3150 = vpack.c.b16 %v3108, %v3105
        %v3151 = vpack.c.b16 %v3112, %v3109
        %v3152 = vpack.c.b16 %v3113, %v3110
        %v3153 = vpack.c.b16 %v3114, %v3111
        %v3154 = vpack.c.b16 %v3118, %v3115
        %v3155 = vpack.c.b16 %v3119, %v3116
        %v3156 = vpack.c.b16 %v3120, %v3117
        %v3157 = vpack.c.b16 %v3124, %v3121
        %v3158 = vpack.c.b16 %v3125, %v3122
        %v3159 = vpack.c.b16 %v3126, %v3123
        %v3160 = vpack.c.b16 %v3130, %v3127
        %v3161 = vpack.c.b16 %v3131, %v3128
        %v3162 = vpack.c.b16 %v3132, %v3129
        %v3163 = vpack.c.b16 %v3136, %v3133
        %v3164 = vpack.c.b16 %v3137, %v3134
        %v3165 = vpack.c.b16 %v3138, %v3135
        %v3166 = vpack.c.b16 %v3142, %v3139
        %v3167 = vpack.c.b16 %v3143, %v3140
        %v3168 = vpack.c.b16 %v3144, %v3141
        %3193 = vmatprep.subr.bf16.mxu0 %v3167
        %3194 = vmatpush1.bf16.msra.mxu0 %v3166
        %3195 = vmatprep.subr.bf16.mxu0 %v3164
        %3196 = vmatpush1.bf16.msra.mxu0 %v3163
        %3197 = vmatprep.subr.bf16.mxu0 %v3161
        %3198 = vmatpush1.bf16.msra.mxu0 %v3160
        %3199 = vmatprep.subr.bf16.mxu0 %v3158
        %3200 = vmatpush1.bf16.msra.mxu0 %v3157
        %3201 = vmatprep.subr.bf16.mxu0 %v3155
        %3202 = vmatpush1.bf16.msra.mxu0 %v3154
        %3203 = vmatprep.subr.bf16.mxu0 %v3152
        %3204 = vmatpush1.bf16.msra.mxu0 %v3151
        %3205 = vmatprep.subr.bf16.mxu0 %v3149
        %3206 = vmatpush1.bf16.msra.mxu0 %v3148
        %3207 = vmatprep.subr.bf16.mxu0 %v3146
        %3208 = vmatpush1.bf16.msra.mxu0 %v3145
        %3209 = vmatprep.subr.bf16.mxu0 0
        %3210 = vmatpush2.bf16.msra.mxu0 0
        %3211 = vmatprep.subr.bf16.mxu0 0
        %3212 = vmatpush2.bf16.msra.mxu0 0
        %3213 = vmatprep.subr.bf16.mxu0 0
        %3214 = vmatpush2.bf16.msra.mxu0 0
        %3215 = vmatprep.subr.bf16.mxu0 0
        %3216 = vmatpush2.bf16.msra.mxu0 0
        %3217 = vmatprep.subr.bf16.mxu0 0
        %3218 = vmatpush2.bf16.msra.mxu0 0
        %3219 = vmatprep.subr.bf16.mxu0 0
        %3220 = vmatpush2.bf16.msra.mxu0 0
        %3221 = vmatprep.subr.bf16.mxu0 0
        %3222 = vmatpush2.bf16.msra.mxu0 0
        %3223 = vmatprep.subr.bf16.mxu0 0
        %3224 = vmatpush2.bf16.msra.mxu0 0
        %3225 = vmatprep.mubr.bf16.mxu0 0
        %3226 = vmatmul.mubr.bf16.gmra.mxu0 %v3024
        %v3227 = vpop.f32.mrf.mxu0
        %v3228 = vadd.f32 0.0, %v3227
        %v3229 = vpop.f32.mrf.mxu0
        %v3230 = vadd.f32 0.0, %v3229
        %v3231 = vpop.f32.mrf.mxu0
        %v3232 = vpop.f32.mrf.mxu0
        %3233 = vdwg.mxu0
        %3234 = vmatprep.subr.bf16.mxu0 0
        %3235 = vmatpush1.bf16.msra.mxu0 %v3168
        %3236 = vmatprep.subr.bf16.mxu0 0
        %3237 = vmatpush1.bf16.msra.mxu0 %v3165
        %3238 = vmatprep.subr.bf16.mxu0 0
        %3239 = vmatpush1.bf16.msra.mxu0 %v3162
        %3240 = vmatprep.subr.bf16.mxu0 0
        %3241 = vmatpush1.bf16.msra.mxu0 %v3159
        %3242 = vmatprep.subr.bf16.mxu0 0
        %3243 = vmatpush1.bf16.msra.mxu0 %v3156
        %3244 = vmatprep.subr.bf16.mxu0 0
        %3245 = vmatpush1.bf16.msra.mxu0 %v3153
        %3246 = vmatprep.subr.bf16.mxu0 0
        %3247 = vmatpush1.bf16.msra.mxu0 %v3150
        %3248 = vmatprep.subr.bf16.mxu0 0
        %3249 = vmatpush1.bf16.msra.mxu0 %v3147
        %3250 = vmatprep.subr.bf16.mxu0 0
        %3251 = vmatpush2.bf16.msra.mxu0 0
        %3252 = vmatprep.subr.bf16.mxu0 0
        %3253 = vmatpush2.bf16.msra.mxu0 0
        %3254 = vmatprep.subr.bf16.mxu0 0
        %3255 = vmatpush2.bf16.msra.mxu0 0
        %3256 = vmatprep.subr.bf16.mxu0 0
        %3257 = vmatpush2.bf16.msra.mxu0 0
        %3258 = vmatprep.subr.bf16.mxu0 0
        %3259 = vmatpush2.bf16.msra.mxu0 0
        %3260 = vmatprep.subr.bf16.mxu0 0
        %3261 = vmatpush2.bf16.msra.mxu0 0
        %3262 = vmatprep.subr.bf16.mxu0 0
        %3263 = vmatpush2.bf16.msra.mxu0 0
        %3264 = vmatprep.subr.bf16.mxu0 0
        %3265 = vmatpush2.bf16.msra.mxu0 0
        %3266 = vmatprep.mubr.bf16.mxu0 0
        %3267 = vmatmul.mubr.bf16.gmra.mxu0 %v3024
        %v3268 = vpop.f32.mrf.mxu0
        %v3269 = vadd.f32 0.0, %v3268
        %v3270 = vpop.f32.mrf.mxu0
        %v3271 = vpop.f32.mrf.mxu0
        %v3272 = vpop.f32.mrf.mxu0
        %3273 = vdwg.mxu0
        %v3274 = vadd.f32 %v3030, %v3228
        %v3275 = vxor.u32 %v3274, 2147483648
        %v3276 = vmul.f32 %v3275, 1.442695
        %v3277 = vpow.pop %v3276
        %v3278 = vadd.f32 %v3277, 1.0
        %v3279 = vrcp.pop %v3278
        %v3280 = vmul.f32 1.0, %v3279
        %v3281 = vadd.f32 %v3031, %v3230
        %v3282 = vxor.u32 %v3281, 2147483648
        %v3283 = vmul.f32 %v3282, 1.442695
        %v3284 = vpow.pop %v3283
        %v3285 = vadd.f32 %v3284, 1.0
        %v3286 = vrcp.pop %v3285
        %v3287 = vmul.f32 1.0, %v3286
        %v3288 = vld [vmem:[%s3] sm:$0x1]
        %v3290 = vlaneseq
        %v3291 = vshrl.u32 %v3290, 7
        %v3292 = vsub.s32 0, %v3291
        %v3293 = vrot.slane %v3288, %v3292
        %v3295 = vadd.f32 %v3269, %v3293
        %v3296 = vmul.f32 %v3280, %v3295
        %v3297 = vadd.f32 %v3032, %v3296
        %v3298 = vtanh.pop %v3297
        %v3299 = vsub.f32 1.0, %v3287
        %v3300 = vmul.f32 %v3299, %v3298
        %v3301 = vmul.f32 %v3287, %v3023
        %v3302 = vadd.f32 %v3300, %v3301
        %v3303 = vpack.c.bf16 %v3302, %v3302
        %s3304 = scalar_lea.vmem %s228, 40
        %3305 = vst [vmem:[%s3304] sm:$0xf] %v3303
        %s3306 = scalar_lea.vmem %s222, 132
        %v3307 = vld [vmem:[%s3306] sm:$0xff]
        %v3308 = vld [vmem:[%s3306 + $0x8] sm:$0xf]
        %v3309 = vunpack.c.l.bf16 %v3307
        %v3310 = vunpack.c.h.bf16 %v3307
        %v3311 = vunpack.c.l.bf16 %v3308
        %v3312 = vld [vmem:[%s2] sm:$0xff]
        %v3313 = vld [vmem:[%s2 + $0x8] sm:$0xf]
        %v3314 = vld [vmem:[%s2 + $0xc] sm:$0xff]
        %v3315 = vld [vmem:[%s2 + $0x14] sm:$0xf]
        %v3316 = vld [vmem:[%s2 + $0x18] sm:$0xff]
        %v3317 = vld [vmem:[%s2 + $0x20] sm:$0xf]
        %v3318 = vld [vmem:[%s2 + $0x24] sm:$0xff]
        %v3319 = vld [vmem:[%s2 + $0x2c] sm:$0xf]
        %v3320 = vld [vmem:[%s2 + $0x30] sm:$0xff]
        %v3321 = vld [vmem:[%s2 + $0x38] sm:$0xf]
        %v3322 = vld [vmem:[%s2 + $0x3c] sm:$0xff]
        %v3323 = vld [vmem:[%s2 + $0x44] sm:$0xf]
        %v3324 = vld [vmem:[%s2 + $0x48] sm:$0xff]
        %v3325 = vld [vmem:[%s2 + $0x50] sm:$0xf]
        %v3326 = vld [vmem:[%s2 + $0x54] sm:$0xff]
        %v3327 = vld [vmem:[%s2 + $0x5c] sm:$0xf]
        %v3328 = vld [vmem:[%s2 + $0x60] sm:$0xff]
        %v3329 = vld [vmem:[%s2 + $0x68] sm:$0xf]
        %v3330 = vld [vmem:[%s2 + $0x6c] sm:$0xff]
        %v3331 = vld [vmem:[%s2 + $0x74] sm:$0xf]
        %v3332 = vld [vmem:[%s2 + $0x78] sm:$0xff]
        %v3333 = vld [vmem:[%s2 + $0x80] sm:$0xf]
        %v3334 = vld [vmem:[%s2 + $0x84] sm:$0xff]
        %v3335 = vld [vmem:[%s2 + $0x8c] sm:$0xf]
        %v3336 = vld [vmem:[%s2 + $0x90] sm:$0xff]
        %v3337 = vld [vmem:[%s2 + $0x98] sm:$0xf]
        %v3338 = vld [vmem:[%s2 + $0x9c] sm:$0xff]
        %v3339 = vld [vmem:[%s2 + $0xa4] sm:$0xf]
        %v3340 = vld [vmem:[%s2 + $0xa8] sm:$0xff]
        %v3341 = vld [vmem:[%s2 + $0xb0] sm:$0xf]
        %v3342 = vld [vmem:[%s2 + $0xb4] sm:$0xff]
        %v3343 = vld [vmem:[%s2 + $0xbc] sm:$0xf]
        %v3376 = vunpack.c.l.b16 %v3312
        %v3377 = vunpack.c.h.b16 %v3312
        %v3378 = vunpack.c.l.b16 %v3313
        %v3379 = vunpack.c.l.b16 %v3314
        %v3380 = vunpack.c.h.b16 %v3314
        %v3381 = vunpack.c.l.b16 %v3315
        %v3382 = vunpack.c.l.b16 %v3316
        %v3383 = vunpack.c.h.b16 %v3316
        %v3384 = vunpack.c.l.b16 %v3317
        %v3385 = vunpack.c.l.b16 %v3318
        %v3386 = vunpack.c.h.b16 %v3318
        %v3387 = vunpack.c.l.b16 %v3319
        %v3388 = vunpack.c.l.b16 %v3320
        %v3389 = vunpack.c.h.b16 %v3320
        %v3390 = vunpack.c.l.b16 %v3321
        %v3391 = vunpack.c.l.b16 %v3322
        %v3392 = vunpack.c.h.b16 %v3322
        %v3393 = vunpack.c.l.b16 %v3323
        %v3394 = vunpack.c.l.b16 %v3324
        %v3395 = vunpack.c.h.b16 %v3324
        %v3396 = vunpack.c.l.b16 %v3325
        %v3397 = vunpack.c.l.b16 %v3326
        %v3398 = vunpack.c.h.b16 %v3326
        %v3399 = vunpack.c.l.b16 %v3327
        %v3400 = vunpack.c.l.b16 %v3328
        %v3401 = vunpack.c.h.b16 %v3328
        %v3402 = vunpack.c.l.b16 %v3329
        %v3403 = vunpack.c.l.b16 %v3330
        %v3404 = vunpack.c.h.b16 %v3330
        %v3405 = vunpack.c.l.b16 %v3331
        %v3406 = vunpack.c.l.b16 %v3332
        %v3407 = vunpack.c.h.b16 %v3332
        %v3408 = vunpack.c.l.b16 %v3333
        %v3409 = vunpack.c.l.b16 %v3334
        %v3410 = vunpack.c.h.b16 %v3334
        %v3411 = vunpack.c.l.b16 %v3335
        %v3412 = vunpack.c.l.b16 %v3336
        %v3413 = vunpack.c.h.b16 %v3336
        %v3414 = vunpack.c.l.b16 %v3337
        %v3415 = vunpack.c.l.b16 %v3338
        %v3416 = vunpack.c.h.b16 %v3338
        %v3417 = vunpack.c.l.b16 %v3339
        %v3418 = vunpack.c.l.b16 %v3340
        %v3419 = vunpack.c.h.b16 %v3340
        %v3420 = vunpack.c.l.b16 %v3341
        %v3421 = vunpack.c.l.b16 %v3342
        %v3422 = vunpack.c.h.b16 %v3342
        %v3423 = vunpack.c.l.b16 %v3343
        %v3424 = vpack.c.b16 %v3379, %v3376
        %v3425 = vpack.c.b16 %v3380, %v3377
        %v3426 = vpack.c.b16 %v3381, %v3378
        %v3427 = vpack.c.b16 %v3385, %v3382
        %v3428 = vpack.c.b16 %v3386, %v3383
        %v3429 = vpack.c.b16 %v3387, %v3384
        %v3430 = vpack.c.b16 %v3391, %v3388
        %v3431 = vpack.c.b16 %v3392, %v3389
        %v3432 = vpack.c.b16 %v3393, %v3390
        %v3433 = vpack.c.b16 %v3397, %v3394
        %v3434 = vpack.c.b16 %v3398, %v3395
        %v3435 = vpack.c.b16 %v3399, %v3396
        %v3436 = vpack.c.b16 %v3403, %v3400
        %v3437 = vpack.c.b16 %v3404, %v3401
        %v3438 = vpack.c.b16 %v3405, %v3402
        %v3439 = vpack.c.b16 %v3409, %v3406
        %v3440 = vpack.c.b16 %v3410, %v3407
        %v3441 = vpack.c.b16 %v3411, %v3408
        %v3442 = vpack.c.b16 %v3415, %v3412
        %v3443 = vpack.c.b16 %v3416, %v3413
        %v3444 = vpack.c.b16 %v3417, %v3414
        %v3445 = vpack.c.b16 %v3421, %v3418
        %v3446 = vpack.c.b16 %v3422, %v3419
        %v3447 = vpack.c.b16 %v3423, %v3420
        %3472 = vmatprep.subr.bf16.mxu0 %v3446
        %3473 = vmatpush1.bf16.msra.mxu0 %v3445
        %3474 = vmatprep.subr.bf16.mxu0 %v3443
        %3475 = vmatpush1.bf16.msra.mxu0 %v3442
        %3476 = vmatprep.subr.bf16.mxu0 %v3440
        %3477 = vmatpush1.bf16.msra.mxu0 %v3439
        %3478 = vmatprep.subr.bf16.mxu0 %v3437
        %3479 = vmatpush1.bf16.msra.mxu0 %v3436
        %3480 = vmatprep.subr.bf16.mxu0 %v3434
        %3481 = vmatpush1.bf16.msra.mxu0 %v3433
        %3482 = vmatprep.subr.bf16.mxu0 %v3431
        %3483 = vmatpush1.bf16.msra.mxu0 %v3430
        %3484 = vmatprep.subr.bf16.mxu0 %v3428
        %3485 = vmatpush1.bf16.msra.mxu0 %v3427
        %3486 = vmatprep.subr.bf16.mxu0 %v3425
        %3487 = vmatpush1.bf16.msra.mxu0 %v3424
        %3488 = vmatprep.subr.bf16.mxu0 0
        %3489 = vmatpush2.bf16.msra.mxu0 0
        %3490 = vmatprep.subr.bf16.mxu0 0
        %3491 = vmatpush2.bf16.msra.mxu0 0
        %3492 = vmatprep.subr.bf16.mxu0 0
        %3493 = vmatpush2.bf16.msra.mxu0 0
        %3494 = vmatprep.subr.bf16.mxu0 0
        %3495 = vmatpush2.bf16.msra.mxu0 0
        %3496 = vmatprep.subr.bf16.mxu0 0
        %3497 = vmatpush2.bf16.msra.mxu0 0
        %3498 = vmatprep.subr.bf16.mxu0 0
        %3499 = vmatpush2.bf16.msra.mxu0 0
        %3500 = vmatprep.subr.bf16.mxu0 0
        %3501 = vmatpush2.bf16.msra.mxu0 0
        %3502 = vmatprep.subr.bf16.mxu0 0
        %3503 = vmatpush2.bf16.msra.mxu0 0
        %3504 = vmatprep.mubr.bf16.mxu0 0
        %3505 = vmatmul.mubr.bf16.gmra.mxu0 %v3303
        %v3506 = vpop.f32.mrf.mxu0
        %v3507 = vadd.f32 0.0, %v3506
        %v3508 = vpop.f32.mrf.mxu0
        %v3509 = vadd.f32 0.0, %v3508
        %v3510 = vpop.f32.mrf.mxu0
        %v3511 = vpop.f32.mrf.mxu0
        %3512 = vdwg.mxu0
        %3513 = vmatprep.subr.bf16.mxu0 0
        %3514 = vmatpush1.bf16.msra.mxu0 %v3447
        %3515 = vmatprep.subr.bf16.mxu0 0
        %3516 = vmatpush1.bf16.msra.mxu0 %v3444
        %3517 = vmatprep.subr.bf16.mxu0 0
        %3518 = vmatpush1.bf16.msra.mxu0 %v3441
        %3519 = vmatprep.subr.bf16.mxu0 0
        %3520 = vmatpush1.bf16.msra.mxu0 %v3438
        %3521 = vmatprep.subr.bf16.mxu0 0
        %3522 = vmatpush1.bf16.msra.mxu0 %v3435
        %3523 = vmatprep.subr.bf16.mxu0 0
        %3524 = vmatpush1.bf16.msra.mxu0 %v3432
        %3525 = vmatprep.subr.bf16.mxu0 0
        %3526 = vmatpush1.bf16.msra.mxu0 %v3429
        %3527 = vmatprep.subr.bf16.mxu0 0
        %3528 = vmatpush1.bf16.msra.mxu0 %v3426
        %3529 = vmatprep.subr.bf16.mxu0 0
        %3530 = vmatpush2.bf16.msra.mxu0 0
        %3531 = vmatprep.subr.bf16.mxu0 0
        %3532 = vmatpush2.bf16.msra.mxu0 0
        %3533 = vmatprep.subr.bf16.mxu0 0
        %3534 = vmatpush2.bf16.msra.mxu0 0
        %3535 = vmatprep.subr.bf16.mxu0 0
        %3536 = vmatpush2.bf16.msra.mxu0 0
        %3537 = vmatprep.subr.bf16.mxu0 0
        %3538 = vmatpush2.bf16.msra.mxu0 0
        %3539 = vmatprep.subr.bf16.mxu0 0
        %3540 = vmatpush2.bf16.msra.mxu0 0
        %3541 = vmatprep.subr.bf16.mxu0 0
        %3542 = vmatpush2.bf16.msra.mxu0 0
        %3543 = vmatprep.subr.bf16.mxu0 0
        %3544 = vmatpush2.bf16.msra.mxu0 0
        %3545 = vmatprep.mubr.bf16.mxu0 0
        %3546 = vmatmul.mubr.bf16.gmra.mxu0 %v3303
        %v3547 = vpop.f32.mrf.mxu0
        %v3548 = vadd.f32 0.0, %v3547
        %v3549 = vpop.f32.mrf.mxu0
        %v3550 = vpop.f32.mrf.mxu0
        %v3551 = vpop.f32.mrf.mxu0
        %3552 = vdwg.mxu0
        %v3553 = vadd.f32 %v3309, %v3507
        %v3554 = vxor.u32 %v3553, 2147483648
        %v3555 = vmul.f32 %v3554, 1.442695
        %v3556 = vpow.pop %v3555
        %v3557 = vadd.f32 %v3556, 1.0
        %v3558 = vrcp.pop %v3557
        %v3559 = vmul.f32 1.0, %v3558
        %v3560 = vadd.f32 %v3310, %v3509
        %v3561 = vxor.u32 %v3560, 2147483648
        %v3562 = vmul.f32 %v3561, 1.442695
        %v3563 = vpow.pop %v3562
        %v3564 = vadd.f32 %v3563, 1.0
        %v3565 = vrcp.pop %v3564
        %v3566 = vmul.f32 1.0, %v3565
        %v3567 = vld [vmem:[%s3] sm:$0x1]
        %v3569 = vlaneseq
        %v3570 = vshrl.u32 %v3569, 7
        %v3571 = vsub.s32 0, %v3570
        %v3572 = vrot.slane %v3567, %v3571
        %v3574 = vadd.f32 %v3548, %v3572
        %v3575 = vmul.f32 %v3559, %v3574
        %v3576 = vadd.f32 %v3311, %v3575
        %v3577 = vtanh.pop %v3576
        %v3578 = vsub.f32 1.0, %v3566
        %v3579 = vmul.f32 %v3578, %v3577
        %v3580 = vmul.f32 %v3566, %v3302
        %v3581 = vadd.f32 %v3579, %v3580
        %v3582 = vpack.c.bf16 %v3581, %v3581
        %s3583 = scalar_lea.vmem %s228, 44
        %3584 = vst [vmem:[%s3583] sm:$0xf] %v3582
        %s3585 = scalar_lea.vmem %s222, 144
        %v3586 = vld [vmem:[%s3585] sm:$0xff]
        %v3587 = vld [vmem:[%s3585 + $0x8] sm:$0xf]
        %v3588 = vunpack.c.l.bf16 %v3586
        %v3589 = vunpack.c.h.bf16 %v3586
        %v3590 = vunpack.c.l.bf16 %v3587
        %v3591 = vld [vmem:[%s2] sm:$0xff]
        %v3592 = vld [vmem:[%s2 + $0x8] sm:$0xf]
        %v3593 = vld [vmem:[%s2 + $0xc] sm:$0xff]
        %v3594 = vld [vmem:[%s2 + $0x14] sm:$0xf]
        %v3595 = vld [vmem:[%s2 + $0x18] sm:$0xff]
        %v3596 = vld [vmem:[%s2 + $0x20] sm:$0xf]
        %v3597 = vld [vmem:[%s2 + $0x24] sm:$0xff]
        %v3598 = vld [vmem:[%s2 + $0x2c] sm:$0xf]
        %v3599 = vld [vmem:[%s2 + $0x30] sm:$0xff]
        %v3600 = vld [vmem:[%s2 + $0x38] sm:$0xf]
        %v3601 = vld [vmem:[%s2 + $0x3c] sm:$0xff]
        %v3602 = vld [vmem:[%s2 + $0x44] sm:$0xf]
        %v3603 = vld [vmem:[%s2 + $0x48] sm:$0xff]
        %v3604 = vld [vmem:[%s2 + $0x50] sm:$0xf]
        %v3605 = vld [vmem:[%s2 + $0x54] sm:$0xff]
        %v3606 = vld [vmem:[%s2 + $0x5c] sm:$0xf]
        %v3607 = vld [vmem:[%s2 + $0x60] sm:$0xff]
        %v3608 = vld [vmem:[%s2 + $0x68] sm:$0xf]
        %v3609 = vld [vmem:[%s2 + $0x6c] sm:$0xff]
        %v3610 = vld [vmem:[%s2 + $0x74] sm:$0xf]
        %v3611 = vld [vmem:[%s2 + $0x78] sm:$0xff]
        %v3612 = vld [vmem:[%s2 + $0x80] sm:$0xf]
        %v3613 = vld [vmem:[%s2 + $0x84] sm:$0xff]
        %v3614 = vld [vmem:[%s2 + $0x8c] sm:$0xf]
        %v3615 = vld [vmem:[%s2 + $0x90] sm:$0xff]
        %v3616 = vld [vmem:[%s2 + $0x98] sm:$0xf]
        %v3617 = vld [vmem:[%s2 + $0x9c] sm:$0xff]
        %v3618 = vld [vmem:[%s2 + $0xa4] sm:$0xf]
        %v3619 = vld [vmem:[%s2 + $0xa8] sm:$0xff]
        %v3620 = vld [vmem:[%s2 + $0xb0] sm:$0xf]
        %v3621 = vld [vmem:[%s2 + $0xb4] sm:$0xff]
        %v3622 = vld [vmem:[%s2 + $0xbc] sm:$0xf]
        %v3655 = vunpack.c.l.b16 %v3591
        %v3656 = vunpack.c.h.b16 %v3591
        %v3657 = vunpack.c.l.b16 %v3592
        %v3658 = vunpack.c.l.b16 %v3593
        %v3659 = vunpack.c.h.b16 %v3593
        %v3660 = vunpack.c.l.b16 %v3594
        %v3661 = vunpack.c.l.b16 %v3595
        %v3662 = vunpack.c.h.b16 %v3595
        %v3663 = vunpack.c.l.b16 %v3596
        %v3664 = vunpack.c.l.b16 %v3597
        %v3665 = vunpack.c.h.b16 %v3597
        %v3666 = vunpack.c.l.b16 %v3598
        %v3667 = vunpack.c.l.b16 %v3599
        %v3668 = vunpack.c.h.b16 %v3599
        %v3669 = vunpack.c.l.b16 %v3600
        %v3670 = vunpack.c.l.b16 %v3601
        %v3671 = vunpack.c.h.b16 %v3601
        %v3672 = vunpack.c.l.b16 %v3602
        %v3673 = vunpack.c.l.b16 %v3603
        %v3674 = vunpack.c.h.b16 %v3603
        %v3675 = vunpack.c.l.b16 %v3604
        %v3676 = vunpack.c.l.b16 %v3605
        %v3677 = vunpack.c.h.b16 %v3605
        %v3678 = vunpack.c.l.b16 %v3606
        %v3679 = vunpack.c.l.b16 %v3607
        %v3680 = vunpack.c.h.b16 %v3607
        %v3681 = vunpack.c.l.b16 %v3608
        %v3682 = vunpack.c.l.b16 %v3609
        %v3683 = vunpack.c.h.b16 %v3609
        %v3684 = vunpack.c.l.b16 %v3610
        %v3685 = vunpack.c.l.b16 %v3611
        %v3686 = vunpack.c.h.b16 %v3611
        %v3687 = vunpack.c.l.b16 %v3612
        %v3688 = vunpack.c.l.b16 %v3613
        %v3689 = vunpack.c.h.b16 %v3613
        %v3690 = vunpack.c.l.b16 %v3614
        %v3691 = vunpack.c.l.b16 %v3615
        %v3692 = vunpack.c.h.b16 %v3615
        %v3693 = vunpack.c.l.b16 %v3616
        %v3694 = vunpack.c.l.b16 %v3617
        %v3695 = vunpack.c.h.b16 %v3617
        %v3696 = vunpack.c.l.b16 %v3618
        %v3697 = vunpack.c.l.b16 %v3619
        %v3698 = vunpack.c.h.b16 %v3619
        %v3699 = vunpack.c.l.b16 %v3620
        %v3700 = vunpack.c.l.b16 %v3621
        %v3701 = vunpack.c.h.b16 %v3621
        %v3702 = vunpack.c.l.b16 %v3622
        %v3703 = vpack.c.b16 %v3658, %v3655
        %v3704 = vpack.c.b16 %v3659, %v3656
        %v3705 = vpack.c.b16 %v3660, %v3657
        %v3706 = vpack.c.b16 %v3664, %v3661
        %v3707 = vpack.c.b16 %v3665, %v3662
        %v3708 = vpack.c.b16 %v3666, %v3663
        %v3709 = vpack.c.b16 %v3670, %v3667
        %v3710 = vpack.c.b16 %v3671, %v3668
        %v3711 = vpack.c.b16 %v3672, %v3669
        %v3712 = vpack.c.b16 %v3676, %v3673
        %v3713 = vpack.c.b16 %v3677, %v3674
        %v3714 = vpack.c.b16 %v3678, %v3675
        %v3715 = vpack.c.b16 %v3682, %v3679
        %v3716 = vpack.c.b16 %v3683, %v3680
        %v3717 = vpack.c.b16 %v3684, %v3681
        %v3718 = vpack.c.b16 %v3688, %v3685
        %v3719 = vpack.c.b16 %v3689, %v3686
        %v3720 = vpack.c.b16 %v3690, %v3687
        %v3721 = vpack.c.b16 %v3694, %v3691
        %v3722 = vpack.c.b16 %v3695, %v3692
        %v3723 = vpack.c.b16 %v3696, %v3693
        %v3724 = vpack.c.b16 %v3700, %v3697
        %v3725 = vpack.c.b16 %v3701, %v3698
        %v3726 = vpack.c.b16 %v3702, %v3699
        %3751 = vmatprep.subr.bf16.mxu0 %v3725
        %3752 = vmatpush1.bf16.msra.mxu0 %v3724
        %3753 = vmatprep.subr.bf16.mxu0 %v3722
        %3754 = vmatpush1.bf16.msra.mxu0 %v3721
        %3755 = vmatprep.subr.bf16.mxu0 %v3719
        %3756 = vmatpush1.bf16.msra.mxu0 %v3718
        %3757 = vmatprep.subr.bf16.mxu0 %v3716
        %3758 = vmatpush1.bf16.msra.mxu0 %v3715
        %3759 = vmatprep.subr.bf16.mxu0 %v3713
        %3760 = vmatpush1.bf16.msra.mxu0 %v3712
        %3761 = vmatprep.subr.bf16.mxu0 %v3710
        %3762 = vmatpush1.bf16.msra.mxu0 %v3709
        %3763 = vmatprep.subr.bf16.mxu0 %v3707
        %3764 = vmatpush1.bf16.msra.mxu0 %v3706
        %3765 = vmatprep.subr.bf16.mxu0 %v3704
        %3766 = vmatpush1.bf16.msra.mxu0 %v3703
        %3767 = vmatprep.subr.bf16.mxu0 0
        %3768 = vmatpush2.bf16.msra.mxu0 0
        %3769 = vmatprep.subr.bf16.mxu0 0
        %3770 = vmatpush2.bf16.msra.mxu0 0
        %3771 = vmatprep.subr.bf16.mxu0 0
        %3772 = vmatpush2.bf16.msra.mxu0 0
        %3773 = vmatprep.subr.bf16.mxu0 0
        %3774 = vmatpush2.bf16.msra.mxu0 0
        %3775 = vmatprep.subr.bf16.mxu0 0
        %3776 = vmatpush2.bf16.msra.mxu0 0
        %3777 = vmatprep.subr.bf16.mxu0 0
        %3778 = vmatpush2.bf16.msra.mxu0 0
        %3779 = vmatprep.subr.bf16.mxu0 0
        %3780 = vmatpush2.bf16.msra.mxu0 0
        %3781 = vmatprep.subr.bf16.mxu0 0
        %3782 = vmatpush2.bf16.msra.mxu0 0
        %3783 = vmatprep.mubr.bf16.mxu0 0
        %3784 = vmatmul.mubr.bf16.gmra.mxu0 %v3582
        %v3785 = vpop.f32.mrf.mxu0
        %v3786 = vadd.f32 0.0, %v3785
        %v3787 = vpop.f32.mrf.mxu0
        %v3788 = vadd.f32 0.0, %v3787
        %v3789 = vpop.f32.mrf.mxu0
        %v3790 = vpop.f32.mrf.mxu0
        %3791 = vdwg.mxu0
        %3792 = vmatprep.subr.bf16.mxu0 0
        %3793 = vmatpush1.bf16.msra.mxu0 %v3726
        %3794 = vmatprep.subr.bf16.mxu0 0
        %3795 = vmatpush1.bf16.msra.mxu0 %v3723
        %3796 = vmatprep.subr.bf16.mxu0 0
        %3797 = vmatpush1.bf16.msra.mxu0 %v3720
        %3798 = vmatprep.subr.bf16.mxu0 0
        %3799 = vmatpush1.bf16.msra.mxu0 %v3717
        %3800 = vmatprep.subr.bf16.mxu0 0
        %3801 = vmatpush1.bf16.msra.mxu0 %v3714
        %3802 = vmatprep.subr.bf16.mxu0 0
        %3803 = vmatpush1.bf16.msra.mxu0 %v3711
        %3804 = vmatprep.subr.bf16.mxu0 0
        %3805 = vmatpush1.bf16.msra.mxu0 %v3708
        %3806 = vmatprep.subr.bf16.mxu0 0
        %3807 = vmatpush1.bf16.msra.mxu0 %v3705
        %3808 = vmatprep.subr.bf16.mxu0 0
        %3809 = vmatpush2.bf16.msra.mxu0 0
        %3810 = vmatprep.subr.bf16.mxu0 0
        %3811 = vmatpush2.bf16.msra.mxu0 0
        %3812 = vmatprep.subr.bf16.mxu0 0
        %3813 = vmatpush2.bf16.msra.mxu0 0
        %3814 = vmatprep.subr.bf16.mxu0 0
        %3815 = vmatpush2.bf16.msra.mxu0 0
        %3816 = vmatprep.subr.bf16.mxu0 0
        %3817 = vmatpush2.bf16.msra.mxu0 0
        %3818 = vmatprep.subr.bf16.mxu0 0
        %3819 = vmatpush2.bf16.msra.mxu0 0
        %3820 = vmatprep.subr.bf16.mxu0 0
        %3821 = vmatpush2.bf16.msra.mxu0 0
        %3822 = vmatprep.subr.bf16.mxu0 0
        %3823 = vmatpush2.bf16.msra.mxu0 0
        %3824 = vmatprep.mubr.bf16.mxu0 0
        %3825 = vmatmul.mubr.bf16.gmra.mxu0 %v3582
        %v3826 = vpop.f32.mrf.mxu0
        %v3827 = vadd.f32 0.0, %v3826
        %v3828 = vpop.f32.mrf.mxu0
        %v3829 = vpop.f32.mrf.mxu0
        %v3830 = vpop.f32.mrf.mxu0
        %3831 = vdwg.mxu0
        %v3832 = vadd.f32 %v3588, %v3786
        %v3833 = vxor.u32 %v3832, 2147483648
        %v3834 = vmul.f32 %v3833, 1.442695
        %v3835 = vpow.pop %v3834
        %v3836 = vadd.f32 %v3835, 1.0
        %v3837 = vrcp.pop %v3836
        %v3838 = vmul.f32 1.0, %v3837
        %v3839 = vadd.f32 %v3589, %v3788
        %v3840 = vxor.u32 %v3839, 2147483648
        %v3841 = vmul.f32 %v3840, 1.442695
        %v3842 = vpow.pop %v3841
        %v3843 = vadd.f32 %v3842, 1.0
        %v3844 = vrcp.pop %v3843
        %v3845 = vmul.f32 1.0, %v3844
        %v3846 = vld [vmem:[%s3] sm:$0x1]
        %v3848 = vlaneseq
        %v3849 = vshrl.u32 %v3848, 7
        %v3850 = vsub.s32 0, %v3849
        %v3851 = vrot.slane %v3846, %v3850
        %v3853 = vadd.f32 %v3827, %v3851
        %v3854 = vmul.f32 %v3838, %v3853
        %v3855 = vadd.f32 %v3590, %v3854
        %v3856 = vtanh.pop %v3855
        %v3857 = vsub.f32 1.0, %v3845
        %v3858 = vmul.f32 %v3857, %v3856
        %v3859 = vmul.f32 %v3845, %v3581
        %v3860 = vadd.f32 %v3858, %v3859
        %v3861 = vpack.c.bf16 %v3860, %v3860
        %s3862 = scalar_lea.vmem %s228, 48
        %3863 = vst [vmem:[%s3862] sm:$0xf] %v3861
        %s3864 = scalar_lea.vmem %s222, 156
        %v3865 = vld [vmem:[%s3864] sm:$0xff]
        %v3866 = vld [vmem:[%s3864 + $0x8] sm:$0xf]
        %v3867 = vunpack.c.l.bf16 %v3865
        %v3868 = vunpack.c.h.bf16 %v3865
        %v3869 = vunpack.c.l.bf16 %v3866
        %v3870 = vld [vmem:[%s2] sm:$0xff]
        %v3871 = vld [vmem:[%s2 + $0x8] sm:$0xf]
        %v3872 = vld [vmem:[%s2 + $0xc] sm:$0xff]
        %v3873 = vld [vmem:[%s2 + $0x14] sm:$0xf]
        %v3874 = vld [vmem:[%s2 + $0x18] sm:$0xff]
        %v3875 = vld [vmem:[%s2 + $0x20] sm:$0xf]
        %v3876 = vld [vmem:[%s2 + $0x24] sm:$0xff]
        %v3877 = vld [vmem:[%s2 + $0x2c] sm:$0xf]
        %v3878 = vld [vmem:[%s2 + $0x30] sm:$0xff]
        %v3879 = vld [vmem:[%s2 + $0x38] sm:$0xf]
        %v3880 = vld [vmem:[%s2 + $0x3c] sm:$0xff]
        %v3881 = vld [vmem:[%s2 + $0x44] sm:$0xf]
        %v3882 = vld [vmem:[%s2 + $0x48] sm:$0xff]
        %v3883 = vld [vmem:[%s2 + $0x50] sm:$0xf]
        %v3884 = vld [vmem:[%s2 + $0x54] sm:$0xff]
        %v3885 = vld [vmem:[%s2 + $0x5c] sm:$0xf]
        %v3886 = vld [vmem:[%s2 + $0x60] sm:$0xff]
        %v3887 = vld [vmem:[%s2 + $0x68] sm:$0xf]
        %v3888 = vld [vmem:[%s2 + $0x6c] sm:$0xff]
        %v3889 = vld [vmem:[%s2 + $0x74] sm:$0xf]
        %v3890 = vld [vmem:[%s2 + $0x78] sm:$0xff]
        %v3891 = vld [vmem:[%s2 + $0x80] sm:$0xf]
        %v3892 = vld [vmem:[%s2 + $0x84] sm:$0xff]
        %v3893 = vld [vmem:[%s2 + $0x8c] sm:$0xf]
        %v3894 = vld [vmem:[%s2 + $0x90] sm:$0xff]
        %v3895 = vld [vmem:[%s2 + $0x98] sm:$0xf]
        %v3896 = vld [vmem:[%s2 + $0x9c] sm:$0xff]
        %v3897 = vld [vmem:[%s2 + $0xa4] sm:$0xf]
        %v3898 = vld [vmem:[%s2 + $0xa8] sm:$0xff]
        %v3899 = vld [vmem:[%s2 + $0xb0] sm:$0xf]
        %v3900 = vld [vmem:[%s2 + $0xb4] sm:$0xff]
        %v3901 = vld [vmem:[%s2 + $0xbc] sm:$0xf]
        %v3934 = vunpack.c.l.b16 %v3870
        %v3935 = vunpack.c.h.b16 %v3870
        %v3936 = vunpack.c.l.b16 %v3871
        %v3937 = vunpack.c.l.b16 %v3872
        %v3938 = vunpack.c.h.b16 %v3872
        %v3939 = vunpack.c.l.b16 %v3873
        %v3940 = vunpack.c.l.b16 %v3874
        %v3941 = vunpack.c.h.b16 %v3874
        %v3942 = vunpack.c.l.b16 %v3875
        %v3943 = vunpack.c.l.b16 %v3876
        %v3944 = vunpack.c.h.b16 %v3876
        %v3945 = vunpack.c.l.b16 %v3877
        %v3946 = vunpack.c.l.b16 %v3878
        %v3947 = vunpack.c.h.b16 %v3878
        %v3948 = vunpack.c.l.b16 %v3879
        %v3949 = vunpack.c.l.b16 %v3880
        %v3950 = vunpack.c.h.b16 %v3880
        %v3951 = vunpack.c.l.b16 %v3881
        %v3952 = vunpack.c.l.b16 %v3882
        %v3953 = vunpack.c.h.b16 %v3882
        %v3954 = vunpack.c.l.b16 %v3883
        %v3955 = vunpack.c.l.b16 %v3884
        %v3956 = vunpack.c.h.b16 %v3884
        %v3957 = vunpack.c.l.b16 %v3885
        %v3958 = vunpack.c.l.b16 %v3886
        %v3959 = vunpack.c.h.b16 %v3886
        %v3960 = vunpack.c.l.b16 %v3887
        %v3961 = vunpack.c.l.b16 %v3888
        %v3962 = vunpack.c.h.b16 %v3888
        %v3963 = vunpack.c.l.b16 %v3889
        %v3964 = vunpack.c.l.b16 %v3890
        %v3965 = vunpack.c.h.b16 %v3890
        %v3966 = vunpack.c.l.b16 %v3891
        %v3967 = vunpack.c.l.b16 %v3892
        %v3968 = vunpack.c.h.b16 %v3892
        %v3969 = vunpack.c.l.b16 %v3893
        %v3970 = vunpack.c.l.b16 %v3894
        %v3971 = vunpack.c.h.b16 %v3894
        %v3972 = vunpack.c.l.b16 %v3895
        %v3973 = vunpack.c.l.b16 %v3896
        %v3974 = vunpack.c.h.b16 %v3896
        %v3975 = vunpack.c.l.b16 %v3897
        %v3976 = vunpack.c.l.b16 %v3898
        %v3977 = vunpack.c.h.b16 %v3898
        %v3978 = vunpack.c.l.b16 %v3899
        %v3979 = vunpack.c.l.b16 %v3900
        %v3980 = vunpack.c.h.b16 %v3900
        %v3981 = vunpack.c.l.b16 %v3901
        %v3982 = vpack.c.b16 %v3937, %v3934
        %v3983 = vpack.c.b16 %v3938, %v3935
        %v3984 = vpack.c.b16 %v3939, %v3936
        %v3985 = vpack.c.b16 %v3943, %v3940
        %v3986 = vpack.c.b16 %v3944, %v3941
        %v3987 = vpack.c.b16 %v3945, %v3942
        %v3988 = vpack.c.b16 %v3949, %v3946
        %v3989 = vpack.c.b16 %v3950, %v3947
        %v3990 = vpack.c.b16 %v3951, %v3948
        %v3991 = vpack.c.b16 %v3955, %v3952
        %v3992 = vpack.c.b16 %v3956, %v3953
        %v3993 = vpack.c.b16 %v3957, %v3954
        %v3994 = vpack.c.b16 %v3961, %v3958
        %v3995 = vpack.c.b16 %v3962, %v3959
        %v3996 = vpack.c.b16 %v3963, %v3960
        %v3997 = vpack.c.b16 %v3967, %v3964
        %v3998 = vpack.c.b16 %v3968, %v3965
        %v3999 = vpack.c.b16 %v3969, %v3966
        %v4000 = vpack.c.b16 %v3973, %v3970
        %v4001 = vpack.c.b16 %v3974, %v3971
        %v4002 = vpack.c.b16 %v3975, %v3972
        %v4003 = vpack.c.b16 %v3979, %v3976
        %v4004 = vpack.c.b16 %v3980, %v3977
        %v4005 = vpack.c.b16 %v3981, %v3978
        %4030 = vmatprep.subr.bf16.mxu0 %v4004
        %4031 = vmatpush1.bf16.msra.mxu0 %v4003
        %4032 = vmatprep.subr.bf16.mxu0 %v4001
        %4033 = vmatpush1.bf16.msra.mxu0 %v4000
        %4034 = vmatprep.subr.bf16.mxu0 %v3998
        %4035 = vmatpush1.bf16.msra.mxu0 %v3997
        %4036 = vmatprep.subr.bf16.mxu0 %v3995
        %4037 = vmatpush1.bf16.msra.mxu0 %v3994
        %4038 = vmatprep.subr.bf16.mxu0 %v3992
        %4039 = vmatpush1.bf16.msra.mxu0 %v3991
        %4040 = vmatprep.subr.bf16.mxu0 %v3989
        %4041 = vmatpush1.bf16.msra.mxu0 %v3988
        %4042 = vmatprep.subr.bf16.mxu0 %v3986
        %4043 = vmatpush1.bf16.msra.mxu0 %v3985
        %4044 = vmatprep.subr.bf16.mxu0 %v3983
        %4045 = vmatpush1.bf16.msra.mxu0 %v3982
        %4046 = vmatprep.subr.bf16.mxu0 0
        %4047 = vmatpush2.bf16.msra.mxu0 0
        %4048 = vmatprep.subr.bf16.mxu0 0
        %4049 = vmatpush2.bf16.msra.mxu0 0
        %4050 = vmatprep.subr.bf16.mxu0 0
        %4051 = vmatpush2.bf16.msra.mxu0 0
        %4052 = vmatprep.subr.bf16.mxu0 0
        %4053 = vmatpush2.bf16.msra.mxu0 0
        %4054 = vmatprep.subr.bf16.mxu0 0
        %4055 = vmatpush2.bf16.msra.mxu0 0
        %4056 = vmatprep.subr.bf16.mxu0 0
        %4057 = vmatpush2.bf16.msra.mxu0 0
        %4058 = vmatprep.subr.bf16.mxu0 0
        %4059 = vmatpush2.bf16.msra.mxu0 0
        %4060 = vmatprep.subr.bf16.mxu0 0
        %4061 = vmatpush2.bf16.msra.mxu0 0
        %4062 = vmatprep.mubr.bf16.mxu0 0
        %4063 = vmatmul.mubr.bf16.gmra.mxu0 %v3861
        %v4064 = vpop.f32.mrf.mxu0
        %v4065 = vadd.f32 0.0, %v4064
        %v4066 = vpop.f32.mrf.mxu0
        %v4067 = vadd.f32 0.0, %v4066
        %v4068 = vpop.f32.mrf.mxu0
        %v4069 = vpop.f32.mrf.mxu0
        %4070 = vdwg.mxu0
        %4071 = vmatprep.subr.bf16.mxu0 0
        %4072 = vmatpush1.bf16.msra.mxu0 %v4005
        %4073 = vmatprep.subr.bf16.mxu0 0
        %4074 = vmatpush1.bf16.msra.mxu0 %v4002
        %4075 = vmatprep.subr.bf16.mxu0 0
        %4076 = vmatpush1.bf16.msra.mxu0 %v3999
        %4077 = vmatprep.subr.bf16.mxu0 0
        %4078 = vmatpush1.bf16.msra.mxu0 %v3996
        %4079 = vmatprep.subr.bf16.mxu0 0
        %4080 = vmatpush1.bf16.msra.mxu0 %v3993
        %4081 = vmatprep.subr.bf16.mxu0 0
        %4082 = vmatpush1.bf16.msra.mxu0 %v3990
        %4083 = vmatprep.subr.bf16.mxu0 0
        %4084 = vmatpush1.bf16.msra.mxu0 %v3987
        %4085 = vmatprep.subr.bf16.mxu0 0
        %4086 = vmatpush1.bf16.msra.mxu0 %v3984
        %4087 = vmatprep.subr.bf16.mxu0 0
        %4088 = vmatpush2.bf16.msra.mxu0 0
        %4089 = vmatprep.subr.bf16.mxu0 0
        %4090 = vmatpush2.bf16.msra.mxu0 0
        %4091 = vmatprep.subr.bf16.mxu0 0
        %4092 = vmatpush2.bf16.msra.mxu0 0
        %4093 = vmatprep.subr.bf16.mxu0 0
        %4094 = vmatpush2.bf16.msra.mxu0 0
        %4095 = vmatprep.subr.bf16.mxu0 0
        %4096 = vmatpush2.bf16.msra.mxu0 0
        %4097 = vmatprep.subr.bf16.mxu0 0
        %4098 = vmatpush2.bf16.msra.mxu0 0
        %4099 = vmatprep.subr.bf16.mxu0 0
        %4100 = vmatpush2.bf16.msra.mxu0 0
        %4101 = vmatprep.subr.bf16.mxu0 0
        %4102 = vmatpush2.bf16.msra.mxu0 0
        %4103 = vmatprep.mubr.bf16.mxu0 0
        %4104 = vmatmul.mubr.bf16.gmra.mxu0 %v3861
        %v4105 = vpop.f32.mrf.mxu0
        %v4106 = vadd.f32 0.0, %v4105
        %v4107 = vpop.f32.mrf.mxu0
        %v4108 = vpop.f32.mrf.mxu0
        %v4109 = vpop.f32.mrf.mxu0
        %4110 = vdwg.mxu0
        %v4111 = vadd.f32 %v3867, %v4065
        %v4112 = vxor.u32 %v4111, 2147483648
        %v4113 = vmul.f32 %v4112, 1.442695
        %v4114 = vpow.pop %v4113
        %v4115 = vadd.f32 %v4114, 1.0
        %v4116 = vrcp.pop %v4115
        %v4117 = vmul.f32 1.0, %v4116
        %v4118 = vadd.f32 %v3868, %v4067
        %v4119 = vxor.u32 %v4118, 2147483648
        %v4120 = vmul.f32 %v4119, 1.442695
        %v4121 = vpow.pop %v4120
        %v4122 = vadd.f32 %v4121, 1.0
        %v4123 = vrcp.pop %v4122
        %v4124 = vmul.f32 1.0, %v4123
        %v4125 = vld [vmem:[%s3] sm:$0x1]
        %v4127 = vlaneseq
        %v4128 = vshrl.u32 %v4127, 7
        %v4129 = vsub.s32 0, %v4128
        %v4130 = vrot.slane %v4125, %v4129
        %v4132 = vadd.f32 %v4106, %v4130
        %v4133 = vmul.f32 %v4117, %v4132
        %v4134 = vadd.f32 %v3869, %v4133
        %v4135 = vtanh.pop %v4134
        %v4136 = vsub.f32 1.0, %v4124
        %v4137 = vmul.f32 %v4136, %v4135
        %v4138 = vmul.f32 %v4124, %v3860
        %v4139 = vadd.f32 %v4137, %v4138
        %v4140 = vpack.c.bf16 %v4139, %v4139
        %s4141 = scalar_lea.vmem %s228, 52
        %4142 = vst [vmem:[%s4141] sm:$0xf] %v4140
        %s4143 = scalar_lea.vmem %s222, 168
        %v4144 = vld [vmem:[%s4143] sm:$0xff]
        %v4145 = vld [vmem:[%s4143 + $0x8] sm:$0xf]
        %v4146 = vunpack.c.l.bf16 %v4144
        %v4147 = vunpack.c.h.bf16 %v4144
        %v4148 = vunpack.c.l.bf16 %v4145
        %v4149 = vld [vmem:[%s2] sm:$0xff]
        %v4150 = vld [vmem:[%s2 + $0x8] sm:$0xf]
        %v4151 = vld [vmem:[%s2 + $0xc] sm:$0xff]
        %v4152 = vld [vmem:[%s2 + $0x14] sm:$0xf]
        %v4153 = vld [vmem:[%s2 + $0x18] sm:$0xff]
        %v4154 = vld [vmem:[%s2 + $0x20] sm:$0xf]
        %v4155 = vld [vmem:[%s2 + $0x24] sm:$0xff]
        %v4156 = vld [vmem:[%s2 + $0x2c] sm:$0xf]
        %v4157 = vld [vmem:[%s2 + $0x30] sm:$0xff]
        %v4158 = vld [vmem:[%s2 + $0x38] sm:$0xf]
        %v4159 = vld [vmem:[%s2 + $0x3c] sm:$0xff]
        %v4160 = vld [vmem:[%s2 + $0x44] sm:$0xf]
        %v4161 = vld [vmem:[%s2 + $0x48] sm:$0xff]
        %v4162 = vld [vmem:[%s2 + $0x50] sm:$0xf]
        %v4163 = vld [vmem:[%s2 + $0x54] sm:$0xff]
        %v4164 = vld [vmem:[%s2 + $0x5c] sm:$0xf]
        %v4165 = vld [vmem:[%s2 + $0x60] sm:$0xff]
        %v4166 = vld [vmem:[%s2 + $0x68] sm:$0xf]
        %v4167 = vld [vmem:[%s2 + $0x6c] sm:$0xff]
        %v4168 = vld [vmem:[%s2 + $0x74] sm:$0xf]
        %v4169 = vld [vmem:[%s2 + $0x78] sm:$0xff]
        %v4170 = vld [vmem:[%s2 + $0x80] sm:$0xf]
        %v4171 = vld [vmem:[%s2 + $0x84] sm:$0xff]
        %v4172 = vld [vmem:[%s2 + $0x8c] sm:$0xf]
        %v4173 = vld [vmem:[%s2 + $0x90] sm:$0xff]
        %v4174 = vld [vmem:[%s2 + $0x98] sm:$0xf]
        %v4175 = vld [vmem:[%s2 + $0x9c] sm:$0xff]
        %v4176 = vld [vmem:[%s2 + $0xa4] sm:$0xf]
        %v4177 = vld [vmem:[%s2 + $0xa8] sm:$0xff]
        %v4178 = vld [vmem:[%s2 + $0xb0] sm:$0xf]
        %v4179 = vld [vmem:[%s2 + $0xb4] sm:$0xff]
        %v4180 = vld [vmem:[%s2 + $0xbc] sm:$0xf]
        %v4213 = vunpack.c.l.b16 %v4149
        %v4214 = vunpack.c.h.b16 %v4149
        %v4215 = vunpack.c.l.b16 %v4150
        %v4216 = vunpack.c.l.b16 %v4151
        %v4217 = vunpack.c.h.b16 %v4151
        %v4218 = vunpack.c.l.b16 %v4152
        %v4219 = vunpack.c.l.b16 %v4153
        %v4220 = vunpack.c.h.b16 %v4153
        %v4221 = vunpack.c.l.b16 %v4154
        %v4222 = vunpack.c.l.b16 %v4155
        %v4223 = vunpack.c.h.b16 %v4155
        %v4224 = vunpack.c.l.b16 %v4156
        %v4225 = vunpack.c.l.b16 %v4157
        %v4226 = vunpack.c.h.b16 %v4157
        %v4227 = vunpack.c.l.b16 %v4158
        %v4228 = vunpack.c.l.b16 %v4159
        %v4229 = vunpack.c.h.b16 %v4159
        %v4230 = vunpack.c.l.b16 %v4160
        %v4231 = vunpack.c.l.b16 %v4161
        %v4232 = vunpack.c.h.b16 %v4161
        %v4233 = vunpack.c.l.b16 %v4162
        %v4234 = vunpack.c.l.b16 %v4163
        %v4235 = vunpack.c.h.b16 %v4163
        %v4236 = vunpack.c.l.b16 %v4164
        %v4237 = vunpack.c.l.b16 %v4165
        %v4238 = vunpack.c.h.b16 %v4165
        %v4239 = vunpack.c.l.b16 %v4166
        %v4240 = vunpack.c.l.b16 %v4167
        %v4241 = vunpack.c.h.b16 %v4167
        %v4242 = vunpack.c.l.b16 %v4168
        %v4243 = vunpack.c.l.b16 %v4169
        %v4244 = vunpack.c.h.b16 %v4169
        %v4245 = vunpack.c.l.b16 %v4170
        %v4246 = vunpack.c.l.b16 %v4171
        %v4247 = vunpack.c.h.b16 %v4171
        %v4248 = vunpack.c.l.b16 %v4172
        %v4249 = vunpack.c.l.b16 %v4173
        %v4250 = vunpack.c.h.b16 %v4173
        %v4251 = vunpack.c.l.b16 %v4174
        %v4252 = vunpack.c.l.b16 %v4175
        %v4253 = vunpack.c.h.b16 %v4175
        %v4254 = vunpack.c.l.b16 %v4176
        %v4255 = vunpack.c.l.b16 %v4177
        %v4256 = vunpack.c.h.b16 %v4177
        %v4257 = vunpack.c.l.b16 %v4178
        %v4258 = vunpack.c.l.b16 %v4179
        %v4259 = vunpack.c.h.b16 %v4179
        %v4260 = vunpack.c.l.b16 %v4180
        %v4261 = vpack.c.b16 %v4216, %v4213
        %v4262 = vpack.c.b16 %v4217, %v4214
        %v4263 = vpack.c.b16 %v4218, %v4215
        %v4264 = vpack.c.b16 %v4222, %v4219
        %v4265 = vpack.c.b16 %v4223, %v4220
        %v4266 = vpack.c.b16 %v4224, %v4221
        %v4267 = vpack.c.b16 %v4228, %v4225
        %v4268 = vpack.c.b16 %v4229, %v4226
        %v4269 = vpack.c.b16 %v4230, %v4227
        %v4270 = vpack.c.b16 %v4234, %v4231
        %v4271 = vpack.c.b16 %v4235, %v4232
        %v4272 = vpack.c.b16 %v4236, %v4233
        %v4273 = vpack.c.b16 %v4240, %v4237
        %v4274 = vpack.c.b16 %v4241, %v4238
        %v4275 = vpack.c.b16 %v4242, %v4239
        %v4276 = vpack.c.b16 %v4246, %v4243
        %v4277 = vpack.c.b16 %v4247, %v4244
        %v4278 = vpack.c.b16 %v4248, %v4245
        %v4279 = vpack.c.b16 %v4252, %v4249
        %v4280 = vpack.c.b16 %v4253, %v4250
        %v4281 = vpack.c.b16 %v4254, %v4251
        %v4282 = vpack.c.b16 %v4258, %v4255
        %v4283 = vpack.c.b16 %v4259, %v4256
        %v4284 = vpack.c.b16 %v4260, %v4257
        %4309 = vmatprep.subr.bf16.mxu0 %v4283
        %4310 = vmatpush1.bf16.msra.mxu0 %v4282
        %4311 = vmatprep.subr.bf16.mxu0 %v4280
        %4312 = vmatpush1.bf16.msra.mxu0 %v4279
        %4313 = vmatprep.subr.bf16.mxu0 %v4277
        %4314 = vmatpush1.bf16.msra.mxu0 %v4276
        %4315 = vmatprep.subr.bf16.mxu0 %v4274
        %4316 = vmatpush1.bf16.msra.mxu0 %v4273
        %4317 = vmatprep.subr.bf16.mxu0 %v4271
        %4318 = vmatpush1.bf16.msra.mxu0 %v4270
        %4319 = vmatprep.subr.bf16.mxu0 %v4268
        %4320 = vmatpush1.bf16.msra.mxu0 %v4267
        %4321 = vmatprep.subr.bf16.mxu0 %v4265
        %4322 = vmatpush1.bf16.msra.mxu0 %v4264
        %4323 = vmatprep.subr.bf16.mxu0 %v4262
        %4324 = vmatpush1.bf16.msra.mxu0 %v4261
        %4325 = vmatprep.subr.bf16.mxu0 0
        %4326 = vmatpush2.bf16.msra.mxu0 0
        %4327 = vmatprep.subr.bf16.mxu0 0
        %4328 = vmatpush2.bf16.msra.mxu0 0
        %4329 = vmatprep.subr.bf16.mxu0 0
        %4330 = vmatpush2.bf16.msra.mxu0 0
        %4331 = vmatprep.subr.bf16.mxu0 0
        %4332 = vmatpush2.bf16.msra.mxu0 0
        %4333 = vmatprep.subr.bf16.mxu0 0
        %4334 = vmatpush2.bf16.msra.mxu0 0
        %4335 = vmatprep.subr.bf16.mxu0 0
        %4336 = vmatpush2.bf16.msra.mxu0 0
        %4337 = vmatprep.subr.bf16.mxu0 0
        %4338 = vmatpush2.bf16.msra.mxu0 0
        %4339 = vmatprep.subr.bf16.mxu0 0
        %4340 = vmatpush2.bf16.msra.mxu0 0
        %4341 = vmatprep.mubr.bf16.mxu0 0
        %4342 = vmatmul.mubr.bf16.gmra.mxu0 %v4140
        %v4343 = vpop.f32.mrf.mxu0
        %v4344 = vadd.f32 0.0, %v4343
        %v4345 = vpop.f32.mrf.mxu0
        %v4346 = vadd.f32 0.0, %v4345
        %v4347 = vpop.f32.mrf.mxu0
        %v4348 = vpop.f32.mrf.mxu0
        %4349 = vdwg.mxu0
        %4350 = vmatprep.subr.bf16.mxu0 0
        %4351 = vmatpush1.bf16.msra.mxu0 %v4284
        %4352 = vmatprep.subr.bf16.mxu0 0
        %4353 = vmatpush1.bf16.msra.mxu0 %v4281
        %4354 = vmatprep.subr.bf16.mxu0 0
        %4355 = vmatpush1.bf16.msra.mxu0 %v4278
        %4356 = vmatprep.subr.bf16.mxu0 0
        %4357 = vmatpush1.bf16.msra.mxu0 %v4275
        %4358 = vmatprep.subr.bf16.mxu0 0
        %4359 = vmatpush1.bf16.msra.mxu0 %v4272
        %4360 = vmatprep.subr.bf16.mxu0 0
        %4361 = vmatpush1.bf16.msra.mxu0 %v4269
        %4362 = vmatprep.subr.bf16.mxu0 0
        %4363 = vmatpush1.bf16.msra.mxu0 %v4266
        %4364 = vmatprep.subr.bf16.mxu0 0
        %4365 = vmatpush1.bf16.msra.mxu0 %v4263
        %4366 = vmatprep.subr.bf16.mxu0 0
        %4367 = vmatpush2.bf16.msra.mxu0 0
        %4368 = vmatprep.subr.bf16.mxu0 0
        %4369 = vmatpush2.bf16.msra.mxu0 0
        %4370 = vmatprep.subr.bf16.mxu0 0
        %4371 = vmatpush2.bf16.msra.mxu0 0
        %4372 = vmatprep.subr.bf16.mxu0 0
        %4373 = vmatpush2.bf16.msra.mxu0 0
        %4374 = vmatprep.subr.bf16.mxu0 0
        %4375 = vmatpush2.bf16.msra.mxu0 0
        %4376 = vmatprep.subr.bf16.mxu0 0
        %4377 = vmatpush2.bf16.msra.mxu0 0
        %4378 = vmatprep.subr.bf16.mxu0 0
        %4379 = vmatpush2.bf16.msra.mxu0 0
        %4380 = vmatprep.subr.bf16.mxu0 0
        %4381 = vmatpush2.bf16.msra.mxu0 0
        %4382 = vmatprep.mubr.bf16.mxu0 0
        %4383 = vmatmul.mubr.bf16.gmra.mxu0 %v4140
        %v4384 = vpop.f32.mrf.mxu0
        %v4385 = vadd.f32 0.0, %v4384
        %v4386 = vpop.f32.mrf.mxu0
        %v4387 = vpop.f32.mrf.mxu0
        %v4388 = vpop.f32.mrf.mxu0
        %4389 = vdwg.mxu0
        %v4390 = vadd.f32 %v4146, %v4344
        %v4391 = vxor.u32 %v4390, 2147483648
        %v4392 = vmul.f32 %v4391, 1.442695
        %v4393 = vpow.pop %v4392
        %v4394 = vadd.f32 %v4393, 1.0
        %v4395 = vrcp.pop %v4394
        %v4396 = vmul.f32 1.0, %v4395
        %v4397 = vadd.f32 %v4147, %v4346
        %v4398 = vxor.u32 %v4397, 2147483648
        %v4399 = vmul.f32 %v4398, 1.442695
        %v4400 = vpow.pop %v4399
        %v4401 = vadd.f32 %v4400, 1.0
        %v4402 = vrcp.pop %v4401
        %v4403 = vmul.f32 1.0, %v4402
        %v4404 = vld [vmem:[%s3] sm:$0x1]
        %v4406 = vlaneseq
        %v4407 = vshrl.u32 %v4406, 7
        %v4408 = vsub.s32 0, %v4407
        %v4409 = vrot.slane %v4404, %v4408
        %v4411 = vadd.f32 %v4385, %v4409
        %v4412 = vmul.f32 %v4396, %v4411
        %v4413 = vadd.f32 %v4148, %v4412
        %v4414 = vtanh.pop %v4413
        %v4415 = vsub.f32 1.0, %v4403
        %v4416 = vmul.f32 %v4415, %v4414
        %v4417 = vmul.f32 %v4403, %v4139
        %v4418 = vadd.f32 %v4416, %v4417
        %v4419 = vpack.c.bf16 %v4418, %v4418
        %s4420 = scalar_lea.vmem %s228, 56
        %4421 = vst [vmem:[%s4420] sm:$0xf] %v4419
        %s4422 = scalar_lea.vmem %s222, 180
        %v4423 = vld [vmem:[%s4422] sm:$0xff]
        %v4424 = vld [vmem:[%s4422 + $0x8] sm:$0xf]
        %v4425 = vunpack.c.l.bf16 %v4423
        %v4426 = vunpack.c.h.bf16 %v4423
        %v4427 = vunpack.c.l.bf16 %v4424
        %v4428 = vld [vmem:[%s2] sm:$0xff]
        %v4429 = vld [vmem:[%s2 + $0x8] sm:$0xf]
        %v4430 = vld [vmem:[%s2 + $0xc] sm:$0xff]
        %v4431 = vld [vmem:[%s2 + $0x14] sm:$0xf]
        %v4432 = vld [vmem:[%s2 + $0x18] sm:$0xff]
        %v4433 = vld [vmem:[%s2 + $0x20] sm:$0xf]
        %v4434 = vld [vmem:[%s2 + $0x24] sm:$0xff]
        %v4435 = vld [vmem:[%s2 + $0x2c] sm:$0xf]
        %v4436 = vld [vmem:[%s2 + $0x30] sm:$0xff]
        %v4437 = vld [vmem:[%s2 + $0x38] sm:$0xf]
        %v4438 = vld [vmem:[%s2 + $0x3c] sm:$0xff]
        %v4439 = vld [vmem:[%s2 + $0x44] sm:$0xf]
        %v4440 = vld [vmem:[%s2 + $0x48] sm:$0xff]
        %v4441 = vld [vmem:[%s2 + $0x50] sm:$0xf]
        %v4442 = vld [vmem:[%s2 + $0x54] sm:$0xff]
        %v4443 = vld [vmem:[%s2 + $0x5c] sm:$0xf]
        %v4444 = vld [vmem:[%s2 + $0x60] sm:$0xff]
        %v4445 = vld [vmem:[%s2 + $0x68] sm:$0xf]
        %v4446 = vld [vmem:[%s2 + $0x6c] sm:$0xff]
        %v4447 = vld [vmem:[%s2 + $0x74] sm:$0xf]
        %v4448 = vld [vmem:[%s2 + $0x78] sm:$0xff]
        %v4449 = vld [vmem:[%s2 + $0x80] sm:$0xf]
        %v4450 = vld [vmem:[%s2 + $0x84] sm:$0xff]
        %v4451 = vld [vmem:[%s2 + $0x8c] sm:$0xf]
        %v4452 = vld [vmem:[%s2 + $0x90] sm:$0xff]
        %v4453 = vld [vmem:[%s2 + $0x98] sm:$0xf]
        %v4454 = vld [vmem:[%s2 + $0x9c] sm:$0xff]
        %v4455 = vld [vmem:[%s2 + $0xa4] sm:$0xf]
        %v4456 = vld [vmem:[%s2 + $0xa8] sm:$0xff]
        %v4457 = vld [vmem:[%s2 + $0xb0] sm:$0xf]
        %v4458 = vld [vmem:[%s2 + $0xb4] sm:$0xff]
        %v4459 = vld [vmem:[%s2 + $0xbc] sm:$0xf]
        %v4492 = vunpack.c.l.b16 %v4428
        %v4493 = vunpack.c.h.b16 %v4428
        %v4494 = vunpack.c.l.b16 %v4429
        %v4495 = vunpack.c.l.b16 %v4430
        %v4496 = vunpack.c.h.b16 %v4430
        %v4497 = vunpack.c.l.b16 %v4431
        %v4498 = vunpack.c.l.b16 %v4432
        %v4499 = vunpack.c.h.b16 %v4432
        %v4500 = vunpack.c.l.b16 %v4433
        %v4501 = vunpack.c.l.b16 %v4434
        %v4502 = vunpack.c.h.b16 %v4434
        %v4503 = vunpack.c.l.b16 %v4435
        %v4504 = vunpack.c.l.b16 %v4436
        %v4505 = vunpack.c.h.b16 %v4436
        %v4506 = vunpack.c.l.b16 %v4437
        %v4507 = vunpack.c.l.b16 %v4438
        %v4508 = vunpack.c.h.b16 %v4438
        %v4509 = vunpack.c.l.b16 %v4439
        %v4510 = vunpack.c.l.b16 %v4440
        %v4511 = vunpack.c.h.b16 %v4440
        %v4512 = vunpack.c.l.b16 %v4441
        %v4513 = vunpack.c.l.b16 %v4442
        %v4514 = vunpack.c.h.b16 %v4442
        %v4515 = vunpack.c.l.b16 %v4443
        %v4516 = vunpack.c.l.b16 %v4444
        %v4517 = vunpack.c.h.b16 %v4444
        %v4518 = vunpack.c.l.b16 %v4445
        %v4519 = vunpack.c.l.b16 %v4446
        %v4520 = vunpack.c.h.b16 %v4446
        %v4521 = vunpack.c.l.b16 %v4447
        %v4522 = vunpack.c.l.b16 %v4448
        %v4523 = vunpack.c.h.b16 %v4448
        %v4524 = vunpack.c.l.b16 %v4449
        %v4525 = vunpack.c.l.b16 %v4450
        %v4526 = vunpack.c.h.b16 %v4450
        %v4527 = vunpack.c.l.b16 %v4451
        %v4528 = vunpack.c.l.b16 %v4452
        %v4529 = vunpack.c.h.b16 %v4452
        %v4530 = vunpack.c.l.b16 %v4453
        %v4531 = vunpack.c.l.b16 %v4454
        %v4532 = vunpack.c.h.b16 %v4454
        %v4533 = vunpack.c.l.b16 %v4455
        %v4534 = vunpack.c.l.b16 %v4456
        %v4535 = vunpack.c.h.b16 %v4456
        %v4536 = vunpack.c.l.b16 %v4457
        %v4537 = vunpack.c.l.b16 %v4458
        %v4538 = vunpack.c.h.b16 %v4458
        %v4539 = vunpack.c.l.b16 %v4459
        %v4540 = vpack.c.b16 %v4495, %v4492
        %v4541 = vpack.c.b16 %v4496, %v4493
        %v4542 = vpack.c.b16 %v4497, %v4494
        %v4543 = vpack.c.b16 %v4501, %v4498
        %v4544 = vpack.c.b16 %v4502, %v4499
        %v4545 = vpack.c.b16 %v4503, %v4500
        %v4546 = vpack.c.b16 %v4507, %v4504
        %v4547 = vpack.c.b16 %v4508, %v4505
        %v4548 = vpack.c.b16 %v4509, %v4506
        %v4549 = vpack.c.b16 %v4513, %v4510
        %v4550 = vpack.c.b16 %v4514, %v4511
        %v4551 = vpack.c.b16 %v4515, %v4512
        %v4552 = vpack.c.b16 %v4519, %v4516
        %v4553 = vpack.c.b16 %v4520, %v4517
        %v4554 = vpack.c.b16 %v4521, %v4518
        %v4555 = vpack.c.b16 %v4525, %v4522
        %v4556 = vpack.c.b16 %v4526, %v4523
        %v4557 = vpack.c.b16 %v4527, %v4524
        %v4558 = vpack.c.b16 %v4531, %v4528
        %v4559 = vpack.c.b16 %v4532, %v4529
        %v4560 = vpack.c.b16 %v4533, %v4530
        %v4561 = vpack.c.b16 %v4537, %v4534
        %v4562 = vpack.c.b16 %v4538, %v4535
        %v4563 = vpack.c.b16 %v4539, %v4536
        %4588 = vmatprep.subr.bf16.mxu0 %v4562
        %4589 = vmatpush1.bf16.msra.mxu0 %v4561
        %4590 = vmatprep.subr.bf16.mxu0 %v4559
        %4591 = vmatpush1.bf16.msra.mxu0 %v4558
        %4592 = vmatprep.subr.bf16.mxu0 %v4556
        %4593 = vmatpush1.bf16.msra.mxu0 %v4555
        %4594 = vmatprep.subr.bf16.mxu0 %v4553
        %4595 = vmatpush1.bf16.msra.mxu0 %v4552
        %4596 = vmatprep.subr.bf16.mxu0 %v4550
        %4597 = vmatpush1.bf16.msra.mxu0 %v4549
        %4598 = vmatprep.subr.bf16.mxu0 %v4547
        %4599 = vmatpush1.bf16.msra.mxu0 %v4546
        %4600 = vmatprep.subr.bf16.mxu0 %v4544
        %4601 = vmatpush1.bf16.msra.mxu0 %v4543
        %4602 = vmatprep.subr.bf16.mxu0 %v4541
        %4603 = vmatpush1.bf16.msra.mxu0 %v4540
        %4604 = vmatprep.subr.bf16.mxu0 0
        %4605 = vmatpush2.bf16.msra.mxu0 0
        %4606 = vmatprep.subr.bf16.mxu0 0
        %4607 = vmatpush2.bf16.msra.mxu0 0
        %4608 = vmatprep.subr.bf16.mxu0 0
        %4609 = vmatpush2.bf16.msra.mxu0 0
        %4610 = vmatprep.subr.bf16.mxu0 0
        %4611 = vmatpush2.bf16.msra.mxu0 0
        %4612 = vmatprep.subr.bf16.mxu0 0
        %4613 = vmatpush2.bf16.msra.mxu0 0
        %4614 = vmatprep.subr.bf16.mxu0 0
        %4615 = vmatpush2.bf16.msra.mxu0 0
        %4616 = vmatprep.subr.bf16.mxu0 0
        %4617 = vmatpush2.bf16.msra.mxu0 0
        %4618 = vmatprep.subr.bf16.mxu0 0
        %4619 = vmatpush2.bf16.msra.mxu0 0
        %4620 = vmatprep.mubr.bf16.mxu0 0
        %4621 = vmatmul.mubr.bf16.gmra.mxu0 %v4419
        %v4622 = vpop.f32.mrf.mxu0
        %v4623 = vadd.f32 0.0, %v4622
        %v4624 = vpop.f32.mrf.mxu0
        %v4625 = vadd.f32 0.0, %v4624
        %v4626 = vpop.f32.mrf.mxu0
        %v4627 = vpop.f32.mrf.mxu0
        %4628 = vdwg.mxu0
        %4629 = vmatprep.subr.bf16.mxu0 0
        %4630 = vmatpush1.bf16.msra.mxu0 %v4563
        %4631 = vmatprep.subr.bf16.mxu0 0
        %4632 = vmatpush1.bf16.msra.mxu0 %v4560
        %4633 = vmatprep.subr.bf16.mxu0 0
        %4634 = vmatpush1.bf16.msra.mxu0 %v4557
        %4635 = vmatprep.subr.bf16.mxu0 0
        %4636 = vmatpush1.bf16.msra.mxu0 %v4554
        %4637 = vmatprep.subr.bf16.mxu0 0
        %4638 = vmatpush1.bf16.msra.mxu0 %v4551
        %4639 = vmatprep.subr.bf16.mxu0 0
        %4640 = vmatpush1.bf16.msra.mxu0 %v4548
        %4641 = vmatprep.subr.bf16.mxu0 0
        %4642 = vmatpush1.bf16.msra.mxu0 %v4545
        %4643 = vmatprep.subr.bf16.mxu0 0
        %4644 = vmatpush1.bf16.msra.mxu0 %v4542
        %4645 = vmatprep.subr.bf16.mxu0 0
        %4646 = vmatpush2.bf16.msra.mxu0 0
        %4647 = vmatprep.subr.bf16.mxu0 0
        %4648 = vmatpush2.bf16.msra.mxu0 0
        %4649 = vmatprep.subr.bf16.mxu0 0
        %4650 = vmatpush2.bf16.msra.mxu0 0
        %4651 = vmatprep.subr.bf16.mxu0 0
        %4652 = vmatpush2.bf16.msra.mxu0 0
        %4653 = vmatprep.subr.bf16.mxu0 0
        %4654 = vmatpush2.bf16.msra.mxu0 0
        %4655 = vmatprep.subr.bf16.mxu0 0
        %4656 = vmatpush2.bf16.msra.mxu0 0
        %4657 = vmatprep.subr.bf16.mxu0 0
        %4658 = vmatpush2.bf16.msra.mxu0 0
        %4659 = vmatprep.subr.bf16.mxu0 0
        %4660 = vmatpush2.bf16.msra.mxu0 0
        %4661 = vmatprep.mubr.bf16.mxu0 0
        %4662 = vmatmul.mubr.bf16.gmra.mxu0 %v4419
        %v4663 = vpop.f32.mrf.mxu0
        %v4664 = vadd.f32 0.0, %v4663
        %v4665 = vpop.f32.mrf.mxu0
        %v4666 = vpop.f32.mrf.mxu0
        %v4667 = vpop.f32.mrf.mxu0
        %4668 = vdwg.mxu0
        %v4669 = vadd.f32 %v4425, %v4623
        %v4670 = vxor.u32 %v4669, 2147483648
        %v4671 = vmul.f32 %v4670, 1.442695
        %v4672 = vpow.pop %v4671
        %v4673 = vadd.f32 %v4672, 1.0
        %v4674 = vrcp.pop %v4673
        %v4675 = vmul.f32 1.0, %v4674
        %v4676 = vadd.f32 %v4426, %v4625
        %v4677 = vxor.u32 %v4676, 2147483648
        %v4678 = vmul.f32 %v4677, 1.442695
        %v4679 = vpow.pop %v4678
        %v4680 = vadd.f32 %v4679, 1.0
        %v4681 = vrcp.pop %v4680
        %v4682 = vmul.f32 1.0, %v4681
        %v4683 = vld [vmem:[%s3] sm:$0x1]
        %v4685 = vlaneseq
        %v4686 = vshrl.u32 %v4685, 7
        %v4687 = vsub.s32 0, %v4686
        %v4688 = vrot.slane %v4683, %v4687
        %v4690 = vadd.f32 %v4664, %v4688
        %v4691 = vmul.f32 %v4675, %v4690
        %v4692 = vadd.f32 %v4427, %v4691
        %v4693 = vtanh.pop %v4692
        %v4694 = vsub.f32 1.0, %v4682
        %v4695 = vmul.f32 %v4694, %v4693
        %v4696 = vmul.f32 %v4682, %v4418
        %v4697 = vadd.f32 %v4695, %v4696
        %v4698 = vpack.c.bf16 %v4697, %v4697
        %s4699 = scalar_lea.vmem %s228, 60
        %4700 = vst [vmem:[%s4699] sm:$0xf] %v4698
        %4701 = vst [vmem:[#allocation2] sm:$0xff] %v4697
        %s4702 = smul.u32 16, %s18
        %p4703 = scmp.lt.s32.totalorder %s4702, 31
        %s4704 = scalar_select %p4703, %s4702, 31
        %s4705 = smul.addr %s4704, 4
        %s4706 = scalar_lea.vmem %s4, %s4705
        // Predicated region
        $region41: #{_lambda_.4} parent=35 // pred_check
          %p4707 = pneg %p125
        $region42: #{_lambda_.4} parent=35 // pred_check_branch
          %4709 = sbr.rel (%p4707) target = $region44
        $region43: #{_lambda_.4} parent=35 // pred_region
          %s4710 = smul.u32 16, %s18
        $region44: #{_lambda_.4} parent=35 // pred_fallthru
          _
        // Predicated region
        $region45: #{_lambda_.4} parent=35 // pred_check
          %p4711 = pneg %p146
        $region46: #{_lambda_.4} parent=35 // pred_check_branch
          %4713 = sbr.rel (%p4711) target = $region48
        $region47: #{_lambda_.4} parent=35 // pred_region
          %s4715 = ssub.s32 128, 128
          %4716 = vsyncadd [#allocation3], %s4715
          %s4718 = sshll.u32 [#allocation2], 4
          %s4719 = int_to_ptr.vmem [resolvable:$true] %s4718
          %4721 = dma.vmem_to_hbm [thread:$0]  %s4719, 128, %s5, [#allocation3]
        $region48: #{_lambda_.4} parent=35 // pred_fallthru
          _
        // Predicated region
        $region49: #{_lambda_.4} parent=35 // pred_check
          %p4722 = pneg %p146
        $region50: #{_lambda_.4} parent=35 // pred_check_branch
          %4724 = sbr.rel (%p4722) target = $region52
        $region51: #{_lambda_.4} parent=35 // pred_region
          %4725 = dma.done [#allocation3], 128
        $region52: #{_lambda_.4} parent=35 // pred_fallthru
          _
      $region36: #{_lambda_.4} parent=5 // pred_fallthru
        _
      %p4726 = scmp.le.s32.totalorder 2, %s13
      // Predicated region
      $region53: #{_lambda_.4} parent=5 // pred_check
        %p4727 = pneg %p4726
      $region54: #{_lambda_.4} parent=5 // pred_check_branch
        %4729 = sbr.rel (%p4727) target = $region56
      $region55: #{_lambda_.4} parent=5 // pred_region
        %s4730 = ssub.s32 %s13, 2
        // Predicated region
        $region57: #{_lambda_.4} parent=55 // pred_check
          %p4731 = pneg %p131
        $region58: #{_lambda_.4} parent=55 // pred_check_branch
          %4733 = sbr.rel (%p4731) target = $region60
        $region59: #{_lambda_.4} parent=55 // pred_region
          %s4734 = smul.u32 16, %s19
          %p4735 = scmp.lt.s32.totalorder %s4734, 31
          %s4736 = scalar_select %p4735, %s4734, 31
          %s4737 = smul.addr %s4736, 4
          %s4738 = scalar_lea.vmem %s4, %s4737
        $region60: #{_lambda_.4} parent=55 // pred_fallthru
          _
      $region56: #{_lambda_.4} parent=5 // pred_fallthru
        _
    $region6: #{_lambda_.4} parent=1 // loop_footer
      %s17 = sadd.s32 1, %s13
    $region7: #{_lambda_.4} parent=1 // loop_footer_branch
      %12 = sbr.rel target = $region3
    $region8: #{_lambda_.4} parent=1 // loop_exit
      _
    %4739 = vsyncpa [#allocation3], 1
    %s4740 = scalar_lea.sflag [#allocation3], 1
    %4741 = vsyncpa %s4740, 1

</llo_original>
